<compile_context>
chip_gen: v6e
topology: v6e:2x2x1
jax: 0.10.0
libtpu: 0.0.40
codegen_flags: <defaults>
</compile_context>

<pallas_src>
import functools
import math

import jax
import jax.numpy as jnp
import numpy as np
from jax.experimental import pallas as pl
from jax.experimental.pallas import tpu as pltpu

BN_EPS = 1e-5


# ----------------------------------------------------------------------------
# Helpers
# ----------------------------------------------------------------------------
def _pick_time_chunk(T, V, max_lanes=128):
    """Largest divisor Tc of T with Tc*V <= max_lanes (keeps the block-diagonal
    adjacency operator and the per-chunk working set small)."""
    best = 1
    for tc in range(1, T + 1):
        if T % tc == 0 and tc * V <= max_lanes:
            best = tc
    return best


# ----------------------------------------------------------------------------
# Fused Pallas kernel: both multiscale units, one batch element per grid step
# ----------------------------------------------------------------------------
def _fused_multiscale_kernel(
        x_ref, kron_ref,
        wg1, gsc1, gsh1, wt1, tsc1, tsh1, wd1, dsc1, dsh1,
        wg2, gsc2, gsh2, wt2, tsc2, tsh2, wd2, dsc2, dsh2,
        o_ref, g1_ref, g2_ref,
        *, num_A, T, V, Tc, K1, K2, O1, O2, has_down1, has_down2):
    """All tensors use the merged (t, v) lane layout:

    x_ref:    (1, C, T*V)              input for this batch element
    kron_ref: (num_A, Tc*V, Tc*V)      I_Tc (x) A_i  (block-diagonal adjacency)
    wg*:      (num_A, O, C)            GCN 1x1 conv weights
    wt*:      (K, O, O)                temporal conv weights (tap-major)
    wd*:      (O, C)                   1x1 downsample weights (zeros if unused)
    gsc/gsh/tsc/tsh/dsc/dsh: (O, 1)    folded BN scale / (bias+BN) shift
    o_ref:    (1, O1+O2, T*V)          channel-concatenated output
    g1/g2:    (O, (T+2*pad)*V) VMEM    time-padded GCN intermediates
    """
    f32 = jnp.float32
    TcV = Tc * V
    nchunks = T // Tc
    pad1 = (K1 - 1) // 2
    pad2 = (K2 - 1) // 2

    # Zero the time-padded GCN scratch (only the halo regions strictly need it).
    g1_ref[...] = jnp.zeros_like(g1_ref)
    g2_ref[...] = jnp.zeros_like(g2_ref)

    units_gcn = ((wg1, gsc1, gsh1, g1_ref, pad1, O1),
                 (wg2, gsc2, gsh2, g2_ref, pad2, O2))

    # ---------------- Unit_GCN (x @ A_i shared between both units) ----------
    for c in range(nchunks):
        lo = c * TcV
        xc = x_ref[0, :, lo:lo + TcV].astype(f32)                # (C, Tc*V)
        # xa_i[c, t*V+v] = sum_u x[c, t*V+u] * A_i[u, v]  (block-diag matmul)
        xa = [jnp.dot(xc, kron_ref[i], preferred_element_type=f32)
              for i in range(num_A)]                             # num_A x (C, Tc*V)
        for wg, gsc, gsh, g_ref, pad, O in units_gcn:
            # Accumulate the num_A (O, C) x (C, Tc*V) matmuls.  (At real channel
            # counts K=C is already MXU-adequate; accumulation avoids an
            # in-kernel sublane concat of the xa stack.)
            acc = jnp.zeros((O, TcV), f32)
            for i in range(num_A):
                acc = acc + jnp.dot(wg[i], xa[i], preferred_element_type=f32)
            g = jnp.maximum(acc * gsc[...] + gsh[...], 0.0)      # BN(eval)+ReLU
            g_ref[:, pad * V + lo: pad * V + lo + TcV] = g

    units_tcn = ((g1_ref, wt1, tsc1, tsh1, wd1, dsc1, dsh1, K1, O1, has_down1, 0),
                 (g2_ref, wt2, tsc2, tsh2, wd2, dsc2, dsh2, K2, O2, has_down2, O1))

    # ------- Unit2D temporal conv + BN + ReLU + residual, concat output -----
    for g_ref, wt, tsc, tsh, wd, dsc, dsh, K, O, has_down, ch0 in units_tcn:
        for c in range(nchunks):
            lo = c * TcV
            acc = jnp.zeros((O, TcV), f32)
            for k in range(K):
                # time shift of k  ==  lane shift of k*V in the merged layout
                gk = g_ref[:, lo + k * V: lo + k * V + TcV]      # (O, Tc*V)
                acc = acc + jnp.dot(wt[k], gk, preferred_element_type=f32)
            y = jnp.maximum(acc * tsc[...] + tsh[...], 0.0)
            if has_down:
                xc = x_ref[0, :, lo:lo + TcV].astype(f32)
                r = jnp.dot(wd[...], xc, preferred_element_type=f32)
                r = jnp.maximum(r * dsc[...] + dsh[...], 0.0)
            else:
                r = x_ref[0, :, lo:lo + TcV].astype(f32)         # identity (C == O)
            o_ref[0, ch0:ch0 + O, lo:lo + TcV] = (y + r).astype(o_ref.dtype)


# ----------------------------------------------------------------------------
# Wrapper: parameter folding, BlockSpec plumbing
# ----------------------------------------------------------------------------
def _fold_unit_args(p):
    """Fold conv biases into the eval-mode BN shift and shape (O,1) vectors."""
    col = lambda v: jnp.asarray(v, jnp.float32).reshape(-1, 1)
    O, C = p["Wg"].shape[1], p["Wg"].shape[2]
    g_sh = p["bg"] * p["g_scale"] + p["g_shift"]
    t_sh = p["bt"] * p["t_scale"] + p["t_shift"]
    if p["has_down"]:
        wd = p["Wd"]
        d_sc = p["d_scale"]
        d_sh = p["bd"] * p["d_scale"] + p["d_shift"]
    else:  # placeholders keep the kernel signature uniform (unused: static flag)
        wd = jnp.zeros((O, C), jnp.float32)
        d_sc = jnp.zeros((O,), jnp.float32)
        d_sh = jnp.zeros((O,), jnp.float32)
    return [p["Wg"], col(p["g_scale"]), col(g_sh),
            p["Wt"], col(p["t_scale"]), col(t_sh),
            wd, col(d_sc), col(d_sh)]


def _unit_in_specs(num_A, O, C, K):
    full3 = lambda shape: pl.BlockSpec(shape, lambda n: (0, 0, 0))
    vec = pl.BlockSpec((O, 1), lambda n: (0, 0))
    return [full3((num_A, O, C)), vec, vec,
            full3((K, O, O)), vec, vec,
            pl.BlockSpec((O, C), lambda n: (0, 0)), vec, vec]


def tcn_gcn_unit_multiscale_forward(x_nctv, p1, p2):
    """x_nctv: (N, C, T, V)  ->  (N, out_c1 + out_c2, T_out, V)."""
    N, C, T, V = x_nctv.shape
    A = p1["A"]                        # unit_1 and unit_2 share the same A
    num_A = A.shape[0]
    K1, K2 = p1["K"], p2["K"]
    stride = p1["stride"]
    O1, O2 = p1["Wg"].shape[1], p2["Wg"].shape[1]
    pad1, pad2 = (K1 - 1) // 2, (K2 - 1) // 2
    TV = T * V
    Tc = _pick_time_chunk(T, V)
    TcV = Tc * V

    # Free layout view: NCTV -> (N, C, T*V); time & vertices merged on lanes.
    x_flat = x_nctv.reshape(N, C, TV)
    # Block-diagonal adjacency operator acting on the merged (t, v) lane axis.
    eye = jnp.eye(Tc, dtype=jnp.float32)
    kron = jnp.stack([jnp.kron(eye, A[i].astype(jnp.float32))
                      for i in range(num_A)], axis=0)            # (num_A, TcV, TcV)

    args = [x_flat, kron] + _fold_unit_args(p1) + _fold_unit_args(p2)
    in_specs = ([pl.BlockSpec((1, C, TV), lambda n: (n, 0, 0)),
                 pl.BlockSpec((num_A, TcV, TcV), lambda n: (0, 0, 0))]
                + _unit_in_specs(num_A, O1, C, K1)
                + _unit_in_specs(num_A, O2, C, K2))

    kernel = functools.partial(
        _fused_multiscale_kernel, num_A=num_A, T=T, V=V, Tc=Tc,
        K1=K1, K2=K2, O1=O1, O2=O2,
        has_down1=bool(p1["has_down"]), has_down2=bool(p2["has_down"]))

    flops = 2 * N * (num_A * C * TV * TcV            # x @ (I (x) A_i)
                     + num_A * C * TV * (O1 + O2)    # GCN 1x1 convs
                     + (K1 * O1 * O1 + K2 * O2 * O2) * TV  # temporal convs
                     + (O1 + O2) * C * TV)           # downsample 1x1
    bytes_accessed = 4 * (N * C * TV + num_A * TcV * TcV + N * (O1 + O2) * TV)

    out_flat = pl.pallas_call(
        kernel,
        out_shape=jax.ShapeDtypeStruct((N, O1 + O2, TV), x_nctv.dtype),
        grid_spec=pltpu.PrefetchScalarGridSpec(
            num_scalar_prefetch=0,
            grid=(N,),
            in_specs=in_specs,
            out_specs=pl.BlockSpec((1, O1 + O2, TV), lambda n: (n, 0, 0)),
            scratch_shapes=[pltpu.VMEM((O1, (T + 2 * pad1) * V), jnp.float32),
                            pltpu.VMEM((O2, (T + 2 * pad2) * V), jnp.float32)],
        ),
        compiler_params=pltpu.CompilerParams(dimension_semantics=("parallel",)),
        cost_estimate=pl.CostEstimate(flops=int(flops), transcendentals=0,
                                      bytes_accessed=int(bytes_accessed)),
    )(*args)

    out = out_flat.reshape(N, O1 + O2, T, V)
    if stride != 1:
        # Same-padded stride-s temporal conv == stride-1 conv subsampled at t*s
        # (BN/ReLU/downsample are pointwise in t, so subsampling after is exact).
        out = out[:, :, ::stride, :]
    return out


# ----------------------------------------------------------------------------
# Deterministic parameter construction (matches module __init__ shapes)
# ----------------------------------------------------------------------------
def _bn_fold(key, c):
    k1, k2, k3, k4 = jax.random.split(key, 4)
    gamma = 1.0 + 0.1 * jax.random.normal(k1, (c,), jnp.float32)
    beta = 0.1 * jax.random.normal(k2, (c,), jnp.float32)
    mean = 0.1 * jax.random.normal(k3, (c,), jnp.float32)
    var = 1.0 + 0.1 * jnp.abs(jax.random.normal(k4, (c,), jnp.float32))
    scale = gamma / jnp.sqrt(var + BN_EPS)
    shift = beta - mean * scale
    return scale, shift


def init_tcn_gcn_unit(key, in_c, out_c, A, K, stride):
    num_A, V, _ = A.shape
    ks = jax.random.split(key, 9)
    # Unit_GCN: num_A 1x1 convs, conv_init std = sqrt(2 / (out_c*1*1))
    std_g = math.sqrt(2.0 / out_c)
    Wg = std_g * jax.random.normal(ks[0], (num_A, out_c, in_c), jnp.float32)
    bg = (0.05 * jax.random.normal(ks[1], (num_A, out_c), jnp.float32)).sum(0)
    g_scale, g_shift = _bn_fold(ks[2], out_c)
    # Unit2D tcn1: Conv2d(out_c, out_c, (K,1)), conv_init std = sqrt(2/(out_c*K))
    std_t = math.sqrt(2.0 / (out_c * K))
    Wt = std_t * jax.random.normal(ks[3], (K, out_c, out_c), jnp.float32)
    bt = 0.05 * jax.random.normal(ks[4], (out_c,), jnp.float32)
    t_scale, t_shift = _bn_fold(ks[5], out_c)
    has_down = (in_c != out_c) or (stride != 1)
    p = dict(A=A, Wg=Wg, bg=bg, g_scale=g_scale, g_shift=g_shift,
             Wt=Wt, bt=bt, t_scale=t_scale, t_shift=t_shift,
             K=K, stride=stride, has_down=has_down)
    if has_down:
        std_d = math.sqrt(2.0 / out_c)
        p["Wd"] = std_d * jax.random.normal(ks[6], (out_c, in_c), jnp.float32)
        p["bd"] = 0.05 * jax.random.normal(ks[7], (out_c,), jnp.float32)
        p["d_scale"], p["d_shift"] = _bn_fold(ks[8], out_c)
    return p


# ----------------------------------------------------------------------------
# Pure-JAX reference (for correctness check of the Pallas path)
# ----------------------------------------------------------------------------
def _unit_ref(x, p):
    K, stride = p["K"], p["stride"]
    T = x.shape[2]
    xa = jnp.einsum("nctu,auv->anctv", x, p["A"])
    y = jnp.einsum("anctv,aoc->notv", xa, p["Wg"]) + p["bg"][None, :, None, None]
    y = jnp.maximum(y * p["g_scale"][None, :, None, None]
                    + p["g_shift"][None, :, None, None], 0.0)
    pad = (K - 1) // 2
    ypad = jnp.pad(y, ((0, 0), (0, 0), (pad, pad), (0, 0)))
    T_out = (T + 2 * pad - K) // stride + 1
    win = jnp.stack(
        [ypad[:, :, k:k + (T_out - 1) * stride + 1:stride, :] for k in range(K)],
        axis=0)                                               # (K, N, O1, T_out, V)
    t = jnp.einsum("knctv,koc->notv", win, p["Wt"]) + p["bt"][None, :, None, None]
    t = jnp.maximum(t * p["t_scale"][None, :, None, None]
                    + p["t_shift"][None, :, None, None], 0.0)
    if p["has_down"]:
        xs = x[:, :, 0:(T_out - 1) * stride + 1:stride, :]
        d = jnp.einsum("nctv,oc->notv", xs, p["Wd"]) + p["bd"][None, :, None, None]
        d = jnp.maximum(d * p["d_scale"][None, :, None, None]
                        + p["d_shift"][None, :, None, None], 0.0)
    else:
        d = x
    return t + d


# ----------------------------------------------------------------------------
if __name__ == "__main__":
    key = jax.random.PRNGKey(0)
    k_x, k_A, k_u1, k_u2 = jax.random.split(key, 4)

    N, C_in, T, V = 2, 4, 16, 16
    out_channels = 16
    num_A = 3
    kernel_size = 9
    stride = 1

    x = jax.random.normal(k_x, (N, C_in, T, V), jnp.float32)
    A = jax.random.uniform(k_A, (num_A, V, V), jnp.float32) / V

    out1_c = out_channels // 2
    out2_c = out_channels - out_channels // 2
    p1 = init_tcn_gcn_unit(k_u1, C_in, out1_c, A, kernel_size, stride)
    p2 = init_tcn_gcn_unit(k_u2, C_in, out2_c, A, 2 * kernel_size - 1, stride)

    fwd = jax.jit(lambda xx: tcn_gcn_unit_multiscale_forward(xx, p1, p2))
    out = jax.block_until_ready(fwd(x))
    assert out.shape == (N, out_channels, T, V), out.shape

    with jax.default_matmul_precision("highest"):
        ref = jnp.concatenate([_unit_ref(x, p1), _unit_ref(x, p2)], axis=1)
    ref = jax.block_until_ready(ref)
    np.testing.assert_allclose(np.asarray(out), np.asarray(ref),
                               rtol=2e-3, atol=2e-3)
    print("KERNEL_OK")
</pallas_src>

<mosaic_0001>
module attributes {stable_mosaic.version = 11 : i64} {
  func.func @_fused_multiscale_kernel(%arg0: i32, %arg1: memref<1x4x256xf32, #tpu.memory_space<vmem>>, %arg2: memref<3x128x128xf32, #tpu.memory_space<vmem>>, %arg3: memref<3x8x4xf32, #tpu.memory_space<vmem>>, %arg4: memref<8x1xf32, #tpu.memory_space<vmem>>, %arg5: memref<8x1xf32, #tpu.memory_space<vmem>>, %arg6: memref<9x8x8xf32, #tpu.memory_space<vmem>>, %arg7: memref<8x1xf32, #tpu.memory_space<vmem>>, %arg8: memref<8x1xf32, #tpu.memory_space<vmem>>, %arg9: memref<8x4xf32, #tpu.memory_space<vmem>>, %arg10: memref<8x1xf32, #tpu.memory_space<vmem>>, %arg11: memref<8x1xf32, #tpu.memory_space<vmem>>, %arg12: memref<3x8x4xf32, #tpu.memory_space<vmem>>, %arg13: memref<8x1xf32, #tpu.memory_space<vmem>>, %arg14: memref<8x1xf32, #tpu.memory_space<vmem>>, %arg15: memref<17x8x8xf32, #tpu.memory_space<vmem>>, %arg16: memref<8x1xf32, #tpu.memory_space<vmem>>, %arg17: memref<8x1xf32, #tpu.memory_space<vmem>>, %arg18: memref<8x4xf32, #tpu.memory_space<vmem>>, %arg19: memref<8x1xf32, #tpu.memory_space<vmem>>, %arg20: memref<8x1xf32, #tpu.memory_space<vmem>>, %arg21: memref<1x16x256xf32, #tpu.memory_space<vmem>>, %arg22: memref<8x384xf32, #tpu.memory_space<vmem>>, %arg23: memref<8x512xf32, #tpu.memory_space<vmem>>) attributes {dimension_semantics = [#tpu.dimension_semantics<parallel>], iteration_bounds = array<i64: 2>, scalar_prefetch = 0 : i64, scratch_operands = 2 : i64, tpu.core_type = #tpu.core_type<tc>, window_params = [{transform_indices = @transform_0, window_bounds = array<i64: 1, 4, 256>}, {pipeline_mode = #tpu.pipeline_mode<synchronous>, transform_indices = @transform_1, window_bounds = array<i64: 3, 128, 128>}, {pipeline_mode = #tpu.pipeline_mode<synchronous>, transform_indices = @transform_2, window_bounds = array<i64: 3, 8, 4>}, {pipeline_mode = #tpu.pipeline_mode<synchronous>, transform_indices = @transform_3, window_bounds = array<i64: 8, 1>}, {pipeline_mode = #tpu.pipeline_mode<synchronous>, transform_indices = @transform_4, window_bounds = array<i64: 8, 1>}, {pipeline_mode = #tpu.pipeline_mode<synchronous>, transform_indices = @transform_5, window_bounds = array<i64: 9, 8, 8>}, {pipeline_mode = #tpu.pipeline_mode<synchronous>, transform_indices = @transform_6, window_bounds = array<i64: 8, 1>}, {pipeline_mode = #tpu.pipeline_mode<synchronous>, transform_indices = @transform_7, window_bounds = array<i64: 8, 1>}, {pipeline_mode = #tpu.pipeline_mode<synchronous>, transform_indices = @transform_8, window_bounds = array<i64: 8, 4>}, {pipeline_mode = #tpu.pipeline_mode<synchronous>, transform_indices = @transform_9, window_bounds = array<i64: 8, 1>}, {pipeline_mode = #tpu.pipeline_mode<synchronous>, transform_indices = @transform_10, window_bounds = array<i64: 8, 1>}, {pipeline_mode = #tpu.pipeline_mode<synchronous>, transform_indices = @transform_11, window_bounds = array<i64: 3, 8, 4>}, {pipeline_mode = #tpu.pipeline_mode<synchronous>, transform_indices = @transform_12, window_bounds = array<i64: 8, 1>}, {pipeline_mode = #tpu.pipeline_mode<synchronous>, transform_indices = @transform_13, window_bounds = array<i64: 8, 1>}, {pipeline_mode = #tpu.pipeline_mode<synchronous>, transform_indices = @transform_14, window_bounds = array<i64: 17, 8, 8>}, {pipeline_mode = #tpu.pipeline_mode<synchronous>, transform_indices = @transform_15, window_bounds = array<i64: 8, 1>}, {pipeline_mode = #tpu.pipeline_mode<synchronous>, transform_indices = @transform_16, window_bounds = array<i64: 8, 1>}, {pipeline_mode = #tpu.pipeline_mode<synchronous>, transform_indices = @transform_17, window_bounds = array<i64: 8, 4>}, {pipeline_mode = #tpu.pipeline_mode<synchronous>, transform_indices = @transform_18, window_bounds = array<i64: 8, 1>}, {pipeline_mode = #tpu.pipeline_mode<synchronous>, transform_indices = @transform_19, window_bounds = array<i64: 8, 1>}, {transform_indices = @transform_20, window_bounds = array<i64: 1, 16, 256>}]} {
    %cst = arith.constant 0.000000e+00 : f32
    %0 = vector.broadcast %cst : f32 to vector<8x384xf32>
    %c0 = arith.constant 0 : index
    %c0_0 = arith.constant 0 : index
    %1 = vector.load %arg22[%c0, %c0_0] : memref<8x384xf32, #tpu.memory_space<vmem>>, vector<8x384xf32>
    tpu.vector_store %arg22[%c0, %c0_0], %0 {strides = array<i32>} : memref<8x384xf32, #tpu.memory_space<vmem>>, vector<8x384xf32>,
    %cst_1 = arith.constant 0.000000e+00 : f32
    %2 = vector.broadcast %cst_1 : f32 to vector<8x512xf32>
    %c0_2 = arith.constant 0 : index
    %c0_3 = arith.constant 0 : index
    %3 = vector.load %arg23[%c0_2, %c0_3] : memref<8x512xf32, #tpu.memory_space<vmem>>, vector<8x512xf32>
    tpu.vector_store %arg23[%c0_2, %c0_3], %2 {strides = array<i32>} : memref<8x512xf32, #tpu.memory_space<vmem>>, vector<8x512xf32>,
    %c0_4 = arith.constant 0 : index
    %c0_5 = arith.constant 0 : index
    %c0_6 = arith.constant 0 : index
    %4 = vector.load %arg1[%c0_4, %c0_5, %c0_6] : memref<1x4x256xf32, #tpu.memory_space<vmem>>, vector<1x4x128xf32>
    %5 = vector.shape_cast %4 : vector<1x4x128xf32> to vector<4x128xf32>
    %c0_7 = arith.constant 0 : index
    %c0_8 = arith.constant 0 : index
    %c0_9 = arith.constant 0 : index
    %6 = vector.load %arg2[%c0_7, %c0_8, %c0_9] : memref<3x128x128xf32, #tpu.memory_space<vmem>>, vector<1x128x128xf32>
    %7 = vector.shape_cast %6 : vector<1x128x128xf32> to vector<128x128xf32>
    %cst_10 = arith.constant dense<0.000000e+00> : vector<4x128xf32>
    %8 = tpu.matmul %5, %7, %cst_10 {dimension_numbers = #tpu.dot_dimension_numbers<[1], [0], [0], [1], [0, 0, 1, 1], [], []>} : vector<4x128xf32>, vector<128x128xf32>, vector<4x128xf32> -> vector<4x128xf32>
    %c1 = arith.constant 1 : index
    %c0_11 = arith.constant 0 : index
    %c0_12 = arith.constant 0 : index
    %9 = vector.load %arg2[%c1, %c0_11, %c0_12] : memref<3x128x128xf32, #tpu.memory_space<vmem>>, vector<1x128x128xf32>
    %10 = vector.shape_cast %9 : vector<1x128x128xf32> to vector<128x128xf32>
    %cst_13 = arith.constant dense<0.000000e+00> : vector<4x128xf32>
    %11 = tpu.matmul %5, %10, %cst_13 {dimension_numbers = #tpu.dot_dimension_numbers<[1], [0], [0], [1], [0, 0, 1, 1], [], []>} : vector<4x128xf32>, vector<128x128xf32>, vector<4x128xf32> -> vector<4x128xf32>
    %c2 = arith.constant 2 : index
    %c0_14 = arith.constant 0 : index
    %c0_15 = arith.constant 0 : index
    %12 = vector.load %arg2[%c2, %c0_14, %c0_15] : memref<3x128x128xf32, #tpu.memory_space<vmem>>, vector<1x128x128xf32>
    %13 = vector.shape_cast %12 : vector<1x128x128xf32> to vector<128x128xf32>
    %cst_16 = arith.constant dense<0.000000e+00> : vector<4x128xf32>
    %14 = tpu.matmul %5, %13, %cst_16 {dimension_numbers = #tpu.dot_dimension_numbers<[1], [0], [0], [1], [0, 0, 1, 1], [], []>} : vector<4x128xf32>, vector<128x128xf32>, vector<4x128xf32> -> vector<4x128xf32>
    %cst_17 = arith.constant 0.000000e+00 : f32
    %15 = vector.broadcast %cst_17 : f32 to vector<8x128xf32>
    %c0_18 = arith.constant 0 : index
    %c0_19 = arith.constant 0 : index
    %c0_20 = arith.constant 0 : index
    %16 = vector.load %arg3[%c0_18, %c0_19, %c0_20] : memref<3x8x4xf32, #tpu.memory_space<vmem>>, vector<1x8x4xf32>
    %17 = vector.shape_cast %16 : vector<1x8x4xf32> to vector<8x4xf32>
    %cst_21 = arith.constant dense<0.000000e+00> : vector<8x128xf32>
    %18 = tpu.matmul %17, %8, %cst_21 {dimension_numbers = #tpu.dot_dimension_numbers<[1], [0], [0], [1], [0, 0, 1, 1], [], []>} : vector<8x4xf32>, vector<4x128xf32>, vector<8x128xf32> -> vector<8x128xf32>
    %19 = arith.addf %15, %18 : vector<8x128xf32>
    %c1_22 = arith.constant 1 : index
    %c0_23 = arith.constant 0 : index
    %c0_24 = arith.constant 0 : index
    %20 = vector.load %arg3[%c1_22, %c0_23, %c0_24] : memref<3x8x4xf32, #tpu.memory_space<vmem>>, vector<1x8x4xf32>
    %21 = vector.shape_cast %20 : vector<1x8x4xf32> to vector<8x4xf32>
    %cst_25 = arith.constant dense<0.000000e+00> : vector<8x128xf32>
    %22 = tpu.matmul %21, %11, %cst_25 {dimension_numbers = #tpu.dot_dimension_numbers<[1], [0], [0], [1], [0, 0, 1, 1], [], []>} : vector<8x4xf32>, vector<4x128xf32>, vector<8x128xf32> -> vector<8x128xf32>
    %23 = arith.addf %19, %22 : vector<8x128xf32>
    %c2_26 = arith.constant 2 : index
    %c0_27 = arith.constant 0 : index
    %c0_28 = arith.constant 0 : index
    %24 = vector.load %arg3[%c2_26, %c0_27, %c0_28] : memref<3x8x4xf32, #tpu.memory_space<vmem>>, vector<1x8x4xf32>
    %25 = vector.shape_cast %24 : vector<1x8x4xf32> to vector<8x4xf32>
    %cst_29 = arith.constant dense<0.000000e+00> : vector<8x128xf32>
    %26 = tpu.matmul %25, %14, %cst_29 {dimension_numbers = #tpu.dot_dimension_numbers<[1], [0], [0], [1], [0, 0, 1, 1], [], []>} : vector<8x4xf32>, vector<4x128xf32>, vector<8x128xf32> -> vector<8x128xf32>
    %27 = arith.addf %23, %26 : vector<8x128xf32>
    %c0_30 = arith.constant 0 : index
    %c0_31 = arith.constant 0 : index
    %28 = vector.load %arg4[%c0_30, %c0_31] : memref<8x1xf32, #tpu.memory_space<vmem>>, vector<8x1xf32>
    %29 = vector.broadcast %28 : vector<8x1xf32> to vector<8x128xf32>
    %30 = arith.mulf %27, %29 : vector<8x128xf32>
    %c0_32 = arith.constant 0 : index
    %c0_33 = arith.constant 0 : index
    %31 = vector.load %arg5[%c0_32, %c0_33] : memref<8x1xf32, #tpu.memory_space<vmem>>, vector<8x1xf32>
    %32 = vector.broadcast %31 : vector<8x1xf32> to vector<8x128xf32>
    %33 = arith.addf %30, %32 : vector<8x128xf32>
    %cst_34 = arith.constant 0.000000e+00 : f32
    %34 = vector.broadcast %cst_34 : f32 to vector<8x128xf32>
    %35 = arith.maximumf %33, %34 : vector<8x128xf32>
    %c0_35 = arith.constant 0 : index
    %c64 = arith.constant 64 : index
    %36 = vector.load %arg22[%c0_35, %c64] : memref<8x384xf32, #tpu.memory_space<vmem>>, vector<8x128xf32>
    tpu.vector_store %arg22[%c0_35, %c64], %35 {strides = array<i32>} : memref<8x384xf32, #tpu.memory_space<vmem>>, vector<8x128xf32>,
    %cst_36 = arith.constant 0.000000e+00 : f32
    %37 = vector.broadcast %cst_36 : f32 to vector<8x128xf32>
    %c0_37 = arith.constant 0 : index
    %c0_38 = arith.constant 0 : index
    %c0_39 = arith.constant 0 : index
    %38 = vector.load %arg12[%c0_37, %c0_38, %c0_39] : memref<3x8x4xf32, #tpu.memory_space<vmem>>, vector<1x8x4xf32>
    %39 = vector.shape_cast %38 : vector<1x8x4xf32> to vector<8x4xf32>
    %cst_40 = arith.constant dense<0.000000e+00> : vector<8x128xf32>
    %40 = tpu.matmul %39, %8, %cst_40 {dimension_numbers = #tpu.dot_dimension_numbers<[1], [0], [0], [1], [0, 0, 1, 1], [], []>} : vector<8x4xf32>, vector<4x128xf32>, vector<8x128xf32> -> vector<8x128xf32>
    %41 = arith.addf %37, %40 : vector<8x128xf32>
    %c1_41 = arith.constant 1 : index
    %c0_42 = arith.constant 0 : index
    %c0_43 = arith.constant 0 : index
    %42 = vector.load %arg12[%c1_41, %c0_42, %c0_43] : memref<3x8x4xf32, #tpu.memory_space<vmem>>, vector<1x8x4xf32>
    %43 = vector.shape_cast %42 : vector<1x8x4xf32> to vector<8x4xf32>
    %cst_44 = arith.constant dense<0.000000e+00> : vector<8x128xf32>
    %44 = tpu.matmul %43, %11, %cst_44 {dimension_numbers = #tpu.dot_dimension_numbers<[1], [0], [0], [1], [0, 0, 1, 1], [], []>} : vector<8x4xf32>, vector<4x128xf32>, vector<8x128xf32> -> vector<8x128xf32>
    %45 = arith.addf %41, %44 : vector<8x128xf32>
    %c2_45 = arith.constant 2 : index
    %c0_46 = arith.constant 0 : index
    %c0_47 = arith.constant 0 : index
    %46 = vector.load %arg12[%c2_45, %c0_46, %c0_47] : memref<3x8x4xf32, #tpu.memory_space<vmem>>, vector<1x8x4xf32>
    %47 = vector.shape_cast %46 : vector<1x8x4xf32> to vector<8x4xf32>
    %cst_48 = arith.constant dense<0.000000e+00> : vector<8x128xf32>
    %48 = tpu.matmul %47, %14, %cst_48 {dimension_numbers = #tpu.dot_dimension_numbers<[1], [0], [0], [1], [0, 0, 1, 1], [], []>} : vector<8x4xf32>, vector<4x128xf32>, vector<8x128xf32> -> vector<8x128xf32>
    %49 = arith.addf %45, %48 : vector<8x128xf32>
    %c0_49 = arith.constant 0 : index
    %c0_50 = arith.constant 0 : index
    %50 = vector.load %arg13[%c0_49, %c0_50] : memref<8x1xf32, #tpu.memory_space<vmem>>, vector<8x1xf32>
    %51 = vector.broadcast %50 : vector<8x1xf32> to vector<8x128xf32>
    %52 = arith.mulf %49, %51 : vector<8x128xf32>
    %c0_51 = arith.constant 0 : index
    %c0_52 = arith.constant 0 : index
    %53 = vector.load %arg14[%c0_51, %c0_52] : memref<8x1xf32, #tpu.memory_space<vmem>>, vector<8x1xf32>
    %54 = vector.broadcast %53 : vector<8x1xf32> to vector<8x128xf32>
    %55 = arith.addf %52, %54 : vector<8x128xf32>
    %cst_53 = arith.constant 0.000000e+00 : f32
    %56 = vector.broadcast %cst_53 : f32 to vector<8x128xf32>
    %57 = arith.maximumf %55, %56 : vector<8x128xf32>
    %c0_54 = arith.constant 0 : index
    %c128 = arith.constant 128 : index
    %58 = vector.load %arg23[%c0_54, %c128] : memref<8x512xf32, #tpu.memory_space<vmem>>, vector<8x128xf32>
    tpu.vector_store %arg23[%c0_54, %c128], %57 {strides = array<i32>} : memref<8x512xf32, #tpu.memory_space<vmem>>, vector<8x128xf32>,
    %c0_55 = arith.constant 0 : index
    %c0_56 = arith.constant 0 : index
    %c128_57 = arith.constant 128 : index
    %59 = vector.load %arg1[%c0_55, %c0_56, %c128_57] : memref<1x4x256xf32, #tpu.memory_space<vmem>>, vector<1x4x128xf32>
    %60 = vector.shape_cast %59 : vector<1x4x128xf32> to vector<4x128xf32>
    %c0_58 = arith.constant 0 : index
    %c0_59 = arith.constant 0 : index
    %c0_60 = arith.constant 0 : index
    %61 = vector.load %arg2[%c0_58, %c0_59, %c0_60] : memref<3x128x128xf32, #tpu.memory_space<vmem>>, vector<1x128x128xf32>
    %62 = vector.shape_cast %61 : vector<1x128x128xf32> to vector<128x128xf32>
    %cst_61 = arith.constant dense<0.000000e+00> : vector<4x128xf32>
    %63 = tpu.matmul %60, %62, %cst_61 {dimension_numbers = #tpu.dot_dimension_numbers<[1], [0], [0], [1], [0, 0, 1, 1], [], []>} : vector<4x128xf32>, vector<128x128xf32>, vector<4x128xf32> -> vector<4x128xf32>
    %c1_62 = arith.constant 1 : index
    %c0_63 = arith.constant 0 : index
    %c0_64 = arith.constant 0 : index
    %64 = vector.load %arg2[%c1_62, %c0_63, %c0_64] : memref<3x128x128xf32, #tpu.memory_space<vmem>>, vector<1x128x128xf32>
    %65 = vector.shape_cast %64 : vector<1x128x128xf32> to vector<128x128xf32>
    %cst_65 = arith.constant dense<0.000000e+00> : vector<4x128xf32>
    %66 = tpu.matmul %60, %65, %cst_65 {dimension_numbers = #tpu.dot_dimension_numbers<[1], [0], [0], [1], [0, 0, 1, 1], [], []>} : vector<4x128xf32>, vector<128x128xf32>, vector<4x128xf32> -> vector<4x128xf32>
    %c2_66 = arith.constant 2 : index
    %c0_67 = arith.constant 0 : index
    %c0_68 = arith.constant 0 : index
    %67 = vector.load %arg2[%c2_66, %c0_67, %c0_68] : memref<3x128x128xf32, #tpu.memory_space<vmem>>, vector<1x128x128xf32>
    %68 = vector.shape_cast %67 : vector<1x128x128xf32> to vector<128x128xf32>
    %cst_69 = arith.constant dense<0.000000e+00> : vector<4x128xf32>
    %69 = tpu.matmul %60, %68, %cst_69 {dimension_numbers = #tpu.dot_dimension_numbers<[1], [0], [0], [1], [0, 0, 1, 1], [], []>} : vector<4x128xf32>, vector<128x128xf32>, vector<4x128xf32> -> vector<4x128xf32>
    %cst_70 = arith.constant 0.000000e+00 : f32
    %70 = vector.broadcast %cst_70 : f32 to vector<8x128xf32>
    %c0_71 = arith.constant 0 : index
    %c0_72 = arith.constant 0 : index
    %c0_73 = arith.constant 0 : index
    %71 = vector.load %arg3[%c0_71, %c0_72, %c0_73] : memref<3x8x4xf32, #tpu.memory_space<vmem>>, vector<1x8x4xf32>
    %72 = vector.shape_cast %71 : vector<1x8x4xf32> to vector<8x4xf32>
    %cst_74 = arith.constant dense<0.000000e+00> : vector<8x128xf32>
    %73 = tpu.matmul %72, %63, %cst_74 {dimension_numbers = #tpu.dot_dimension_numbers<[1], [0], [0], [1], [0, 0, 1, 1], [], []>} : vector<8x4xf32>, vector<4x128xf32>, vector<8x128xf32> -> vector<8x128xf32>
    %74 = arith.addf %70, %73 : vector<8x128xf32>
    %c1_75 = arith.constant 1 : index
    %c0_76 = arith.constant 0 : index
    %c0_77 = arith.constant 0 : index
    %75 = vector.load %arg3[%c1_75, %c0_76, %c0_77] : memref<3x8x4xf32, #tpu.memory_space<vmem>>, vector<1x8x4xf32>
    %76 = vector.shape_cast %75 : vector<1x8x4xf32> to vector<8x4xf32>
    %cst_78 = arith.constant dense<0.000000e+00> : vector<8x128xf32>
    %77 = tpu.matmul %76, %66, %cst_78 {dimension_numbers = #tpu.dot_dimension_numbers<[1], [0], [0], [1], [0, 0, 1, 1], [], []>} : vector<8x4xf32>, vector<4x128xf32>, vector<8x128xf32> -> vector<8x128xf32>
    %78 = arith.addf %74, %77 : vector<8x128xf32>
    %c2_79 = arith.constant 2 : index
    %c0_80 = arith.constant 0 : index
    %c0_81 = arith.constant 0 : index
    %79 = vector.load %arg3[%c2_79, %c0_80, %c0_81] : memref<3x8x4xf32, #tpu.memory_space<vmem>>, vector<1x8x4xf32>
    %80 = vector.shape_cast %79 : vector<1x8x4xf32> to vector<8x4xf32>
    %cst_82 = arith.constant dense<0.000000e+00> : vector<8x128xf32>
    %81 = tpu.matmul %80, %69, %cst_82 {dimension_numbers = #tpu.dot_dimension_numbers<[1], [0], [0], [1], [0, 0, 1, 1], [], []>} : vector<8x4xf32>, vector<4x128xf32>, vector<8x128xf32> -> vector<8x128xf32>
    %82 = arith.addf %78, %81 : vector<8x128xf32>
    %c0_83 = arith.constant 0 : index
    %c0_84 = arith.constant 0 : index
    %83 = vector.load %arg4[%c0_83, %c0_84] : memref<8x1xf32, #tpu.memory_space<vmem>>, vector<8x1xf32>
    %84 = vector.broadcast %83 : vector<8x1xf32> to vector<8x128xf32>
    %85 = arith.mulf %82, %84 : vector<8x128xf32>
    %c0_85 = arith.constant 0 : index
    %c0_86 = arith.constant 0 : index
    %86 = vector.load %arg5[%c0_85, %c0_86] : memref<8x1xf32, #tpu.memory_space<vmem>>, vector<8x1xf32>
    %87 = vector.broadcast %86 : vector<8x1xf32> to vector<8x128xf32>
    %88 = arith.addf %85, %87 : vector<8x128xf32>
    %cst_87 = arith.constant 0.000000e+00 : f32
    %89 = vector.broadcast %cst_87 : f32 to vector<8x128xf32>
    %90 = arith.maximumf %88, %89 : vector<8x128xf32>
    %c0_88 = arith.constant 0 : index
    %c192 = arith.constant 192 : index
    %91 = vector.load %arg22[%c0_88, %c192] : memref<8x384xf32, #tpu.memory_space<vmem>>, vector<8x128xf32>
    tpu.vector_store %arg22[%c0_88, %c192], %90 {strides = array<i32>} : memref<8x384xf32, #tpu.memory_space<vmem>>, vector<8x128xf32>,
    %cst_89 = arith.constant 0.000000e+00 : f32
    %92 = vector.broadcast %cst_89 : f32 to vector<8x128xf32>
    %c0_90 = arith.constant 0 : index
    %c0_91 = arith.constant 0 : index
    %c0_92 = arith.constant 0 : index
    %93 = vector.load %arg12[%c0_90, %c0_91, %c0_92] : memref<3x8x4xf32, #tpu.memory_space<vmem>>, vector<1x8x4xf32>
    %94 = vector.shape_cast %93 : vector<1x8x4xf32> to vector<8x4xf32>
    %cst_93 = arith.constant dense<0.000000e+00> : vector<8x128xf32>
    %95 = tpu.matmul %94, %63, %cst_93 {dimension_numbers = #tpu.dot_dimension_numbers<[1], [0], [0], [1], [0, 0, 1, 1], [], []>} : vector<8x4xf32>, vector<4x128xf32>, vector<8x128xf32> -> vector<8x128xf32>
    %96 = arith.addf %92, %95 : vector<8x128xf32>
    %c1_94 = arith.constant 1 : index
    %c0_95 = arith.constant 0 : index
    %c0_96 = arith.constant 0 : index
    %97 = vector.load %arg12[%c1_94, %c0_95, %c0_96] : memref<3x8x4xf32, #tpu.memory_space<vmem>>, vector<1x8x4xf32>
    %98 = vector.shape_cast %97 : vector<1x8x4xf32> to vector<8x4xf32>
    %cst_97 = arith.constant dense<0.000000e+00> : vector<8x128xf32>
    %99 = tpu.matmul %98, %66, %cst_97 {dimension_numbers = #tpu.dot_dimension_numbers<[1], [0], [0], [1], [0, 0, 1, 1], [], []>} : vector<8x4xf32>, vector<4x128xf32>, vector<8x128xf32> -> vector<8x128xf32>
    %100 = arith.addf %96, %99 : vector<8x128xf32>
    %c2_98 = arith.constant 2 : index
    %c0_99 = arith.constant 0 : index
    %c0_100 = arith.constant 0 : index
    %101 = vector.load %arg12[%c2_98, %c0_99, %c0_100] : memref<3x8x4xf32, #tpu.memory_space<vmem>>, vector<1x8x4xf32>
    %102 = vector.shape_cast %101 : vector<1x8x4xf32> to vector<8x4xf32>
    %cst_101 = arith.constant dense<0.000000e+00> : vector<8x128xf32>
    %103 = tpu.matmul %102, %69, %cst_101 {dimension_numbers = #tpu.dot_dimension_numbers<[1], [0], [0], [1], [0, 0, 1, 1], [], []>} : vector<8x4xf32>, vector<4x128xf32>, vector<8x128xf32> -> vector<8x128xf32>
    %104 = arith.addf %100, %103 : vector<8x128xf32>
    %c0_102 = arith.constant 0 : index
    %c0_103 = arith.constant 0 : index
    %105 = vector.load %arg13[%c0_102, %c0_103] : memref<8x1xf32, #tpu.memory_space<vmem>>, vector<8x1xf32>
    %106 = vector.broadcast %105 : vector<8x1xf32> to vector<8x128xf32>
    %107 = arith.mulf %104, %106 : vector<8x128xf32>
    %c0_104 = arith.constant 0 : index
    %c0_105 = arith.constant 0 : index
    %108 = vector.load %arg14[%c0_104, %c0_105] : memref<8x1xf32, #tpu.memory_space<vmem>>, vector<8x1xf32>
    %109 = vector.broadcast %108 : vector<8x1xf32> to vector<8x128xf32>
    %110 = arith.addf %107, %109 : vector<8x128xf32>
    %cst_106 = arith.constant 0.000000e+00 : f32
    %111 = vector.broadcast %cst_106 : f32 to vector<8x128xf32>
    %112 = arith.maximumf %110, %111 : vector<8x128xf32>
    %c0_107 = arith.constant 0 : index
    %c256 = arith.constant 256 : index
    %113 = vector.load %arg23[%c0_107, %c256] : memref<8x512xf32, #tpu.memory_space<vmem>>, vector<8x128xf32>
    tpu.vector_store %arg23[%c0_107, %c256], %112 {strides = array<i32>} : memref<8x512xf32, #tpu.memory_space<vmem>>, vector<8x128xf32>,
    %cst_108 = arith.constant 0.000000e+00 : f32
    %114 = vector.broadcast %cst_108 : f32 to vector<8x128xf32>
    %c0_109 = arith.constant 0 : index
    %c0_110 = arith.constant 0 : index
    %115 = vector.load %arg22[%c0_109, %c0_110] : memref<8x384xf32, #tpu.memory_space<vmem>>, vector<8x128xf32>
    %c0_111 = arith.constant 0 : index
    %c0_112 = arith.constant 0 : index
    %c0_113 = arith.constant 0 : index
    %116 = vector.load %arg6[%c0_111, %c0_112, %c0_113] : memref<9x8x8xf32, #tpu.memory_space<vmem>>, vector<1x8x8xf32>
    %117 = vector.shape_cast %116 : vector<1x8x8xf32> to vector<8x8xf32>
    %cst_114 = arith.constant dense<0.000000e+00> : vector<8x128xf32>
    %118 = tpu.matmul %117, %115, %cst_114 {dimension_numbers = #tpu.dot_dimension_numbers<[1], [0], [0], [1], [0, 0, 1, 1], [], []>} : vector<8x8xf32>, vector<8x128xf32>, vector<8x128xf32> -> vector<8x128xf32>
    %119 = arith.addf %114, %118 : vector<8x128xf32>
    %c0_115 = arith.constant 0 : index
    %c16 = arith.constant 16 : index
    %120 = vector.load %arg22[%c0_115, %c16] : memref<8x384xf32, #tpu.memory_space<vmem>>, vector<8x128xf32>
    %c1_116 = arith.constant 1 : index
    %c0_117 = arith.constant 0 : index
    %c0_118 = arith.constant 0 : index
    %121 = vector.load %arg6[%c1_116, %c0_117, %c0_118] : memref<9x8x8xf32, #tpu.memory_space<vmem>>, vector<1x8x8xf32>
    %122 = vector.shape_cast %121 : vector<1x8x8xf32> to vector<8x8xf32>
    %cst_119 = arith.constant dense<0.000000e+00> : vector<8x128xf32>
    %123 = tpu.matmul %122, %120, %cst_119 {dimension_numbers = #tpu.dot_dimension_numbers<[1], [0], [0], [1], [0, 0, 1, 1], [], []>} : vector<8x8xf32>, vector<8x128xf32>, vector<8x128xf32> -> vector<8x128xf32>
    %124 = arith.addf %119, %123 : vector<8x128xf32>
    %c0_120 = arith.constant 0 : index
    %c32 = arith.constant 32 : index
    %125 = vector.load %arg22[%c0_120, %c32] : memref<8x384xf32, #tpu.memory_space<vmem>>, vector<8x128xf32>
    %c2_121 = arith.constant 2 : index
    %c0_122 = arith.constant 0 : index
    %c0_123 = arith.constant 0 : index
    %126 = vector.load %arg6[%c2_121, %c0_122, %c0_123] : memref<9x8x8xf32, #tpu.memory_space<vmem>>, vector<1x8x8xf32>
    %127 = vector.shape_cast %126 : vector<1x8x8xf32> to vector<8x8xf32>
    %cst_124 = arith.constant dense<0.000000e+00> : vector<8x128xf32>
    %128 = tpu.matmul %127, %125, %cst_124 {dimension_numbers = #tpu.dot_dimension_numbers<[1], [0], [0], [1], [0, 0, 1, 1], [], []>} : vector<8x8xf32>, vector<8x128xf32>, vector<8x128xf32> -> vector<8x128xf32>
    %129 = arith.addf %124, %128 : vector<8x128xf32>
    %c0_125 = arith.constant 0 : index
    %c48 = arith.constant 48 : index
    %130 = vector.load %arg22[%c0_125, %c48] : memref<8x384xf32, #tpu.memory_space<vmem>>, vector<8x128xf32>
    %c3 = arith.constant 3 : index
    %c0_126 = arith.constant 0 : index
    %c0_127 = arith.constant 0 : index
    %131 = vector.load %arg6[%c3, %c0_126, %c0_127] : memref<9x8x8xf32, #tpu.memory_space<vmem>>, vector<1x8x8xf32>
    %132 = vector.shape_cast %131 : vector<1x8x8xf32> to vector<8x8xf32>
    %cst_128 = arith.constant dense<0.000000e+00> : vector<8x128xf32>
    %133 = tpu.matmul %132, %130, %cst_128 {dimension_numbers = #tpu.dot_dimension_numbers<[1], [0], [0], [1], [0, 0, 1, 1], [], []>} : vector<8x8xf32>, vector<8x128xf32>, vector<8x128xf32> -> vector<8x128xf32>
    %134 = arith.addf %129, %133 : vector<8x128xf32>
    %c0_129 = arith.constant 0 : index
    %c64_130 = arith.constant 64 : index
    %135 = vector.load %arg22[%c0_129, %c64_130] : memref<8x384xf32, #tpu.memory_space<vmem>>, vector<8x128xf32>
    %c4 = arith.constant 4 : index
    %c0_131 = arith.constant 0 : index
    %c0_132 = arith.constant 0 : index
    %136 = vector.load %arg6[%c4, %c0_131, %c0_132] : memref<9x8x8xf32, #tpu.memory_space<vmem>>, vector<1x8x8xf32>
    %137 = vector.shape_cast %136 : vector<1x8x8xf32> to vector<8x8xf32>
    %cst_133 = arith.constant dense<0.000000e+00> : vector<8x128xf32>
    %138 = tpu.matmul %137, %135, %cst_133 {dimension_numbers = #tpu.dot_dimension_numbers<[1], [0], [0], [1], [0, 0, 1, 1], [], []>} : vector<8x8xf32>, vector<8x128xf32>, vector<8x128xf32> -> vector<8x128xf32>
    %139 = arith.addf %134, %138 : vector<8x128xf32>
    %c0_134 = arith.constant 0 : index
    %c80 = arith.constant 80 : index
    %140 = vector.load %arg22[%c0_134, %c80] : memref<8x384xf32, #tpu.memory_space<vmem>>, vector<8x128xf32>
    %c5 = arith.constant 5 : index
    %c0_135 = arith.constant 0 : index
    %c0_136 = arith.constant 0 : index
    %141 = vector.load %arg6[%c5, %c0_135, %c0_136] : memref<9x8x8xf32, #tpu.memory_space<vmem>>, vector<1x8x8xf32>
    %142 = vector.shape_cast %141 : vector<1x8x8xf32> to vector<8x8xf32>
    %cst_137 = arith.constant dense<0.000000e+00> : vector<8x128xf32>
    %143 = tpu.matmul %142, %140, %cst_137 {dimension_numbers = #tpu.dot_dimension_numbers<[1], [0], [0], [1], [0, 0, 1, 1], [], []>} : vector<8x8xf32>, vector<8x128xf32>, vector<8x128xf32> -> vector<8x128xf32>
    %144 = arith.addf %139, %143 : vector<8x128xf32>
    %c0_138 = arith.constant 0 : index
    %c96 = arith.constant 96 : index
    %145 = vector.load %arg22[%c0_138, %c96] : memref<8x384xf32, #tpu.memory_space<vmem>>, vector<8x128xf32>
    %c6 = arith.constant 6 : index
    %c0_139 = arith.constant 0 : index
    %c0_140 = arith.constant 0 : index
    %146 = vector.load %arg6[%c6, %c0_139, %c0_140] : memref<9x8x8xf32, #tpu.memory_space<vmem>>, vector<1x8x8xf32>
    %147 = vector.shape_cast %146 : vector<1x8x8xf32> to vector<8x8xf32>
    %cst_141 = arith.constant dense<0.000000e+00> : vector<8x128xf32>
    %148 = tpu.matmul %147, %145, %cst_141 {dimension_numbers = #tpu.dot_dimension_numbers<[1], [0], [0], [1], [0, 0, 1, 1], [], []>} : vector<8x8xf32>, vector<8x128xf32>, vector<8x128xf32> -> vector<8x128xf32>
    %149 = arith.addf %144, %148 : vector<8x128xf32>
    %c0_142 = arith.constant 0 : index
    %c112 = arith.constant 112 : index
    %150 = vector.load %arg22[%c0_142, %c112] : memref<8x384xf32, #tpu.memory_space<vmem>>, vector<8x128xf32>
    %c7 = arith.constant 7 : index
    %c0_143 = arith.constant 0 : index
    %c0_144 = arith.constant 0 : index
    %151 = vector.load %arg6[%c7, %c0_143, %c0_144] : memref<9x8x8xf32, #tpu.memory_space<vmem>>, vector<1x8x8xf32>
    %152 = vector.shape_cast %151 : vector<1x8x8xf32> to vector<8x8xf32>
    %cst_145 = arith.constant dense<0.000000e+00> : vector<8x128xf32>
    %153 = tpu.matmul %152, %150, %cst_145 {dimension_numbers = #tpu.dot_dimension_numbers<[1], [0], [0], [1], [0, 0, 1, 1], [], []>} : vector<8x8xf32>, vector<8x128xf32>, vector<8x128xf32> -> vector<8x128xf32>
    %154 = arith.addf %149, %153 : vector<8x128xf32>
    %c0_146 = arith.constant 0 : index
    %c128_147 = arith.constant 128 : index
    %155 = vector.load %arg22[%c0_146, %c128_147] : memref<8x384xf32, #tpu.memory_space<vmem>>, vector<8x128xf32>
    %c8 = arith.constant 8 : index
    %c0_148 = arith.constant 0 : index
    %c0_149 = arith.constant 0 : index
    %156 = vector.load %arg6[%c8, %c0_148, %c0_149] : memref<9x8x8xf32, #tpu.memory_space<vmem>>, vector<1x8x8xf32>
    %157 = vector.shape_cast %156 : vector<1x8x8xf32> to vector<8x8xf32>
    %cst_150 = arith.constant dense<0.000000e+00> : vector<8x128xf32>
    %158 = tpu.matmul %157, %155, %cst_150 {dimension_numbers = #tpu.dot_dimension_numbers<[1], [0], [0], [1], [0, 0, 1, 1], [], []>} : vector<8x8xf32>, vector<8x128xf32>, vector<8x128xf32> -> vector<8x128xf32>
    %159 = arith.addf %154, %158 : vector<8x128xf32>
    %c0_151 = arith.constant 0 : index
    %c0_152 = arith.constant 0 : index
    %160 = vector.load %arg7[%c0_151, %c0_152] : memref<8x1xf32, #tpu.memory_space<vmem>>, vector<8x1xf32>
    %161 = vector.broadcast %160 : vector<8x1xf32> to vector<8x128xf32>
    %162 = arith.mulf %159, %161 : vector<8x128xf32>
    %c0_153 = arith.constant 0 : index
    %c0_154 = arith.constant 0 : index
    %163 = vector.load %arg8[%c0_153, %c0_154] : memref<8x1xf32, #tpu.memory_space<vmem>>, vector<8x1xf32>
    %164 = vector.broadcast %163 : vector<8x1xf32> to vector<8x128xf32>
    %165 = arith.addf %162, %164 : vector<8x128xf32>
    %cst_155 = arith.constant 0.000000e+00 : f32
    %166 = vector.broadcast %cst_155 : f32 to vector<8x128xf32>
    %167 = arith.maximumf %165, %166 : vector<8x128xf32>
    %c0_156 = arith.constant 0 : index
    %c0_157 = arith.constant 0 : index
    %c0_158 = arith.constant 0 : index
    %168 = vector.load %arg1[%c0_156, %c0_157, %c0_158] : memref<1x4x256xf32, #tpu.memory_space<vmem>>, vector<1x4x128xf32>
    %169 = vector.shape_cast %168 : vector<1x4x128xf32> to vector<4x128xf32>
    %c0_159 = arith.constant 0 : index
    %c0_160 = arith.constant 0 : index
    %170 = vector.load %arg9[%c0_159, %c0_160] : memref<8x4xf32, #tpu.memory_space<vmem>>, vector<8x4xf32>
    %cst_161 = arith.constant dense<0.000000e+00> : vector<8x128xf32>
    %171 = tpu.matmul %170, %169, %cst_161 {dimension_numbers = #tpu.dot_dimension_numbers<[1], [0], [0], [1], [0, 0, 1, 1], [], []>} : vector<8x4xf32>, vector<4x128xf32>, vector<8x128xf32> -> vector<8x128xf32>
    %c0_162 = arith.constant 0 : index
    %c0_163 = arith.constant 0 : index
    %172 = vector.load %arg10[%c0_162, %c0_163] : memref<8x1xf32, #tpu.memory_space<vmem>>, vector<8x1xf32>
    %173 = vector.broadcast %172 : vector<8x1xf32> to vector<8x128xf32>
    %174 = arith.mulf %171, %173 : vector<8x128xf32>
    %c0_164 = arith.constant 0 : index
    %c0_165 = arith.constant 0 : index
    %175 = vector.load %arg11[%c0_164, %c0_165] : memref<8x1xf32, #tpu.memory_space<vmem>>, vector<8x1xf32>
    %176 = vector.broadcast %175 : vector<8x1xf32> to vector<8x128xf32>
    %177 = arith.addf %174, %176 : vector<8x128xf32>
    %cst_166 = arith.constant 0.000000e+00 : f32
    %178 = vector.broadcast %cst_166 : f32 to vector<8x128xf32>
    %179 = arith.maximumf %177, %178 : vector<8x128xf32>
    %180 = arith.addf %167, %179 : vector<8x128xf32>
    %c0_167 = arith.constant 0 : index
    %c0_168 = arith.constant 0 : index
    %c0_169 = arith.constant 0 : index
    %181 = vector.load %arg21[%c0_167, %c0_168, %c0_169] : memref<1x16x256xf32, #tpu.memory_space<vmem>>, vector<1x8x128xf32>
    %182 = vector.shape_cast %181 : vector<1x8x128xf32> to vector<8x128xf32>
    %183 = vector.shape_cast %180 : vector<8x128xf32> to vector<1x8x128xf32>
    tpu.vector_store %arg21[%c0_167, %c0_168, %c0_169], %183 {strides = array<i32>} : memref<1x16x256xf32, #tpu.memory_space<vmem>>, vector<1x8x128xf32>,
    %cst_170 = arith.constant 0.000000e+00 : f32
    %184 = vector.broadcast %cst_170 : f32 to vector<8x128xf32>
    %c0_171 = arith.constant 0 : index
    %c128_172 = arith.constant 128 : index
    %185 = vector.load %arg22[%c0_171, %c128_172] : memref<8x384xf32, #tpu.memory_space<vmem>>, vector<8x128xf32>
    %c0_173 = arith.constant 0 : index
    %c0_174 = arith.constant 0 : index
    %c0_175 = arith.constant 0 : index
    %186 = vector.load %arg6[%c0_173, %c0_174, %c0_175] : memref<9x8x8xf32, #tpu.memory_space<vmem>>, vector<1x8x8xf32>
    %187 = vector.shape_cast %186 : vector<1x8x8xf32> to vector<8x8xf32>
    %cst_176 = arith.constant dense<0.000000e+00> : vector<8x128xf32>
    %188 = tpu.matmul %187, %185, %cst_176 {dimension_numbers = #tpu.dot_dimension_numbers<[1], [0], [0], [1], [0, 0, 1, 1], [], []>} : vector<8x8xf32>, vector<8x128xf32>, vector<8x128xf32> -> vector<8x128xf32>
    %189 = arith.addf %184, %188 : vector<8x128xf32>
    %c0_177 = arith.constant 0 : index
    %c144 = arith.constant 144 : index
    %190 = vector.load %arg22[%c0_177, %c144] : memref<8x384xf32, #tpu.memory_space<vmem>>, vector<8x128xf32>
    %c1_178 = arith.constant 1 : index
    %c0_179 = arith.constant 0 : index
    %c0_180 = arith.constant 0 : index
    %191 = vector.load %arg6[%c1_178, %c0_179, %c0_180] : memref<9x8x8xf32, #tpu.memory_space<vmem>>, vector<1x8x8xf32>
    %192 = vector.shape_cast %191 : vector<1x8x8xf32> to vector<8x8xf32>
    %cst_181 = arith.constant dense<0.000000e+00> : vector<8x128xf32>
    %193 = tpu.matmul %192, %190, %cst_181 {dimension_numbers = #tpu.dot_dimension_numbers<[1], [0], [0], [1], [0, 0, 1, 1], [], []>} : vector<8x8xf32>, vector<8x128xf32>, vector<8x128xf32> -> vector<8x128xf32>
    %194 = arith.addf %189, %193 : vector<8x128xf32>
    %c0_182 = arith.constant 0 : index
    %c160 = arith.constant 160 : index
    %195 = vector.load %arg22[%c0_182, %c160] : memref<8x384xf32, #tpu.memory_space<vmem>>, vector<8x128xf32>
    %c2_183 = arith.constant 2 : index
    %c0_184 = arith.constant 0 : index
    %c0_185 = arith.constant 0 : index
    %196 = vector.load %arg6[%c2_183, %c0_184, %c0_185] : memref<9x8x8xf32, #tpu.memory_space<vmem>>, vector<1x8x8xf32>
    %197 = vector.shape_cast %196 : vector<1x8x8xf32> to vector<8x8xf32>
    %cst_186 = arith.constant dense<0.000000e+00> : vector<8x128xf32>
    %198 = tpu.matmul %197, %195, %cst_186 {dimension_numbers = #tpu.dot_dimension_numbers<[1], [0], [0], [1], [0, 0, 1, 1], [], []>} : vector<8x8xf32>, vector<8x128xf32>, vector<8x128xf32> -> vector<8x128xf32>
    %199 = arith.addf %194, %198 : vector<8x128xf32>
    %c0_187 = arith.constant 0 : index
    %c176 = arith.constant 176 : index
    %200 = vector.load %arg22[%c0_187, %c176] : memref<8x384xf32, #tpu.memory_space<vmem>>, vector<8x128xf32>
    %c3_188 = arith.constant 3 : index
    %c0_189 = arith.constant 0 : index
    %c0_190 = arith.constant 0 : index
    %201 = vector.load %arg6[%c3_188, %c0_189, %c0_190] : memref<9x8x8xf32, #tpu.memory_space<vmem>>, vector<1x8x8xf32>
    %202 = vector.shape_cast %201 : vector<1x8x8xf32> to vector<8x8xf32>
    %cst_191 = arith.constant dense<0.000000e+00> : vector<8x128xf32>
    %203 = tpu.matmul %202, %200, %cst_191 {dimension_numbers = #tpu.dot_dimension_numbers<[1], [0], [0], [1], [0, 0, 1, 1], [], []>} : vector<8x8xf32>, vector<8x128xf32>, vector<8x128xf32> -> vector<8x128xf32>
    %204 = arith.addf %199, %203 : vector<8x128xf32>
    %c0_192 = arith.constant 0 : index
    %c192_193 = arith.constant 192 : index
    %205 = vector.load %arg22[%c0_192, %c192_193] : memref<8x384xf32, #tpu.memory_space<vmem>>, vector<8x128xf32>
    %c4_194 = arith.constant 4 : index
    %c0_195 = arith.constant 0 : index
    %c0_196 = arith.constant 0 : index
    %206 = vector.load %arg6[%c4_194, %c0_195, %c0_196] : memref<9x8x8xf32, #tpu.memory_space<vmem>>, vector<1x8x8xf32>
    %207 = vector.shape_cast %206 : vector<1x8x8xf32> to vector<8x8xf32>
    %cst_197 = arith.constant dense<0.000000e+00> : vector<8x128xf32>
    %208 = tpu.matmul %207, %205, %cst_197 {dimension_numbers = #tpu.dot_dimension_numbers<[1], [0], [0], [1], [0, 0, 1, 1], [], []>} : vector<8x8xf32>, vector<8x128xf32>, vector<8x128xf32> -> vector<8x128xf32>
    %209 = arith.addf %204, %208 : vector<8x128xf32>
    %c0_198 = arith.constant 0 : index
    %c208 = arith.constant 208 : index
    %210 = vector.load %arg22[%c0_198, %c208] : memref<8x384xf32, #tpu.memory_space<vmem>>, vector<8x128xf32>
    %c5_199 = arith.constant 5 : index
    %c0_200 = arith.constant 0 : index
    %c0_201 = arith.constant 0 : index
    %211 = vector.load %arg6[%c5_199, %c0_200, %c0_201] : memref<9x8x8xf32, #tpu.memory_space<vmem>>, vector<1x8x8xf32>
    %212 = vector.shape_cast %211 : vector<1x8x8xf32> to vector<8x8xf32>
    %cst_202 = arith.constant dense<0.000000e+00> : vector<8x128xf32>
    %213 = tpu.matmul %212, %210, %cst_202 {dimension_numbers = #tpu.dot_dimension_numbers<[1], [0], [0], [1], [0, 0, 1, 1], [], []>} : vector<8x8xf32>, vector<8x128xf32>, vector<8x128xf32> -> vector<8x128xf32>
    %214 = arith.addf %209, %213 : vector<8x128xf32>
    %c0_203 = arith.constant 0 : index
    %c224 = arith.constant 224 : index
    %215 = vector.load %arg22[%c0_203, %c224] : memref<8x384xf32, #tpu.memory_space<vmem>>, vector<8x128xf32>
    %c6_204 = arith.constant 6 : index
    %c0_205 = arith.constant 0 : index
    %c0_206 = arith.constant 0 : index
    %216 = vector.load %arg6[%c6_204, %c0_205, %c0_206] : memref<9x8x8xf32, #tpu.memory_space<vmem>>, vector<1x8x8xf32>
    %217 = vector.shape_cast %216 : vector<1x8x8xf32> to vector<8x8xf32>
    %cst_207 = arith.constant dense<0.000000e+00> : vector<8x128xf32>
    %218 = tpu.matmul %217, %215, %cst_207 {dimension_numbers = #tpu.dot_dimension_numbers<[1], [0], [0], [1], [0, 0, 1, 1], [], []>} : vector<8x8xf32>, vector<8x128xf32>, vector<8x128xf32> -> vector<8x128xf32>
    %219 = arith.addf %214, %218 : vector<8x128xf32>
    %c0_208 = arith.constant 0 : index
    %c240 = arith.constant 240 : index
    %220 = vector.load %arg22[%c0_208, %c240] : memref<8x384xf32, #tpu.memory_space<vmem>>, vector<8x128xf32>
    %c7_209 = arith.constant 7 : index
    %c0_210 = arith.constant 0 : index
    %c0_211 = arith.constant 0 : index
    %221 = vector.load %arg6[%c7_209, %c0_210, %c0_211] : memref<9x8x8xf32, #tpu.memory_space<vmem>>, vector<1x8x8xf32>
    %222 = vector.shape_cast %221 : vector<1x8x8xf32> to vector<8x8xf32>
    %cst_212 = arith.constant dense<0.000000e+00> : vector<8x128xf32>
    %223 = tpu.matmul %222, %220, %cst_212 {dimension_numbers = #tpu.dot_dimension_numbers<[1], [0], [0], [1], [0, 0, 1, 1], [], []>} : vector<8x8xf32>, vector<8x128xf32>, vector<8x128xf32> -> vector<8x128xf32>
    %224 = arith.addf %219, %223 : vector<8x128xf32>
    %c0_213 = arith.constant 0 : index
    %c256_214 = arith.constant 256 : index
    %225 = vector.load %arg22[%c0_213, %c256_214] : memref<8x384xf32, #tpu.memory_space<vmem>>, vector<8x128xf32>
    %c8_215 = arith.constant 8 : index
    %c0_216 = arith.constant 0 : index
    %c0_217 = arith.constant 0 : index
    %226 = vector.load %arg6[%c8_215, %c0_216, %c0_217] : memref<9x8x8xf32, #tpu.memory_space<vmem>>, vector<1x8x8xf32>
    %227 = vector.shape_cast %226 : vector<1x8x8xf32> to vector<8x8xf32>
    %cst_218 = arith.constant dense<0.000000e+00> : vector<8x128xf32>
    %228 = tpu.matmul %227, %225, %cst_218 {dimension_numbers = #tpu.dot_dimension_numbers<[1], [0], [0], [1], [0, 0, 1, 1], [], []>} : vector<8x8xf32>, vector<8x128xf32>, vector<8x128xf32> -> vector<8x128xf32>
    %229 = arith.addf %224, %228 : vector<8x128xf32>
    %c0_219 = arith.constant 0 : index
    %c0_220 = arith.constant 0 : index
    %230 = vector.load %arg7[%c0_219, %c0_220] : memref<8x1xf32, #tpu.memory_space<vmem>>, vector<8x1xf32>
    %231 = vector.broadcast %230 : vector<8x1xf32> to vector<8x128xf32>
    %232 = arith.mulf %229, %231 : vector<8x128xf32>
    %c0_221 = arith.constant 0 : index
    %c0_222 = arith.constant 0 : index
    %233 = vector.load %arg8[%c0_221, %c0_222] : memref<8x1xf32, #tpu.memory_space<vmem>>, vector<8x1xf32>
    %234 = vector.broadcast %233 : vector<8x1xf32> to vector<8x128xf32>
    %235 = arith.addf %232, %234 : vector<8x128xf32>
    %cst_223 = arith.constant 0.000000e+00 : f32
    %236 = vector.broadcast %cst_223 : f32 to vector<8x128xf32>
    %237 = arith.maximumf %235, %236 : vector<8x128xf32>
    %c0_224 = arith.constant 0 : index
    %c0_225 = arith.constant 0 : index
    %c128_226 = arith.constant 128 : index
    %238 = vector.load %arg1[%c0_224, %c0_225, %c128_226] : memref<1x4x256xf32, #tpu.memory_space<vmem>>, vector<1x4x128xf32>
    %239 = vector.shape_cast %238 : vector<1x4x128xf32> to vector<4x128xf32>
    %c0_227 = arith.constant 0 : index
    %c0_228 = arith.constant 0 : index
    %240 = vector.load %arg9[%c0_227, %c0_228] : memref<8x4xf32, #tpu.memory_space<vmem>>, vector<8x4xf32>
    %cst_229 = arith.constant dense<0.000000e+00> : vector<8x128xf32>
    %241 = tpu.matmul %240, %239, %cst_229 {dimension_numbers = #tpu.dot_dimension_numbers<[1], [0], [0], [1], [0, 0, 1, 1], [], []>} : vector<8x4xf32>, vector<4x128xf32>, vector<8x128xf32> -> vector<8x128xf32>
    %c0_230 = arith.constant 0 : index
    %c0_231 = arith.constant 0 : index
    %242 = vector.load %arg10[%c0_230, %c0_231] : memref<8x1xf32, #tpu.memory_space<vmem>>, vector<8x1xf32>
    %243 = vector.broadcast %242 : vector<8x1xf32> to vector<8x128xf32>
    %244 = arith.mulf %241, %243 : vector<8x128xf32>
    %c0_232 = arith.constant 0 : index
    %c0_233 = arith.constant 0 : index
    %245 = vector.load %arg11[%c0_232, %c0_233] : memref<8x1xf32, #tpu.memory_space<vmem>>, vector<8x1xf32>
    %246 = vector.broadcast %245 : vector<8x1xf32> to vector<8x128xf32>
    %247 = arith.addf %244, %246 : vector<8x128xf32>
    %cst_234 = arith.constant 0.000000e+00 : f32
    %248 = vector.broadcast %cst_234 : f32 to vector<8x128xf32>
    %249 = arith.maximumf %247, %248 : vector<8x128xf32>
    %250 = arith.addf %237, %249 : vector<8x128xf32>
    %c0_235 = arith.constant 0 : index
    %c0_236 = arith.constant 0 : index
    %c128_237 = arith.constant 128 : index
    %251 = vector.load %arg21[%c0_235, %c0_236, %c128_237] : memref<1x16x256xf32, #tpu.memory_space<vmem>>, vector<1x8x128xf32>
    %252 = vector.shape_cast %251 : vector<1x8x128xf32> to vector<8x128xf32>
    %253 = vector.shape_cast %250 : vector<8x128xf32> to vector<1x8x128xf32>
    tpu.vector_store %arg21[%c0_235, %c0_236, %c128_237], %253 {strides = array<i32>} : memref<1x16x256xf32, #tpu.memory_space<vmem>>, vector<1x8x128xf32>,
    %cst_238 = arith.constant 0.000000e+00 : f32
    %254 = vector.broadcast %cst_238 : f32 to vector<8x128xf32>
    %c0_239 = arith.constant 0 : index
    %c0_240 = arith.constant 0 : index
    %255 = vector.load %arg23[%c0_239, %c0_240] : memref<8x512xf32, #tpu.memory_space<vmem>>, vector<8x128xf32>
    %c0_241 = arith.constant 0 : index
    %c0_242 = arith.constant 0 : index
    %c0_243 = arith.constant 0 : index
    %256 = vector.load %arg15[%c0_241, %c0_242, %c0_243] : memref<17x8x8xf32, #tpu.memory_space<vmem>>, vector<1x8x8xf32>
    %257 = vector.shape_cast %256 : vector<1x8x8xf32> to vector<8x8xf32>
    %cst_244 = arith.constant dense<0.000000e+00> : vector<8x128xf32>
    %258 = tpu.matmul %257, %255, %cst_244 {dimension_numbers = #tpu.dot_dimension_numbers<[1], [0], [0], [1], [0, 0, 1, 1], [], []>} : vector<8x8xf32>, vector<8x128xf32>, vector<8x128xf32> -> vector<8x128xf32>
    %259 = arith.addf %254, %258 : vector<8x128xf32>
    %c0_245 = arith.constant 0 : index
    %c16_246 = arith.constant 16 : index
    %260 = vector.load %arg23[%c0_245, %c16_246] : memref<8x512xf32, #tpu.memory_space<vmem>>, vector<8x128xf32>
    %c1_247 = arith.constant 1 : index
    %c0_248 = arith.constant 0 : index
    %c0_249 = arith.constant 0 : index
    %261 = vector.load %arg15[%c1_247, %c0_248, %c0_249] : memref<17x8x8xf32, #tpu.memory_space<vmem>>, vector<1x8x8xf32>
    %262 = vector.shape_cast %261 : vector<1x8x8xf32> to vector<8x8xf32>
    %cst_250 = arith.constant dense<0.000000e+00> : vector<8x128xf32>
    %263 = tpu.matmul %262, %260, %cst_250 {dimension_numbers = #tpu.dot_dimension_numbers<[1], [0], [0], [1], [0, 0, 1, 1], [], []>} : vector<8x8xf32>, vector<8x128xf32>, vector<8x128xf32> -> vector<8x128xf32>
    %264 = arith.addf %259, %263 : vector<8x128xf32>
    %c0_251 = arith.constant 0 : index
    %c32_252 = arith.constant 32 : index
    %265 = vector.load %arg23[%c0_251, %c32_252] : memref<8x512xf32, #tpu.memory_space<vmem>>, vector<8x128xf32>
    %c2_253 = arith.constant 2 : index
    %c0_254 = arith.constant 0 : index
    %c0_255 = arith.constant 0 : index
    %266 = vector.load %arg15[%c2_253, %c0_254, %c0_255] : memref<17x8x8xf32, #tpu.memory_space<vmem>>, vector<1x8x8xf32>
    %267 = vector.shape_cast %266 : vector<1x8x8xf32> to vector<8x8xf32>
    %cst_256 = arith.constant dense<0.000000e+00> : vector<8x128xf32>
    %268 = tpu.matmul %267, %265, %cst_256 {dimension_numbers = #tpu.dot_dimension_numbers<[1], [0], [0], [1], [0, 0, 1, 1], [], []>} : vector<8x8xf32>, vector<8x128xf32>, vector<8x128xf32> -> vector<8x128xf32>
    %269 = arith.addf %264, %268 : vector<8x128xf32>
    %c0_257 = arith.constant 0 : index
    %c48_258 = arith.constant 48 : index
    %270 = vector.load %arg23[%c0_257, %c48_258] : memref<8x512xf32, #tpu.memory_space<vmem>>, vector<8x128xf32>
    %c3_259 = arith.constant 3 : index
    %c0_260 = arith.constant 0 : index
    %c0_261 = arith.constant 0 : index
    %271 = vector.load %arg15[%c3_259, %c0_260, %c0_261] : memref<17x8x8xf32, #tpu.memory_space<vmem>>, vector<1x8x8xf32>
    %272 = vector.shape_cast %271 : vector<1x8x8xf32> to vector<8x8xf32>
    %cst_262 = arith.constant dense<0.000000e+00> : vector<8x128xf32>
    %273 = tpu.matmul %272, %270, %cst_262 {dimension_numbers = #tpu.dot_dimension_numbers<[1], [0], [0], [1], [0, 0, 1, 1], [], []>} : vector<8x8xf32>, vector<8x128xf32>, vector<8x128xf32> -> vector<8x128xf32>
    %274 = arith.addf %269, %273 : vector<8x128xf32>
    %c0_263 = arith.constant 0 : index
    %c64_264 = arith.constant 64 : index
    %275 = vector.load %arg23[%c0_263, %c64_264] : memref<8x512xf32, #tpu.memory_space<vmem>>, vector<8x128xf32>
    %c4_265 = arith.constant 4 : index
    %c0_266 = arith.constant 0 : index
    %c0_267 = arith.constant 0 : index
    %276 = vector.load %arg15[%c4_265, %c0_266, %c0_267] : memref<17x8x8xf32, #tpu.memory_space<vmem>>, vector<1x8x8xf32>
    %277 = vector.shape_cast %276 : vector<1x8x8xf32> to vector<8x8xf32>
    %cst_268 = arith.constant dense<0.000000e+00> : vector<8x128xf32>
    %278 = tpu.matmul %277, %275, %cst_268 {dimension_numbers = #tpu.dot_dimension_numbers<[1], [0], [0], [1], [0, 0, 1, 1], [], []>} : vector<8x8xf32>, vector<8x128xf32>, vector<8x128xf32> -> vector<8x128xf32>
    %279 = arith.addf %274, %278 : vector<8x128xf32>
    %c0_269 = arith.constant 0 : index
    %c80_270 = arith.constant 80 : index
    %280 = vector.load %arg23[%c0_269, %c80_270] : memref<8x512xf32, #tpu.memory_space<vmem>>, vector<8x128xf32>
    %c5_271 = arith.constant 5 : index
    %c0_272 = arith.constant 0 : index
    %c0_273 = arith.constant 0 : index
    %281 = vector.load %arg15[%c5_271, %c0_272, %c0_273] : memref<17x8x8xf32, #tpu.memory_space<vmem>>, vector<1x8x8xf32>
    %282 = vector.shape_cast %281 : vector<1x8x8xf32> to vector<8x8xf32>
    %cst_274 = arith.constant dense<0.000000e+00> : vector<8x128xf32>
    %283 = tpu.matmul %282, %280, %cst_274 {dimension_numbers = #tpu.dot_dimension_numbers<[1], [0], [0], [1], [0, 0, 1, 1], [], []>} : vector<8x8xf32>, vector<8x128xf32>, vector<8x128xf32> -> vector<8x128xf32>
    %284 = arith.addf %279, %283 : vector<8x128xf32>
    %c0_275 = arith.constant 0 : index
    %c96_276 = arith.constant 96 : index
    %285 = vector.load %arg23[%c0_275, %c96_276] : memref<8x512xf32, #tpu.memory_space<vmem>>, vector<8x128xf32>
    %c6_277 = arith.constant 6 : index
    %c0_278 = arith.constant 0 : index
    %c0_279 = arith.constant 0 : index
    %286 = vector.load %arg15[%c6_277, %c0_278, %c0_279] : memref<17x8x8xf32, #tpu.memory_space<vmem>>, vector<1x8x8xf32>
    %287 = vector.shape_cast %286 : vector<1x8x8xf32> to vector<8x8xf32>
    %cst_280 = arith.constant dense<0.000000e+00> : vector<8x128xf32>
    %288 = tpu.matmul %287, %285, %cst_280 {dimension_numbers = #tpu.dot_dimension_numbers<[1], [0], [0], [1], [0, 0, 1, 1], [], []>} : vector<8x8xf32>, vector<8x128xf32>, vector<8x128xf32> -> vector<8x128xf32>
    %289 = arith.addf %284, %288 : vector<8x128xf32>
    %c0_281 = arith.constant 0 : index
    %c112_282 = arith.constant 112 : index
    %290 = vector.load %arg23[%c0_281, %c112_282] : memref<8x512xf32, #tpu.memory_space<vmem>>, vector<8x128xf32>
    %c7_283 = arith.constant 7 : index
    %c0_284 = arith.constant 0 : index
    %c0_285 = arith.constant 0 : index
    %291 = vector.load %arg15[%c7_283, %c0_284, %c0_285] : memref<17x8x8xf32, #tpu.memory_space<vmem>>, vector<1x8x8xf32>
    %292 = vector.shape_cast %291 : vector<1x8x8xf32> to vector<8x8xf32>
    %cst_286 = arith.constant dense<0.000000e+00> : vector<8x128xf32>
    %293 = tpu.matmul %292, %290, %cst_286 {dimension_numbers = #tpu.dot_dimension_numbers<[1], [0], [0], [1], [0, 0, 1, 1], [], []>} : vector<8x8xf32>, vector<8x128xf32>, vector<8x128xf32> -> vector<8x128xf32>
    %294 = arith.addf %289, %293 : vector<8x128xf32>
    %c0_287 = arith.constant 0 : index
    %c128_288 = arith.constant 128 : index
    %295 = vector.load %arg23[%c0_287, %c128_288] : memref<8x512xf32, #tpu.memory_space<vmem>>, vector<8x128xf32>
    %c8_289 = arith.constant 8 : index
    %c0_290 = arith.constant 0 : index
    %c0_291 = arith.constant 0 : index
    %296 = vector.load %arg15[%c8_289, %c0_290, %c0_291] : memref<17x8x8xf32, #tpu.memory_space<vmem>>, vector<1x8x8xf32>
    %297 = vector.shape_cast %296 : vector<1x8x8xf32> to vector<8x8xf32>
    %cst_292 = arith.constant dense<0.000000e+00> : vector<8x128xf32>
    %298 = tpu.matmul %297, %295, %cst_292 {dimension_numbers = #tpu.dot_dimension_numbers<[1], [0], [0], [1], [0, 0, 1, 1], [], []>} : vector<8x8xf32>, vector<8x128xf32>, vector<8x128xf32> -> vector<8x128xf32>
    %299 = arith.addf %294, %298 : vector<8x128xf32>
    %c0_293 = arith.constant 0 : index
    %c144_294 = arith.constant 144 : index
    %300 = vector.load %arg23[%c0_293, %c144_294] : memref<8x512xf32, #tpu.memory_space<vmem>>, vector<8x128xf32>
    %c9 = arith.constant 9 : index
    %c0_295 = arith.constant 0 : index
    %c0_296 = arith.constant 0 : index
    %301 = vector.load %arg15[%c9, %c0_295, %c0_296] : memref<17x8x8xf32, #tpu.memory_space<vmem>>, vector<1x8x8xf32>
    %302 = vector.shape_cast %301 : vector<1x8x8xf32> to vector<8x8xf32>
    %cst_297 = arith.constant dense<0.000000e+00> : vector<8x128xf32>
    %303 = tpu.matmul %302, %300, %cst_297 {dimension_numbers = #tpu.dot_dimension_numbers<[1], [0], [0], [1], [0, 0, 1, 1], [], []>} : vector<8x8xf32>, vector<8x128xf32>, vector<8x128xf32> -> vector<8x128xf32>
    %304 = arith.addf %299, %303 : vector<8x128xf32>
    %c0_298 = arith.constant 0 : index
    %c160_299 = arith.constant 160 : index
    %305 = vector.load %arg23[%c0_298, %c160_299] : memref<8x512xf32, #tpu.memory_space<vmem>>, vector<8x128xf32>
    %c10 = arith.constant 10 : index
    %c0_300 = arith.constant 0 : index
    %c0_301 = arith.constant 0 : index
    %306 = vector.load %arg15[%c10, %c0_300, %c0_301] : memref<17x8x8xf32, #tpu.memory_space<vmem>>, vector<1x8x8xf32>
    %307 = vector.shape_cast %306 : vector<1x8x8xf32> to vector<8x8xf32>
    %cst_302 = arith.constant dense<0.000000e+00> : vector<8x128xf32>
    %308 = tpu.matmul %307, %305, %cst_302 {dimension_numbers = #tpu.dot_dimension_numbers<[1], [0], [0], [1], [0, 0, 1, 1], [], []>} : vector<8x8xf32>, vector<8x128xf32>, vector<8x128xf32> -> vector<8x128xf32>
    %309 = arith.addf %304, %308 : vector<8x128xf32>
    %c0_303 = arith.constant 0 : index
    %c176_304 = arith.constant 176 : index
    %310 = vector.load %arg23[%c0_303, %c176_304] : memref<8x512xf32, #tpu.memory_space<vmem>>, vector<8x128xf32>
    %c11 = arith.constant 11 : index
    %c0_305 = arith.constant 0 : index
    %c0_306 = arith.constant 0 : index
    %311 = vector.load %arg15[%c11, %c0_305, %c0_306] : memref<17x8x8xf32, #tpu.memory_space<vmem>>, vector<1x8x8xf32>
    %312 = vector.shape_cast %311 : vector<1x8x8xf32> to vector<8x8xf32>
    %cst_307 = arith.constant dense<0.000000e+00> : vector<8x128xf32>
    %313 = tpu.matmul %312, %310, %cst_307 {dimension_numbers = #tpu.dot_dimension_numbers<[1], [0], [0], [1], [0, 0, 1, 1], [], []>} : vector<8x8xf32>, vector<8x128xf32>, vector<8x128xf32> -> vector<8x128xf32>
    %314 = arith.addf %309, %313 : vector<8x128xf32>
    %c0_308 = arith.constant 0 : index
    %c192_309 = arith.constant 192 : index
    %315 = vector.load %arg23[%c0_308, %c192_309] : memref<8x512xf32, #tpu.memory_space<vmem>>, vector<8x128xf32>
    %c12 = arith.constant 12 : index
    %c0_310 = arith.constant 0 : index
    %c0_311 = arith.constant 0 : index
    %316 = vector.load %arg15[%c12, %c0_310, %c0_311] : memref<17x8x8xf32, #tpu.memory_space<vmem>>, vector<1x8x8xf32>
    %317 = vector.shape_cast %316 : vector<1x8x8xf32> to vector<8x8xf32>
    %cst_312 = arith.constant dense<0.000000e+00> : vector<8x128xf32>
    %318 = tpu.matmul %317, %315, %cst_312 {dimension_numbers = #tpu.dot_dimension_numbers<[1], [0], [0], [1], [0, 0, 1, 1], [], []>} : vector<8x8xf32>, vector<8x128xf32>, vector<8x128xf32> -> vector<8x128xf32>
    %319 = arith.addf %314, %318 : vector<8x128xf32>
    %c0_313 = arith.constant 0 : index
    %c208_314 = arith.constant 208 : index
    %320 = vector.load %arg23[%c0_313, %c208_314] : memref<8x512xf32, #tpu.memory_space<vmem>>, vector<8x128xf32>
    %c13 = arith.constant 13 : index
    %c0_315 = arith.constant 0 : index
    %c0_316 = arith.constant 0 : index
    %321 = vector.load %arg15[%c13, %c0_315, %c0_316] : memref<17x8x8xf32, #tpu.memory_space<vmem>>, vector<1x8x8xf32>
    %322 = vector.shape_cast %321 : vector<1x8x8xf32> to vector<8x8xf32>
    %cst_317 = arith.constant dense<0.000000e+00> : vector<8x128xf32>
    %323 = tpu.matmul %322, %320, %cst_317 {dimension_numbers = #tpu.dot_dimension_numbers<[1], [0], [0], [1], [0, 0, 1, 1], [], []>} : vector<8x8xf32>, vector<8x128xf32>, vector<8x128xf32> -> vector<8x128xf32>
    %324 = arith.addf %319, %323 : vector<8x128xf32>
    %c0_318 = arith.constant 0 : index
    %c224_319 = arith.constant 224 : index
    %325 = vector.load %arg23[%c0_318, %c224_319] : memref<8x512xf32, #tpu.memory_space<vmem>>, vector<8x128xf32>
    %c14 = arith.constant 14 : index
    %c0_320 = arith.constant 0 : index
    %c0_321 = arith.constant 0 : index
    %326 = vector.load %arg15[%c14, %c0_320, %c0_321] : memref<17x8x8xf32, #tpu.memory_space<vmem>>, vector<1x8x8xf32>
    %327 = vector.shape_cast %326 : vector<1x8x8xf32> to vector<8x8xf32>
    %cst_322 = arith.constant dense<0.000000e+00> : vector<8x128xf32>
    %328 = tpu.matmul %327, %325, %cst_322 {dimension_numbers = #tpu.dot_dimension_numbers<[1], [0], [0], [1], [0, 0, 1, 1], [], []>} : vector<8x8xf32>, vector<8x128xf32>, vector<8x128xf32> -> vector<8x128xf32>
    %329 = arith.addf %324, %328 : vector<8x128xf32>
    %c0_323 = arith.constant 0 : index
    %c240_324 = arith.constant 240 : index
    %330 = vector.load %arg23[%c0_323, %c240_324] : memref<8x512xf32, #tpu.memory_space<vmem>>, vector<8x128xf32>
    %c15 = arith.constant 15 : index
    %c0_325 = arith.constant 0 : index
    %c0_326 = arith.constant 0 : index
    %331 = vector.load %arg15[%c15, %c0_325, %c0_326] : memref<17x8x8xf32, #tpu.memory_space<vmem>>, vector<1x8x8xf32>
    %332 = vector.shape_cast %331 : vector<1x8x8xf32> to vector<8x8xf32>
    %cst_327 = arith.constant dense<0.000000e+00> : vector<8x128xf32>
    %333 = tpu.matmul %332, %330, %cst_327 {dimension_numbers = #tpu.dot_dimension_numbers<[1], [0], [0], [1], [0, 0, 1, 1], [], []>} : vector<8x8xf32>, vector<8x128xf32>, vector<8x128xf32> -> vector<8x128xf32>
    %334 = arith.addf %329, %333 : vector<8x128xf32>
    %c0_328 = arith.constant 0 : index
    %c256_329 = arith.constant 256 : index
    %335 = vector.load %arg23[%c0_328, %c256_329] : memref<8x512xf32, #tpu.memory_space<vmem>>, vector<8x128xf32>
    %c16_330 = arith.constant 16 : index
    %c0_331 = arith.constant 0 : index
    %c0_332 = arith.constant 0 : index
    %336 = vector.load %arg15[%c16_330, %c0_331, %c0_332] : memref<17x8x8xf32, #tpu.memory_space<vmem>>, vector<1x8x8xf32>
    %337 = vector.shape_cast %336 : vector<1x8x8xf32> to vector<8x8xf32>
    %cst_333 = arith.constant dense<0.000000e+00> : vector<8x128xf32>
    %338 = tpu.matmul %337, %335, %cst_333 {dimension_numbers = #tpu.dot_dimension_numbers<[1], [0], [0], [1], [0, 0, 1, 1], [], []>} : vector<8x8xf32>, vector<8x128xf32>, vector<8x128xf32> -> vector<8x128xf32>
    %339 = arith.addf %334, %338 : vector<8x128xf32>
    %c0_334 = arith.constant 0 : index
    %c0_335 = arith.constant 0 : index
    %340 = vector.load %arg16[%c0_334, %c0_335] : memref<8x1xf32, #tpu.memory_space<vmem>>, vector<8x1xf32>
    %341 = vector.broadcast %340 : vector<8x1xf32> to vector<8x128xf32>
    %342 = arith.mulf %339, %341 : vector<8x128xf32>
    %c0_336 = arith.constant 0 : index
    %c0_337 = arith.constant 0 : index
    %343 = vector.load %arg17[%c0_336, %c0_337] : memref<8x1xf32, #tpu.memory_space<vmem>>, vector<8x1xf32>
    %344 = vector.broadcast %343 : vector<8x1xf32> to vector<8x128xf32>
    %345 = arith.addf %342, %344 : vector<8x128xf32>
    %cst_338 = arith.constant 0.000000e+00 : f32
    %346 = vector.broadcast %cst_338 : f32 to vector<8x128xf32>
    %347 = arith.maximumf %345, %346 : vector<8x128xf32>
    %c0_339 = arith.constant 0 : index
    %c0_340 = arith.constant 0 : index
    %c0_341 = arith.constant 0 : index
    %348 = vector.load %arg1[%c0_339, %c0_340, %c0_341] : memref<1x4x256xf32, #tpu.memory_space<vmem>>, vector<1x4x128xf32>
    %349 = vector.shape_cast %348 : vector<1x4x128xf32> to vector<4x128xf32>
    %c0_342 = arith.constant 0 : index
    %c0_343 = arith.constant 0 : index
    %350 = vector.load %arg18[%c0_342, %c0_343] : memref<8x4xf32, #tpu.memory_space<vmem>>, vector<8x4xf32>
    %cst_344 = arith.constant dense<0.000000e+00> : vector<8x128xf32>
    %351 = tpu.matmul %350, %349, %cst_344 {dimension_numbers = #tpu.dot_dimension_numbers<[1], [0], [0], [1], [0, 0, 1, 1], [], []>} : vector<8x4xf32>, vector<4x128xf32>, vector<8x128xf32> -> vector<8x128xf32>
    %c0_345 = arith.constant 0 : index
    %c0_346 = arith.constant 0 : index
    %352 = vector.load %arg19[%c0_345, %c0_346] : memref<8x1xf32, #tpu.memory_space<vmem>>, vector<8x1xf32>
    %353 = vector.broadcast %352 : vector<8x1xf32> to vector<8x128xf32>
    %354 = arith.mulf %351, %353 : vector<8x128xf32>
    %c0_347 = arith.constant 0 : index
    %c0_348 = arith.constant 0 : index
    %355 = vector.load %arg20[%c0_347, %c0_348] : memref<8x1xf32, #tpu.memory_space<vmem>>, vector<8x1xf32>
    %356 = vector.broadcast %355 : vector<8x1xf32> to vector<8x128xf32>
    %357 = arith.addf %354, %356 : vector<8x128xf32>
    %cst_349 = arith.constant 0.000000e+00 : f32
    %358 = vector.broadcast %cst_349 : f32 to vector<8x128xf32>
    %359 = arith.maximumf %357, %358 : vector<8x128xf32>
    %360 = arith.addf %347, %359 : vector<8x128xf32>
    %c0_350 = arith.constant 0 : index
    %c8_351 = arith.constant 8 : index
    %c0_352 = arith.constant 0 : index
    %361 = vector.load %arg21[%c0_350, %c8_351, %c0_352] : memref<1x16x256xf32, #tpu.memory_space<vmem>>, vector<1x8x128xf32>
    %362 = vector.shape_cast %361 : vector<1x8x128xf32> to vector<8x128xf32>
    %363 = vector.shape_cast %360 : vector<8x128xf32> to vector<1x8x128xf32>
    tpu.vector_store %arg21[%c0_350, %c8_351, %c0_352], %363 {strides = array<i32>} : memref<1x16x256xf32, #tpu.memory_space<vmem>>, vector<1x8x128xf32>,
    %cst_353 = arith.constant 0.000000e+00 : f32
    %364 = vector.broadcast %cst_353 : f32 to vector<8x128xf32>
    %c0_354 = arith.constant 0 : index
    %c128_355 = arith.constant 128 : index
    %365 = vector.load %arg23[%c0_354, %c128_355] : memref<8x512xf32, #tpu.memory_space<vmem>>, vector<8x128xf32>
    %c0_356 = arith.constant 0 : index
    %c0_357 = arith.constant 0 : index
    %c0_358 = arith.constant 0 : index
    %366 = vector.load %arg15[%c0_356, %c0_357, %c0_358] : memref<17x8x8xf32, #tpu.memory_space<vmem>>, vector<1x8x8xf32>
    %367 = vector.shape_cast %366 : vector<1x8x8xf32> to vector<8x8xf32>
    %cst_359 = arith.constant dense<0.000000e+00> : vector<8x128xf32>
    %368 = tpu.matmul %367, %365, %cst_359 {dimension_numbers = #tpu.dot_dimension_numbers<[1], [0], [0], [1], [0, 0, 1, 1], [], []>} : vector<8x8xf32>, vector<8x128xf32>, vector<8x128xf32> -> vector<8x128xf32>
    %369 = arith.addf %364, %368 : vector<8x128xf32>
    %c0_360 = arith.constant 0 : index
    %c144_361 = arith.constant 144 : index
    %370 = vector.load %arg23[%c0_360, %c144_361] : memref<8x512xf32, #tpu.memory_space<vmem>>, vector<8x128xf32>
    %c1_362 = arith.constant 1 : index
    %c0_363 = arith.constant 0 : index
    %c0_364 = arith.constant 0 : index
    %371 = vector.load %arg15[%c1_362, %c0_363, %c0_364] : memref<17x8x8xf32, #tpu.memory_space<vmem>>, vector<1x8x8xf32>
    %372 = vector.shape_cast %371 : vector<1x8x8xf32> to vector<8x8xf32>
    %cst_365 = arith.constant dense<0.000000e+00> : vector<8x128xf32>
    %373 = tpu.matmul %372, %370, %cst_365 {dimension_numbers = #tpu.dot_dimension_numbers<[1], [0], [0], [1], [0, 0, 1, 1], [], []>} : vector<8x8xf32>, vector<8x128xf32>, vector<8x128xf32> -> vector<8x128xf32>
    %374 = arith.addf %369, %373 : vector<8x128xf32>
    %c0_366 = arith.constant 0 : index
    %c160_367 = arith.constant 160 : index
    %375 = vector.load %arg23[%c0_366, %c160_367] : memref<8x512xf32, #tpu.memory_space<vmem>>, vector<8x128xf32>
    %c2_368 = arith.constant 2 : index
    %c0_369 = arith.constant 0 : index
    %c0_370 = arith.constant 0 : index
    %376 = vector.load %arg15[%c2_368, %c0_369, %c0_370] : memref<17x8x8xf32, #tpu.memory_space<vmem>>, vector<1x8x8xf32>
    %377 = vector.shape_cast %376 : vector<1x8x8xf32> to vector<8x8xf32>
    %cst_371 = arith.constant dense<0.000000e+00> : vector<8x128xf32>
    %378 = tpu.matmul %377, %375, %cst_371 {dimension_numbers = #tpu.dot_dimension_numbers<[1], [0], [0], [1], [0, 0, 1, 1], [], []>} : vector<8x8xf32>, vector<8x128xf32>, vector<8x128xf32> -> vector<8x128xf32>
    %379 = arith.addf %374, %378 : vector<8x128xf32>
    %c0_372 = arith.constant 0 : index
    %c176_373 = arith.constant 176 : index
    %380 = vector.load %arg23[%c0_372, %c176_373] : memref<8x512xf32, #tpu.memory_space<vmem>>, vector<8x128xf32>
    %c3_374 = arith.constant 3 : index
    %c0_375 = arith.constant 0 : index
    %c0_376 = arith.constant 0 : index
    %381 = vector.load %arg15[%c3_374, %c0_375, %c0_376] : memref<17x8x8xf32, #tpu.memory_space<vmem>>, vector<1x8x8xf32>
    %382 = vector.shape_cast %381 : vector<1x8x8xf32> to vector<8x8xf32>
    %cst_377 = arith.constant dense<0.000000e+00> : vector<8x128xf32>
    %383 = tpu.matmul %382, %380, %cst_377 {dimension_numbers = #tpu.dot_dimension_numbers<[1], [0], [0], [1], [0, 0, 1, 1], [], []>} : vector<8x8xf32>, vector<8x128xf32>, vector<8x128xf32> -> vector<8x128xf32>
    %384 = arith.addf %379, %383 : vector<8x128xf32>
    %c0_378 = arith.constant 0 : index
    %c192_379 = arith.constant 192 : index
    %385 = vector.load %arg23[%c0_378, %c192_379] : memref<8x512xf32, #tpu.memory_space<vmem>>, vector<8x128xf32>
    %c4_380 = arith.constant 4 : index
    %c0_381 = arith.constant 0 : index
    %c0_382 = arith.constant 0 : index
    %386 = vector.load %arg15[%c4_380, %c0_381, %c0_382] : memref<17x8x8xf32, #tpu.memory_space<vmem>>, vector<1x8x8xf32>
    %387 = vector.shape_cast %386 : vector<1x8x8xf32> to vector<8x8xf32>
    %cst_383 = arith.constant dense<0.000000e+00> : vector<8x128xf32>
    %388 = tpu.matmul %387, %385, %cst_383 {dimension_numbers = #tpu.dot_dimension_numbers<[1], [0], [0], [1], [0, 0, 1, 1], [], []>} : vector<8x8xf32>, vector<8x128xf32>, vector<8x128xf32> -> vector<8x128xf32>
    %389 = arith.addf %384, %388 : vector<8x128xf32>
    %c0_384 = arith.constant 0 : index
    %c208_385 = arith.constant 208 : index
    %390 = vector.load %arg23[%c0_384, %c208_385] : memref<8x512xf32, #tpu.memory_space<vmem>>, vector<8x128xf32>
    %c5_386 = arith.constant 5 : index
    %c0_387 = arith.constant 0 : index
    %c0_388 = arith.constant 0 : index
    %391 = vector.load %arg15[%c5_386, %c0_387, %c0_388] : memref<17x8x8xf32, #tpu.memory_space<vmem>>, vector<1x8x8xf32>
    %392 = vector.shape_cast %391 : vector<1x8x8xf32> to vector<8x8xf32>
    %cst_389 = arith.constant dense<0.000000e+00> : vector<8x128xf32>
    %393 = tpu.matmul %392, %390, %cst_389 {dimension_numbers = #tpu.dot_dimension_numbers<[1], [0], [0], [1], [0, 0, 1, 1], [], []>} : vector<8x8xf32>, vector<8x128xf32>, vector<8x128xf32> -> vector<8x128xf32>
    %394 = arith.addf %389, %393 : vector<8x128xf32>
    %c0_390 = arith.constant 0 : index
    %c224_391 = arith.constant 224 : index
    %395 = vector.load %arg23[%c0_390, %c224_391] : memref<8x512xf32, #tpu.memory_space<vmem>>, vector<8x128xf32>
    %c6_392 = arith.constant 6 : index
    %c0_393 = arith.constant 0 : index
    %c0_394 = arith.constant 0 : index
    %396 = vector.load %arg15[%c6_392, %c0_393, %c0_394] : memref<17x8x8xf32, #tpu.memory_space<vmem>>, vector<1x8x8xf32>
    %397 = vector.shape_cast %396 : vector<1x8x8xf32> to vector<8x8xf32>
    %cst_395 = arith.constant dense<0.000000e+00> : vector<8x128xf32>
    %398 = tpu.matmul %397, %395, %cst_395 {dimension_numbers = #tpu.dot_dimension_numbers<[1], [0], [0], [1], [0, 0, 1, 1], [], []>} : vector<8x8xf32>, vector<8x128xf32>, vector<8x128xf32> -> vector<8x128xf32>
    %399 = arith.addf %394, %398 : vector<8x128xf32>
    %c0_396 = arith.constant 0 : index
    %c240_397 = arith.constant 240 : index
    %400 = vector.load %arg23[%c0_396, %c240_397] : memref<8x512xf32, #tpu.memory_space<vmem>>, vector<8x128xf32>
    %c7_398 = arith.constant 7 : index
    %c0_399 = arith.constant 0 : index
    %c0_400 = arith.constant 0 : index
    %401 = vector.load %arg15[%c7_398, %c0_399, %c0_400] : memref<17x8x8xf32, #tpu.memory_space<vmem>>, vector<1x8x8xf32>
    %402 = vector.shape_cast %401 : vector<1x8x8xf32> to vector<8x8xf32>
    %cst_401 = arith.constant dense<0.000000e+00> : vector<8x128xf32>
    %403 = tpu.matmul %402, %400, %cst_401 {dimension_numbers = #tpu.dot_dimension_numbers<[1], [0], [0], [1], [0, 0, 1, 1], [], []>} : vector<8x8xf32>, vector<8x128xf32>, vector<8x128xf32> -> vector<8x128xf32>
    %404 = arith.addf %399, %403 : vector<8x128xf32>
    %c0_402 = arith.constant 0 : index
    %c256_403 = arith.constant 256 : index
    %405 = vector.load %arg23[%c0_402, %c256_403] : memref<8x512xf32, #tpu.memory_space<vmem>>, vector<8x128xf32>
    %c8_404 = arith.constant 8 : index
    %c0_405 = arith.constant 0 : index
    %c0_406 = arith.constant 0 : index
    %406 = vector.load %arg15[%c8_404, %c0_405, %c0_406] : memref<17x8x8xf32, #tpu.memory_space<vmem>>, vector<1x8x8xf32>
    %407 = vector.shape_cast %406 : vector<1x8x8xf32> to vector<8x8xf32>
    %cst_407 = arith.constant dense<0.000000e+00> : vector<8x128xf32>
    %408 = tpu.matmul %407, %405, %cst_407 {dimension_numbers = #tpu.dot_dimension_numbers<[1], [0], [0], [1], [0, 0, 1, 1], [], []>} : vector<8x8xf32>, vector<8x128xf32>, vector<8x128xf32> -> vector<8x128xf32>
    %409 = arith.addf %404, %408 : vector<8x128xf32>
    %c0_408 = arith.constant 0 : index
    %c272 = arith.constant 272 : index
    %410 = vector.load %arg23[%c0_408, %c272] : memref<8x512xf32, #tpu.memory_space<vmem>>, vector<8x128xf32>
    %c9_409 = arith.constant 9 : index
    %c0_410 = arith.constant 0 : index
    %c0_411 = arith.constant 0 : index
    %411 = vector.load %arg15[%c9_409, %c0_410, %c0_411] : memref<17x8x8xf32, #tpu.memory_space<vmem>>, vector<1x8x8xf32>
    %412 = vector.shape_cast %411 : vector<1x8x8xf32> to vector<8x8xf32>
    %cst_412 = arith.constant dense<0.000000e+00> : vector<8x128xf32>
    %413 = tpu.matmul %412, %410, %cst_412 {dimension_numbers = #tpu.dot_dimension_numbers<[1], [0], [0], [1], [0, 0, 1, 1], [], []>} : vector<8x8xf32>, vector<8x128xf32>, vector<8x128xf32> -> vector<8x128xf32>
    %414 = arith.addf %409, %413 : vector<8x128xf32>
    %c0_413 = arith.constant 0 : index
    %c288 = arith.constant 288 : index
    %415 = vector.load %arg23[%c0_413, %c288] : memref<8x512xf32, #tpu.memory_space<vmem>>, vector<8x128xf32>
    %c10_414 = arith.constant 10 : index
    %c0_415 = arith.constant 0 : index
    %c0_416 = arith.constant 0 : index
    %416 = vector.load %arg15[%c10_414, %c0_415, %c0_416] : memref<17x8x8xf32, #tpu.memory_space<vmem>>, vector<1x8x8xf32>
    %417 = vector.shape_cast %416 : vector<1x8x8xf32> to vector<8x8xf32>
    %cst_417 = arith.constant dense<0.000000e+00> : vector<8x128xf32>
    %418 = tpu.matmul %417, %415, %cst_417 {dimension_numbers = #tpu.dot_dimension_numbers<[1], [0], [0], [1], [0, 0, 1, 1], [], []>} : vector<8x8xf32>, vector<8x128xf32>, vector<8x128xf32> -> vector<8x128xf32>
    %419 = arith.addf %414, %418 : vector<8x128xf32>
    %c0_418 = arith.constant 0 : index
    %c304 = arith.constant 304 : index
    %420 = vector.load %arg23[%c0_418, %c304] : memref<8x512xf32, #tpu.memory_space<vmem>>, vector<8x128xf32>
    %c11_419 = arith.constant 11 : index
    %c0_420 = arith.constant 0 : index
    %c0_421 = arith.constant 0 : index
    %421 = vector.load %arg15[%c11_419, %c0_420, %c0_421] : memref<17x8x8xf32, #tpu.memory_space<vmem>>, vector<1x8x8xf32>
    %422 = vector.shape_cast %421 : vector<1x8x8xf32> to vector<8x8xf32>
    %cst_422 = arith.constant dense<0.000000e+00> : vector<8x128xf32>
    %423 = tpu.matmul %422, %420, %cst_422 {dimension_numbers = #tpu.dot_dimension_numbers<[1], [0], [0], [1], [0, 0, 1, 1], [], []>} : vector<8x8xf32>, vector<8x128xf32>, vector<8x128xf32> -> vector<8x128xf32>
    %424 = arith.addf %419, %423 : vector<8x128xf32>
    %c0_423 = arith.constant 0 : index
    %c320 = arith.constant 320 : index
    %425 = vector.load %arg23[%c0_423, %c320] : memref<8x512xf32, #tpu.memory_space<vmem>>, vector<8x128xf32>
    %c12_424 = arith.constant 12 : index
    %c0_425 = arith.constant 0 : index
    %c0_426 = arith.constant 0 : index
    %426 = vector.load %arg15[%c12_424, %c0_425, %c0_426] : memref<17x8x8xf32, #tpu.memory_space<vmem>>, vector<1x8x8xf32>
    %427 = vector.shape_cast %426 : vector<1x8x8xf32> to vector<8x8xf32>
    %cst_427 = arith.constant dense<0.000000e+00> : vector<8x128xf32>
    %428 = tpu.matmul %427, %425, %cst_427 {dimension_numbers = #tpu.dot_dimension_numbers<[1], [0], [0], [1], [0, 0, 1, 1], [], []>} : vector<8x8xf32>, vector<8x128xf32>, vector<8x128xf32> -> vector<8x128xf32>
    %429 = arith.addf %424, %428 : vector<8x128xf32>
    %c0_428 = arith.constant 0 : index
    %c336 = arith.constant 336 : index
    %430 = vector.load %arg23[%c0_428, %c336] : memref<8x512xf32, #tpu.memory_space<vmem>>, vector<8x128xf32>
    %c13_429 = arith.constant 13 : index
    %c0_430 = arith.constant 0 : index
    %c0_431 = arith.constant 0 : index
    %431 = vector.load %arg15[%c13_429, %c0_430, %c0_431] : memref<17x8x8xf32, #tpu.memory_space<vmem>>, vector<1x8x8xf32>
    %432 = vector.shape_cast %431 : vector<1x8x8xf32> to vector<8x8xf32>
    %cst_432 = arith.constant dense<0.000000e+00> : vector<8x128xf32>
    %433 = tpu.matmul %432, %430, %cst_432 {dimension_numbers = #tpu.dot_dimension_numbers<[1], [0], [0], [1], [0, 0, 1, 1], [], []>} : vector<8x8xf32>, vector<8x128xf32>, vector<8x128xf32> -> vector<8x128xf32>
    %434 = arith.addf %429, %433 : vector<8x128xf32>
    %c0_433 = arith.constant 0 : index
    %c352 = arith.constant 352 : index
    %435 = vector.load %arg23[%c0_433, %c352] : memref<8x512xf32, #tpu.memory_space<vmem>>, vector<8x128xf32>
    %c14_434 = arith.constant 14 : index
    %c0_435 = arith.constant 0 : index
    %c0_436 = arith.constant 0 : index
    %436 = vector.load %arg15[%c14_434, %c0_435, %c0_436] : memref<17x8x8xf32, #tpu.memory_space<vmem>>, vector<1x8x8xf32>
    %437 = vector.shape_cast %436 : vector<1x8x8xf32> to vector<8x8xf32>
    %cst_437 = arith.constant dense<0.000000e+00> : vector<8x128xf32>
    %438 = tpu.matmul %437, %435, %cst_437 {dimension_numbers = #tpu.dot_dimension_numbers<[1], [0], [0], [1], [0, 0, 1, 1], [], []>} : vector<8x8xf32>, vector<8x128xf32>, vector<8x128xf32> -> vector<8x128xf32>
    %439 = arith.addf %434, %438 : vector<8x128xf32>
    %c0_438 = arith.constant 0 : index
    %c368 = arith.constant 368 : index
    %440 = vector.load %arg23[%c0_438, %c368] : memref<8x512xf32, #tpu.memory_space<vmem>>, vector<8x128xf32>
    %c15_439 = arith.constant 15 : index
    %c0_440 = arith.constant 0 : index
    %c0_441 = arith.constant 0 : index
    %441 = vector.load %arg15[%c15_439, %c0_440, %c0_441] : memref<17x8x8xf32, #tpu.memory_space<vmem>>, vector<1x8x8xf32>
    %442 = vector.shape_cast %441 : vector<1x8x8xf32> to vector<8x8xf32>
    %cst_442 = arith.constant dense<0.000000e+00> : vector<8x128xf32>
    %443 = tpu.matmul %442, %440, %cst_442 {dimension_numbers = #tpu.dot_dimension_numbers<[1], [0], [0], [1], [0, 0, 1, 1], [], []>} : vector<8x8xf32>, vector<8x128xf32>, vector<8x128xf32> -> vector<8x128xf32>
    %444 = arith.addf %439, %443 : vector<8x128xf32>
    %c0_443 = arith.constant 0 : index
    %c384 = arith.constant 384 : index
    %445 = vector.load %arg23[%c0_443, %c384] : memref<8x512xf32, #tpu.memory_space<vmem>>, vector<8x128xf32>
    %c16_444 = arith.constant 16 : index
    %c0_445 = arith.constant 0 : index
    %c0_446 = arith.constant 0 : index
    %446 = vector.load %arg15[%c16_444, %c0_445, %c0_446] : memref<17x8x8xf32, #tpu.memory_space<vmem>>, vector<1x8x8xf32>
    %447 = vector.shape_cast %446 : vector<1x8x8xf32> to vector<8x8xf32>
    %cst_447 = arith.constant dense<0.000000e+00> : vector<8x128xf32>
    %448 = tpu.matmul %447, %445, %cst_447 {dimension_numbers = #tpu.dot_dimension_numbers<[1], [0], [0], [1], [0, 0, 1, 1], [], []>} : vector<8x8xf32>, vector<8x128xf32>, vector<8x128xf32> -> vector<8x128xf32>
    %449 = arith.addf %444, %448 : vector<8x128xf32>
    %c0_448 = arith.constant 0 : index
    %c0_449 = arith.constant 0 : index
    %450 = vector.load %arg16[%c0_448, %c0_449] : memref<8x1xf32, #tpu.memory_space<vmem>>, vector<8x1xf32>
    %451 = vector.broadcast %450 : vector<8x1xf32> to vector<8x128xf32>
    %452 = arith.mulf %449, %451 : vector<8x128xf32>
    %c0_450 = arith.constant 0 : index
    %c0_451 = arith.constant 0 : index
    %453 = vector.load %arg17[%c0_450, %c0_451] : memref<8x1xf32, #tpu.memory_space<vmem>>, vector<8x1xf32>
    %454 = vector.broadcast %453 : vector<8x1xf32> to vector<8x128xf32>
    %455 = arith.addf %452, %454 : vector<8x128xf32>
    %cst_452 = arith.constant 0.000000e+00 : f32
    %456 = vector.broadcast %cst_452 : f32 to vector<8x128xf32>
    %457 = arith.maximumf %455, %456 : vector<8x128xf32>
    %c0_453 = arith.constant 0 : index
    %c0_454 = arith.constant 0 : index
    %c128_455 = arith.constant 128 : index
    %458 = vector.load %arg1[%c0_453, %c0_454, %c128_455] : memref<1x4x256xf32, #tpu.memory_space<vmem>>, vector<1x4x128xf32>
    %459 = vector.shape_cast %458 : vector<1x4x128xf32> to vector<4x128xf32>
    %c0_456 = arith.constant 0 : index
    %c0_457 = arith.constant 0 : index
    %460 = vector.load %arg18[%c0_456, %c0_457] : memref<8x4xf32, #tpu.memory_space<vmem>>, vector<8x4xf32>
    %cst_458 = arith.constant dense<0.000000e+00> : vector<8x128xf32>
    %461 = tpu.matmul %460, %459, %cst_458 {dimension_numbers = #tpu.dot_dimension_numbers<[1], [0], [0], [1], [0, 0, 1, 1], [], []>} : vector<8x4xf32>, vector<4x128xf32>, vector<8x128xf32> -> vector<8x128xf32>
    %c0_459 = arith.constant 0 : index
    %c0_460 = arith.constant 0 : index
    %462 = vector.load %arg19[%c0_459, %c0_460] : memref<8x1xf32, #tpu.memory_space<vmem>>, vector<8x1xf32>
    %463 = vector.broadcast %462 : vector<8x1xf32> to vector<8x128xf32>
    %464 = arith.mulf %461, %463 : vector<8x128xf32>
    %c0_461 = arith.constant 0 : index
    %c0_462 = arith.constant 0 : index
    %465 = vector.load %arg20[%c0_461, %c0_462] : memref<8x1xf32, #tpu.memory_space<vmem>>, vector<8x1xf32>
    %466 = vector.broadcast %465 : vector<8x1xf32> to vector<8x128xf32>
    %467 = arith.addf %464, %466 : vector<8x128xf32>
    %cst_463 = arith.constant 0.000000e+00 : f32
    %468 = vector.broadcast %cst_463 : f32 to vector<8x128xf32>
    %469 = arith.maximumf %467, %468 : vector<8x128xf32>
    %470 = arith.addf %457, %469 : vector<8x128xf32>
    %c0_464 = arith.constant 0 : index
    %c8_465 = arith.constant 8 : index
    %c128_466 = arith.constant 128 : index
    %471 = vector.load %arg21[%c0_464, %c8_465, %c128_466] : memref<1x16x256xf32, #tpu.memory_space<vmem>>, vector<1x8x128xf32>
    %472 = vector.shape_cast %471 : vector<1x8x128xf32> to vector<8x128xf32>
    %473 = vector.shape_cast %470 : vector<8x128xf32> to vector<1x8x128xf32>
    tpu.vector_store %arg21[%c0_464, %c8_465, %c128_466], %473 {strides = array<i32>} : memref<1x16x256xf32, #tpu.memory_space<vmem>>, vector<1x8x128xf32>,
    return
  }
  func.func @transform_0(%arg0: i32) -> (i32, i32, i32) {
    %c0_i32 = arith.constant 0 : i32
    %c0_i32_0 = arith.constant 0 : i32
    %c0_i32_1 = arith.constant 0 : i32
    return %arg0, %c0_i32, %c0_i32_0 : i32, i32, i32
  }
  func.func @transform_1(%arg0: i32) -> (i32, i32, i32) {
    %c0_i32 = arith.constant 0 : i32
    %c0_i32_0 = arith.constant 0 : i32
    %c0_i32_1 = arith.constant 0 : i32
    %c0_i32_2 = arith.constant 0 : i32
    return %c0_i32, %c0_i32_0, %c0_i32_1 : i32, i32, i32
  }
  func.func @transform_2(%arg0: i32) -> (i32, i32, i32) {
    %c0_i32 = arith.constant 0 : i32
    %c0_i32_0 = arith.constant 0 : i32
    %c0_i32_1 = arith.constant 0 : i32
    %c0_i32_2 = arith.constant 0 : i32
    return %c0_i32, %c0_i32_0, %c0_i32_1 : i32, i32, i32
  }
  func.func @transform_3(%arg0: i32) -> (i32, i32) {
    %c0_i32 = arith.constant 0 : i32
    %c0_i32_0 = arith.constant 0 : i32
    %c0_i32_1 = arith.constant 0 : i32
    return %c0_i32, %c0_i32_0 : i32, i32
  }
  func.func @transform_4(%arg0: i32) -> (i32, i32) {
    %c0_i32 = arith.constant 0 : i32
    %c0_i32_0 = arith.constant 0 : i32
    %c0_i32_1 = arith.constant 0 : i32
    return %c0_i32, %c0_i32_0 : i32, i32
  }
  func.func @transform_5(%arg0: i32) -> (i32, i32, i32) {
    %c0_i32 = arith.constant 0 : i32
    %c0_i32_0 = arith.constant 0 : i32
    %c0_i32_1 = arith.constant 0 : i32
    %c0_i32_2 = arith.constant 0 : i32
    return %c0_i32, %c0_i32_0, %c0_i32_1 : i32, i32, i32
  }
  func.func @transform_6(%arg0: i32) -> (i32, i32) {
    %c0_i32 = arith.constant 0 : i32
    %c0_i32_0 = arith.constant 0 : i32
    %c0_i32_1 = arith.constant 0 : i32
    return %c0_i32, %c0_i32_0 : i32, i32
  }
  func.func @transform_7(%arg0: i32) -> (i32, i32) {
    %c0_i32 = arith.constant 0 : i32
    %c0_i32_0 = arith.constant 0 : i32
    %c0_i32_1 = arith.constant 0 : i32
    return %c0_i32, %c0_i32_0 : i32, i32
  }
  func.func @transform_8(%arg0: i32) -> (i32, i32) {
    %c0_i32 = arith.constant 0 : i32
    %c0_i32_0 = arith.constant 0 : i32
    %c0_i32_1 = arith.constant 0 : i32
    return %c0_i32, %c0_i32_0 : i32, i32
  }
  func.func @transform_9(%arg0: i32) -> (i32, i32) {
    %c0_i32 = arith.constant 0 : i32
    %c0_i32_0 = arith.constant 0 : i32
    %c0_i32_1 = arith.constant 0 : i32
    return %c0_i32, %c0_i32_0 : i32, i32
  }
  func.func @transform_10(%arg0: i32) -> (i32, i32) {
    %c0_i32 = arith.constant 0 : i32
    %c0_i32_0 = arith.constant 0 : i32
    %c0_i32_1 = arith.constant 0 : i32
    return %c0_i32, %c0_i32_0 : i32, i32
  }
  func.func @transform_11(%arg0: i32) -> (i32, i32, i32) {
    %c0_i32 = arith.constant 0 : i32
    %c0_i32_0 = arith.constant 0 : i32
    %c0_i32_1 = arith.constant 0 : i32
    %c0_i32_2 = arith.constant 0 : i32
    return %c0_i32, %c0_i32_0, %c0_i32_1 : i32, i32, i32
  }
  func.func @transform_12(%arg0: i32) -> (i32, i32) {
    %c0_i32 = arith.constant 0 : i32
    %c0_i32_0 = arith.constant 0 : i32
    %c0_i32_1 = arith.constant 0 : i32
    return %c0_i32, %c0_i32_0 : i32, i32
  }
  func.func @transform_13(%arg0: i32) -> (i32, i32) {
    %c0_i32 = arith.constant 0 : i32
    %c0_i32_0 = arith.constant 0 : i32
    %c0_i32_1 = arith.constant 0 : i32
    return %c0_i32, %c0_i32_0 : i32, i32
  }
  func.func @transform_14(%arg0: i32) -> (i32, i32, i32) {
    %c0_i32 = arith.constant 0 : i32
    %c0_i32_0 = arith.constant 0 : i32
    %c0_i32_1 = arith.constant 0 : i32
    %c0_i32_2 = arith.constant 0 : i32
    return %c0_i32, %c0_i32_0, %c0_i32_1 : i32, i32, i32
  }
  func.func @transform_15(%arg0: i32) -> (i32, i32) {
    %c0_i32 = arith.constant 0 : i32
    %c0_i32_0 = arith.constant 0 : i32
    %c0_i32_1 = arith.constant 0 : i32
    return %c0_i32, %c0_i32_0 : i32, i32
  }
  func.func @transform_16(%arg0: i32) -> (i32, i32) {
    %c0_i32 = arith.constant 0 : i32
    %c0_i32_0 = arith.constant 0 : i32
    %c0_i32_1 = arith.constant 0 : i32
    return %c0_i32, %c0_i32_0 : i32, i32
  }
  func.func @transform_17(%arg0: i32) -> (i32, i32) {
    %c0_i32 = arith.constant 0 : i32
    %c0_i32_0 = arith.constant 0 : i32
    %c0_i32_1 = arith.constant 0 : i32
    return %c0_i32, %c0_i32_0 : i32, i32
  }
  func.func @transform_18(%arg0: i32) -> (i32, i32) {
    %c0_i32 = arith.constant 0 : i32
    %c0_i32_0 = arith.constant 0 : i32
    %c0_i32_1 = arith.constant 0 : i32
    return %c0_i32, %c0_i32_0 : i32, i32
  }
  func.func @transform_19(%arg0: i32) -> (i32, i32) {
    %c0_i32 = arith.constant 0 : i32
    %c0_i32_0 = arith.constant 0 : i32
    %c0_i32_1 = arith.constant 0 : i32
    return %c0_i32, %c0_i32_0 : i32, i32
  }
  func.func @transform_20(%arg0: i32) -> (i32, i32, i32) {
    %c0_i32 = arith.constant 0 : i32
    %c0_i32_0 = arith.constant 0 : i32
    %c0_i32_1 = arith.constant 0 : i32
    return %arg0, %c0_i32, %c0_i32_0 : i32, i32, i32
  }
}

</mosaic_0001>

<llo_original>
// kernel: _lambda_.1
$region0: #{_lambda_.1}
  #allocation0 [shape = 'u32[]', space=smem, size = 0x4, offset = 0x4, fixed_abs, tag = 'smem constant byte address 0x4 - core index']
  #allocation1 [shape = 'u32[144,128]{1,0:T(1,128)}', space=vmem, size = 0x12000, scoped, tag = 'internal scratch']
  #allocation2 [shape = 'f32[8,384]{1,0:T(8,128)}', space=vmem, size = 0x3000, scoped, tag = 'scratch operand']
  #allocation3 [shape = 'f32[8,512]{1,0:T(8,128)}', space=vmem, size = 0x4000, scoped, tag = 'scratch operand']
  %s0 = inlined_call_operand.vmem [shape: f32[2,4,256], index: 0, kind: input, shape index: {}]
  %s1 = inlined_call_operand.vmem [shape: f32[3,128,128], index: 1, kind: input, shape index: {}]
  %s2 = inlined_call_operand.vmem [shape: f32[3,8,4], index: 2, kind: input, shape index: {}]
  %s3 = inlined_call_operand.vmem [shape: f32[8,1], index: 3, kind: input, shape index: {}]
  %s4 = inlined_call_operand.vmem [shape: f32[8,1], index: 4, kind: input, shape index: {}]
  %s5 = inlined_call_operand.vmem [shape: f32[9,8,8], index: 5, kind: input, shape index: {}]
  %s6 = inlined_call_operand.vmem [shape: f32[8,1], index: 6, kind: input, shape index: {}]
  %s7 = inlined_call_operand.vmem [shape: f32[8,1], index: 7, kind: input, shape index: {}]
  %s8 = inlined_call_operand.vmem [shape: f32[8,4], index: 8, kind: input, shape index: {}]
  %s9 = inlined_call_operand.vmem [shape: f32[8,1], index: 9, kind: input, shape index: {}]
  %s10 = inlined_call_operand.vmem [shape: f32[8,1], index: 10, kind: input, shape index: {}]
  %s11 = inlined_call_operand.vmem [shape: f32[3,8,4], index: 11, kind: input, shape index: {}]
  %s12 = inlined_call_operand.vmem [shape: f32[8,1], index: 12, kind: input, shape index: {}]
  %s13 = inlined_call_operand.vmem [shape: f32[8,1], index: 13, kind: input, shape index: {}]
  %s14 = inlined_call_operand.vmem [shape: f32[17,8,8], index: 14, kind: input, shape index: {}]
  %s15 = inlined_call_operand.vmem [shape: f32[8,1], index: 15, kind: input, shape index: {}]
  %s16 = inlined_call_operand.vmem [shape: f32[8,1], index: 16, kind: input, shape index: {}]
  %s17 = inlined_call_operand.vmem [shape: f32[8,4], index: 17, kind: input, shape index: {}]
  %s18 = inlined_call_operand.vmem [shape: f32[8,1], index: 18, kind: input, shape index: {}]
  %s19 = inlined_call_operand.vmem [shape: f32[8,1], index: 19, kind: input, shape index: {}]
  %s20 = inlined_call_operand.vmem [shape: f32[2,16,256], index: 20, kind: output, shape index: {}]
  %s21 = sld [smem:[#allocation0]]
  $region113: #{_lambda_.1} parent=0
    _
  %s23 = ssub.s32 1, %s21
  %s24 = scalar_select 0, %s23, %s21
  loop: start=0, step=1, limit=4
  $region2: #{_lambda_.1} parent=0 // loop_pre_header
    _
  $region3: #{_lambda_.1} parent=0 // loop_header
    %s26 = sphi 0, %s30
    %p27 = scmp.ge.s32.totalorder %s26, 4
    %s36 = sphi 0, %s38
    %s39 = sphi 0, %s36
    %s40 = sphi 0, %s39
    %s56 = sphi 0, %s40
    %s60 = sphi 0, %s60
    %s62 = sphi 0, %s60
    %s63 = sphi 0, %s62
    %s77 = sphi 0, %s63
    %s81 = sphi 0, %s81
    %s83 = sphi 0, %s81
    %s84 = sphi 0, %s83
    %s98 = sphi 0, %s84
    %s102 = sphi 0, %s102
    %s104 = sphi 0, %s102
    %s105 = sphi 0, %s104
    %s119 = sphi 0, %s105
    %s123 = sphi 0, %s123
    %s125 = sphi 0, %s123
    %s126 = sphi 0, %s125
    %s140 = sphi 0, %s126
    %s144 = sphi 0, %s144
    %s146 = sphi 0, %s144
    %s147 = sphi 0, %s146
    %s161 = sphi 0, %s147
    %s165 = sphi 0, %s165
    %s167 = sphi 0, %s165
    %s168 = sphi 0, %s167
    %s182 = sphi 0, %s168
    %s186 = sphi 0, %s186
    %s188 = sphi 0, %s186
    %s189 = sphi 0, %s188
    %s203 = sphi 0, %s189
    %s207 = sphi 0, %s207
    %s209 = sphi 0, %s207
    %s210 = sphi 0, %s209
    %s224 = sphi 0, %s210
    %s228 = sphi 0, %s228
    %s230 = sphi 0, %s228
    %s231 = sphi 0, %s230
    %s245 = sphi 0, %s231
    %s249 = sphi 0, %s249
    %s251 = sphi 0, %s249
    %s252 = sphi 0, %s251
    %s266 = sphi 0, %s252
    %s270 = sphi 0, %s270
    %s272 = sphi 0, %s270
    %s273 = sphi 0, %s272
    %s287 = sphi 0, %s273
    %s291 = sphi 0, %s291
    %s293 = sphi 0, %s291
    %s294 = sphi 0, %s293
    %s308 = sphi 0, %s294
    %s312 = sphi 0, %s312
    %s314 = sphi 0, %s312
    %s315 = sphi 0, %s314
    %s329 = sphi 0, %s315
    %s333 = sphi 0, %s333
    %s335 = sphi 0, %s333
    %s336 = sphi 0, %s335
    %s350 = sphi 0, %s336
    %s354 = sphi 0, %s354
    %s356 = sphi 0, %s354
    %s357 = sphi 0, %s356
    %s371 = sphi 0, %s357
    %s375 = sphi 0, %s375
    %s377 = sphi 0, %s375
    %s378 = sphi 0, %s377
    %s392 = sphi 0, %s378
    %s396 = sphi 0, %s396
    %s398 = sphi 0, %s396
    %s399 = sphi 0, %s398
    %s413 = sphi 0, %s399
    %s417 = sphi 0, %s417
    %s419 = sphi 0, %s417
    %s420 = sphi 0, %s419
    %s434 = sphi 0, %s420
    %s438 = sphi 0, %s438
    %s440 = sphi 0, %s438
    %s441 = sphi 0, %s440
    %s455 = sphi 0, %s441
    %s461 = sphi 0, %s463
    %s464 = sphi 0, %s461
    %s465 = sphi 0, %s464
    %s481 = sphi 0, %s465
  $region4: #{_lambda_.1} parent=0 // loop_header_branch
    %29 = sbr.rel (%p27) target = $region8
  $region5: #{_lambda_.1} parent=0 // loop_body
    %s31 = ssub.s32 %s26, 1
    %s32 = ssub.s32 %s26, 2
    %s33 = sadd.s32 %s26, 1
    %s34 = ssub.s32 %s26, %s33
    %p35 = scmp.eq.s32.totalorder %s34, 0
    %s37 = sadd.s32 %s36, 1
    %s38 = scalar_select %p35, %s36, %s37
    %p41 = pneg %p35
    %p42 = scmp.eq.s32.totalorder %s26, 1
    %p43 = por %p41, %p42
    %p44 = scmp.ne.s32.totalorder %s36, %s39
    %p45 = scmp.eq.s32.totalorder %s26, 0
    %p46 = por %p44, %p45
    %p47 = scmp.ne.s32.totalorder %s36, %s39
    %p48 = scmp.eq.s32.totalorder %s31, 1
    %p49 = por %p47, %p48
    %p50 = scmp.ne.s32.totalorder %s39, %s40
    %p51 = scmp.eq.s32.totalorder %s31, 0
    %p52 = por %p50, %p51
    %p53 = scmp.ne.s32.totalorder %s39, %s40
    %p54 = scmp.eq.s32.totalorder %s32, 1
    %p55 = por %p53, %p54
    %p57 = scmp.ne.s32.totalorder %s40, %s56
    %p58 = scmp.eq.s32.totalorder %s32, 0
    %p59 = por %p57, %p58
    %s61 = sadd.s32 %s60, 1
    %p64 = scmp.eq.s32.totalorder %s26, 1
    %p65 = scmp.ne.s32.totalorder %s60, %s62
    %p66 = scmp.eq.s32.totalorder %s26, 0
    %p67 = por %p65, %p66
    %p68 = scmp.ne.s32.totalorder %s60, %s62
    %p69 = scmp.eq.s32.totalorder %s31, 1
    %p70 = por %p68, %p69
    %p71 = scmp.ne.s32.totalorder %s62, %s63
    %p72 = scmp.eq.s32.totalorder %s31, 0
    %p73 = por %p71, %p72
    %p74 = scmp.ne.s32.totalorder %s62, %s63
    %p75 = scmp.eq.s32.totalorder %s32, 1
    %p76 = por %p74, %p75
    %p78 = scmp.ne.s32.totalorder %s63, %s77
    %p79 = scmp.eq.s32.totalorder %s32, 0
    %p80 = por %p78, %p79
    %s82 = sadd.s32 %s81, 1
    %p85 = scmp.eq.s32.totalorder %s26, 1
    %p86 = scmp.ne.s32.totalorder %s81, %s83
    %p87 = scmp.eq.s32.totalorder %s26, 0
    %p88 = por %p86, %p87
    %p89 = scmp.ne.s32.totalorder %s81, %s83
    %p90 = scmp.eq.s32.totalorder %s31, 1
    %p91 = por %p89, %p90
    %p92 = scmp.ne.s32.totalorder %s83, %s84
    %p93 = scmp.eq.s32.totalorder %s31, 0
    %p94 = por %p92, %p93
    %p95 = scmp.ne.s32.totalorder %s83, %s84
    %p96 = scmp.eq.s32.totalorder %s32, 1
    %p97 = por %p95, %p96
    %p99 = scmp.ne.s32.totalorder %s84, %s98
    %p100 = scmp.eq.s32.totalorder %s32, 0
    %p101 = por %p99, %p100
    %s103 = sadd.s32 %s102, 1
    %p106 = scmp.eq.s32.totalorder %s26, 1
    %p107 = scmp.ne.s32.totalorder %s102, %s104
    %p108 = scmp.eq.s32.totalorder %s26, 0
    %p109 = por %p107, %p108
    %p110 = scmp.ne.s32.totalorder %s102, %s104
    %p111 = scmp.eq.s32.totalorder %s31, 1
    %p112 = por %p110, %p111
    %p113 = scmp.ne.s32.totalorder %s104, %s105
    %p114 = scmp.eq.s32.totalorder %s31, 0
    %p115 = por %p113, %p114
    %p116 = scmp.ne.s32.totalorder %s104, %s105
    %p117 = scmp.eq.s32.totalorder %s32, 1
    %p118 = por %p116, %p117
    %p120 = scmp.ne.s32.totalorder %s105, %s119
    %p121 = scmp.eq.s32.totalorder %s32, 0
    %p122 = por %p120, %p121
    %s124 = sadd.s32 %s123, 1
    %p127 = scmp.eq.s32.totalorder %s26, 1
    %p128 = scmp.ne.s32.totalorder %s123, %s125
    %p129 = scmp.eq.s32.totalorder %s26, 0
    %p130 = por %p128, %p129
    %p131 = scmp.ne.s32.totalorder %s123, %s125
    %p132 = scmp.eq.s32.totalorder %s31, 1
    %p133 = por %p131, %p132
    %p134 = scmp.ne.s32.totalorder %s125, %s126
    %p135 = scmp.eq.s32.totalorder %s31, 0
    %p136 = por %p134, %p135
    %p137 = scmp.ne.s32.totalorder %s125, %s126
    %p138 = scmp.eq.s32.totalorder %s32, 1
    %p139 = por %p137, %p138
    %p141 = scmp.ne.s32.totalorder %s126, %s140
    %p142 = scmp.eq.s32.totalorder %s32, 0
    %p143 = por %p141, %p142
    %s145 = sadd.s32 %s144, 1
    %p148 = scmp.eq.s32.totalorder %s26, 1
    %p149 = scmp.ne.s32.totalorder %s144, %s146
    %p150 = scmp.eq.s32.totalorder %s26, 0
    %p151 = por %p149, %p150
    %p152 = scmp.ne.s32.totalorder %s144, %s146
    %p153 = scmp.eq.s32.totalorder %s31, 1
    %p154 = por %p152, %p153
    %p155 = scmp.ne.s32.totalorder %s146, %s147
    %p156 = scmp.eq.s32.totalorder %s31, 0
    %p157 = por %p155, %p156
    %p158 = scmp.ne.s32.totalorder %s146, %s147
    %p159 = scmp.eq.s32.totalorder %s32, 1
    %p160 = por %p158, %p159
    %p162 = scmp.ne.s32.totalorder %s147, %s161
    %p163 = scmp.eq.s32.totalorder %s32, 0
    %p164 = por %p162, %p163
    %s166 = sadd.s32 %s165, 1
    %p169 = scmp.eq.s32.totalorder %s26, 1
    %p170 = scmp.ne.s32.totalorder %s165, %s167
    %p171 = scmp.eq.s32.totalorder %s26, 0
    %p172 = por %p170, %p171
    %p173 = scmp.ne.s32.totalorder %s165, %s167
    %p174 = scmp.eq.s32.totalorder %s31, 1
    %p175 = por %p173, %p174
    %p176 = scmp.ne.s32.totalorder %s167, %s168
    %p177 = scmp.eq.s32.totalorder %s31, 0
    %p178 = por %p176, %p177
    %p179 = scmp.ne.s32.totalorder %s167, %s168
    %p180 = scmp.eq.s32.totalorder %s32, 1
    %p181 = por %p179, %p180
    %p183 = scmp.ne.s32.totalorder %s168, %s182
    %p184 = scmp.eq.s32.totalorder %s32, 0
    %p185 = por %p183, %p184
    %s187 = sadd.s32 %s186, 1
    %p190 = scmp.eq.s32.totalorder %s26, 1
    %p191 = scmp.ne.s32.totalorder %s186, %s188
    %p192 = scmp.eq.s32.totalorder %s26, 0
    %p193 = por %p191, %p192
    %p194 = scmp.ne.s32.totalorder %s186, %s188
    %p195 = scmp.eq.s32.totalorder %s31, 1
    %p196 = por %p194, %p195
    %p197 = scmp.ne.s32.totalorder %s188, %s189
    %p198 = scmp.eq.s32.totalorder %s31, 0
    %p199 = por %p197, %p198
    %p200 = scmp.ne.s32.totalorder %s188, %s189
    %p201 = scmp.eq.s32.totalorder %s32, 1
    %p202 = por %p200, %p201
    %p204 = scmp.ne.s32.totalorder %s189, %s203
    %p205 = scmp.eq.s32.totalorder %s32, 0
    %p206 = por %p204, %p205
    %s208 = sadd.s32 %s207, 1
    %p211 = scmp.eq.s32.totalorder %s26, 1
    %p212 = scmp.ne.s32.totalorder %s207, %s209
    %p213 = scmp.eq.s32.totalorder %s26, 0
    %p214 = por %p212, %p213
    %p215 = scmp.ne.s32.totalorder %s207, %s209
    %p216 = scmp.eq.s32.totalorder %s31, 1
    %p217 = por %p215, %p216
    %p218 = scmp.ne.s32.totalorder %s209, %s210
    %p219 = scmp.eq.s32.totalorder %s31, 0
    %p220 = por %p218, %p219
    %p221 = scmp.ne.s32.totalorder %s209, %s210
    %p222 = scmp.eq.s32.totalorder %s32, 1
    %p223 = por %p221, %p222
    %p225 = scmp.ne.s32.totalorder %s210, %s224
    %p226 = scmp.eq.s32.totalorder %s32, 0
    %p227 = por %p225, %p226
    %s229 = sadd.s32 %s228, 1
    %p232 = scmp.eq.s32.totalorder %s26, 1
    %p233 = scmp.ne.s32.totalorder %s228, %s230
    %p234 = scmp.eq.s32.totalorder %s26, 0
    %p235 = por %p233, %p234
    %p236 = scmp.ne.s32.totalorder %s228, %s230
    %p237 = scmp.eq.s32.totalorder %s31, 1
    %p238 = por %p236, %p237
    %p239 = scmp.ne.s32.totalorder %s230, %s231
    %p240 = scmp.eq.s32.totalorder %s31, 0
    %p241 = por %p239, %p240
    %p242 = scmp.ne.s32.totalorder %s230, %s231
    %p243 = scmp.eq.s32.totalorder %s32, 1
    %p244 = por %p242, %p243
    %p246 = scmp.ne.s32.totalorder %s231, %s245
    %p247 = scmp.eq.s32.totalorder %s32, 0
    %p248 = por %p246, %p247
    %s250 = sadd.s32 %s249, 1
    %p253 = scmp.eq.s32.totalorder %s26, 1
    %p254 = scmp.ne.s32.totalorder %s249, %s251
    %p255 = scmp.eq.s32.totalorder %s26, 0
    %p256 = por %p254, %p255
    %p257 = scmp.ne.s32.totalorder %s249, %s251
    %p258 = scmp.eq.s32.totalorder %s31, 1
    %p259 = por %p257, %p258
    %p260 = scmp.ne.s32.totalorder %s251, %s252
    %p261 = scmp.eq.s32.totalorder %s31, 0
    %p262 = por %p260, %p261
    %p263 = scmp.ne.s32.totalorder %s251, %s252
    %p264 = scmp.eq.s32.totalorder %s32, 1
    %p265 = por %p263, %p264
    %p267 = scmp.ne.s32.totalorder %s252, %s266
    %p268 = scmp.eq.s32.totalorder %s32, 0
    %p269 = por %p267, %p268
    %s271 = sadd.s32 %s270, 1
    %p274 = scmp.eq.s32.totalorder %s26, 1
    %p275 = scmp.ne.s32.totalorder %s270, %s272
    %p276 = scmp.eq.s32.totalorder %s26, 0
    %p277 = por %p275, %p276
    %p278 = scmp.ne.s32.totalorder %s270, %s272
    %p279 = scmp.eq.s32.totalorder %s31, 1
    %p280 = por %p278, %p279
    %p281 = scmp.ne.s32.totalorder %s272, %s273
    %p282 = scmp.eq.s32.totalorder %s31, 0
    %p283 = por %p281, %p282
    %p284 = scmp.ne.s32.totalorder %s272, %s273
    %p285 = scmp.eq.s32.totalorder %s32, 1
    %p286 = por %p284, %p285
    %p288 = scmp.ne.s32.totalorder %s273, %s287
    %p289 = scmp.eq.s32.totalorder %s32, 0
    %p290 = por %p288, %p289
    %s292 = sadd.s32 %s291, 1
    %p295 = scmp.eq.s32.totalorder %s26, 1
    %p296 = scmp.ne.s32.totalorder %s291, %s293
    %p297 = scmp.eq.s32.totalorder %s26, 0
    %p298 = por %p296, %p297
    %p299 = scmp.ne.s32.totalorder %s291, %s293
    %p300 = scmp.eq.s32.totalorder %s31, 1
    %p301 = por %p299, %p300
    %p302 = scmp.ne.s32.totalorder %s293, %s294
    %p303 = scmp.eq.s32.totalorder %s31, 0
    %p304 = por %p302, %p303
    %p305 = scmp.ne.s32.totalorder %s293, %s294
    %p306 = scmp.eq.s32.totalorder %s32, 1
    %p307 = por %p305, %p306
    %p309 = scmp.ne.s32.totalorder %s294, %s308
    %p310 = scmp.eq.s32.totalorder %s32, 0
    %p311 = por %p309, %p310
    %s313 = sadd.s32 %s312, 1
    %p316 = scmp.eq.s32.totalorder %s26, 1
    %p317 = scmp.ne.s32.totalorder %s312, %s314
    %p318 = scmp.eq.s32.totalorder %s26, 0
    %p319 = por %p317, %p318
    %p320 = scmp.ne.s32.totalorder %s312, %s314
    %p321 = scmp.eq.s32.totalorder %s31, 1
    %p322 = por %p320, %p321
    %p323 = scmp.ne.s32.totalorder %s314, %s315
    %p324 = scmp.eq.s32.totalorder %s31, 0
    %p325 = por %p323, %p324
    %p326 = scmp.ne.s32.totalorder %s314, %s315
    %p327 = scmp.eq.s32.totalorder %s32, 1
    %p328 = por %p326, %p327
    %p330 = scmp.ne.s32.totalorder %s315, %s329
    %p331 = scmp.eq.s32.totalorder %s32, 0
    %p332 = por %p330, %p331
    %s334 = sadd.s32 %s333, 1
    %p337 = scmp.eq.s32.totalorder %s26, 1
    %p338 = scmp.ne.s32.totalorder %s333, %s335
    %p339 = scmp.eq.s32.totalorder %s26, 0
    %p340 = por %p338, %p339
    %p341 = scmp.ne.s32.totalorder %s333, %s335
    %p342 = scmp.eq.s32.totalorder %s31, 1
    %p343 = por %p341, %p342
    %p344 = scmp.ne.s32.totalorder %s335, %s336
    %p345 = scmp.eq.s32.totalorder %s31, 0
    %p346 = por %p344, %p345
    %p347 = scmp.ne.s32.totalorder %s335, %s336
    %p348 = scmp.eq.s32.totalorder %s32, 1
    %p349 = por %p347, %p348
    %p351 = scmp.ne.s32.totalorder %s336, %s350
    %p352 = scmp.eq.s32.totalorder %s32, 0
    %p353 = por %p351, %p352
    %s355 = sadd.s32 %s354, 1
    %p358 = scmp.eq.s32.totalorder %s26, 1
    %p359 = scmp.ne.s32.totalorder %s354, %s356
    %p360 = scmp.eq.s32.totalorder %s26, 0
    %p361 = por %p359, %p360
    %p362 = scmp.ne.s32.totalorder %s354, %s356
    %p363 = scmp.eq.s32.totalorder %s31, 1
    %p364 = por %p362, %p363
    %p365 = scmp.ne.s32.totalorder %s356, %s357
    %p366 = scmp.eq.s32.totalorder %s31, 0
    %p367 = por %p365, %p366
    %p368 = scmp.ne.s32.totalorder %s356, %s357
    %p369 = scmp.eq.s32.totalorder %s32, 1
    %p370 = por %p368, %p369
    %p372 = scmp.ne.s32.totalorder %s357, %s371
    %p373 = scmp.eq.s32.totalorder %s32, 0
    %p374 = por %p372, %p373
    %s376 = sadd.s32 %s375, 1
    %p379 = scmp.eq.s32.totalorder %s26, 1
    %p380 = scmp.ne.s32.totalorder %s375, %s377
    %p381 = scmp.eq.s32.totalorder %s26, 0
    %p382 = por %p380, %p381
    %p383 = scmp.ne.s32.totalorder %s375, %s377
    %p384 = scmp.eq.s32.totalorder %s31, 1
    %p385 = por %p383, %p384
    %p386 = scmp.ne.s32.totalorder %s377, %s378
    %p387 = scmp.eq.s32.totalorder %s31, 0
    %p388 = por %p386, %p387
    %p389 = scmp.ne.s32.totalorder %s377, %s378
    %p390 = scmp.eq.s32.totalorder %s32, 1
    %p391 = por %p389, %p390
    %p393 = scmp.ne.s32.totalorder %s378, %s392
    %p394 = scmp.eq.s32.totalorder %s32, 0
    %p395 = por %p393, %p394
    %s397 = sadd.s32 %s396, 1
    %p400 = scmp.eq.s32.totalorder %s26, 1
    %p401 = scmp.ne.s32.totalorder %s396, %s398
    %p402 = scmp.eq.s32.totalorder %s26, 0
    %p403 = por %p401, %p402
    %p404 = scmp.ne.s32.totalorder %s396, %s398
    %p405 = scmp.eq.s32.totalorder %s31, 1
    %p406 = por %p404, %p405
    %p407 = scmp.ne.s32.totalorder %s398, %s399
    %p408 = scmp.eq.s32.totalorder %s31, 0
    %p409 = por %p407, %p408
    %p410 = scmp.ne.s32.totalorder %s398, %s399
    %p411 = scmp.eq.s32.totalorder %s32, 1
    %p412 = por %p410, %p411
    %p414 = scmp.ne.s32.totalorder %s399, %s413
    %p415 = scmp.eq.s32.totalorder %s32, 0
    %p416 = por %p414, %p415
    %s418 = sadd.s32 %s417, 1
    %p421 = scmp.eq.s32.totalorder %s26, 1
    %p422 = scmp.ne.s32.totalorder %s417, %s419
    %p423 = scmp.eq.s32.totalorder %s26, 0
    %p424 = por %p422, %p423
    %p425 = scmp.ne.s32.totalorder %s417, %s419
    %p426 = scmp.eq.s32.totalorder %s31, 1
    %p427 = por %p425, %p426
    %p428 = scmp.ne.s32.totalorder %s419, %s420
    %p429 = scmp.eq.s32.totalorder %s31, 0
    %p430 = por %p428, %p429
    %p431 = scmp.ne.s32.totalorder %s419, %s420
    %p432 = scmp.eq.s32.totalorder %s32, 1
    %p433 = por %p431, %p432
    %p435 = scmp.ne.s32.totalorder %s420, %s434
    %p436 = scmp.eq.s32.totalorder %s32, 0
    %p437 = por %p435, %p436
    %s439 = sadd.s32 %s438, 1
    %p442 = scmp.eq.s32.totalorder %s26, 1
    %p443 = scmp.ne.s32.totalorder %s438, %s440
    %p444 = scmp.eq.s32.totalorder %s26, 0
    %p445 = por %p443, %p444
    %p446 = scmp.ne.s32.totalorder %s438, %s440
    %p447 = scmp.eq.s32.totalorder %s31, 1
    %p448 = por %p446, %p447
    %p449 = scmp.ne.s32.totalorder %s440, %s441
    %p450 = scmp.eq.s32.totalorder %s31, 0
    %p451 = por %p449, %p450
    %p452 = scmp.ne.s32.totalorder %s440, %s441
    %p453 = scmp.eq.s32.totalorder %s32, 1
    %p454 = por %p452, %p453
    %p456 = scmp.ne.s32.totalorder %s441, %s455
    %p457 = scmp.eq.s32.totalorder %s32, 0
    %p458 = por %p456, %p457
    %s459 = ssub.s32 %s26, %s33
    %p460 = scmp.eq.s32.totalorder %s459, 0
    %s462 = sadd.s32 %s461, 1
    %s463 = scalar_select %p460, %s461, %s462
    %p466 = pneg %p460
    %p467 = scmp.eq.s32.totalorder %s26, 1
    %p468 = por %p466, %p467
    %p469 = scmp.ne.s32.totalorder %s461, %s464
    %p470 = scmp.eq.s32.totalorder %s26, 0
    %p471 = por %p469, %p470
    %p472 = scmp.ne.s32.totalorder %s461, %s464
    %p473 = scmp.eq.s32.totalorder %s31, 1
    %p474 = por %p472, %p473
    %p475 = scmp.ne.s32.totalorder %s464, %s465
    %p476 = scmp.eq.s32.totalorder %s31, 0
    %p477 = por %p475, %p476
    %p478 = scmp.ne.s32.totalorder %s464, %s465
    %p479 = scmp.eq.s32.totalorder %s32, 1
    %p480 = por %p478, %p479
    %p482 = scmp.ne.s32.totalorder %s465, %s481
    %p483 = scmp.eq.s32.totalorder %s32, 0
    %p484 = por %p482, %p483
    %p485 = scmp.le.s32.totalorder 1, %s26
    %p486 = scmp.lt.s32.totalorder %s26, 3
    %p487 = pnand %p485, %p486
    %p488 = pneg %p487
    // Predicated region
    $region9: #{_lambda_.1} parent=5 // pred_check
      _
    $region10: #{_lambda_.1} parent=5 // pred_check_branch
      %490 = sbr.rel (%p487) target = $region12
    $region11: #{_lambda_.1} parent=5 // pred_region
      %s491 = ssub.s32 %s26, 1
      // Predicated region
      $region13: #{_lambda_.1} parent=11 // pred_check
        %p492 = pneg %p73
      $region14: #{_lambda_.1} parent=11 // pred_check_branch
        %494 = sbr.rel (%p492) target = $region16
      $region15: #{_lambda_.1} parent=11 // pred_region
        _
      $region16: #{_lambda_.1} parent=11 // pred_fallthru
        _
      // Predicated region
      $region17: #{_lambda_.1} parent=11 // pred_check
        %p495 = pneg %p94
      $region18: #{_lambda_.1} parent=11 // pred_check_branch
        %497 = sbr.rel (%p495) target = $region20
      $region19: #{_lambda_.1} parent=11 // pred_region
        _
      $region20: #{_lambda_.1} parent=11 // pred_fallthru
        _
      // Predicated region
      $region21: #{_lambda_.1} parent=11 // pred_check
        %p498 = pneg %p115
      $region22: #{_lambda_.1} parent=11 // pred_check_branch
        %500 = sbr.rel (%p498) target = $region24
      $region23: #{_lambda_.1} parent=11 // pred_region
        _
      $region24: #{_lambda_.1} parent=11 // pred_fallthru
        _
      // Predicated region
      $region25: #{_lambda_.1} parent=11 // pred_check
        %p501 = pneg %p136
      $region26: #{_lambda_.1} parent=11 // pred_check_branch
        %503 = sbr.rel (%p501) target = $region28
      $region27: #{_lambda_.1} parent=11 // pred_region
        _
      $region28: #{_lambda_.1} parent=11 // pred_fallthru
        _
      // Predicated region
      $region29: #{_lambda_.1} parent=11 // pred_check
        %p504 = pneg %p157
      $region30: #{_lambda_.1} parent=11 // pred_check_branch
        %506 = sbr.rel (%p504) target = $region32
      $region31: #{_lambda_.1} parent=11 // pred_region
        _
      $region32: #{_lambda_.1} parent=11 // pred_fallthru
        _
      // Predicated region
      $region33: #{_lambda_.1} parent=11 // pred_check
        %p507 = pneg %p178
      $region34: #{_lambda_.1} parent=11 // pred_check_branch
        %509 = sbr.rel (%p507) target = $region36
      $region35: #{_lambda_.1} parent=11 // pred_region
        _
      $region36: #{_lambda_.1} parent=11 // pred_fallthru
        _
      // Predicated region
      $region37: #{_lambda_.1} parent=11 // pred_check
        %p510 = pneg %p199
      $region38: #{_lambda_.1} parent=11 // pred_check_branch
        %512 = sbr.rel (%p510) target = $region40
      $region39: #{_lambda_.1} parent=11 // pred_region
        _
      $region40: #{_lambda_.1} parent=11 // pred_fallthru
        _
      // Predicated region
      $region41: #{_lambda_.1} parent=11 // pred_check
        %p513 = pneg %p220
      $region42: #{_lambda_.1} parent=11 // pred_check_branch
        %515 = sbr.rel (%p513) target = $region44
      $region43: #{_lambda_.1} parent=11 // pred_region
        _
      $region44: #{_lambda_.1} parent=11 // pred_fallthru
        _
      // Predicated region
      $region45: #{_lambda_.1} parent=11 // pred_check
        %p516 = pneg %p241
      $region46: #{_lambda_.1} parent=11 // pred_check_branch
        %518 = sbr.rel (%p516) target = $region48
      $region47: #{_lambda_.1} parent=11 // pred_region
        _
      $region48: #{_lambda_.1} parent=11 // pred_fallthru
        _
      // Predicated region
      $region49: #{_lambda_.1} parent=11 // pred_check
        %p519 = pneg %p262
      $region50: #{_lambda_.1} parent=11 // pred_check_branch
        %521 = sbr.rel (%p519) target = $region52
      $region51: #{_lambda_.1} parent=11 // pred_region
        _
      $region52: #{_lambda_.1} parent=11 // pred_fallthru
        _
      // Predicated region
      $region53: #{_lambda_.1} parent=11 // pred_check
        %p522 = pneg %p283
      $region54: #{_lambda_.1} parent=11 // pred_check_branch
        %524 = sbr.rel (%p522) target = $region56
      $region55: #{_lambda_.1} parent=11 // pred_region
        _
      $region56: #{_lambda_.1} parent=11 // pred_fallthru
        _
      // Predicated region
      $region57: #{_lambda_.1} parent=11 // pred_check
        %p525 = pneg %p304
      $region58: #{_lambda_.1} parent=11 // pred_check_branch
        %527 = sbr.rel (%p525) target = $region60
      $region59: #{_lambda_.1} parent=11 // pred_region
        _
      $region60: #{_lambda_.1} parent=11 // pred_fallthru
        _
      // Predicated region
      $region61: #{_lambda_.1} parent=11 // pred_check
        %p528 = pneg %p325
      $region62: #{_lambda_.1} parent=11 // pred_check_branch
        %530 = sbr.rel (%p528) target = $region64
      $region63: #{_lambda_.1} parent=11 // pred_region
        _
      $region64: #{_lambda_.1} parent=11 // pred_fallthru
        _
      // Predicated region
      $region65: #{_lambda_.1} parent=11 // pred_check
        %p531 = pneg %p346
      $region66: #{_lambda_.1} parent=11 // pred_check_branch
        %533 = sbr.rel (%p531) target = $region68
      $region67: #{_lambda_.1} parent=11 // pred_region
        _
      $region68: #{_lambda_.1} parent=11 // pred_fallthru
        _
      // Predicated region
      $region69: #{_lambda_.1} parent=11 // pred_check
        %p534 = pneg %p367
      $region70: #{_lambda_.1} parent=11 // pred_check_branch
        %536 = sbr.rel (%p534) target = $region72
      $region71: #{_lambda_.1} parent=11 // pred_region
        _
      $region72: #{_lambda_.1} parent=11 // pred_fallthru
        _
      // Predicated region
      $region73: #{_lambda_.1} parent=11 // pred_check
        %p537 = pneg %p388
      $region74: #{_lambda_.1} parent=11 // pred_check_branch
        %539 = sbr.rel (%p537) target = $region76
      $region75: #{_lambda_.1} parent=11 // pred_region
        _
      $region76: #{_lambda_.1} parent=11 // pred_fallthru
        _
      // Predicated region
      $region77: #{_lambda_.1} parent=11 // pred_check
        %p540 = pneg %p409
      $region78: #{_lambda_.1} parent=11 // pred_check_branch
        %542 = sbr.rel (%p540) target = $region80
      $region79: #{_lambda_.1} parent=11 // pred_region
        _
      $region80: #{_lambda_.1} parent=11 // pred_fallthru
        _
      // Predicated region
      $region81: #{_lambda_.1} parent=11 // pred_check
        %p543 = pneg %p430
      $region82: #{_lambda_.1} parent=11 // pred_check_branch
        %545 = sbr.rel (%p543) target = $region84
      $region83: #{_lambda_.1} parent=11 // pred_region
        _
      $region84: #{_lambda_.1} parent=11 // pred_fallthru
        _
      // Predicated region
      $region85: #{_lambda_.1} parent=11 // pred_check
        %p546 = pneg %p451
      $region86: #{_lambda_.1} parent=11 // pred_check_branch
        %548 = sbr.rel (%p546) target = $region88
      $region87: #{_lambda_.1} parent=11 // pred_region
        _
      $region88: #{_lambda_.1} parent=11 // pred_fallthru
        _
    $region12: #{_lambda_.1} parent=5 // pred_fallthru
      _
    %p549 = scmp.lt.s32.totalorder %s26, 2
    // Predicated region
    $region89: #{_lambda_.1} parent=5 // pred_check
      %p550 = pneg %p549
    $region90: #{_lambda_.1} parent=5 // pred_check_branch
      %552 = sbr.rel (%p550) target = $region92
    $region91: #{_lambda_.1} parent=5 // pred_region
      // Predicated region
      $region93: #{_lambda_.1} parent=91 // pred_check
        %p553 = pneg %p46
      $region94: #{_lambda_.1} parent=91 // pred_check_branch
        %555 = sbr.rel (%p553) target = $region96
      $region95: #{_lambda_.1} parent=91 // pred_region
        %p556 = scmp.lt.s32.totalorder %s26, 1
        %s557 = scalar_select %p556, %s26, 1
        %s558 = smul.addr %s557, 2
        %s559 = smul.addr %s558, 4
        %s560 = scalar_lea.vmem %s0, %s559
      $region96: #{_lambda_.1} parent=91 // pred_fallthru
        _
    $region92: #{_lambda_.1} parent=5 // pred_fallthru
      _
    %p561 = scmp.le.s32.totalorder 1, %s26
    %p562 = scmp.lt.s32.totalorder %s26, 3
    %p563 = pnand %p561, %p562
    %p564 = pneg %p563
    // Predicated region
    $region97: #{_lambda_.1} parent=5 // pred_check
      _
    $region98: #{_lambda_.1} parent=5 // pred_check_branch
      %566 = sbr.rel (%p563) target = $region100
    $region99: #{_lambda_.1} parent=5 // pred_region
      %s567 = ssub.s32 %s26, 1
      %p568 = scmp.lt.s32.totalorder %s31, 1
      %s569 = scalar_select %p568, %s31, 1
      %s570 = smul.addr %s569, 2
      %s571 = smul.addr %s570, 4
      %s572 = scalar_lea.vmem %s0, %s571
      %p573 = pneg %p52
      %p574 = pneg %p49
      %p575 = pneg %p73
      %p576 = pneg %p70
      %p577 = pneg %p94
      %p578 = pneg %p91
      %p579 = pneg %p115
      %p580 = pneg %p112
      %p581 = pneg %p136
      %p582 = pneg %p133
      %p583 = pneg %p157
      %p584 = pneg %p154
      %p585 = pneg %p178
      %p586 = pneg %p175
      %p587 = pneg %p199
      %p588 = pneg %p196
      %p589 = pneg %p220
      %p590 = pneg %p217
      %p591 = pneg %p241
      %p592 = pneg %p238
      %p593 = pneg %p262
      %p594 = pneg %p259
      %p595 = pneg %p283
      %p596 = pneg %p280
      %p597 = pneg %p304
      %p598 = pneg %p301
      %p599 = pneg %p325
      %p600 = pneg %p322
      %p601 = pneg %p346
      %p602 = pneg %p343
      %p603 = pneg %p367
      %p604 = pneg %p364
      %p605 = pneg %p388
      %p606 = pneg %p385
      %p607 = pneg %p409
      %p608 = pneg %p406
      %p609 = pneg %p430
      %p610 = pneg %p427
      %p611 = pneg %p451
      %p612 = pneg %p448
      %p613 = pneg %p477
      %p614 = pneg %p474
      %p615 = scmp.lt.s32.totalorder %s31, 1
      %s616 = scalar_select %p615, %s31, 1
      %s617 = smul.addr %s616, 4
      %s618 = smul.addr %s617, 8
      %s619 = scalar_lea.vmem %s20, %s618
      %p620 = scmp.lt.s32.totalorder %s31, 1
      %s621 = scalar_select %p620, %s31, 1
      %s622 = smul.addr %s621, 2
      %s623 = smul.addr %s622, 4
      %s624 = scalar_lea.vmem %s0, %s623
      %p625 = scmp.lt.s32.totalorder %s31, 1
      %s626 = scalar_select %p625, %s31, 1
      %s627 = smul.addr %s626, 4
      %s628 = smul.addr %s627, 8
      %s629 = scalar_lea.vmem %s20, %s628
      %630 = vst [vmem:[#allocation2] sm:$0xff] 0.0
      %631 = vst [vmem:[#allocation2 + $0x8] sm:$0xff] 0.0
      %632 = vst [vmem:[#allocation2 + $0x10] sm:$0xff] 0.0
      %633 = vst [vmem:[#allocation3] sm:$0xff] 0.0
      %634 = vst [vmem:[#allocation3 + $0x8] sm:$0xff] 0.0
      %635 = vst [vmem:[#allocation3 + $0x10] sm:$0xff] 0.0
      %636 = vst [vmem:[#allocation3 + $0x18] sm:$0xff] 0.0
      %v637 = vld [vmem:[%s624] sm:$0xf]
      %v638 = vld [vmem:[%s1] sm:$0xff]
      %v639 = vld [vmem:[%s1 + $0x8] sm:$0xff]
      %v640 = vld [vmem:[%s1 + $0x10] sm:$0xff]
      %v641 = vld [vmem:[%s1 + $0x18] sm:$0xff]
      %v642 = vld [vmem:[%s1 + $0x20] sm:$0xff]
      %v643 = vld [vmem:[%s1 + $0x28] sm:$0xff]
      %v644 = vld [vmem:[%s1 + $0x30] sm:$0xff]
      %v645 = vld [vmem:[%s1 + $0x38] sm:$0xff]
      %v646 = vld [vmem:[%s1 + $0x40] sm:$0xff]
      %v647 = vld [vmem:[%s1 + $0x48] sm:$0xff]
      %v648 = vld [vmem:[%s1 + $0x50] sm:$0xff]
      %v649 = vld [vmem:[%s1 + $0x58] sm:$0xff]
      %v650 = vld [vmem:[%s1 + $0x60] sm:$0xff]
      %v651 = vld [vmem:[%s1 + $0x68] sm:$0xff]
      %v652 = vld [vmem:[%s1 + $0x70] sm:$0xff]
      %v653 = vld [vmem:[%s1 + $0x78] sm:$0xff]
      %654 = vmatprep.subr.mxu0 0.0
      %655 = vmatpush1.msra.mxu0 %v653
      %656 = vmatprep.subr.mxu0 0.0
      %657 = vmatpush1.msra.mxu0 %v652
      %658 = vmatprep.subr.mxu0 0.0
      %659 = vmatpush1.msra.mxu0 %v651
      %660 = vmatprep.subr.mxu0 0.0
      %661 = vmatpush1.msra.mxu0 %v650
      %662 = vmatprep.subr.mxu0 0.0
      %663 = vmatpush1.msra.mxu0 %v649
      %664 = vmatprep.subr.mxu0 0.0
      %665 = vmatpush1.msra.mxu0 %v648
      %666 = vmatprep.subr.mxu0 0.0
      %667 = vmatpush1.msra.mxu0 %v647
      %668 = vmatprep.subr.mxu0 0.0
      %669 = vmatpush1.msra.mxu0 %v646
      %670 = vmatprep.subr.mxu0 0.0
      %671 = vmatpush1.msra.mxu0 %v645
      %672 = vmatprep.subr.mxu0 0.0
      %673 = vmatpush1.msra.mxu0 %v644
      %674 = vmatprep.subr.mxu0 0.0
      %675 = vmatpush1.msra.mxu0 %v643
      %676 = vmatprep.subr.mxu0 0.0
      %677 = vmatpush1.msra.mxu0 %v642
      %678 = vmatprep.subr.mxu0 0.0
      %679 = vmatpush1.msra.mxu0 %v641
      %680 = vmatprep.subr.mxu0 0.0
      %681 = vmatpush1.msra.mxu0 %v640
      %682 = vmatprep.subr.mxu0 0.0
      %683 = vmatpush1.msra.mxu0 %v639
      %684 = vmatprep.subr.mxu0 0.0
      %685 = vmatpush1.msra.mxu0 %v638
      %686 = vmatprep.subr.mxu0 0.0
      %687 = vmatpush2.msra.mxu0 0.0
      %688 = vmatprep.subr.mxu0 0.0
      %689 = vmatpush2.msra.mxu0 0.0
      %690 = vmatprep.subr.mxu0 0.0
      %691 = vmatpush2.msra.mxu0 0.0
      %692 = vmatprep.subr.mxu0 0.0
      %693 = vmatpush2.msra.mxu0 0.0
      %694 = vmatprep.subr.mxu0 0.0
      %695 = vmatpush2.msra.mxu0 0.0
      %696 = vmatprep.subr.mxu0 0.0
      %697 = vmatpush2.msra.mxu0 0.0
      %698 = vmatprep.subr.mxu0 0.0
      %699 = vmatpush2.msra.mxu0 0.0
      %700 = vmatprep.subr.mxu0 0.0
      %701 = vmatpush2.msra.mxu0 0.0
      %702 = vmatprep.subr.mxu0 0.0
      %703 = vmatpush2.msra.mxu0 0.0
      %704 = vmatprep.subr.mxu0 0.0
      %705 = vmatpush2.msra.mxu0 0.0
      %706 = vmatprep.subr.mxu0 0.0
      %707 = vmatpush2.msra.mxu0 0.0
      %708 = vmatprep.subr.mxu0 0.0
      %709 = vmatpush2.msra.mxu0 0.0
      %710 = vmatprep.subr.mxu0 0.0
      %711 = vmatpush2.msra.mxu0 0.0
      %712 = vmatprep.subr.mxu0 0.0
      %713 = vmatpush2.msra.mxu0 0.0
      %714 = vmatprep.subr.mxu0 0.0
      %715 = vmatpush2.msra.mxu0 0.0
      %716 = vmatprep.subr.mxu0 0.0
      %717 = vmatpush2.msra.mxu0 0.0
      %718 = vmatprep.mubr.f32.mxu0 0.0
      %719 = vmatmul.mubr.f32.gmra.mxu0 %v637
      %v720 = vpop.f32.mrf.mxu0
      %v721 = vadd.f32 0.0, %v720
      %v722 = vpop.f32.mrf.mxu0
      %723 = vdwg.mxu0
      %s724 = scalar_lea.vmem %s1, 128
      %v725 = vld [vmem:[%s724] sm:$0xff]
      %v726 = vld [vmem:[%s724 + $0x8] sm:$0xff]
      %v727 = vld [vmem:[%s724 + $0x10] sm:$0xff]
      %v728 = vld [vmem:[%s724 + $0x18] sm:$0xff]
      %v729 = vld [vmem:[%s724 + $0x20] sm:$0xff]
      %v730 = vld [vmem:[%s724 + $0x28] sm:$0xff]
      %v731 = vld [vmem:[%s724 + $0x30] sm:$0xff]
      %v732 = vld [vmem:[%s724 + $0x38] sm:$0xff]
      %v733 = vld [vmem:[%s724 + $0x40] sm:$0xff]
      %v734 = vld [vmem:[%s724 + $0x48] sm:$0xff]
      %v735 = vld [vmem:[%s724 + $0x50] sm:$0xff]
      %v736 = vld [vmem:[%s724 + $0x58] sm:$0xff]
      %v737 = vld [vmem:[%s724 + $0x60] sm:$0xff]
      %v738 = vld [vmem:[%s724 + $0x68] sm:$0xff]
      %v739 = vld [vmem:[%s724 + $0x70] sm:$0xff]
      %v740 = vld [vmem:[%s724 + $0x78] sm:$0xff]
      %741 = vmatprep.subr.mxu0 0.0
      %742 = vmatpush1.msra.mxu0 %v740
      %743 = vmatprep.subr.mxu0 0.0
      %744 = vmatpush1.msra.mxu0 %v739
      %745 = vmatprep.subr.mxu0 0.0
      %746 = vmatpush1.msra.mxu0 %v738
      %747 = vmatprep.subr.mxu0 0.0
      %748 = vmatpush1.msra.mxu0 %v737
      %749 = vmatprep.subr.mxu0 0.0
      %750 = vmatpush1.msra.mxu0 %v736
      %751 = vmatprep.subr.mxu0 0.0
      %752 = vmatpush1.msra.mxu0 %v735
      %753 = vmatprep.subr.mxu0 0.0
      %754 = vmatpush1.msra.mxu0 %v734
      %755 = vmatprep.subr.mxu0 0.0
      %756 = vmatpush1.msra.mxu0 %v733
      %757 = vmatprep.subr.mxu0 0.0
      %758 = vmatpush1.msra.mxu0 %v732
      %759 = vmatprep.subr.mxu0 0.0
      %760 = vmatpush1.msra.mxu0 %v731
      %761 = vmatprep.subr.mxu0 0.0
      %762 = vmatpush1.msra.mxu0 %v730
      %763 = vmatprep.subr.mxu0 0.0
      %764 = vmatpush1.msra.mxu0 %v729
      %765 = vmatprep.subr.mxu0 0.0
      %766 = vmatpush1.msra.mxu0 %v728
      %767 = vmatprep.subr.mxu0 0.0
      %768 = vmatpush1.msra.mxu0 %v727
      %769 = vmatprep.subr.mxu0 0.0
      %770 = vmatpush1.msra.mxu0 %v726
      %771 = vmatprep.subr.mxu0 0.0
      %772 = vmatpush1.msra.mxu0 %v725
      %773 = vmatprep.subr.mxu0 0.0
      %774 = vmatpush2.msra.mxu0 0.0
      %775 = vmatprep.subr.mxu0 0.0
      %776 = vmatpush2.msra.mxu0 0.0
      %777 = vmatprep.subr.mxu0 0.0
      %778 = vmatpush2.msra.mxu0 0.0
      %779 = vmatprep.subr.mxu0 0.0
      %780 = vmatpush2.msra.mxu0 0.0
      %781 = vmatprep.subr.mxu0 0.0
      %782 = vmatpush2.msra.mxu0 0.0
      %783 = vmatprep.subr.mxu0 0.0
      %784 = vmatpush2.msra.mxu0 0.0
      %785 = vmatprep.subr.mxu0 0.0
      %786 = vmatpush2.msra.mxu0 0.0
      %787 = vmatprep.subr.mxu0 0.0
      %788 = vmatpush2.msra.mxu0 0.0
      %789 = vmatprep.subr.mxu0 0.0
      %790 = vmatpush2.msra.mxu0 0.0
      %791 = vmatprep.subr.mxu0 0.0
      %792 = vmatpush2.msra.mxu0 0.0
      %793 = vmatprep.subr.mxu0 0.0
      %794 = vmatpush2.msra.mxu0 0.0
      %795 = vmatprep.subr.mxu0 0.0
      %796 = vmatpush2.msra.mxu0 0.0
      %797 = vmatprep.subr.mxu0 0.0
      %798 = vmatpush2.msra.mxu0 0.0
      %799 = vmatprep.subr.mxu0 0.0
      %800 = vmatpush2.msra.mxu0 0.0
      %801 = vmatprep.subr.mxu0 0.0
      %802 = vmatpush2.msra.mxu0 0.0
      %803 = vmatprep.subr.mxu0 0.0
      %804 = vmatpush2.msra.mxu0 0.0
      %805 = vmatprep.mubr.f32.mxu0 0.0
      %806 = vmatmul.mubr.f32.gmra.mxu0 %v637
      %v807 = vpop.f32.mrf.mxu0
      %v808 = vadd.f32 0.0, %v807
      %v809 = vpop.f32.mrf.mxu0
      %810 = vdwg.mxu0
      %s811 = scalar_lea.vmem %s1, 256
      %v812 = vld [vmem:[%s811] sm:$0xff]
      %v813 = vld [vmem:[%s811 + $0x8] sm:$0xff]
      %v814 = vld [vmem:[%s811 + $0x10] sm:$0xff]
      %v815 = vld [vmem:[%s811 + $0x18] sm:$0xff]
      %v816 = vld [vmem:[%s811 + $0x20] sm:$0xff]
      %v817 = vld [vmem:[%s811 + $0x28] sm:$0xff]
      %v818 = vld [vmem:[%s811 + $0x30] sm:$0xff]
      %v819 = vld [vmem:[%s811 + $0x38] sm:$0xff]
      %v820 = vld [vmem:[%s811 + $0x40] sm:$0xff]
      %v821 = vld [vmem:[%s811 + $0x48] sm:$0xff]
      %v822 = vld [vmem:[%s811 + $0x50] sm:$0xff]
      %v823 = vld [vmem:[%s811 + $0x58] sm:$0xff]
      %v824 = vld [vmem:[%s811 + $0x60] sm:$0xff]
      %v825 = vld [vmem:[%s811 + $0x68] sm:$0xff]
      %v826 = vld [vmem:[%s811 + $0x70] sm:$0xff]
      %v827 = vld [vmem:[%s811 + $0x78] sm:$0xff]
      %828 = vmatprep.subr.mxu0 0.0
      %829 = vmatpush1.msra.mxu0 %v827
      %830 = vmatprep.subr.mxu0 0.0
      %831 = vmatpush1.msra.mxu0 %v826
      %832 = vmatprep.subr.mxu0 0.0
      %833 = vmatpush1.msra.mxu0 %v825
      %834 = vmatprep.subr.mxu0 0.0
      %835 = vmatpush1.msra.mxu0 %v824
      %836 = vmatprep.subr.mxu0 0.0
      %837 = vmatpush1.msra.mxu0 %v823
      %838 = vmatprep.subr.mxu0 0.0
      %839 = vmatpush1.msra.mxu0 %v822
      %840 = vmatprep.subr.mxu0 0.0
      %841 = vmatpush1.msra.mxu0 %v821
      %842 = vmatprep.subr.mxu0 0.0
      %843 = vmatpush1.msra.mxu0 %v820
      %844 = vmatprep.subr.mxu0 0.0
      %845 = vmatpush1.msra.mxu0 %v819
      %846 = vmatprep.subr.mxu0 0.0
      %847 = vmatpush1.msra.mxu0 %v818
      %848 = vmatprep.subr.mxu0 0.0
      %849 = vmatpush1.msra.mxu0 %v817
      %850 = vmatprep.subr.mxu0 0.0
      %851 = vmatpush1.msra.mxu0 %v816
      %852 = vmatprep.subr.mxu0 0.0
      %853 = vmatpush1.msra.mxu0 %v815
      %854 = vmatprep.subr.mxu0 0.0
      %855 = vmatpush1.msra.mxu0 %v814
      %856 = vmatprep.subr.mxu0 0.0
      %857 = vmatpush1.msra.mxu0 %v813
      %858 = vmatprep.subr.mxu0 0.0
      %859 = vmatpush1.msra.mxu0 %v812
      %860 = vmatprep.subr.mxu0 0.0
      %861 = vmatpush2.msra.mxu0 0.0
      %862 = vmatprep.subr.mxu0 0.0
      %863 = vmatpush2.msra.mxu0 0.0
      %864 = vmatprep.subr.mxu0 0.0
      %865 = vmatpush2.msra.mxu0 0.0
      %866 = vmatprep.subr.mxu0 0.0
      %867 = vmatpush2.msra.mxu0 0.0
      %868 = vmatprep.subr.mxu0 0.0
      %869 = vmatpush2.msra.mxu0 0.0
      %870 = vmatprep.subr.mxu0 0.0
      %871 = vmatpush2.msra.mxu0 0.0
      %872 = vmatprep.subr.mxu0 0.0
      %873 = vmatpush2.msra.mxu0 0.0
      %874 = vmatprep.subr.mxu0 0.0
      %875 = vmatpush2.msra.mxu0 0.0
      %876 = vmatprep.subr.mxu0 0.0
      %877 = vmatpush2.msra.mxu0 0.0
      %878 = vmatprep.subr.mxu0 0.0
      %879 = vmatpush2.msra.mxu0 0.0
      %880 = vmatprep.subr.mxu0 0.0
      %881 = vmatpush2.msra.mxu0 0.0
      %882 = vmatprep.subr.mxu0 0.0
      %883 = vmatpush2.msra.mxu0 0.0
      %884 = vmatprep.subr.mxu0 0.0
      %885 = vmatpush2.msra.mxu0 0.0
      %886 = vmatprep.subr.mxu0 0.0
      %887 = vmatpush2.msra.mxu0 0.0
      %888 = vmatprep.subr.mxu0 0.0
      %889 = vmatpush2.msra.mxu0 0.0
      %890 = vmatprep.subr.mxu0 0.0
      %891 = vmatpush2.msra.mxu0 0.0
      %892 = vmatprep.mubr.f32.mxu0 0.0
      %893 = vmatmul.mubr.f32.gmra.mxu0 %v637
      %v894 = vpop.f32.mrf.mxu0
      %v895 = vadd.f32 0.0, %v894
      %v896 = vpop.f32.mrf.mxu0
      %897 = vdwg.mxu0
      %v898 = vld [vmem:[%s2] sm:$0xff]
      %s899 = scalar_lea.vmem %s2, 8
      %v900 = vld [vmem:[%s899] sm:$0xff]
      %vm901 = vcmask 31744
      %v903 = vsel %vm901, %v900, 0
      %vm905 = vcmask 1043456
      %v907 = vsel %vm905, %v808, 0
      %909 = vmatprep.subr.mxu0 0.0
      %910 = vmatpush1.msra.mxu0 0.0
      %911 = vmatprep.subr.mxu0 0.0
      %912 = vmatpush1.msra.mxu0 0.0
      %913 = vmatprep.subr.mxu0 0.0
      %914 = vmatpush1.msra.mxu0 0.0
      %915 = vmatprep.subr.mxu0 0.0
      %916 = vmatpush1.msra.mxu0 0.0
      %917 = vmatprep.subr.mxu0 0.0
      %918 = vmatpush1.msra.mxu0 0.0
      %919 = vmatprep.subr.mxu0 0.0
      %920 = vmatpush1.msra.mxu0 0.0
      %921 = vmatprep.subr.mxu0 0.0
      %922 = vmatpush1.msra.mxu0 0.0
      %923 = vmatprep.subr.mxu0 0.0
      %924 = vmatpush1.msra.mxu0 0.0
      %925 = vmatprep.subr.mxu0 0.0
      %926 = vmatpush1.msra.mxu0 0.0
      %927 = vmatprep.subr.mxu0 0.0
      %928 = vmatpush1.msra.mxu0 0.0
      %929 = vmatprep.subr.mxu0 0.0
      %930 = vmatpush1.msra.mxu0 0.0
      %931 = vmatprep.subr.mxu0 0.0
      %932 = vmatpush1.msra.mxu0 0.0
      %933 = vmatprep.subr.mxu0 0.0
      %934 = vmatpush1.msra.mxu0 0.0
      %935 = vmatprep.subr.mxu0 0.0
      %936 = vmatpush1.msra.mxu0 0.0
      %937 = vmatprep.subr.mxu0 0.0
      %938 = vmatpush1.msra.mxu0 0.0
      %939 = vmatprep.subr.mxu0 0.0
      %940 = vmatpush1.msra.mxu0 %v907
      %941 = vmatprep.subr.mxu0 0.0
      %942 = vmatpush2.msra.mxu0 0.0
      %943 = vmatprep.subr.mxu0 0.0
      %944 = vmatpush2.msra.mxu0 0.0
      %945 = vmatprep.subr.mxu0 0.0
      %946 = vmatpush2.msra.mxu0 0.0
      %947 = vmatprep.subr.mxu0 0.0
      %948 = vmatpush2.msra.mxu0 0.0
      %949 = vmatprep.subr.mxu0 0.0
      %950 = vmatpush2.msra.mxu0 0.0
      %951 = vmatprep.subr.mxu0 0.0
      %952 = vmatpush2.msra.mxu0 0.0
      %953 = vmatprep.subr.mxu0 0.0
      %954 = vmatpush2.msra.mxu0 0.0
      %955 = vmatprep.subr.mxu0 0.0
      %956 = vmatpush2.msra.mxu0 0.0
      %957 = vmatprep.subr.mxu0 0.0
      %958 = vmatpush2.msra.mxu0 0.0
      %959 = vmatprep.subr.mxu0 0.0
      %960 = vmatpush2.msra.mxu0 0.0
      %961 = vmatprep.subr.mxu0 0.0
      %962 = vmatpush2.msra.mxu0 0.0
      %963 = vmatprep.subr.mxu0 0.0
      %964 = vmatpush2.msra.mxu0 0.0
      %965 = vmatprep.subr.mxu0 0.0
      %966 = vmatpush2.msra.mxu0 0.0
      %967 = vmatprep.subr.mxu0 0.0
      %968 = vmatpush2.msra.mxu0 0.0
      %969 = vmatprep.subr.mxu0 0.0
      %970 = vmatpush2.msra.mxu0 0.0
      %971 = vmatprep.subr.mxu0 0.0
      %972 = vmatpush2.msra.mxu0 0.0
      %973 = vmatprep.mubr.f32.mxu0 0.0
      %974 = vmatmul.mubr.f32.gmra.mxu0 %v903
      %v975 = vpop.f32.mrf.mxu0
      %v976 = vadd.f32 0.0, %v975
      %v977 = vpop.f32.mrf.mxu0
      %978 = vdwg.mxu0
      %v980 = vsel %vm901, %v898, 0
      %v983 = vsel %vm905, %v721, 0
      %985 = vmatprep.subr.mxu0 0.0
      %986 = vmatpush1.msra.mxu0 0.0
      %987 = vmatprep.subr.mxu0 0.0
      %988 = vmatpush1.msra.mxu0 0.0
      %989 = vmatprep.subr.mxu0 0.0
      %990 = vmatpush1.msra.mxu0 0.0
      %991 = vmatprep.subr.mxu0 0.0
      %992 = vmatpush1.msra.mxu0 0.0
      %993 = vmatprep.subr.mxu0 0.0
      %994 = vmatpush1.msra.mxu0 0.0
      %995 = vmatprep.subr.mxu0 0.0
      %996 = vmatpush1.msra.mxu0 0.0
      %997 = vmatprep.subr.mxu0 0.0
      %998 = vmatpush1.msra.mxu0 0.0
      %999 = vmatprep.subr.mxu0 0.0
      %1000 = vmatpush1.msra.mxu0 0.0
      %1001 = vmatprep.subr.mxu0 0.0
      %1002 = vmatpush1.msra.mxu0 0.0
      %1003 = vmatprep.subr.mxu0 0.0
      %1004 = vmatpush1.msra.mxu0 0.0
      %1005 = vmatprep.subr.mxu0 0.0
      %1006 = vmatpush1.msra.mxu0 0.0
      %1007 = vmatprep.subr.mxu0 0.0
      %1008 = vmatpush1.msra.mxu0 0.0
      %1009 = vmatprep.subr.mxu0 0.0
      %1010 = vmatpush1.msra.mxu0 0.0
      %1011 = vmatprep.subr.mxu0 0.0
      %1012 = vmatpush1.msra.mxu0 0.0
      %1013 = vmatprep.subr.mxu0 0.0
      %1014 = vmatpush1.msra.mxu0 0.0
      %1015 = vmatprep.subr.mxu0 0.0
      %1016 = vmatpush1.msra.mxu0 %v983
      %1017 = vmatprep.subr.mxu0 0.0
      %1018 = vmatpush2.msra.mxu0 0.0
      %1019 = vmatprep.subr.mxu0 0.0
      %1020 = vmatpush2.msra.mxu0 0.0
      %1021 = vmatprep.subr.mxu0 0.0
      %1022 = vmatpush2.msra.mxu0 0.0
      %1023 = vmatprep.subr.mxu0 0.0
      %1024 = vmatpush2.msra.mxu0 0.0
      %1025 = vmatprep.subr.mxu0 0.0
      %1026 = vmatpush2.msra.mxu0 0.0
      %1027 = vmatprep.subr.mxu0 0.0
      %1028 = vmatpush2.msra.mxu0 0.0
      %1029 = vmatprep.subr.mxu0 0.0
      %1030 = vmatpush2.msra.mxu0 0.0
      %1031 = vmatprep.subr.mxu0 0.0
      %1032 = vmatpush2.msra.mxu0 0.0
      %1033 = vmatprep.subr.mxu0 0.0
      %1034 = vmatpush2.msra.mxu0 0.0
      %1035 = vmatprep.subr.mxu0 0.0
      %1036 = vmatpush2.msra.mxu0 0.0
      %1037 = vmatprep.subr.mxu0 0.0
      %1038 = vmatpush2.msra.mxu0 0.0
      %1039 = vmatprep.subr.mxu0 0.0
      %1040 = vmatpush2.msra.mxu0 0.0
      %1041 = vmatprep.subr.mxu0 0.0
      %1042 = vmatpush2.msra.mxu0 0.0
      %1043 = vmatprep.subr.mxu0 0.0
      %1044 = vmatpush2.msra.mxu0 0.0
      %1045 = vmatprep.subr.mxu0 0.0
      %1046 = vmatpush2.msra.mxu0 0.0
      %1047 = vmatprep.subr.mxu0 0.0
      %1048 = vmatpush2.msra.mxu0 0.0
      %1049 = vmatprep.mubr.f32.mxu0 0.0
      %1050 = vmatmul.mubr.f32.gmra.mxu0 %v980
      %v1051 = vpop.f32.mrf.mxu0
      %v1052 = vadd.f32 %v976, %v1051
      %v1053 = vpop.f32.mrf.mxu0
      %1054 = vdwg.mxu0
      %s1055 = scalar_lea.vmem %s2, 16
      %v1056 = vld [vmem:[%s1055] sm:$0xff]
      %v1058 = vsel %vm901, %v1056, 0
      %v1061 = vsel %vm905, %v895, 0
      %1063 = vmatprep.subr.mxu0 0.0
      %1064 = vmatpush1.msra.mxu0 0.0
      %1065 = vmatprep.subr.mxu0 0.0
      %1066 = vmatpush1.msra.mxu0 0.0
      %1067 = vmatprep.subr.mxu0 0.0
      %1068 = vmatpush1.msra.mxu0 0.0
      %1069 = vmatprep.subr.mxu0 0.0
      %1070 = vmatpush1.msra.mxu0 0.0
      %1071 = vmatprep.subr.mxu0 0.0
      %1072 = vmatpush1.msra.mxu0 0.0
      %1073 = vmatprep.subr.mxu0 0.0
      %1074 = vmatpush1.msra.mxu0 0.0
      %1075 = vmatprep.subr.mxu0 0.0
      %1076 = vmatpush1.msra.mxu0 0.0
      %1077 = vmatprep.subr.mxu0 0.0
      %1078 = vmatpush1.msra.mxu0 0.0
      %1079 = vmatprep.subr.mxu0 0.0
      %1080 = vmatpush1.msra.mxu0 0.0
      %1081 = vmatprep.subr.mxu0 0.0
      %1082 = vmatpush1.msra.mxu0 0.0
      %1083 = vmatprep.subr.mxu0 0.0
      %1084 = vmatpush1.msra.mxu0 0.0
      %1085 = vmatprep.subr.mxu0 0.0
      %1086 = vmatpush1.msra.mxu0 0.0
      %1087 = vmatprep.subr.mxu0 0.0
      %1088 = vmatpush1.msra.mxu0 0.0
      %1089 = vmatprep.subr.mxu0 0.0
      %1090 = vmatpush1.msra.mxu0 0.0
      %1091 = vmatprep.subr.mxu0 0.0
      %1092 = vmatpush1.msra.mxu0 0.0
      %1093 = vmatprep.subr.mxu0 0.0
      %1094 = vmatpush1.msra.mxu0 %v1061
      %1095 = vmatprep.subr.mxu0 0.0
      %1096 = vmatpush2.msra.mxu0 0.0
      %1097 = vmatprep.subr.mxu0 0.0
      %1098 = vmatpush2.msra.mxu0 0.0
      %1099 = vmatprep.subr.mxu0 0.0
      %1100 = vmatpush2.msra.mxu0 0.0
      %1101 = vmatprep.subr.mxu0 0.0
      %1102 = vmatpush2.msra.mxu0 0.0
      %1103 = vmatprep.subr.mxu0 0.0
      %1104 = vmatpush2.msra.mxu0 0.0
      %1105 = vmatprep.subr.mxu0 0.0
      %1106 = vmatpush2.msra.mxu0 0.0
      %1107 = vmatprep.subr.mxu0 0.0
      %1108 = vmatpush2.msra.mxu0 0.0
      %1109 = vmatprep.subr.mxu0 0.0
      %1110 = vmatpush2.msra.mxu0 0.0
      %1111 = vmatprep.subr.mxu0 0.0
      %1112 = vmatpush2.msra.mxu0 0.0
      %1113 = vmatprep.subr.mxu0 0.0
      %1114 = vmatpush2.msra.mxu0 0.0
      %1115 = vmatprep.subr.mxu0 0.0
      %1116 = vmatpush2.msra.mxu0 0.0
      %1117 = vmatprep.subr.mxu0 0.0
      %1118 = vmatpush2.msra.mxu0 0.0
      %1119 = vmatprep.subr.mxu0 0.0
      %1120 = vmatpush2.msra.mxu0 0.0
      %1121 = vmatprep.subr.mxu0 0.0
      %1122 = vmatpush2.msra.mxu0 0.0
      %1123 = vmatprep.subr.mxu0 0.0
      %1124 = vmatpush2.msra.mxu0 0.0
      %1125 = vmatprep.subr.mxu0 0.0
      %1126 = vmatpush2.msra.mxu0 0.0
      %1127 = vmatprep.mubr.f32.mxu0 0.0
      %1128 = vmatmul.mubr.f32.gmra.mxu0 %v1058
      %v1129 = vpop.f32.mrf.mxu0
      %v1130 = vadd.f32 0.0, %v1129
      %v1131 = vpop.f32.mrf.mxu0
      %1132 = vdwg.mxu0
      %v1133 = vadd.f32 %v1052, %v1130
      %v1134 = vld [vmem:[%s3] sm:$0xff]
      %1136 = vset.pattern.permute.xlu0 0
      %1137 = vperm.xlu0 %1136, %v1134
      %v1138 = vpop.permute.xlu0 %1137
      %v1140 = vmul.f32 %v1133, %v1138
      %v1141 = vld [vmem:[%s4] sm:$0xff]
      %1143 = vset.pattern.permute.xlu0 0
      %1144 = vperm.xlu0 %1143, %v1141
      %v1145 = vpop.permute.xlu0 %1144
      %v1147 = vadd.f32 %v1140, %v1145
      %v1148 = vmax.f32 %v1147, 0.0
      %1150 = vrot.lane.b32.xlu0 %v1148, 64
      %v1151 = vpop.permute.xlu0 %1150
      %vm1153 = vcmask 1048064
      %1154 = vst.msk [vmem:[#allocation2] sm:$0xff] %vm1153, %v1151
      %vm1155 = vcmask 523264
      %1156 = vst.msk [vmem:[#allocation2 + $0x8] sm:$0xff] %vm1155, %v1151
      %v1157 = vld [vmem:[%s11] sm:$0xff]
      %s1158 = scalar_lea.vmem %s11, 8
      %v1159 = vld [vmem:[%s1158] sm:$0xff]
      %v1161 = vsel %vm901, %v1159, 0
      %1163 = vmatprep.subr.mxu0 0.0
      %1164 = vmatpush1.msra.mxu0 0.0
      %1165 = vmatprep.subr.mxu0 0.0
      %1166 = vmatpush1.msra.mxu0 0.0
      %1167 = vmatprep.subr.mxu0 0.0
      %1168 = vmatpush1.msra.mxu0 0.0
      %1169 = vmatprep.subr.mxu0 0.0
      %1170 = vmatpush1.msra.mxu0 0.0
      %1171 = vmatprep.subr.mxu0 0.0
      %1172 = vmatpush1.msra.mxu0 0.0
      %1173 = vmatprep.subr.mxu0 0.0
      %1174 = vmatpush1.msra.mxu0 0.0
      %1175 = vmatprep.subr.mxu0 0.0
      %1176 = vmatpush1.msra.mxu0 0.0
      %1177 = vmatprep.subr.mxu0 0.0
      %1178 = vmatpush1.msra.mxu0 0.0
      %1179 = vmatprep.subr.mxu0 0.0
      %1180 = vmatpush1.msra.mxu0 0.0
      %1181 = vmatprep.subr.mxu0 0.0
      %1182 = vmatpush1.msra.mxu0 0.0
      %1183 = vmatprep.subr.mxu0 0.0
      %1184 = vmatpush1.msra.mxu0 0.0
      %1185 = vmatprep.subr.mxu0 0.0
      %1186 = vmatpush1.msra.mxu0 0.0
      %1187 = vmatprep.subr.mxu0 0.0
      %1188 = vmatpush1.msra.mxu0 0.0
      %1189 = vmatprep.subr.mxu0 0.0
      %1190 = vmatpush1.msra.mxu0 0.0
      %1191 = vmatprep.subr.mxu0 0.0
      %1192 = vmatpush1.msra.mxu0 0.0
      %1193 = vmatprep.subr.mxu0 0.0
      %1194 = vmatpush1.msra.mxu0 %v907
      %1195 = vmatprep.subr.mxu0 0.0
      %1196 = vmatpush2.msra.mxu0 0.0
      %1197 = vmatprep.subr.mxu0 0.0
      %1198 = vmatpush2.msra.mxu0 0.0
      %1199 = vmatprep.subr.mxu0 0.0
      %1200 = vmatpush2.msra.mxu0 0.0
      %1201 = vmatprep.subr.mxu0 0.0
      %1202 = vmatpush2.msra.mxu0 0.0
      %1203 = vmatprep.subr.mxu0 0.0
      %1204 = vmatpush2.msra.mxu0 0.0
      %1205 = vmatprep.subr.mxu0 0.0
      %1206 = vmatpush2.msra.mxu0 0.0
      %1207 = vmatprep.subr.mxu0 0.0
      %1208 = vmatpush2.msra.mxu0 0.0
      %1209 = vmatprep.subr.mxu0 0.0
      %1210 = vmatpush2.msra.mxu0 0.0
      %1211 = vmatprep.subr.mxu0 0.0
      %1212 = vmatpush2.msra.mxu0 0.0
      %1213 = vmatprep.subr.mxu0 0.0
      %1214 = vmatpush2.msra.mxu0 0.0
      %1215 = vmatprep.subr.mxu0 0.0
      %1216 = vmatpush2.msra.mxu0 0.0
      %1217 = vmatprep.subr.mxu0 0.0
      %1218 = vmatpush2.msra.mxu0 0.0
      %1219 = vmatprep.subr.mxu0 0.0
      %1220 = vmatpush2.msra.mxu0 0.0
      %1221 = vmatprep.subr.mxu0 0.0
      %1222 = vmatpush2.msra.mxu0 0.0
      %1223 = vmatprep.subr.mxu0 0.0
      %1224 = vmatpush2.msra.mxu0 0.0
      %1225 = vmatprep.subr.mxu0 0.0
      %1226 = vmatpush2.msra.mxu0 0.0
      %1227 = vmatprep.mubr.f32.mxu0 0.0
      %1228 = vmatmul.mubr.f32.gmra.mxu0 %v1161
      %v1229 = vpop.f32.mrf.mxu0
      %v1230 = vadd.f32 0.0, %v1229
      %v1231 = vpop.f32.mrf.mxu0
      %1232 = vdwg.mxu0
      %v1234 = vsel %vm901, %v1157, 0
      %1236 = vmatprep.subr.mxu0 0.0
      %1237 = vmatpush1.msra.mxu0 0.0
      %1238 = vmatprep.subr.mxu0 0.0
      %1239 = vmatpush1.msra.mxu0 0.0
      %1240 = vmatprep.subr.mxu0 0.0
      %1241 = vmatpush1.msra.mxu0 0.0
      %1242 = vmatprep.subr.mxu0 0.0
      %1243 = vmatpush1.msra.mxu0 0.0
      %1244 = vmatprep.subr.mxu0 0.0
      %1245 = vmatpush1.msra.mxu0 0.0
      %1246 = vmatprep.subr.mxu0 0.0
      %1247 = vmatpush1.msra.mxu0 0.0
      %1248 = vmatprep.subr.mxu0 0.0
      %1249 = vmatpush1.msra.mxu0 0.0
      %1250 = vmatprep.subr.mxu0 0.0
      %1251 = vmatpush1.msra.mxu0 0.0
      %1252 = vmatprep.subr.mxu0 0.0
      %1253 = vmatpush1.msra.mxu0 0.0
      %1254 = vmatprep.subr.mxu0 0.0
      %1255 = vmatpush1.msra.mxu0 0.0
      %1256 = vmatprep.subr.mxu0 0.0
      %1257 = vmatpush1.msra.mxu0 0.0
      %1258 = vmatprep.subr.mxu0 0.0
      %1259 = vmatpush1.msra.mxu0 0.0
      %1260 = vmatprep.subr.mxu0 0.0
      %1261 = vmatpush1.msra.mxu0 0.0
      %1262 = vmatprep.subr.mxu0 0.0
      %1263 = vmatpush1.msra.mxu0 0.0
      %1264 = vmatprep.subr.mxu0 0.0
      %1265 = vmatpush1.msra.mxu0 0.0
      %1266 = vmatprep.subr.mxu0 0.0
      %1267 = vmatpush1.msra.mxu0 %v983
      %1268 = vmatprep.subr.mxu0 0.0
      %1269 = vmatpush2.msra.mxu0 0.0
      %1270 = vmatprep.subr.mxu0 0.0
      %1271 = vmatpush2.msra.mxu0 0.0
      %1272 = vmatprep.subr.mxu0 0.0
      %1273 = vmatpush2.msra.mxu0 0.0
      %1274 = vmatprep.subr.mxu0 0.0
      %1275 = vmatpush2.msra.mxu0 0.0
      %1276 = vmatprep.subr.mxu0 0.0
      %1277 = vmatpush2.msra.mxu0 0.0
      %1278 = vmatprep.subr.mxu0 0.0
      %1279 = vmatpush2.msra.mxu0 0.0
      %1280 = vmatprep.subr.mxu0 0.0
      %1281 = vmatpush2.msra.mxu0 0.0
      %1282 = vmatprep.subr.mxu0 0.0
      %1283 = vmatpush2.msra.mxu0 0.0
      %1284 = vmatprep.subr.mxu0 0.0
      %1285 = vmatpush2.msra.mxu0 0.0
      %1286 = vmatprep.subr.mxu0 0.0
      %1287 = vmatpush2.msra.mxu0 0.0
      %1288 = vmatprep.subr.mxu0 0.0
      %1289 = vmatpush2.msra.mxu0 0.0
      %1290 = vmatprep.subr.mxu0 0.0
      %1291 = vmatpush2.msra.mxu0 0.0
      %1292 = vmatprep.subr.mxu0 0.0
      %1293 = vmatpush2.msra.mxu0 0.0
      %1294 = vmatprep.subr.mxu0 0.0
      %1295 = vmatpush2.msra.mxu0 0.0
      %1296 = vmatprep.subr.mxu0 0.0
      %1297 = vmatpush2.msra.mxu0 0.0
      %1298 = vmatprep.subr.mxu0 0.0
      %1299 = vmatpush2.msra.mxu0 0.0
      %1300 = vmatprep.mubr.f32.mxu0 0.0
      %1301 = vmatmul.mubr.f32.gmra.mxu0 %v1234
      %v1302 = vpop.f32.mrf.mxu0
      %v1303 = vadd.f32 %v1230, %v1302
      %v1304 = vpop.f32.mrf.mxu0
      %1305 = vdwg.mxu0
      %s1306 = scalar_lea.vmem %s11, 16
      %v1307 = vld [vmem:[%s1306] sm:$0xff]
      %v1309 = vsel %vm901, %v1307, 0
      %1311 = vmatprep.subr.mxu0 0.0
      %1312 = vmatpush1.msra.mxu0 0.0
      %1313 = vmatprep.subr.mxu0 0.0
      %1314 = vmatpush1.msra.mxu0 0.0
      %1315 = vmatprep.subr.mxu0 0.0
      %1316 = vmatpush1.msra.mxu0 0.0
      %1317 = vmatprep.subr.mxu0 0.0
      %1318 = vmatpush1.msra.mxu0 0.0
      %1319 = vmatprep.subr.mxu0 0.0
      %1320 = vmatpush1.msra.mxu0 0.0
      %1321 = vmatprep.subr.mxu0 0.0
      %1322 = vmatpush1.msra.mxu0 0.0
      %1323 = vmatprep.subr.mxu0 0.0
      %1324 = vmatpush1.msra.mxu0 0.0
      %1325 = vmatprep.subr.mxu0 0.0
      %1326 = vmatpush1.msra.mxu0 0.0
      %1327 = vmatprep.subr.mxu0 0.0
      %1328 = vmatpush1.msra.mxu0 0.0
      %1329 = vmatprep.subr.mxu0 0.0
      %1330 = vmatpush1.msra.mxu0 0.0
      %1331 = vmatprep.subr.mxu0 0.0
      %1332 = vmatpush1.msra.mxu0 0.0
      %1333 = vmatprep.subr.mxu0 0.0
      %1334 = vmatpush1.msra.mxu0 0.0
      %1335 = vmatprep.subr.mxu0 0.0
      %1336 = vmatpush1.msra.mxu0 0.0
      %1337 = vmatprep.subr.mxu0 0.0
      %1338 = vmatpush1.msra.mxu0 0.0
      %1339 = vmatprep.subr.mxu0 0.0
      %1340 = vmatpush1.msra.mxu0 0.0
      %1341 = vmatprep.subr.mxu0 0.0
      %1342 = vmatpush1.msra.mxu0 %v1061
      %1343 = vmatprep.subr.mxu0 0.0
      %1344 = vmatpush2.msra.mxu0 0.0
      %1345 = vmatprep.subr.mxu0 0.0
      %1346 = vmatpush2.msra.mxu0 0.0
      %1347 = vmatprep.subr.mxu0 0.0
      %1348 = vmatpush2.msra.mxu0 0.0
      %1349 = vmatprep.subr.mxu0 0.0
      %1350 = vmatpush2.msra.mxu0 0.0
      %1351 = vmatprep.subr.mxu0 0.0
      %1352 = vmatpush2.msra.mxu0 0.0
      %1353 = vmatprep.subr.mxu0 0.0
      %1354 = vmatpush2.msra.mxu0 0.0
      %1355 = vmatprep.subr.mxu0 0.0
      %1356 = vmatpush2.msra.mxu0 0.0
      %1357 = vmatprep.subr.mxu0 0.0
      %1358 = vmatpush2.msra.mxu0 0.0
      %1359 = vmatprep.subr.mxu0 0.0
      %1360 = vmatpush2.msra.mxu0 0.0
      %1361 = vmatprep.subr.mxu0 0.0
      %1362 = vmatpush2.msra.mxu0 0.0
      %1363 = vmatprep.subr.mxu0 0.0
      %1364 = vmatpush2.msra.mxu0 0.0
      %1365 = vmatprep.subr.mxu0 0.0
      %1366 = vmatpush2.msra.mxu0 0.0
      %1367 = vmatprep.subr.mxu0 0.0
      %1368 = vmatpush2.msra.mxu0 0.0
      %1369 = vmatprep.subr.mxu0 0.0
      %1370 = vmatpush2.msra.mxu0 0.0
      %1371 = vmatprep.subr.mxu0 0.0
      %1372 = vmatpush2.msra.mxu0 0.0
      %1373 = vmatprep.subr.mxu0 0.0
      %1374 = vmatpush2.msra.mxu0 0.0
      %1375 = vmatprep.mubr.f32.mxu0 0.0
      %1376 = vmatmul.mubr.f32.gmra.mxu0 %v1309
      %v1377 = vpop.f32.mrf.mxu0
      %v1378 = vadd.f32 0.0, %v1377
      %v1379 = vpop.f32.mrf.mxu0
      %1380 = vdwg.mxu0
      %v1381 = vadd.f32 %v1303, %v1378
      %v1382 = vld [vmem:[%s12] sm:$0xff]
      %1384 = vset.pattern.permute.xlu0 0
      %1385 = vperm.xlu0 %1384, %v1382
      %v1386 = vpop.permute.xlu0 %1385
      %v1388 = vmul.f32 %v1381, %v1386
      %v1389 = vld [vmem:[%s13] sm:$0xff]
      %1391 = vset.pattern.permute.xlu0 0
      %1392 = vperm.xlu0 %1391, %v1389
      %v1393 = vpop.permute.xlu0 %1392
      %v1395 = vadd.f32 %v1388, %v1393
      %v1396 = vmax.f32 %v1395, 0.0
      %1397 = vst [vmem:[#allocation3 + $0x8] sm:$0xff] %v1396
      %v1398 = vld [vmem:[%s624 + $0x4] sm:$0xf]
      %v1399 = vld [vmem:[%s1] sm:$0xff]
      %v1400 = vld [vmem:[%s1 + $0x8] sm:$0xff]
      %v1401 = vld [vmem:[%s1 + $0x10] sm:$0xff]
      %v1402 = vld [vmem:[%s1 + $0x18] sm:$0xff]
      %v1403 = vld [vmem:[%s1 + $0x20] sm:$0xff]
      %v1404 = vld [vmem:[%s1 + $0x28] sm:$0xff]
      %v1405 = vld [vmem:[%s1 + $0x30] sm:$0xff]
      %v1406 = vld [vmem:[%s1 + $0x38] sm:$0xff]
      %v1407 = vld [vmem:[%s1 + $0x40] sm:$0xff]
      %v1408 = vld [vmem:[%s1 + $0x48] sm:$0xff]
      %v1409 = vld [vmem:[%s1 + $0x50] sm:$0xff]
      %v1410 = vld [vmem:[%s1 + $0x58] sm:$0xff]
      %v1411 = vld [vmem:[%s1 + $0x60] sm:$0xff]
      %v1412 = vld [vmem:[%s1 + $0x68] sm:$0xff]
      %v1413 = vld [vmem:[%s1 + $0x70] sm:$0xff]
      %v1414 = vld [vmem:[%s1 + $0x78] sm:$0xff]
      %1415 = vmatprep.subr.mxu0 0.0
      %1416 = vmatpush1.msra.mxu0 %v1414
      %1417 = vmatprep.subr.mxu0 0.0
      %1418 = vmatpush1.msra.mxu0 %v1413
      %1419 = vmatprep.subr.mxu0 0.0
      %1420 = vmatpush1.msra.mxu0 %v1412
      %1421 = vmatprep.subr.mxu0 0.0
      %1422 = vmatpush1.msra.mxu0 %v1411
      %1423 = vmatprep.subr.mxu0 0.0
      %1424 = vmatpush1.msra.mxu0 %v1410
      %1425 = vmatprep.subr.mxu0 0.0
      %1426 = vmatpush1.msra.mxu0 %v1409
      %1427 = vmatprep.subr.mxu0 0.0
      %1428 = vmatpush1.msra.mxu0 %v1408
      %1429 = vmatprep.subr.mxu0 0.0
      %1430 = vmatpush1.msra.mxu0 %v1407
      %1431 = vmatprep.subr.mxu0 0.0
      %1432 = vmatpush1.msra.mxu0 %v1406
      %1433 = vmatprep.subr.mxu0 0.0
      %1434 = vmatpush1.msra.mxu0 %v1405
      %1435 = vmatprep.subr.mxu0 0.0
      %1436 = vmatpush1.msra.mxu0 %v1404
      %1437 = vmatprep.subr.mxu0 0.0
      %1438 = vmatpush1.msra.mxu0 %v1403
      %1439 = vmatprep.subr.mxu0 0.0
      %1440 = vmatpush1.msra.mxu0 %v1402
      %1441 = vmatprep.subr.mxu0 0.0
      %1442 = vmatpush1.msra.mxu0 %v1401
      %1443 = vmatprep.subr.mxu0 0.0
      %1444 = vmatpush1.msra.mxu0 %v1400
      %1445 = vmatprep.subr.mxu0 0.0
      %1446 = vmatpush1.msra.mxu0 %v1399
      %1447 = vmatprep.subr.mxu0 0.0
      %1448 = vmatpush2.msra.mxu0 0.0
      %1449 = vmatprep.subr.mxu0 0.0
      %1450 = vmatpush2.msra.mxu0 0.0
      %1451 = vmatprep.subr.mxu0 0.0
      %1452 = vmatpush2.msra.mxu0 0.0
      %1453 = vmatprep.subr.mxu0 0.0
      %1454 = vmatpush2.msra.mxu0 0.0
      %1455 = vmatprep.subr.mxu0 0.0
      %1456 = vmatpush2.msra.mxu0 0.0
      %1457 = vmatprep.subr.mxu0 0.0
      %1458 = vmatpush2.msra.mxu0 0.0
      %1459 = vmatprep.subr.mxu0 0.0
      %1460 = vmatpush2.msra.mxu0 0.0
      %1461 = vmatprep.subr.mxu0 0.0
      %1462 = vmatpush2.msra.mxu0 0.0
      %1463 = vmatprep.subr.mxu0 0.0
      %1464 = vmatpush2.msra.mxu0 0.0
      %1465 = vmatprep.subr.mxu0 0.0
      %1466 = vmatpush2.msra.mxu0 0.0
      %1467 = vmatprep.subr.mxu0 0.0
      %1468 = vmatpush2.msra.mxu0 0.0
      %1469 = vmatprep.subr.mxu0 0.0
      %1470 = vmatpush2.msra.mxu0 0.0
      %1471 = vmatprep.subr.mxu0 0.0
      %1472 = vmatpush2.msra.mxu0 0.0
      %1473 = vmatprep.subr.mxu0 0.0
      %1474 = vmatpush2.msra.mxu0 0.0
      %1475 = vmatprep.subr.mxu0 0.0
      %1476 = vmatpush2.msra.mxu0 0.0
      %1477 = vmatprep.subr.mxu0 0.0
      %1478 = vmatpush2.msra.mxu0 0.0
      %1479 = vmatprep.mubr.f32.mxu0 0.0
      %1480 = vmatmul.mubr.f32.gmra.mxu0 %v1398
      %v1481 = vpop.f32.mrf.mxu0
      %v1482 = vadd.f32 0.0, %v1481
      %v1483 = vpop.f32.mrf.mxu0
      %1484 = vdwg.mxu0
      %v1485 = vld [vmem:[%s724] sm:$0xff]
      %v1486 = vld [vmem:[%s724 + $0x8] sm:$0xff]
      %v1487 = vld [vmem:[%s724 + $0x10] sm:$0xff]
      %v1488 = vld [vmem:[%s724 + $0x18] sm:$0xff]
      %v1489 = vld [vmem:[%s724 + $0x20] sm:$0xff]
      %v1490 = vld [vmem:[%s724 + $0x28] sm:$0xff]
      %v1491 = vld [vmem:[%s724 + $0x30] sm:$0xff]
      %v1492 = vld [vmem:[%s724 + $0x38] sm:$0xff]
      %v1493 = vld [vmem:[%s724 + $0x40] sm:$0xff]
      %v1494 = vld [vmem:[%s724 + $0x48] sm:$0xff]
      %v1495 = vld [vmem:[%s724 + $0x50] sm:$0xff]
      %v1496 = vld [vmem:[%s724 + $0x58] sm:$0xff]
      %v1497 = vld [vmem:[%s724 + $0x60] sm:$0xff]
      %v1498 = vld [vmem:[%s724 + $0x68] sm:$0xff]
      %v1499 = vld [vmem:[%s724 + $0x70] sm:$0xff]
      %v1500 = vld [vmem:[%s724 + $0x78] sm:$0xff]
      %1501 = vmatprep.subr.mxu0 0.0
      %1502 = vmatpush1.msra.mxu0 %v1500
      %1503 = vmatprep.subr.mxu0 0.0
      %1504 = vmatpush1.msra.mxu0 %v1499
      %1505 = vmatprep.subr.mxu0 0.0
      %1506 = vmatpush1.msra.mxu0 %v1498
      %1507 = vmatprep.subr.mxu0 0.0
      %1508 = vmatpush1.msra.mxu0 %v1497
      %1509 = vmatprep.subr.mxu0 0.0
      %1510 = vmatpush1.msra.mxu0 %v1496
      %1511 = vmatprep.subr.mxu0 0.0
      %1512 = vmatpush1.msra.mxu0 %v1495
      %1513 = vmatprep.subr.mxu0 0.0
      %1514 = vmatpush1.msra.mxu0 %v1494
      %1515 = vmatprep.subr.mxu0 0.0
      %1516 = vmatpush1.msra.mxu0 %v1493
      %1517 = vmatprep.subr.mxu0 0.0
      %1518 = vmatpush1.msra.mxu0 %v1492
      %1519 = vmatprep.subr.mxu0 0.0
      %1520 = vmatpush1.msra.mxu0 %v1491
      %1521 = vmatprep.subr.mxu0 0.0
      %1522 = vmatpush1.msra.mxu0 %v1490
      %1523 = vmatprep.subr.mxu0 0.0
      %1524 = vmatpush1.msra.mxu0 %v1489
      %1525 = vmatprep.subr.mxu0 0.0
      %1526 = vmatpush1.msra.mxu0 %v1488
      %1527 = vmatprep.subr.mxu0 0.0
      %1528 = vmatpush1.msra.mxu0 %v1487
      %1529 = vmatprep.subr.mxu0 0.0
      %1530 = vmatpush1.msra.mxu0 %v1486
      %1531 = vmatprep.subr.mxu0 0.0
      %1532 = vmatpush1.msra.mxu0 %v1485
      %1533 = vmatprep.subr.mxu0 0.0
      %1534 = vmatpush2.msra.mxu0 0.0
      %1535 = vmatprep.subr.mxu0 0.0
      %1536 = vmatpush2.msra.mxu0 0.0
      %1537 = vmatprep.subr.mxu0 0.0
      %1538 = vmatpush2.msra.mxu0 0.0
      %1539 = vmatprep.subr.mxu0 0.0
      %1540 = vmatpush2.msra.mxu0 0.0
      %1541 = vmatprep.subr.mxu0 0.0
      %1542 = vmatpush2.msra.mxu0 0.0
      %1543 = vmatprep.subr.mxu0 0.0
      %1544 = vmatpush2.msra.mxu0 0.0
      %1545 = vmatprep.subr.mxu0 0.0
      %1546 = vmatpush2.msra.mxu0 0.0
      %1547 = vmatprep.subr.mxu0 0.0
      %1548 = vmatpush2.msra.mxu0 0.0
      %1549 = vmatprep.subr.mxu0 0.0
      %1550 = vmatpush2.msra.mxu0 0.0
      %1551 = vmatprep.subr.mxu0 0.0
      %1552 = vmatpush2.msra.mxu0 0.0
      %1553 = vmatprep.subr.mxu0 0.0
      %1554 = vmatpush2.msra.mxu0 0.0
      %1555 = vmatprep.subr.mxu0 0.0
      %1556 = vmatpush2.msra.mxu0 0.0
      %1557 = vmatprep.subr.mxu0 0.0
      %1558 = vmatpush2.msra.mxu0 0.0
      %1559 = vmatprep.subr.mxu0 0.0
      %1560 = vmatpush2.msra.mxu0 0.0
      %1561 = vmatprep.subr.mxu0 0.0
      %1562 = vmatpush2.msra.mxu0 0.0
      %1563 = vmatprep.subr.mxu0 0.0
      %1564 = vmatpush2.msra.mxu0 0.0
      %1565 = vmatprep.mubr.f32.mxu0 0.0
      %1566 = vmatmul.mubr.f32.gmra.mxu0 %v1398
      %v1567 = vpop.f32.mrf.mxu0
      %v1568 = vadd.f32 0.0, %v1567
      %v1569 = vpop.f32.mrf.mxu0
      %1570 = vdwg.mxu0
      %v1571 = vld [vmem:[%s811] sm:$0xff]
      %v1572 = vld [vmem:[%s811 + $0x8] sm:$0xff]
      %v1573 = vld [vmem:[%s811 + $0x10] sm:$0xff]
      %v1574 = vld [vmem:[%s811 + $0x18] sm:$0xff]
      %v1575 = vld [vmem:[%s811 + $0x20] sm:$0xff]
      %v1576 = vld [vmem:[%s811 + $0x28] sm:$0xff]
      %v1577 = vld [vmem:[%s811 + $0x30] sm:$0xff]
      %v1578 = vld [vmem:[%s811 + $0x38] sm:$0xff]
      %v1579 = vld [vmem:[%s811 + $0x40] sm:$0xff]
      %v1580 = vld [vmem:[%s811 + $0x48] sm:$0xff]
      %v1581 = vld [vmem:[%s811 + $0x50] sm:$0xff]
      %v1582 = vld [vmem:[%s811 + $0x58] sm:$0xff]
      %v1583 = vld [vmem:[%s811 + $0x60] sm:$0xff]
      %v1584 = vld [vmem:[%s811 + $0x68] sm:$0xff]
      %v1585 = vld [vmem:[%s811 + $0x70] sm:$0xff]
      %v1586 = vld [vmem:[%s811 + $0x78] sm:$0xff]
      %1587 = vmatprep.subr.mxu0 0.0
      %1588 = vmatpush1.msra.mxu0 %v1586
      %1589 = vmatprep.subr.mxu0 0.0
      %1590 = vmatpush1.msra.mxu0 %v1585
      %1591 = vmatprep.subr.mxu0 0.0
      %1592 = vmatpush1.msra.mxu0 %v1584
      %1593 = vmatprep.subr.mxu0 0.0
      %1594 = vmatpush1.msra.mxu0 %v1583
      %1595 = vmatprep.subr.mxu0 0.0
      %1596 = vmatpush1.msra.mxu0 %v1582
      %1597 = vmatprep.subr.mxu0 0.0
      %1598 = vmatpush1.msra.mxu0 %v1581
      %1599 = vmatprep.subr.mxu0 0.0
      %1600 = vmatpush1.msra.mxu0 %v1580
      %1601 = vmatprep.subr.mxu0 0.0
      %1602 = vmatpush1.msra.mxu0 %v1579
      %1603 = vmatprep.subr.mxu0 0.0
      %1604 = vmatpush1.msra.mxu0 %v1578
      %1605 = vmatprep.subr.mxu0 0.0
      %1606 = vmatpush1.msra.mxu0 %v1577
      %1607 = vmatprep.subr.mxu0 0.0
      %1608 = vmatpush1.msra.mxu0 %v1576
      %1609 = vmatprep.subr.mxu0 0.0
      %1610 = vmatpush1.msra.mxu0 %v1575
      %1611 = vmatprep.subr.mxu0 0.0
      %1612 = vmatpush1.msra.mxu0 %v1574
      %1613 = vmatprep.subr.mxu0 0.0
      %1614 = vmatpush1.msra.mxu0 %v1573
      %1615 = vmatprep.subr.mxu0 0.0
      %1616 = vmatpush1.msra.mxu0 %v1572
      %1617 = vmatprep.subr.mxu0 0.0
      %1618 = vmatpush1.msra.mxu0 %v1571
      %1619 = vmatprep.subr.mxu0 0.0
      %1620 = vmatpush2.msra.mxu0 0.0
      %1621 = vmatprep.subr.mxu0 0.0
      %1622 = vmatpush2.msra.mxu0 0.0
      %1623 = vmatprep.subr.mxu0 0.0
      %1624 = vmatpush2.msra.mxu0 0.0
      %1625 = vmatprep.subr.mxu0 0.0
      %1626 = vmatpush2.msra.mxu0 0.0
      %1627 = vmatprep.subr.mxu0 0.0
      %1628 = vmatpush2.msra.mxu0 0.0
      %1629 = vmatprep.subr.mxu0 0.0
      %1630 = vmatpush2.msra.mxu0 0.0
      %1631 = vmatprep.subr.mxu0 0.0
      %1632 = vmatpush2.msra.mxu0 0.0
      %1633 = vmatprep.subr.mxu0 0.0
      %1634 = vmatpush2.msra.mxu0 0.0
      %1635 = vmatprep.subr.mxu0 0.0
      %1636 = vmatpush2.msra.mxu0 0.0
      %1637 = vmatprep.subr.mxu0 0.0
      %1638 = vmatpush2.msra.mxu0 0.0
      %1639 = vmatprep.subr.mxu0 0.0
      %1640 = vmatpush2.msra.mxu0 0.0
      %1641 = vmatprep.subr.mxu0 0.0
      %1642 = vmatpush2.msra.mxu0 0.0
      %1643 = vmatprep.subr.mxu0 0.0
      %1644 = vmatpush2.msra.mxu0 0.0
      %1645 = vmatprep.subr.mxu0 0.0
      %1646 = vmatpush2.msra.mxu0 0.0
      %1647 = vmatprep.subr.mxu0 0.0
      %1648 = vmatpush2.msra.mxu0 0.0
      %1649 = vmatprep.subr.mxu0 0.0
      %1650 = vmatpush2.msra.mxu0 0.0
      %1651 = vmatprep.mubr.f32.mxu0 0.0
      %1652 = vmatmul.mubr.f32.gmra.mxu0 %v1398
      %v1653 = vpop.f32.mrf.mxu0
      %v1654 = vadd.f32 0.0, %v1653
      %v1655 = vpop.f32.mrf.mxu0
      %1656 = vdwg.mxu0
      %v1657 = vld [vmem:[%s2] sm:$0xff]
      %v1658 = vld [vmem:[%s899] sm:$0xff]
      %v1660 = vsel %vm901, %v1658, 0
      %v1663 = vsel %vm905, %v1568, 0
      %1665 = vmatprep.subr.mxu0 0.0
      %1666 = vmatpush1.msra.mxu0 0.0
      %1667 = vmatprep.subr.mxu0 0.0
      %1668 = vmatpush1.msra.mxu0 0.0
      %1669 = vmatprep.subr.mxu0 0.0
      %1670 = vmatpush1.msra.mxu0 0.0
      %1671 = vmatprep.subr.mxu0 0.0
      %1672 = vmatpush1.msra.mxu0 0.0
      %1673 = vmatprep.subr.mxu0 0.0
      %1674 = vmatpush1.msra.mxu0 0.0
      %1675 = vmatprep.subr.mxu0 0.0
      %1676 = vmatpush1.msra.mxu0 0.0
      %1677 = vmatprep.subr.mxu0 0.0
      %1678 = vmatpush1.msra.mxu0 0.0
      %1679 = vmatprep.subr.mxu0 0.0
      %1680 = vmatpush1.msra.mxu0 0.0
      %1681 = vmatprep.subr.mxu0 0.0
      %1682 = vmatpush1.msra.mxu0 0.0
      %1683 = vmatprep.subr.mxu0 0.0
      %1684 = vmatpush1.msra.mxu0 0.0
      %1685 = vmatprep.subr.mxu0 0.0
      %1686 = vmatpush1.msra.mxu0 0.0
      %1687 = vmatprep.subr.mxu0 0.0
      %1688 = vmatpush1.msra.mxu0 0.0
      %1689 = vmatprep.subr.mxu0 0.0
      %1690 = vmatpush1.msra.mxu0 0.0
      %1691 = vmatprep.subr.mxu0 0.0
      %1692 = vmatpush1.msra.mxu0 0.0
      %1693 = vmatprep.subr.mxu0 0.0
      %1694 = vmatpush1.msra.mxu0 0.0
      %1695 = vmatprep.subr.mxu0 0.0
      %1696 = vmatpush1.msra.mxu0 %v1663
      %1697 = vmatprep.subr.mxu0 0.0
      %1698 = vmatpush2.msra.mxu0 0.0
      %1699 = vmatprep.subr.mxu0 0.0
      %1700 = vmatpush2.msra.mxu0 0.0
      %1701 = vmatprep.subr.mxu0 0.0
      %1702 = vmatpush2.msra.mxu0 0.0
      %1703 = vmatprep.subr.mxu0 0.0
      %1704 = vmatpush2.msra.mxu0 0.0
      %1705 = vmatprep.subr.mxu0 0.0
      %1706 = vmatpush2.msra.mxu0 0.0
      %1707 = vmatprep.subr.mxu0 0.0
      %1708 = vmatpush2.msra.mxu0 0.0
      %1709 = vmatprep.subr.mxu0 0.0
      %1710 = vmatpush2.msra.mxu0 0.0
      %1711 = vmatprep.subr.mxu0 0.0
      %1712 = vmatpush2.msra.mxu0 0.0
      %1713 = vmatprep.subr.mxu0 0.0
      %1714 = vmatpush2.msra.mxu0 0.0
      %1715 = vmatprep.subr.mxu0 0.0
      %1716 = vmatpush2.msra.mxu0 0.0
      %1717 = vmatprep.subr.mxu0 0.0
      %1718 = vmatpush2.msra.mxu0 0.0
      %1719 = vmatprep.subr.mxu0 0.0
      %1720 = vmatpush2.msra.mxu0 0.0
      %1721 = vmatprep.subr.mxu0 0.0
      %1722 = vmatpush2.msra.mxu0 0.0
      %1723 = vmatprep.subr.mxu0 0.0
      %1724 = vmatpush2.msra.mxu0 0.0
      %1725 = vmatprep.subr.mxu0 0.0
      %1726 = vmatpush2.msra.mxu0 0.0
      %1727 = vmatprep.subr.mxu0 0.0
      %1728 = vmatpush2.msra.mxu0 0.0
      %1729 = vmatprep.mubr.f32.mxu0 0.0
      %1730 = vmatmul.mubr.f32.gmra.mxu0 %v1660
      %v1731 = vpop.f32.mrf.mxu0
      %v1732 = vadd.f32 0.0, %v1731
      %v1733 = vpop.f32.mrf.mxu0
      %1734 = vdwg.mxu0
      %v1736 = vsel %vm901, %v1657, 0
      %v1739 = vsel %vm905, %v1482, 0
      %1741 = vmatprep.subr.mxu0 0.0
      %1742 = vmatpush1.msra.mxu0 0.0
      %1743 = vmatprep.subr.mxu0 0.0
      %1744 = vmatpush1.msra.mxu0 0.0
      %1745 = vmatprep.subr.mxu0 0.0
      %1746 = vmatpush1.msra.mxu0 0.0
      %1747 = vmatprep.subr.mxu0 0.0
      %1748 = vmatpush1.msra.mxu0 0.0
      %1749 = vmatprep.subr.mxu0 0.0
      %1750 = vmatpush1.msra.mxu0 0.0
      %1751 = vmatprep.subr.mxu0 0.0
      %1752 = vmatpush1.msra.mxu0 0.0
      %1753 = vmatprep.subr.mxu0 0.0
      %1754 = vmatpush1.msra.mxu0 0.0
      %1755 = vmatprep.subr.mxu0 0.0
      %1756 = vmatpush1.msra.mxu0 0.0
      %1757 = vmatprep.subr.mxu0 0.0
      %1758 = vmatpush1.msra.mxu0 0.0
      %1759 = vmatprep.subr.mxu0 0.0
      %1760 = vmatpush1.msra.mxu0 0.0
      %1761 = vmatprep.subr.mxu0 0.0
      %1762 = vmatpush1.msra.mxu0 0.0
      %1763 = vmatprep.subr.mxu0 0.0
      %1764 = vmatpush1.msra.mxu0 0.0
      %1765 = vmatprep.subr.mxu0 0.0
      %1766 = vmatpush1.msra.mxu0 0.0
      %1767 = vmatprep.subr.mxu0 0.0
      %1768 = vmatpush1.msra.mxu0 0.0
      %1769 = vmatprep.subr.mxu0 0.0
      %1770 = vmatpush1.msra.mxu0 0.0
      %1771 = vmatprep.subr.mxu0 0.0
      %1772 = vmatpush1.msra.mxu0 %v1739
      %1773 = vmatprep.subr.mxu0 0.0
      %1774 = vmatpush2.msra.mxu0 0.0
      %1775 = vmatprep.subr.mxu0 0.0
      %1776 = vmatpush2.msra.mxu0 0.0
      %1777 = vmatprep.subr.mxu0 0.0
      %1778 = vmatpush2.msra.mxu0 0.0
      %1779 = vmatprep.subr.mxu0 0.0
      %1780 = vmatpush2.msra.mxu0 0.0
      %1781 = vmatprep.subr.mxu0 0.0
      %1782 = vmatpush2.msra.mxu0 0.0
      %1783 = vmatprep.subr.mxu0 0.0
      %1784 = vmatpush2.msra.mxu0 0.0
      %1785 = vmatprep.subr.mxu0 0.0
      %1786 = vmatpush2.msra.mxu0 0.0
      %1787 = vmatprep.subr.mxu0 0.0
      %1788 = vmatpush2.msra.mxu0 0.0
      %1789 = vmatprep.subr.mxu0 0.0
      %1790 = vmatpush2.msra.mxu0 0.0
      %1791 = vmatprep.subr.mxu0 0.0
      %1792 = vmatpush2.msra.mxu0 0.0
      %1793 = vmatprep.subr.mxu0 0.0
      %1794 = vmatpush2.msra.mxu0 0.0
      %1795 = vmatprep.subr.mxu0 0.0
      %1796 = vmatpush2.msra.mxu0 0.0
      %1797 = vmatprep.subr.mxu0 0.0
      %1798 = vmatpush2.msra.mxu0 0.0
      %1799 = vmatprep.subr.mxu0 0.0
      %1800 = vmatpush2.msra.mxu0 0.0
      %1801 = vmatprep.subr.mxu0 0.0
      %1802 = vmatpush2.msra.mxu0 0.0
      %1803 = vmatprep.subr.mxu0 0.0
      %1804 = vmatpush2.msra.mxu0 0.0
      %1805 = vmatprep.mubr.f32.mxu0 0.0
      %1806 = vmatmul.mubr.f32.gmra.mxu0 %v1736
      %v1807 = vpop.f32.mrf.mxu0
      %v1808 = vadd.f32 %v1732, %v1807
      %v1809 = vpop.f32.mrf.mxu0
      %1810 = vdwg.mxu0
      %v1811 = vld [vmem:[%s1055] sm:$0xff]
      %v1813 = vsel %vm901, %v1811, 0
      %v1816 = vsel %vm905, %v1654, 0
      %1818 = vmatprep.subr.mxu0 0.0
      %1819 = vmatpush1.msra.mxu0 0.0
      %1820 = vmatprep.subr.mxu0 0.0
      %1821 = vmatpush1.msra.mxu0 0.0
      %1822 = vmatprep.subr.mxu0 0.0
      %1823 = vmatpush1.msra.mxu0 0.0
      %1824 = vmatprep.subr.mxu0 0.0
      %1825 = vmatpush1.msra.mxu0 0.0
      %1826 = vmatprep.subr.mxu0 0.0
      %1827 = vmatpush1.msra.mxu0 0.0
      %1828 = vmatprep.subr.mxu0 0.0
      %1829 = vmatpush1.msra.mxu0 0.0
      %1830 = vmatprep.subr.mxu0 0.0
      %1831 = vmatpush1.msra.mxu0 0.0
      %1832 = vmatprep.subr.mxu0 0.0
      %1833 = vmatpush1.msra.mxu0 0.0
      %1834 = vmatprep.subr.mxu0 0.0
      %1835 = vmatpush1.msra.mxu0 0.0
      %1836 = vmatprep.subr.mxu0 0.0
      %1837 = vmatpush1.msra.mxu0 0.0
      %1838 = vmatprep.subr.mxu0 0.0
      %1839 = vmatpush1.msra.mxu0 0.0
      %1840 = vmatprep.subr.mxu0 0.0
      %1841 = vmatpush1.msra.mxu0 0.0
      %1842 = vmatprep.subr.mxu0 0.0
      %1843 = vmatpush1.msra.mxu0 0.0
      %1844 = vmatprep.subr.mxu0 0.0
      %1845 = vmatpush1.msra.mxu0 0.0
      %1846 = vmatprep.subr.mxu0 0.0
      %1847 = vmatpush1.msra.mxu0 0.0
      %1848 = vmatprep.subr.mxu0 0.0
      %1849 = vmatpush1.msra.mxu0 %v1816
      %1850 = vmatprep.subr.mxu0 0.0
      %1851 = vmatpush2.msra.mxu0 0.0
      %1852 = vmatprep.subr.mxu0 0.0
      %1853 = vmatpush2.msra.mxu0 0.0
      %1854 = vmatprep.subr.mxu0 0.0
      %1855 = vmatpush2.msra.mxu0 0.0
      %1856 = vmatprep.subr.mxu0 0.0
      %1857 = vmatpush2.msra.mxu0 0.0
      %1858 = vmatprep.subr.mxu0 0.0
      %1859 = vmatpush2.msra.mxu0 0.0
      %1860 = vmatprep.subr.mxu0 0.0
      %1861 = vmatpush2.msra.mxu0 0.0
      %1862 = vmatprep.subr.mxu0 0.0
      %1863 = vmatpush2.msra.mxu0 0.0
      %1864 = vmatprep.subr.mxu0 0.0
      %1865 = vmatpush2.msra.mxu0 0.0
      %1866 = vmatprep.subr.mxu0 0.0
      %1867 = vmatpush2.msra.mxu0 0.0
      %1868 = vmatprep.subr.mxu0 0.0
      %1869 = vmatpush2.msra.mxu0 0.0
      %1870 = vmatprep.subr.mxu0 0.0
      %1871 = vmatpush2.msra.mxu0 0.0
      %1872 = vmatprep.subr.mxu0 0.0
      %1873 = vmatpush2.msra.mxu0 0.0
      %1874 = vmatprep.subr.mxu0 0.0
      %1875 = vmatpush2.msra.mxu0 0.0
      %1876 = vmatprep.subr.mxu0 0.0
      %1877 = vmatpush2.msra.mxu0 0.0
      %1878 = vmatprep.subr.mxu0 0.0
      %1879 = vmatpush2.msra.mxu0 0.0
      %1880 = vmatprep.subr.mxu0 0.0
      %1881 = vmatpush2.msra.mxu0 0.0
      %1882 = vmatprep.mubr.f32.mxu0 0.0
      %1883 = vmatmul.mubr.f32.gmra.mxu0 %v1813
      %v1884 = vpop.f32.mrf.mxu0
      %v1885 = vadd.f32 0.0, %v1884
      %v1886 = vpop.f32.mrf.mxu0
      %1887 = vdwg.mxu0
      %v1888 = vadd.f32 %v1808, %v1885
      %v1889 = vld [vmem:[%s3] sm:$0xff]
      %1891 = vset.pattern.permute.xlu0 0
      %1892 = vperm.xlu0 %1891, %v1889
      %v1893 = vpop.permute.xlu0 %1892
      %v1895 = vmul.f32 %v1888, %v1893
      %v1896 = vld [vmem:[%s4] sm:$0xff]
      %1898 = vset.pattern.permute.xlu0 0
      %1899 = vperm.xlu0 %1898, %v1896
      %v1900 = vpop.permute.xlu0 %1899
      %v1902 = vadd.f32 %v1895, %v1900
      %v1903 = vmax.f32 %v1902, 0.0
      %1905 = vrot.lane.b32.xlu0 %v1903, 64
      %v1906 = vpop.permute.xlu0 %1905
      %1908 = vst.msk [vmem:[#allocation2 + $0x8] sm:$0xff] %vm1153, %v1906
      %1909 = vst.msk [vmem:[#allocation2 + $0x10] sm:$0xff] %vm1155, %v1906
      %v1910 = vld [vmem:[%s11] sm:$0xff]
      %v1911 = vld [vmem:[%s1158] sm:$0xff]
      %v1913 = vsel %vm901, %v1911, 0
      %1915 = vmatprep.subr.mxu0 0.0
      %1916 = vmatpush1.msra.mxu0 0.0
      %1917 = vmatprep.subr.mxu0 0.0
      %1918 = vmatpush1.msra.mxu0 0.0
      %1919 = vmatprep.subr.mxu0 0.0
      %1920 = vmatpush1.msra.mxu0 0.0
      %1921 = vmatprep.subr.mxu0 0.0
      %1922 = vmatpush1.msra.mxu0 0.0
      %1923 = vmatprep.subr.mxu0 0.0
      %1924 = vmatpush1.msra.mxu0 0.0
      %1925 = vmatprep.subr.mxu0 0.0
      %1926 = vmatpush1.msra.mxu0 0.0
      %1927 = vmatprep.subr.mxu0 0.0
      %1928 = vmatpush1.msra.mxu0 0.0
      %1929 = vmatprep.subr.mxu0 0.0
      %1930 = vmatpush1.msra.mxu0 0.0
      %1931 = vmatprep.subr.mxu0 0.0
      %1932 = vmatpush1.msra.mxu0 0.0
      %1933 = vmatprep.subr.mxu0 0.0
      %1934 = vmatpush1.msra.mxu0 0.0
      %1935 = vmatprep.subr.mxu0 0.0
      %1936 = vmatpush1.msra.mxu0 0.0
      %1937 = vmatprep.subr.mxu0 0.0
      %1938 = vmatpush1.msra.mxu0 0.0
      %1939 = vmatprep.subr.mxu0 0.0
      %1940 = vmatpush1.msra.mxu0 0.0
      %1941 = vmatprep.subr.mxu0 0.0
      %1942 = vmatpush1.msra.mxu0 0.0
      %1943 = vmatprep.subr.mxu0 0.0
      %1944 = vmatpush1.msra.mxu0 0.0
      %1945 = vmatprep.subr.mxu0 0.0
      %1946 = vmatpush1.msra.mxu0 %v1663
      %1947 = vmatprep.subr.mxu0 0.0
      %1948 = vmatpush2.msra.mxu0 0.0
      %1949 = vmatprep.subr.mxu0 0.0
      %1950 = vmatpush2.msra.mxu0 0.0
      %1951 = vmatprep.subr.mxu0 0.0
      %1952 = vmatpush2.msra.mxu0 0.0
      %1953 = vmatprep.subr.mxu0 0.0
      %1954 = vmatpush2.msra.mxu0 0.0
      %1955 = vmatprep.subr.mxu0 0.0
      %1956 = vmatpush2.msra.mxu0 0.0
      %1957 = vmatprep.subr.mxu0 0.0
      %1958 = vmatpush2.msra.mxu0 0.0
      %1959 = vmatprep.subr.mxu0 0.0
      %1960 = vmatpush2.msra.mxu0 0.0
      %1961 = vmatprep.subr.mxu0 0.0
      %1962 = vmatpush2.msra.mxu0 0.0
      %1963 = vmatprep.subr.mxu0 0.0
      %1964 = vmatpush2.msra.mxu0 0.0
      %1965 = vmatprep.subr.mxu0 0.0
      %1966 = vmatpush2.msra.mxu0 0.0
      %1967 = vmatprep.subr.mxu0 0.0
      %1968 = vmatpush2.msra.mxu0 0.0
      %1969 = vmatprep.subr.mxu0 0.0
      %1970 = vmatpush2.msra.mxu0 0.0
      %1971 = vmatprep.subr.mxu0 0.0
      %1972 = vmatpush2.msra.mxu0 0.0
      %1973 = vmatprep.subr.mxu0 0.0
      %1974 = vmatpush2.msra.mxu0 0.0
      %1975 = vmatprep.subr.mxu0 0.0
      %1976 = vmatpush2.msra.mxu0 0.0
      %1977 = vmatprep.subr.mxu0 0.0
      %1978 = vmatpush2.msra.mxu0 0.0
      %1979 = vmatprep.mubr.f32.mxu0 0.0
      %1980 = vmatmul.mubr.f32.gmra.mxu0 %v1913
      %v1981 = vpop.f32.mrf.mxu0
      %v1982 = vadd.f32 0.0, %v1981
      %v1983 = vpop.f32.mrf.mxu0
      %1984 = vdwg.mxu0
      %v1986 = vsel %vm901, %v1910, 0
      %1988 = vmatprep.subr.mxu0 0.0
      %1989 = vmatpush1.msra.mxu0 0.0
      %1990 = vmatprep.subr.mxu0 0.0
      %1991 = vmatpush1.msra.mxu0 0.0
      %1992 = vmatprep.subr.mxu0 0.0
      %1993 = vmatpush1.msra.mxu0 0.0
      %1994 = vmatprep.subr.mxu0 0.0
      %1995 = vmatpush1.msra.mxu0 0.0
      %1996 = vmatprep.subr.mxu0 0.0
      %1997 = vmatpush1.msra.mxu0 0.0
      %1998 = vmatprep.subr.mxu0 0.0
      %1999 = vmatpush1.msra.mxu0 0.0
      %2000 = vmatprep.subr.mxu0 0.0
      %2001 = vmatpush1.msra.mxu0 0.0
      %2002 = vmatprep.subr.mxu0 0.0
      %2003 = vmatpush1.msra.mxu0 0.0
      %2004 = vmatprep.subr.mxu0 0.0
      %2005 = vmatpush1.msra.mxu0 0.0
      %2006 = vmatprep.subr.mxu0 0.0
      %2007 = vmatpush1.msra.mxu0 0.0
      %2008 = vmatprep.subr.mxu0 0.0
      %2009 = vmatpush1.msra.mxu0 0.0
      %2010 = vmatprep.subr.mxu0 0.0
      %2011 = vmatpush1.msra.mxu0 0.0
      %2012 = vmatprep.subr.mxu0 0.0
      %2013 = vmatpush1.msra.mxu0 0.0
      %2014 = vmatprep.subr.mxu0 0.0
      %2015 = vmatpush1.msra.mxu0 0.0
      %2016 = vmatprep.subr.mxu0 0.0
      %2017 = vmatpush1.msra.mxu0 0.0
      %2018 = vmatprep.subr.mxu0 0.0
      %2019 = vmatpush1.msra.mxu0 %v1739
      %2020 = vmatprep.subr.mxu0 0.0
      %2021 = vmatpush2.msra.mxu0 0.0
      %2022 = vmatprep.subr.mxu0 0.0
      %2023 = vmatpush2.msra.mxu0 0.0
      %2024 = vmatprep.subr.mxu0 0.0
      %2025 = vmatpush2.msra.mxu0 0.0
      %2026 = vmatprep.subr.mxu0 0.0
      %2027 = vmatpush2.msra.mxu0 0.0
      %2028 = vmatprep.subr.mxu0 0.0
      %2029 = vmatpush2.msra.mxu0 0.0
      %2030 = vmatprep.subr.mxu0 0.0
      %2031 = vmatpush2.msra.mxu0 0.0
      %2032 = vmatprep.subr.mxu0 0.0
      %2033 = vmatpush2.msra.mxu0 0.0
      %2034 = vmatprep.subr.mxu0 0.0
      %2035 = vmatpush2.msra.mxu0 0.0
      %2036 = vmatprep.subr.mxu0 0.0
      %2037 = vmatpush2.msra.mxu0 0.0
      %2038 = vmatprep.subr.mxu0 0.0
      %2039 = vmatpush2.msra.mxu0 0.0
      %2040 = vmatprep.subr.mxu0 0.0
      %2041 = vmatpush2.msra.mxu0 0.0
      %2042 = vmatprep.subr.mxu0 0.0
      %2043 = vmatpush2.msra.mxu0 0.0
      %2044 = vmatprep.subr.mxu0 0.0
      %2045 = vmatpush2.msra.mxu0 0.0
      %2046 = vmatprep.subr.mxu0 0.0
      %2047 = vmatpush2.msra.mxu0 0.0
      %2048 = vmatprep.subr.mxu0 0.0
      %2049 = vmatpush2.msra.mxu0 0.0
      %2050 = vmatprep.subr.mxu0 0.0
      %2051 = vmatpush2.msra.mxu0 0.0
      %2052 = vmatprep.mubr.f32.mxu0 0.0
      %2053 = vmatmul.mubr.f32.gmra.mxu0 %v1986
      %v2054 = vpop.f32.mrf.mxu0
      %v2055 = vadd.f32 %v1982, %v2054
      %v2056 = vpop.f32.mrf.mxu0
      %2057 = vdwg.mxu0
      %v2058 = vld [vmem:[%s1306] sm:$0xff]
      %v2060 = vsel %vm901, %v2058, 0
      %2062 = vmatprep.subr.mxu0 0.0
      %2063 = vmatpush1.msra.mxu0 0.0
      %2064 = vmatprep.subr.mxu0 0.0
      %2065 = vmatpush1.msra.mxu0 0.0
      %2066 = vmatprep.subr.mxu0 0.0
      %2067 = vmatpush1.msra.mxu0 0.0
      %2068 = vmatprep.subr.mxu0 0.0
      %2069 = vmatpush1.msra.mxu0 0.0
      %2070 = vmatprep.subr.mxu0 0.0
      %2071 = vmatpush1.msra.mxu0 0.0
      %2072 = vmatprep.subr.mxu0 0.0
      %2073 = vmatpush1.msra.mxu0 0.0
      %2074 = vmatprep.subr.mxu0 0.0
      %2075 = vmatpush1.msra.mxu0 0.0
      %2076 = vmatprep.subr.mxu0 0.0
      %2077 = vmatpush1.msra.mxu0 0.0
      %2078 = vmatprep.subr.mxu0 0.0
      %2079 = vmatpush1.msra.mxu0 0.0
      %2080 = vmatprep.subr.mxu0 0.0
      %2081 = vmatpush1.msra.mxu0 0.0
      %2082 = vmatprep.subr.mxu0 0.0
      %2083 = vmatpush1.msra.mxu0 0.0
      %2084 = vmatprep.subr.mxu0 0.0
      %2085 = vmatpush1.msra.mxu0 0.0
      %2086 = vmatprep.subr.mxu0 0.0
      %2087 = vmatpush1.msra.mxu0 0.0
      %2088 = vmatprep.subr.mxu0 0.0
      %2089 = vmatpush1.msra.mxu0 0.0
      %2090 = vmatprep.subr.mxu0 0.0
      %2091 = vmatpush1.msra.mxu0 0.0
      %2092 = vmatprep.subr.mxu0 0.0
      %2093 = vmatpush1.msra.mxu0 %v1816
      %2094 = vmatprep.subr.mxu0 0.0
      %2095 = vmatpush2.msra.mxu0 0.0
      %2096 = vmatprep.subr.mxu0 0.0
      %2097 = vmatpush2.msra.mxu0 0.0
      %2098 = vmatprep.subr.mxu0 0.0
      %2099 = vmatpush2.msra.mxu0 0.0
      %2100 = vmatprep.subr.mxu0 0.0
      %2101 = vmatpush2.msra.mxu0 0.0
      %2102 = vmatprep.subr.mxu0 0.0
      %2103 = vmatpush2.msra.mxu0 0.0
      %2104 = vmatprep.subr.mxu0 0.0
      %2105 = vmatpush2.msra.mxu0 0.0
      %2106 = vmatprep.subr.mxu0 0.0
      %2107 = vmatpush2.msra.mxu0 0.0
      %2108 = vmatprep.subr.mxu0 0.0
      %2109 = vmatpush2.msra.mxu0 0.0
      %2110 = vmatprep.subr.mxu0 0.0
      %2111 = vmatpush2.msra.mxu0 0.0
      %2112 = vmatprep.subr.mxu0 0.0
      %2113 = vmatpush2.msra.mxu0 0.0
      %2114 = vmatprep.subr.mxu0 0.0
      %2115 = vmatpush2.msra.mxu0 0.0
      %2116 = vmatprep.subr.mxu0 0.0
      %2117 = vmatpush2.msra.mxu0 0.0
      %2118 = vmatprep.subr.mxu0 0.0
      %2119 = vmatpush2.msra.mxu0 0.0
      %2120 = vmatprep.subr.mxu0 0.0
      %2121 = vmatpush2.msra.mxu0 0.0
      %2122 = vmatprep.subr.mxu0 0.0
      %2123 = vmatpush2.msra.mxu0 0.0
      %2124 = vmatprep.subr.mxu0 0.0
      %2125 = vmatpush2.msra.mxu0 0.0
      %2126 = vmatprep.mubr.f32.mxu0 0.0
      %2127 = vmatmul.mubr.f32.gmra.mxu0 %v2060
      %v2128 = vpop.f32.mrf.mxu0
      %v2129 = vadd.f32 0.0, %v2128
      %v2130 = vpop.f32.mrf.mxu0
      %2131 = vdwg.mxu0
      %v2132 = vadd.f32 %v2055, %v2129
      %v2133 = vld [vmem:[%s12] sm:$0xff]
      %2135 = vset.pattern.permute.xlu0 0
      %2136 = vperm.xlu0 %2135, %v2133
      %v2137 = vpop.permute.xlu0 %2136
      %v2139 = vmul.f32 %v2132, %v2137
      %v2140 = vld [vmem:[%s13] sm:$0xff]
      %2142 = vset.pattern.permute.xlu0 0
      %2143 = vperm.xlu0 %2142, %v2140
      %v2144 = vpop.permute.xlu0 %2143
      %v2146 = vadd.f32 %v2139, %v2144
      %v2147 = vmax.f32 %v2146, 0.0
      %2148 = vst [vmem:[#allocation3 + $0x10] sm:$0xff] %v2147
      %v2149 = vld [vmem:[#allocation2] sm:$0xff]
      %v2150 = vld [vmem:[%s5] sm:$0xff]
      %v2151 = vld [vmem:[#allocation2 + $0x8] sm:$0xff]
      %s2152 = scalar_lea.vmem %s5, 8
      %v2153 = vld [vmem:[%s2152] sm:$0xff]
      %2156 = vrot.lane.b32.xlu0 %v2149, 112
      %v2157 = vpop.permute.xlu0 %2156
      %2158 = vrot.lane.b32.xlu0 %v2151, 112
      %v2159 = vpop.permute.xlu0 %2158
      %vm2160 = vcmask 916480
      %v2161 = vsel %vm2160, %v2157, %v2159
      %vm2163 = vcmask 64512
      %v2165 = vsel %vm2163, %v2153, 0
      %2167 = vmatprep.subr.mxu0 0.0
      %2168 = vmatpush1.msra.mxu0 0.0
      %2169 = vmatprep.subr.mxu0 0.0
      %2170 = vmatpush1.msra.mxu0 0.0
      %2171 = vmatprep.subr.mxu0 0.0
      %2172 = vmatpush1.msra.mxu0 0.0
      %2173 = vmatprep.subr.mxu0 0.0
      %2174 = vmatpush1.msra.mxu0 0.0
      %2175 = vmatprep.subr.mxu0 0.0
      %2176 = vmatpush1.msra.mxu0 0.0
      %2177 = vmatprep.subr.mxu0 0.0
      %2178 = vmatpush1.msra.mxu0 0.0
      %2179 = vmatprep.subr.mxu0 0.0
      %2180 = vmatpush1.msra.mxu0 0.0
      %2181 = vmatprep.subr.mxu0 0.0
      %2182 = vmatpush1.msra.mxu0 0.0
      %2183 = vmatprep.subr.mxu0 0.0
      %2184 = vmatpush1.msra.mxu0 0.0
      %2185 = vmatprep.subr.mxu0 0.0
      %2186 = vmatpush1.msra.mxu0 0.0
      %2187 = vmatprep.subr.mxu0 0.0
      %2188 = vmatpush1.msra.mxu0 0.0
      %2189 = vmatprep.subr.mxu0 0.0
      %2190 = vmatpush1.msra.mxu0 0.0
      %2191 = vmatprep.subr.mxu0 0.0
      %2192 = vmatpush1.msra.mxu0 0.0
      %2193 = vmatprep.subr.mxu0 0.0
      %2194 = vmatpush1.msra.mxu0 0.0
      %2195 = vmatprep.subr.mxu0 0.0
      %2196 = vmatpush1.msra.mxu0 0.0
      %2197 = vmatprep.subr.mxu0 0.0
      %2198 = vmatpush1.msra.mxu0 %v2161
      %2199 = vmatprep.subr.mxu0 0.0
      %2200 = vmatpush2.msra.mxu0 0.0
      %2201 = vmatprep.subr.mxu0 0.0
      %2202 = vmatpush2.msra.mxu0 0.0
      %2203 = vmatprep.subr.mxu0 0.0
      %2204 = vmatpush2.msra.mxu0 0.0
      %2205 = vmatprep.subr.mxu0 0.0
      %2206 = vmatpush2.msra.mxu0 0.0
      %2207 = vmatprep.subr.mxu0 0.0
      %2208 = vmatpush2.msra.mxu0 0.0
      %2209 = vmatprep.subr.mxu0 0.0
      %2210 = vmatpush2.msra.mxu0 0.0
      %2211 = vmatprep.subr.mxu0 0.0
      %2212 = vmatpush2.msra.mxu0 0.0
      %2213 = vmatprep.subr.mxu0 0.0
      %2214 = vmatpush2.msra.mxu0 0.0
      %2215 = vmatprep.subr.mxu0 0.0
      %2216 = vmatpush2.msra.mxu0 0.0
      %2217 = vmatprep.subr.mxu0 0.0
      %2218 = vmatpush2.msra.mxu0 0.0
      %2219 = vmatprep.subr.mxu0 0.0
      %2220 = vmatpush2.msra.mxu0 0.0
      %2221 = vmatprep.subr.mxu0 0.0
      %2222 = vmatpush2.msra.mxu0 0.0
      %2223 = vmatprep.subr.mxu0 0.0
      %2224 = vmatpush2.msra.mxu0 0.0
      %2225 = vmatprep.subr.mxu0 0.0
      %2226 = vmatpush2.msra.mxu0 0.0
      %2227 = vmatprep.subr.mxu0 0.0
      %2228 = vmatpush2.msra.mxu0 0.0
      %2229 = vmatprep.subr.mxu0 0.0
      %2230 = vmatpush2.msra.mxu0 0.0
      %2231 = vmatprep.mubr.f32.mxu0 0.0
      %2232 = vmatmul.mubr.f32.gmra.mxu0 %v2165
      %v2233 = vpop.f32.mrf.mxu0
      %v2234 = vadd.f32 0.0, %v2233
      %v2235 = vpop.f32.mrf.mxu0
      %2236 = vdwg.mxu0
      %v2238 = vsel %vm2163, %v2150, 0
      %2240 = vmatprep.subr.mxu0 0.0
      %2241 = vmatpush1.msra.mxu0 0.0
      %2242 = vmatprep.subr.mxu0 0.0
      %2243 = vmatpush1.msra.mxu0 0.0
      %2244 = vmatprep.subr.mxu0 0.0
      %2245 = vmatpush1.msra.mxu0 0.0
      %2246 = vmatprep.subr.mxu0 0.0
      %2247 = vmatpush1.msra.mxu0 0.0
      %2248 = vmatprep.subr.mxu0 0.0
      %2249 = vmatpush1.msra.mxu0 0.0
      %2250 = vmatprep.subr.mxu0 0.0
      %2251 = vmatpush1.msra.mxu0 0.0
      %2252 = vmatprep.subr.mxu0 0.0
      %2253 = vmatpush1.msra.mxu0 0.0
      %2254 = vmatprep.subr.mxu0 0.0
      %2255 = vmatpush1.msra.mxu0 0.0
      %2256 = vmatprep.subr.mxu0 0.0
      %2257 = vmatpush1.msra.mxu0 0.0
      %2258 = vmatprep.subr.mxu0 0.0
      %2259 = vmatpush1.msra.mxu0 0.0
      %2260 = vmatprep.subr.mxu0 0.0
      %2261 = vmatpush1.msra.mxu0 0.0
      %2262 = vmatprep.subr.mxu0 0.0
      %2263 = vmatpush1.msra.mxu0 0.0
      %2264 = vmatprep.subr.mxu0 0.0
      %2265 = vmatpush1.msra.mxu0 0.0
      %2266 = vmatprep.subr.mxu0 0.0
      %2267 = vmatpush1.msra.mxu0 0.0
      %2268 = vmatprep.subr.mxu0 0.0
      %2269 = vmatpush1.msra.mxu0 0.0
      %2270 = vmatprep.subr.mxu0 0.0
      %2271 = vmatpush1.msra.mxu0 %v2149
      %2272 = vmatprep.subr.mxu0 0.0
      %2273 = vmatpush2.msra.mxu0 0.0
      %2274 = vmatprep.subr.mxu0 0.0
      %2275 = vmatpush2.msra.mxu0 0.0
      %2276 = vmatprep.subr.mxu0 0.0
      %2277 = vmatpush2.msra.mxu0 0.0
      %2278 = vmatprep.subr.mxu0 0.0
      %2279 = vmatpush2.msra.mxu0 0.0
      %2280 = vmatprep.subr.mxu0 0.0
      %2281 = vmatpush2.msra.mxu0 0.0
      %2282 = vmatprep.subr.mxu0 0.0
      %2283 = vmatpush2.msra.mxu0 0.0
      %2284 = vmatprep.subr.mxu0 0.0
      %2285 = vmatpush2.msra.mxu0 0.0
      %2286 = vmatprep.subr.mxu0 0.0
      %2287 = vmatpush2.msra.mxu0 0.0
      %2288 = vmatprep.subr.mxu0 0.0
      %2289 = vmatpush2.msra.mxu0 0.0
      %2290 = vmatprep.subr.mxu0 0.0
      %2291 = vmatpush2.msra.mxu0 0.0
      %2292 = vmatprep.subr.mxu0 0.0
      %2293 = vmatpush2.msra.mxu0 0.0
      %2294 = vmatprep.subr.mxu0 0.0
      %2295 = vmatpush2.msra.mxu0 0.0
      %2296 = vmatprep.subr.mxu0 0.0
      %2297 = vmatpush2.msra.mxu0 0.0
      %2298 = vmatprep.subr.mxu0 0.0
      %2299 = vmatpush2.msra.mxu0 0.0
      %2300 = vmatprep.subr.mxu0 0.0
      %2301 = vmatpush2.msra.mxu0 0.0
      %2302 = vmatprep.subr.mxu0 0.0
      %2303 = vmatpush2.msra.mxu0 0.0
      %2304 = vmatprep.mubr.f32.mxu0 0.0
      %2305 = vmatmul.mubr.f32.gmra.mxu0 %v2238
      %v2306 = vpop.f32.mrf.mxu0
      %v2307 = vadd.f32 %v2234, %v2306
      %v2308 = vpop.f32.mrf.mxu0
      %2309 = vdwg.mxu0
      %s2310 = scalar_lea.vmem %s5, 16
      %v2311 = vld [vmem:[%s2310] sm:$0xff]
      %2312 = vrot.lane.b32.xlu0 %v2149, 96
      %v2313 = vpop.permute.xlu0 %2312
      %2314 = vrot.lane.b32.xlu0 %v2151, 96
      %v2315 = vpop.permute.xlu0 %2314
      %vm2316 = vcmask 785408
      %v2317 = vsel %vm2316, %v2313, %v2315
      %v2320 = vsel %vm2163, %v2311, 0
      %2322 = vmatprep.subr.mxu0 0.0
      %2323 = vmatpush1.msra.mxu0 0.0
      %2324 = vmatprep.subr.mxu0 0.0
      %2325 = vmatpush1.msra.mxu0 0.0
      %2326 = vmatprep.subr.mxu0 0.0
      %2327 = vmatpush1.msra.mxu0 0.0
      %2328 = vmatprep.subr.mxu0 0.0
      %2329 = vmatpush1.msra.mxu0 0.0
      %2330 = vmatprep.subr.mxu0 0.0
      %2331 = vmatpush1.msra.mxu0 0.0
      %2332 = vmatprep.subr.mxu0 0.0
      %2333 = vmatpush1.msra.mxu0 0.0
      %2334 = vmatprep.subr.mxu0 0.0
      %2335 = vmatpush1.msra.mxu0 0.0
      %2336 = vmatprep.subr.mxu0 0.0
      %2337 = vmatpush1.msra.mxu0 0.0
      %2338 = vmatprep.subr.mxu0 0.0
      %2339 = vmatpush1.msra.mxu0 0.0
      %2340 = vmatprep.subr.mxu0 0.0
      %2341 = vmatpush1.msra.mxu0 0.0
      %2342 = vmatprep.subr.mxu0 0.0
      %2343 = vmatpush1.msra.mxu0 0.0
      %2344 = vmatprep.subr.mxu0 0.0
      %2345 = vmatpush1.msra.mxu0 0.0
      %2346 = vmatprep.subr.mxu0 0.0
      %2347 = vmatpush1.msra.mxu0 0.0
      %2348 = vmatprep.subr.mxu0 0.0
      %2349 = vmatpush1.msra.mxu0 0.0
      %2350 = vmatprep.subr.mxu0 0.0
      %2351 = vmatpush1.msra.mxu0 0.0
      %2352 = vmatprep.subr.mxu0 0.0
      %2353 = vmatpush1.msra.mxu0 %v2317
      %2354 = vmatprep.subr.mxu0 0.0
      %2355 = vmatpush2.msra.mxu0 0.0
      %2356 = vmatprep.subr.mxu0 0.0
      %2357 = vmatpush2.msra.mxu0 0.0
      %2358 = vmatprep.subr.mxu0 0.0
      %2359 = vmatpush2.msra.mxu0 0.0
      %2360 = vmatprep.subr.mxu0 0.0
      %2361 = vmatpush2.msra.mxu0 0.0
      %2362 = vmatprep.subr.mxu0 0.0
      %2363 = vmatpush2.msra.mxu0 0.0
      %2364 = vmatprep.subr.mxu0 0.0
      %2365 = vmatpush2.msra.mxu0 0.0
      %2366 = vmatprep.subr.mxu0 0.0
      %2367 = vmatpush2.msra.mxu0 0.0
      %2368 = vmatprep.subr.mxu0 0.0
      %2369 = vmatpush2.msra.mxu0 0.0
      %2370 = vmatprep.subr.mxu0 0.0
      %2371 = vmatpush2.msra.mxu0 0.0
      %2372 = vmatprep.subr.mxu0 0.0
      %2373 = vmatpush2.msra.mxu0 0.0
      %2374 = vmatprep.subr.mxu0 0.0
      %2375 = vmatpush2.msra.mxu0 0.0
      %2376 = vmatprep.subr.mxu0 0.0
      %2377 = vmatpush2.msra.mxu0 0.0
      %2378 = vmatprep.subr.mxu0 0.0
      %2379 = vmatpush2.msra.mxu0 0.0
      %2380 = vmatprep.subr.mxu0 0.0
      %2381 = vmatpush2.msra.mxu0 0.0
      %2382 = vmatprep.subr.mxu0 0.0
      %2383 = vmatpush2.msra.mxu0 0.0
      %2384 = vmatprep.subr.mxu0 0.0
      %2385 = vmatpush2.msra.mxu0 0.0
      %2386 = vmatprep.mubr.f32.mxu0 0.0
      %2387 = vmatmul.mubr.f32.gmra.mxu0 %v2320
      %v2388 = vpop.f32.mrf.mxu0
      %v2389 = vadd.f32 0.0, %v2388
      %v2390 = vpop.f32.mrf.mxu0
      %2391 = vdwg.mxu0
      %v2392 = vadd.f32 %v2307, %v2389
      %s2393 = scalar_lea.vmem %s5, 24
      %v2394 = vld [vmem:[%s2393] sm:$0xff]
      %2395 = vrot.lane.b32.xlu0 %v2149, 80
      %v2396 = vpop.permute.xlu0 %2395
      %2397 = vrot.lane.b32.xlu0 %v2151, 80
      %v2398 = vpop.permute.xlu0 %2397
      %vm2399 = vcmask 654336
      %v2400 = vsel %vm2399, %v2396, %v2398
      %v2403 = vsel %vm2163, %v2394, 0
      %2405 = vmatprep.subr.mxu0 0.0
      %2406 = vmatpush1.msra.mxu0 0.0
      %2407 = vmatprep.subr.mxu0 0.0
      %2408 = vmatpush1.msra.mxu0 0.0
      %2409 = vmatprep.subr.mxu0 0.0
      %2410 = vmatpush1.msra.mxu0 0.0
      %2411 = vmatprep.subr.mxu0 0.0
      %2412 = vmatpush1.msra.mxu0 0.0
      %2413 = vmatprep.subr.mxu0 0.0
      %2414 = vmatpush1.msra.mxu0 0.0
      %2415 = vmatprep.subr.mxu0 0.0
      %2416 = vmatpush1.msra.mxu0 0.0
      %2417 = vmatprep.subr.mxu0 0.0
      %2418 = vmatpush1.msra.mxu0 0.0
      %2419 = vmatprep.subr.mxu0 0.0
      %2420 = vmatpush1.msra.mxu0 0.0
      %2421 = vmatprep.subr.mxu0 0.0
      %2422 = vmatpush1.msra.mxu0 0.0
      %2423 = vmatprep.subr.mxu0 0.0
      %2424 = vmatpush1.msra.mxu0 0.0
      %2425 = vmatprep.subr.mxu0 0.0
      %2426 = vmatpush1.msra.mxu0 0.0
      %2427 = vmatprep.subr.mxu0 0.0
      %2428 = vmatpush1.msra.mxu0 0.0
      %2429 = vmatprep.subr.mxu0 0.0
      %2430 = vmatpush1.msra.mxu0 0.0
      %2431 = vmatprep.subr.mxu0 0.0
      %2432 = vmatpush1.msra.mxu0 0.0
      %2433 = vmatprep.subr.mxu0 0.0
      %2434 = vmatpush1.msra.mxu0 0.0
      %2435 = vmatprep.subr.mxu0 0.0
      %2436 = vmatpush1.msra.mxu0 %v2400
      %2437 = vmatprep.subr.mxu0 0.0
      %2438 = vmatpush2.msra.mxu0 0.0
      %2439 = vmatprep.subr.mxu0 0.0
      %2440 = vmatpush2.msra.mxu0 0.0
      %2441 = vmatprep.subr.mxu0 0.0
      %2442 = vmatpush2.msra.mxu0 0.0
      %2443 = vmatprep.subr.mxu0 0.0
      %2444 = vmatpush2.msra.mxu0 0.0
      %2445 = vmatprep.subr.mxu0 0.0
      %2446 = vmatpush2.msra.mxu0 0.0
      %2447 = vmatprep.subr.mxu0 0.0
      %2448 = vmatpush2.msra.mxu0 0.0
      %2449 = vmatprep.subr.mxu0 0.0
      %2450 = vmatpush2.msra.mxu0 0.0
      %2451 = vmatprep.subr.mxu0 0.0
      %2452 = vmatpush2.msra.mxu0 0.0
      %2453 = vmatprep.subr.mxu0 0.0
      %2454 = vmatpush2.msra.mxu0 0.0
      %2455 = vmatprep.subr.mxu0 0.0
      %2456 = vmatpush2.msra.mxu0 0.0
      %2457 = vmatprep.subr.mxu0 0.0
      %2458 = vmatpush2.msra.mxu0 0.0
      %2459 = vmatprep.subr.mxu0 0.0
      %2460 = vmatpush2.msra.mxu0 0.0
      %2461 = vmatprep.subr.mxu0 0.0
      %2462 = vmatpush2.msra.mxu0 0.0
      %2463 = vmatprep.subr.mxu0 0.0
      %2464 = vmatpush2.msra.mxu0 0.0
      %2465 = vmatprep.subr.mxu0 0.0
      %2466 = vmatpush2.msra.mxu0 0.0
      %2467 = vmatprep.subr.mxu0 0.0
      %2468 = vmatpush2.msra.mxu0 0.0
      %2469 = vmatprep.mubr.f32.mxu0 0.0
      %2470 = vmatmul.mubr.f32.gmra.mxu0 %v2403
      %v2471 = vpop.f32.mrf.mxu0
      %v2472 = vadd.f32 0.0, %v2471
      %v2473 = vpop.f32.mrf.mxu0
      %2474 = vdwg.mxu0
      %v2475 = vadd.f32 %v2392, %v2472
      %s2476 = scalar_lea.vmem %s5, 32
      %v2477 = vld [vmem:[%s2476] sm:$0xff]
      %2478 = vrot.lane.b32.xlu0 %v2149, 64
      %v2479 = vpop.permute.xlu0 %2478
      %2480 = vrot.lane.b32.xlu0 %v2151, 64
      %v2481 = vpop.permute.xlu0 %2480
      %v2482 = vsel %vm1155, %v2479, %v2481
      %v2485 = vsel %vm2163, %v2477, 0
      %2487 = vmatprep.subr.mxu0 0.0
      %2488 = vmatpush1.msra.mxu0 0.0
      %2489 = vmatprep.subr.mxu0 0.0
      %2490 = vmatpush1.msra.mxu0 0.0
      %2491 = vmatprep.subr.mxu0 0.0
      %2492 = vmatpush1.msra.mxu0 0.0
      %2493 = vmatprep.subr.mxu0 0.0
      %2494 = vmatpush1.msra.mxu0 0.0
      %2495 = vmatprep.subr.mxu0 0.0
      %2496 = vmatpush1.msra.mxu0 0.0
      %2497 = vmatprep.subr.mxu0 0.0
      %2498 = vmatpush1.msra.mxu0 0.0
      %2499 = vmatprep.subr.mxu0 0.0
      %2500 = vmatpush1.msra.mxu0 0.0
      %2501 = vmatprep.subr.mxu0 0.0
      %2502 = vmatpush1.msra.mxu0 0.0
      %2503 = vmatprep.subr.mxu0 0.0
      %2504 = vmatpush1.msra.mxu0 0.0
      %2505 = vmatprep.subr.mxu0 0.0
      %2506 = vmatpush1.msra.mxu0 0.0
      %2507 = vmatprep.subr.mxu0 0.0
      %2508 = vmatpush1.msra.mxu0 0.0
      %2509 = vmatprep.subr.mxu0 0.0
      %2510 = vmatpush1.msra.mxu0 0.0
      %2511 = vmatprep.subr.mxu0 0.0
      %2512 = vmatpush1.msra.mxu0 0.0
      %2513 = vmatprep.subr.mxu0 0.0
      %2514 = vmatpush1.msra.mxu0 0.0
      %2515 = vmatprep.subr.mxu0 0.0
      %2516 = vmatpush1.msra.mxu0 0.0
      %2517 = vmatprep.subr.mxu0 0.0
      %2518 = vmatpush1.msra.mxu0 %v2482
      %2519 = vmatprep.subr.mxu0 0.0
      %2520 = vmatpush2.msra.mxu0 0.0
      %2521 = vmatprep.subr.mxu0 0.0
      %2522 = vmatpush2.msra.mxu0 0.0
      %2523 = vmatprep.subr.mxu0 0.0
      %2524 = vmatpush2.msra.mxu0 0.0
      %2525 = vmatprep.subr.mxu0 0.0
      %2526 = vmatpush2.msra.mxu0 0.0
      %2527 = vmatprep.subr.mxu0 0.0
      %2528 = vmatpush2.msra.mxu0 0.0
      %2529 = vmatprep.subr.mxu0 0.0
      %2530 = vmatpush2.msra.mxu0 0.0
      %2531 = vmatprep.subr.mxu0 0.0
      %2532 = vmatpush2.msra.mxu0 0.0
      %2533 = vmatprep.subr.mxu0 0.0
      %2534 = vmatpush2.msra.mxu0 0.0
      %2535 = vmatprep.subr.mxu0 0.0
      %2536 = vmatpush2.msra.mxu0 0.0
      %2537 = vmatprep.subr.mxu0 0.0
      %2538 = vmatpush2.msra.mxu0 0.0
      %2539 = vmatprep.subr.mxu0 0.0
      %2540 = vmatpush2.msra.mxu0 0.0
      %2541 = vmatprep.subr.mxu0 0.0
      %2542 = vmatpush2.msra.mxu0 0.0
      %2543 = vmatprep.subr.mxu0 0.0
      %2544 = vmatpush2.msra.mxu0 0.0
      %2545 = vmatprep.subr.mxu0 0.0
      %2546 = vmatpush2.msra.mxu0 0.0
      %2547 = vmatprep.subr.mxu0 0.0
      %2548 = vmatpush2.msra.mxu0 0.0
      %2549 = vmatprep.subr.mxu0 0.0
      %2550 = vmatpush2.msra.mxu0 0.0
      %2551 = vmatprep.mubr.f32.mxu0 0.0
      %2552 = vmatmul.mubr.f32.gmra.mxu0 %v2485
      %v2553 = vpop.f32.mrf.mxu0
      %v2554 = vadd.f32 0.0, %v2553
      %v2555 = vpop.f32.mrf.mxu0
      %2556 = vdwg.mxu0
      %v2557 = vadd.f32 %v2475, %v2554
      %s2558 = scalar_lea.vmem %s5, 40
      %v2559 = vld [vmem:[%s2558] sm:$0xff]
      %2560 = vrot.lane.b32.xlu0 %v2149, 48
      %v2561 = vpop.permute.xlu0 %2560
      %2562 = vrot.lane.b32.xlu0 %v2151, 48
      %v2563 = vpop.permute.xlu0 %2562
      %vm2564 = vcmask 392192
      %v2565 = vsel %vm2564, %v2561, %v2563
      %v2568 = vsel %vm2163, %v2559, 0
      %2570 = vmatprep.subr.mxu0 0.0
      %2571 = vmatpush1.msra.mxu0 0.0
      %2572 = vmatprep.subr.mxu0 0.0
      %2573 = vmatpush1.msra.mxu0 0.0
      %2574 = vmatprep.subr.mxu0 0.0
      %2575 = vmatpush1.msra.mxu0 0.0
      %2576 = vmatprep.subr.mxu0 0.0
      %2577 = vmatpush1.msra.mxu0 0.0
      %2578 = vmatprep.subr.mxu0 0.0
      %2579 = vmatpush1.msra.mxu0 0.0
      %2580 = vmatprep.subr.mxu0 0.0
      %2581 = vmatpush1.msra.mxu0 0.0
      %2582 = vmatprep.subr.mxu0 0.0
      %2583 = vmatpush1.msra.mxu0 0.0
      %2584 = vmatprep.subr.mxu0 0.0
      %2585 = vmatpush1.msra.mxu0 0.0
      %2586 = vmatprep.subr.mxu0 0.0
      %2587 = vmatpush1.msra.mxu0 0.0
      %2588 = vmatprep.subr.mxu0 0.0
      %2589 = vmatpush1.msra.mxu0 0.0
      %2590 = vmatprep.subr.mxu0 0.0
      %2591 = vmatpush1.msra.mxu0 0.0
      %2592 = vmatprep.subr.mxu0 0.0
      %2593 = vmatpush1.msra.mxu0 0.0
      %2594 = vmatprep.subr.mxu0 0.0
      %2595 = vmatpush1.msra.mxu0 0.0
      %2596 = vmatprep.subr.mxu0 0.0
      %2597 = vmatpush1.msra.mxu0 0.0
      %2598 = vmatprep.subr.mxu0 0.0
      %2599 = vmatpush1.msra.mxu0 0.0
      %2600 = vmatprep.subr.mxu0 0.0
      %2601 = vmatpush1.msra.mxu0 %v2565
      %2602 = vmatprep.subr.mxu0 0.0
      %2603 = vmatpush2.msra.mxu0 0.0
      %2604 = vmatprep.subr.mxu0 0.0
      %2605 = vmatpush2.msra.mxu0 0.0
      %2606 = vmatprep.subr.mxu0 0.0
      %2607 = vmatpush2.msra.mxu0 0.0
      %2608 = vmatprep.subr.mxu0 0.0
      %2609 = vmatpush2.msra.mxu0 0.0
      %2610 = vmatprep.subr.mxu0 0.0
      %2611 = vmatpush2.msra.mxu0 0.0
      %2612 = vmatprep.subr.mxu0 0.0
      %2613 = vmatpush2.msra.mxu0 0.0
      %2614 = vmatprep.subr.mxu0 0.0
      %2615 = vmatpush2.msra.mxu0 0.0
      %2616 = vmatprep.subr.mxu0 0.0
      %2617 = vmatpush2.msra.mxu0 0.0
      %2618 = vmatprep.subr.mxu0 0.0
      %2619 = vmatpush2.msra.mxu0 0.0
      %2620 = vmatprep.subr.mxu0 0.0
      %2621 = vmatpush2.msra.mxu0 0.0
      %2622 = vmatprep.subr.mxu0 0.0
      %2623 = vmatpush2.msra.mxu0 0.0
      %2624 = vmatprep.subr.mxu0 0.0
      %2625 = vmatpush2.msra.mxu0 0.0
      %2626 = vmatprep.subr.mxu0 0.0
      %2627 = vmatpush2.msra.mxu0 0.0
      %2628 = vmatprep.subr.mxu0 0.0
      %2629 = vmatpush2.msra.mxu0 0.0
      %2630 = vmatprep.subr.mxu0 0.0
      %2631 = vmatpush2.msra.mxu0 0.0
      %2632 = vmatprep.subr.mxu0 0.0
      %2633 = vmatpush2.msra.mxu0 0.0
      %2634 = vmatprep.mubr.f32.mxu0 0.0
      %2635 = vmatmul.mubr.f32.gmra.mxu0 %v2568
      %v2636 = vpop.f32.mrf.mxu0
      %v2637 = vadd.f32 0.0, %v2636
      %v2638 = vpop.f32.mrf.mxu0
      %2639 = vdwg.mxu0
      %v2640 = vadd.f32 %v2557, %v2637
      %s2641 = scalar_lea.vmem %s5, 48
      %v2642 = vld [vmem:[%s2641] sm:$0xff]
      %2643 = vrot.lane.b32.xlu0 %v2149, 32
      %v2644 = vpop.permute.xlu0 %2643
      %2645 = vrot.lane.b32.xlu0 %v2151, 32
      %v2646 = vpop.permute.xlu0 %2645
      %vm2647 = vcmask 261120
      %v2648 = vsel %vm2647, %v2644, %v2646
      %v2651 = vsel %vm2163, %v2642, 0
      %2653 = vmatprep.subr.mxu0 0.0
      %2654 = vmatpush1.msra.mxu0 0.0
      %2655 = vmatprep.subr.mxu0 0.0
      %2656 = vmatpush1.msra.mxu0 0.0
      %2657 = vmatprep.subr.mxu0 0.0
      %2658 = vmatpush1.msra.mxu0 0.0
      %2659 = vmatprep.subr.mxu0 0.0
      %2660 = vmatpush1.msra.mxu0 0.0
      %2661 = vmatprep.subr.mxu0 0.0
      %2662 = vmatpush1.msra.mxu0 0.0
      %2663 = vmatprep.subr.mxu0 0.0
      %2664 = vmatpush1.msra.mxu0 0.0
      %2665 = vmatprep.subr.mxu0 0.0
      %2666 = vmatpush1.msra.mxu0 0.0
      %2667 = vmatprep.subr.mxu0 0.0
      %2668 = vmatpush1.msra.mxu0 0.0
      %2669 = vmatprep.subr.mxu0 0.0
      %2670 = vmatpush1.msra.mxu0 0.0
      %2671 = vmatprep.subr.mxu0 0.0
      %2672 = vmatpush1.msra.mxu0 0.0
      %2673 = vmatprep.subr.mxu0 0.0
      %2674 = vmatpush1.msra.mxu0 0.0
      %2675 = vmatprep.subr.mxu0 0.0
      %2676 = vmatpush1.msra.mxu0 0.0
      %2677 = vmatprep.subr.mxu0 0.0
      %2678 = vmatpush1.msra.mxu0 0.0
      %2679 = vmatprep.subr.mxu0 0.0
      %2680 = vmatpush1.msra.mxu0 0.0
      %2681 = vmatprep.subr.mxu0 0.0
      %2682 = vmatpush1.msra.mxu0 0.0
      %2683 = vmatprep.subr.mxu0 0.0
      %2684 = vmatpush1.msra.mxu0 %v2648
      %2685 = vmatprep.subr.mxu0 0.0
      %2686 = vmatpush2.msra.mxu0 0.0
      %2687 = vmatprep.subr.mxu0 0.0
      %2688 = vmatpush2.msra.mxu0 0.0
      %2689 = vmatprep.subr.mxu0 0.0
      %2690 = vmatpush2.msra.mxu0 0.0
      %2691 = vmatprep.subr.mxu0 0.0
      %2692 = vmatpush2.msra.mxu0 0.0
      %2693 = vmatprep.subr.mxu0 0.0
      %2694 = vmatpush2.msra.mxu0 0.0
      %2695 = vmatprep.subr.mxu0 0.0
      %2696 = vmatpush2.msra.mxu0 0.0
      %2697 = vmatprep.subr.mxu0 0.0
      %2698 = vmatpush2.msra.mxu0 0.0
      %2699 = vmatprep.subr.mxu0 0.0
      %2700 = vmatpush2.msra.mxu0 0.0
      %2701 = vmatprep.subr.mxu0 0.0
      %2702 = vmatpush2.msra.mxu0 0.0
      %2703 = vmatprep.subr.mxu0 0.0
      %2704 = vmatpush2.msra.mxu0 0.0
      %2705 = vmatprep.subr.mxu0 0.0
      %2706 = vmatpush2.msra.mxu0 0.0
      %2707 = vmatprep.subr.mxu0 0.0
      %2708 = vmatpush2.msra.mxu0 0.0
      %2709 = vmatprep.subr.mxu0 0.0
      %2710 = vmatpush2.msra.mxu0 0.0
      %2711 = vmatprep.subr.mxu0 0.0
      %2712 = vmatpush2.msra.mxu0 0.0
      %2713 = vmatprep.subr.mxu0 0.0
      %2714 = vmatpush2.msra.mxu0 0.0
      %2715 = vmatprep.subr.mxu0 0.0
      %2716 = vmatpush2.msra.mxu0 0.0
      %2717 = vmatprep.mubr.f32.mxu0 0.0
      %2718 = vmatmul.mubr.f32.gmra.mxu0 %v2651
      %v2719 = vpop.f32.mrf.mxu0
      %v2720 = vadd.f32 0.0, %v2719
      %v2721 = vpop.f32.mrf.mxu0
      %2722 = vdwg.mxu0
      %v2723 = vadd.f32 %v2640, %v2720
      %s2724 = scalar_lea.vmem %s5, 56
      %v2725 = vld [vmem:[%s2724] sm:$0xff]
      %2726 = vrot.lane.b32.xlu0 %v2149, 16
      %v2727 = vpop.permute.xlu0 %2726
      %2728 = vrot.lane.b32.xlu0 %v2151, 16
      %v2729 = vpop.permute.xlu0 %2728
      %vm2730 = vcmask 130048
      %v2731 = vsel %vm2730, %v2727, %v2729
      %v2734 = vsel %vm2163, %v2725, 0
      %2736 = vmatprep.subr.mxu0 0.0
      %2737 = vmatpush1.msra.mxu0 0.0
      %2738 = vmatprep.subr.mxu0 0.0
      %2739 = vmatpush1.msra.mxu0 0.0
      %2740 = vmatprep.subr.mxu0 0.0
      %2741 = vmatpush1.msra.mxu0 0.0
      %2742 = vmatprep.subr.mxu0 0.0
      %2743 = vmatpush1.msra.mxu0 0.0
      %2744 = vmatprep.subr.mxu0 0.0
      %2745 = vmatpush1.msra.mxu0 0.0
      %2746 = vmatprep.subr.mxu0 0.0
      %2747 = vmatpush1.msra.mxu0 0.0
      %2748 = vmatprep.subr.mxu0 0.0
      %2749 = vmatpush1.msra.mxu0 0.0
      %2750 = vmatprep.subr.mxu0 0.0
      %2751 = vmatpush1.msra.mxu0 0.0
      %2752 = vmatprep.subr.mxu0 0.0
      %2753 = vmatpush1.msra.mxu0 0.0
      %2754 = vmatprep.subr.mxu0 0.0
      %2755 = vmatpush1.msra.mxu0 0.0
      %2756 = vmatprep.subr.mxu0 0.0
      %2757 = vmatpush1.msra.mxu0 0.0
      %2758 = vmatprep.subr.mxu0 0.0
      %2759 = vmatpush1.msra.mxu0 0.0
      %2760 = vmatprep.subr.mxu0 0.0
      %2761 = vmatpush1.msra.mxu0 0.0
      %2762 = vmatprep.subr.mxu0 0.0
      %2763 = vmatpush1.msra.mxu0 0.0
      %2764 = vmatprep.subr.mxu0 0.0
      %2765 = vmatpush1.msra.mxu0 0.0
      %2766 = vmatprep.subr.mxu0 0.0
      %2767 = vmatpush1.msra.mxu0 %v2731
      %2768 = vmatprep.subr.mxu0 0.0
      %2769 = vmatpush2.msra.mxu0 0.0
      %2770 = vmatprep.subr.mxu0 0.0
      %2771 = vmatpush2.msra.mxu0 0.0
      %2772 = vmatprep.subr.mxu0 0.0
      %2773 = vmatpush2.msra.mxu0 0.0
      %2774 = vmatprep.subr.mxu0 0.0
      %2775 = vmatpush2.msra.mxu0 0.0
      %2776 = vmatprep.subr.mxu0 0.0
      %2777 = vmatpush2.msra.mxu0 0.0
      %2778 = vmatprep.subr.mxu0 0.0
      %2779 = vmatpush2.msra.mxu0 0.0
      %2780 = vmatprep.subr.mxu0 0.0
      %2781 = vmatpush2.msra.mxu0 0.0
      %2782 = vmatprep.subr.mxu0 0.0
      %2783 = vmatpush2.msra.mxu0 0.0
      %2784 = vmatprep.subr.mxu0 0.0
      %2785 = vmatpush2.msra.mxu0 0.0
      %2786 = vmatprep.subr.mxu0 0.0
      %2787 = vmatpush2.msra.mxu0 0.0
      %2788 = vmatprep.subr.mxu0 0.0
      %2789 = vmatpush2.msra.mxu0 0.0
      %2790 = vmatprep.subr.mxu0 0.0
      %2791 = vmatpush2.msra.mxu0 0.0
      %2792 = vmatprep.subr.mxu0 0.0
      %2793 = vmatpush2.msra.mxu0 0.0
      %2794 = vmatprep.subr.mxu0 0.0
      %2795 = vmatpush2.msra.mxu0 0.0
      %2796 = vmatprep.subr.mxu0 0.0
      %2797 = vmatpush2.msra.mxu0 0.0
      %2798 = vmatprep.subr.mxu0 0.0
      %2799 = vmatpush2.msra.mxu0 0.0
      %2800 = vmatprep.mubr.f32.mxu0 0.0
      %2801 = vmatmul.mubr.f32.gmra.mxu0 %v2734
      %v2802 = vpop.f32.mrf.mxu0
      %v2803 = vadd.f32 0.0, %v2802
      %v2804 = vpop.f32.mrf.mxu0
      %2805 = vdwg.mxu0
      %v2806 = vadd.f32 %v2723, %v2803
      %s2807 = scalar_lea.vmem %s5, 64
      %v2808 = vld [vmem:[%s2807] sm:$0xff]
      %v2810 = vsel %vm2163, %v2808, 0
      %2812 = vmatprep.subr.mxu0 0.0
      %2813 = vmatpush1.msra.mxu0 0.0
      %2814 = vmatprep.subr.mxu0 0.0
      %2815 = vmatpush1.msra.mxu0 0.0
      %2816 = vmatprep.subr.mxu0 0.0
      %2817 = vmatpush1.msra.mxu0 0.0
      %2818 = vmatprep.subr.mxu0 0.0
      %2819 = vmatpush1.msra.mxu0 0.0
      %2820 = vmatprep.subr.mxu0 0.0
      %2821 = vmatpush1.msra.mxu0 0.0
      %2822 = vmatprep.subr.mxu0 0.0
      %2823 = vmatpush1.msra.mxu0 0.0
      %2824 = vmatprep.subr.mxu0 0.0
      %2825 = vmatpush1.msra.mxu0 0.0
      %2826 = vmatprep.subr.mxu0 0.0
      %2827 = vmatpush1.msra.mxu0 0.0
      %2828 = vmatprep.subr.mxu0 0.0
      %2829 = vmatpush1.msra.mxu0 0.0
      %2830 = vmatprep.subr.mxu0 0.0
      %2831 = vmatpush1.msra.mxu0 0.0
      %2832 = vmatprep.subr.mxu0 0.0
      %2833 = vmatpush1.msra.mxu0 0.0
      %2834 = vmatprep.subr.mxu0 0.0
      %2835 = vmatpush1.msra.mxu0 0.0
      %2836 = vmatprep.subr.mxu0 0.0
      %2837 = vmatpush1.msra.mxu0 0.0
      %2838 = vmatprep.subr.mxu0 0.0
      %2839 = vmatpush1.msra.mxu0 0.0
      %2840 = vmatprep.subr.mxu0 0.0
      %2841 = vmatpush1.msra.mxu0 0.0
      %2842 = vmatprep.subr.mxu0 0.0
      %2843 = vmatpush1.msra.mxu0 %v2151
      %2844 = vmatprep.subr.mxu0 0.0
      %2845 = vmatpush2.msra.mxu0 0.0
      %2846 = vmatprep.subr.mxu0 0.0
      %2847 = vmatpush2.msra.mxu0 0.0
      %2848 = vmatprep.subr.mxu0 0.0
      %2849 = vmatpush2.msra.mxu0 0.0
      %2850 = vmatprep.subr.mxu0 0.0
      %2851 = vmatpush2.msra.mxu0 0.0
      %2852 = vmatprep.subr.mxu0 0.0
      %2853 = vmatpush2.msra.mxu0 0.0
      %2854 = vmatprep.subr.mxu0 0.0
      %2855 = vmatpush2.msra.mxu0 0.0
      %2856 = vmatprep.subr.mxu0 0.0
      %2857 = vmatpush2.msra.mxu0 0.0
      %2858 = vmatprep.subr.mxu0 0.0
      %2859 = vmatpush2.msra.mxu0 0.0
      %2860 = vmatprep.subr.mxu0 0.0
      %2861 = vmatpush2.msra.mxu0 0.0
      %2862 = vmatprep.subr.mxu0 0.0
      %2863 = vmatpush2.msra.mxu0 0.0
      %2864 = vmatprep.subr.mxu0 0.0
      %2865 = vmatpush2.msra.mxu0 0.0
      %2866 = vmatprep.subr.mxu0 0.0
      %2867 = vmatpush2.msra.mxu0 0.0
      %2868 = vmatprep.subr.mxu0 0.0
      %2869 = vmatpush2.msra.mxu0 0.0
      %2870 = vmatprep.subr.mxu0 0.0
      %2871 = vmatpush2.msra.mxu0 0.0
      %2872 = vmatprep.subr.mxu0 0.0
      %2873 = vmatpush2.msra.mxu0 0.0
      %2874 = vmatprep.subr.mxu0 0.0
      %2875 = vmatpush2.msra.mxu0 0.0
      %2876 = vmatprep.mubr.f32.mxu0 0.0
      %2877 = vmatmul.mubr.f32.gmra.mxu0 %v2810
      %v2878 = vpop.f32.mrf.mxu0
      %v2879 = vadd.f32 0.0, %v2878
      %v2880 = vpop.f32.mrf.mxu0
      %2881 = vdwg.mxu0
      %v2882 = vadd.f32 %v2806, %v2879
      %v2883 = vld [vmem:[%s6] sm:$0xff]
      %2885 = vset.pattern.permute.xlu0 0
      %2886 = vperm.xlu0 %2885, %v2883
      %v2887 = vpop.permute.xlu0 %2886
      %v2889 = vmul.f32 %v2882, %v2887
      %v2890 = vld [vmem:[%s7] sm:$0xff]
      %2892 = vset.pattern.permute.xlu0 0
      %2893 = vperm.xlu0 %2892, %v2890
      %v2894 = vpop.permute.xlu0 %2893
      %v2896 = vadd.f32 %v2889, %v2894
      %v2897 = vmax.f32 %v2896, 0.0
      %v2898 = vld [vmem:[%s624] sm:$0xf]
      %v2899 = vld [vmem:[%s8] sm:$0xff]
      %v2901 = vsel %vm901, %v2899, 0
      %v2904 = vsel %vm905, %v2898, 0
      %2906 = vmatprep.subr.mxu0 0.0
      %2907 = vmatpush1.msra.mxu0 0.0
      %2908 = vmatprep.subr.mxu0 0.0
      %2909 = vmatpush1.msra.mxu0 0.0
      %2910 = vmatprep.subr.mxu0 0.0
      %2911 = vmatpush1.msra.mxu0 0.0
      %2912 = vmatprep.subr.mxu0 0.0
      %2913 = vmatpush1.msra.mxu0 0.0
      %2914 = vmatprep.subr.mxu0 0.0
      %2915 = vmatpush1.msra.mxu0 0.0
      %2916 = vmatprep.subr.mxu0 0.0
      %2917 = vmatpush1.msra.mxu0 0.0
      %2918 = vmatprep.subr.mxu0 0.0
      %2919 = vmatpush1.msra.mxu0 0.0
      %2920 = vmatprep.subr.mxu0 0.0
      %2921 = vmatpush1.msra.mxu0 0.0
      %2922 = vmatprep.subr.mxu0 0.0
      %2923 = vmatpush1.msra.mxu0 0.0
      %2924 = vmatprep.subr.mxu0 0.0
      %2925 = vmatpush1.msra.mxu0 0.0
      %2926 = vmatprep.subr.mxu0 0.0
      %2927 = vmatpush1.msra.mxu0 0.0
      %2928 = vmatprep.subr.mxu0 0.0
      %2929 = vmatpush1.msra.mxu0 0.0
      %2930 = vmatprep.subr.mxu0 0.0
      %2931 = vmatpush1.msra.mxu0 0.0
      %2932 = vmatprep.subr.mxu0 0.0
      %2933 = vmatpush1.msra.mxu0 0.0
      %2934 = vmatprep.subr.mxu0 0.0
      %2935 = vmatpush1.msra.mxu0 0.0
      %2936 = vmatprep.subr.mxu0 0.0
      %2937 = vmatpush1.msra.mxu0 %v2904
      %2938 = vmatprep.subr.mxu0 0.0
      %2939 = vmatpush2.msra.mxu0 0.0
      %2940 = vmatprep.subr.mxu0 0.0
      %2941 = vmatpush2.msra.mxu0 0.0
      %2942 = vmatprep.subr.mxu0 0.0
      %2943 = vmatpush2.msra.mxu0 0.0
      %2944 = vmatprep.subr.mxu0 0.0
      %2945 = vmatpush2.msra.mxu0 0.0
      %2946 = vmatprep.subr.mxu0 0.0
      %2947 = vmatpush2.msra.mxu0 0.0
      %2948 = vmatprep.subr.mxu0 0.0
      %2949 = vmatpush2.msra.mxu0 0.0
      %2950 = vmatprep.subr.mxu0 0.0
      %2951 = vmatpush2.msra.mxu0 0.0
      %2952 = vmatprep.subr.mxu0 0.0
      %2953 = vmatpush2.msra.mxu0 0.0
      %2954 = vmatprep.subr.mxu0 0.0
      %2955 = vmatpush2.msra.mxu0 0.0
      %2956 = vmatprep.subr.mxu0 0.0
      %2957 = vmatpush2.msra.mxu0 0.0
      %2958 = vmatprep.subr.mxu0 0.0
      %2959 = vmatpush2.msra.mxu0 0.0
      %2960 = vmatprep.subr.mxu0 0.0
      %2961 = vmatpush2.msra.mxu0 0.0
      %2962 = vmatprep.subr.mxu0 0.0
      %2963 = vmatpush2.msra.mxu0 0.0
      %2964 = vmatprep.subr.mxu0 0.0
      %2965 = vmatpush2.msra.mxu0 0.0
      %2966 = vmatprep.subr.mxu0 0.0
      %2967 = vmatpush2.msra.mxu0 0.0
      %2968 = vmatprep.subr.mxu0 0.0
      %2969 = vmatpush2.msra.mxu0 0.0
      %2970 = vmatprep.mubr.f32.mxu0 0.0
      %2971 = vmatmul.mubr.f32.gmra.mxu0 %v2901
      %v2972 = vpop.f32.mrf.mxu0
      %v2973 = vadd.f32 0.0, %v2972
      %v2974 = vpop.f32.mrf.mxu0
      %2975 = vdwg.mxu0
      %v2976 = vld [vmem:[%s9] sm:$0xff]
      %2978 = vset.pattern.permute.xlu0 0
      %2979 = vperm.xlu0 %2978, %v2976
      %v2980 = vpop.permute.xlu0 %2979
      %v2982 = vmul.f32 %v2973, %v2980
      %v2983 = vld [vmem:[%s10] sm:$0xff]
      %2985 = vset.pattern.permute.xlu0 0
      %2986 = vperm.xlu0 %2985, %v2983
      %v2987 = vpop.permute.xlu0 %2986
      %v2989 = vadd.f32 %v2982, %v2987
      %v2990 = vmax.f32 %v2989, 0.0
      %v2991 = vadd.f32 %v2897, %v2990
      %2992 = vst [vmem:[%s629] sm:$0xff] %v2991
      %v2993 = vld [vmem:[#allocation2 + $0x8] sm:$0xff]
      %v2994 = vld [vmem:[%s5] sm:$0xff]
      %v2995 = vld [vmem:[#allocation2 + $0x8] sm:$0xff]
      %v2996 = vld [vmem:[#allocation2 + $0x10] sm:$0xff]
      %v2997 = vld [vmem:[%s2152] sm:$0xff]
      %3000 = vrot.lane.b32.xlu0 %v2995, 112
      %v3001 = vpop.permute.xlu0 %3000
      %3002 = vrot.lane.b32.xlu0 %v2996, 112
      %v3003 = vpop.permute.xlu0 %3002
      %v3004 = vsel %vm2160, %v3001, %v3003
      %v3007 = vsel %vm2163, %v2997, 0
      %3009 = vmatprep.subr.mxu0 0.0
      %3010 = vmatpush1.msra.mxu0 0.0
      %3011 = vmatprep.subr.mxu0 0.0
      %3012 = vmatpush1.msra.mxu0 0.0
      %3013 = vmatprep.subr.mxu0 0.0
      %3014 = vmatpush1.msra.mxu0 0.0
      %3015 = vmatprep.subr.mxu0 0.0
      %3016 = vmatpush1.msra.mxu0 0.0
      %3017 = vmatprep.subr.mxu0 0.0
      %3018 = vmatpush1.msra.mxu0 0.0
      %3019 = vmatprep.subr.mxu0 0.0
      %3020 = vmatpush1.msra.mxu0 0.0
      %3021 = vmatprep.subr.mxu0 0.0
      %3022 = vmatpush1.msra.mxu0 0.0
      %3023 = vmatprep.subr.mxu0 0.0
      %3024 = vmatpush1.msra.mxu0 0.0
      %3025 = vmatprep.subr.mxu0 0.0
      %3026 = vmatpush1.msra.mxu0 0.0
      %3027 = vmatprep.subr.mxu0 0.0
      %3028 = vmatpush1.msra.mxu0 0.0
      %3029 = vmatprep.subr.mxu0 0.0
      %3030 = vmatpush1.msra.mxu0 0.0
      %3031 = vmatprep.subr.mxu0 0.0
      %3032 = vmatpush1.msra.mxu0 0.0
      %3033 = vmatprep.subr.mxu0 0.0
      %3034 = vmatpush1.msra.mxu0 0.0
      %3035 = vmatprep.subr.mxu0 0.0
      %3036 = vmatpush1.msra.mxu0 0.0
      %3037 = vmatprep.subr.mxu0 0.0
      %3038 = vmatpush1.msra.mxu0 0.0
      %3039 = vmatprep.subr.mxu0 0.0
      %3040 = vmatpush1.msra.mxu0 %v3004
      %3041 = vmatprep.subr.mxu0 0.0
      %3042 = vmatpush2.msra.mxu0 0.0
      %3043 = vmatprep.subr.mxu0 0.0
      %3044 = vmatpush2.msra.mxu0 0.0
      %3045 = vmatprep.subr.mxu0 0.0
      %3046 = vmatpush2.msra.mxu0 0.0
      %3047 = vmatprep.subr.mxu0 0.0
      %3048 = vmatpush2.msra.mxu0 0.0
      %3049 = vmatprep.subr.mxu0 0.0
      %3050 = vmatpush2.msra.mxu0 0.0
      %3051 = vmatprep.subr.mxu0 0.0
      %3052 = vmatpush2.msra.mxu0 0.0
      %3053 = vmatprep.subr.mxu0 0.0
      %3054 = vmatpush2.msra.mxu0 0.0
      %3055 = vmatprep.subr.mxu0 0.0
      %3056 = vmatpush2.msra.mxu0 0.0
      %3057 = vmatprep.subr.mxu0 0.0
      %3058 = vmatpush2.msra.mxu0 0.0
      %3059 = vmatprep.subr.mxu0 0.0
      %3060 = vmatpush2.msra.mxu0 0.0
      %3061 = vmatprep.subr.mxu0 0.0
      %3062 = vmatpush2.msra.mxu0 0.0
      %3063 = vmatprep.subr.mxu0 0.0
      %3064 = vmatpush2.msra.mxu0 0.0
      %3065 = vmatprep.subr.mxu0 0.0
      %3066 = vmatpush2.msra.mxu0 0.0
      %3067 = vmatprep.subr.mxu0 0.0
      %3068 = vmatpush2.msra.mxu0 0.0
      %3069 = vmatprep.subr.mxu0 0.0
      %3070 = vmatpush2.msra.mxu0 0.0
      %3071 = vmatprep.subr.mxu0 0.0
      %3072 = vmatpush2.msra.mxu0 0.0
      %3073 = vmatprep.mubr.f32.mxu0 0.0
      %3074 = vmatmul.mubr.f32.gmra.mxu0 %v3007
      %v3075 = vpop.f32.mrf.mxu0
      %v3076 = vadd.f32 0.0, %v3075
      %v3077 = vpop.f32.mrf.mxu0
      %3078 = vdwg.mxu0
      %v3080 = vsel %vm2163, %v2994, 0
      %3082 = vmatprep.subr.mxu0 0.0
      %3083 = vmatpush1.msra.mxu0 0.0
      %3084 = vmatprep.subr.mxu0 0.0
      %3085 = vmatpush1.msra.mxu0 0.0
      %3086 = vmatprep.subr.mxu0 0.0
      %3087 = vmatpush1.msra.mxu0 0.0
      %3088 = vmatprep.subr.mxu0 0.0
      %3089 = vmatpush1.msra.mxu0 0.0
      %3090 = vmatprep.subr.mxu0 0.0
      %3091 = vmatpush1.msra.mxu0 0.0
      %3092 = vmatprep.subr.mxu0 0.0
      %3093 = vmatpush1.msra.mxu0 0.0
      %3094 = vmatprep.subr.mxu0 0.0
      %3095 = vmatpush1.msra.mxu0 0.0
      %3096 = vmatprep.subr.mxu0 0.0
      %3097 = vmatpush1.msra.mxu0 0.0
      %3098 = vmatprep.subr.mxu0 0.0
      %3099 = vmatpush1.msra.mxu0 0.0
      %3100 = vmatprep.subr.mxu0 0.0
      %3101 = vmatpush1.msra.mxu0 0.0
      %3102 = vmatprep.subr.mxu0 0.0
      %3103 = vmatpush1.msra.mxu0 0.0
      %3104 = vmatprep.subr.mxu0 0.0
      %3105 = vmatpush1.msra.mxu0 0.0
      %3106 = vmatprep.subr.mxu0 0.0
      %3107 = vmatpush1.msra.mxu0 0.0
      %3108 = vmatprep.subr.mxu0 0.0
      %3109 = vmatpush1.msra.mxu0 0.0
      %3110 = vmatprep.subr.mxu0 0.0
      %3111 = vmatpush1.msra.mxu0 0.0
      %3112 = vmatprep.subr.mxu0 0.0
      %3113 = vmatpush1.msra.mxu0 %v2993
      %3114 = vmatprep.subr.mxu0 0.0
      %3115 = vmatpush2.msra.mxu0 0.0
      %3116 = vmatprep.subr.mxu0 0.0
      %3117 = vmatpush2.msra.mxu0 0.0
      %3118 = vmatprep.subr.mxu0 0.0
      %3119 = vmatpush2.msra.mxu0 0.0
      %3120 = vmatprep.subr.mxu0 0.0
      %3121 = vmatpush2.msra.mxu0 0.0
      %3122 = vmatprep.subr.mxu0 0.0
      %3123 = vmatpush2.msra.mxu0 0.0
      %3124 = vmatprep.subr.mxu0 0.0
      %3125 = vmatpush2.msra.mxu0 0.0
      %3126 = vmatprep.subr.mxu0 0.0
      %3127 = vmatpush2.msra.mxu0 0.0
      %3128 = vmatprep.subr.mxu0 0.0
      %3129 = vmatpush2.msra.mxu0 0.0
      %3130 = vmatprep.subr.mxu0 0.0
      %3131 = vmatpush2.msra.mxu0 0.0
      %3132 = vmatprep.subr.mxu0 0.0
      %3133 = vmatpush2.msra.mxu0 0.0
      %3134 = vmatprep.subr.mxu0 0.0
      %3135 = vmatpush2.msra.mxu0 0.0
      %3136 = vmatprep.subr.mxu0 0.0
      %3137 = vmatpush2.msra.mxu0 0.0
      %3138 = vmatprep.subr.mxu0 0.0
      %3139 = vmatpush2.msra.mxu0 0.0
      %3140 = vmatprep.subr.mxu0 0.0
      %3141 = vmatpush2.msra.mxu0 0.0
      %3142 = vmatprep.subr.mxu0 0.0
      %3143 = vmatpush2.msra.mxu0 0.0
      %3144 = vmatprep.subr.mxu0 0.0
      %3145 = vmatpush2.msra.mxu0 0.0
      %3146 = vmatprep.mubr.f32.mxu0 0.0
      %3147 = vmatmul.mubr.f32.gmra.mxu0 %v3080
      %v3148 = vpop.f32.mrf.mxu0
      %v3149 = vadd.f32 %v3076, %v3148
      %v3150 = vpop.f32.mrf.mxu0
      %3151 = vdwg.mxu0
      %v3152 = vld [vmem:[%s2310] sm:$0xff]
      %3153 = vrot.lane.b32.xlu0 %v2995, 96
      %v3154 = vpop.permute.xlu0 %3153
      %3155 = vrot.lane.b32.xlu0 %v2996, 96
      %v3156 = vpop.permute.xlu0 %3155
      %v3157 = vsel %vm2316, %v3154, %v3156
      %v3160 = vsel %vm2163, %v3152, 0
      %3162 = vmatprep.subr.mxu0 0.0
      %3163 = vmatpush1.msra.mxu0 0.0
      %3164 = vmatprep.subr.mxu0 0.0
      %3165 = vmatpush1.msra.mxu0 0.0
      %3166 = vmatprep.subr.mxu0 0.0
      %3167 = vmatpush1.msra.mxu0 0.0
      %3168 = vmatprep.subr.mxu0 0.0
      %3169 = vmatpush1.msra.mxu0 0.0
      %3170 = vmatprep.subr.mxu0 0.0
      %3171 = vmatpush1.msra.mxu0 0.0
      %3172 = vmatprep.subr.mxu0 0.0
      %3173 = vmatpush1.msra.mxu0 0.0
      %3174 = vmatprep.subr.mxu0 0.0
      %3175 = vmatpush1.msra.mxu0 0.0
      %3176 = vmatprep.subr.mxu0 0.0
      %3177 = vmatpush1.msra.mxu0 0.0
      %3178 = vmatprep.subr.mxu0 0.0
      %3179 = vmatpush1.msra.mxu0 0.0
      %3180 = vmatprep.subr.mxu0 0.0
      %3181 = vmatpush1.msra.mxu0 0.0
      %3182 = vmatprep.subr.mxu0 0.0
      %3183 = vmatpush1.msra.mxu0 0.0
      %3184 = vmatprep.subr.mxu0 0.0
      %3185 = vmatpush1.msra.mxu0 0.0
      %3186 = vmatprep.subr.mxu0 0.0
      %3187 = vmatpush1.msra.mxu0 0.0
      %3188 = vmatprep.subr.mxu0 0.0
      %3189 = vmatpush1.msra.mxu0 0.0
      %3190 = vmatprep.subr.mxu0 0.0
      %3191 = vmatpush1.msra.mxu0 0.0
      %3192 = vmatprep.subr.mxu0 0.0
      %3193 = vmatpush1.msra.mxu0 %v3157
      %3194 = vmatprep.subr.mxu0 0.0
      %3195 = vmatpush2.msra.mxu0 0.0
      %3196 = vmatprep.subr.mxu0 0.0
      %3197 = vmatpush2.msra.mxu0 0.0
      %3198 = vmatprep.subr.mxu0 0.0
      %3199 = vmatpush2.msra.mxu0 0.0
      %3200 = vmatprep.subr.mxu0 0.0
      %3201 = vmatpush2.msra.mxu0 0.0
      %3202 = vmatprep.subr.mxu0 0.0
      %3203 = vmatpush2.msra.mxu0 0.0
      %3204 = vmatprep.subr.mxu0 0.0
      %3205 = vmatpush2.msra.mxu0 0.0
      %3206 = vmatprep.subr.mxu0 0.0
      %3207 = vmatpush2.msra.mxu0 0.0
      %3208 = vmatprep.subr.mxu0 0.0
      %3209 = vmatpush2.msra.mxu0 0.0
      %3210 = vmatprep.subr.mxu0 0.0
      %3211 = vmatpush2.msra.mxu0 0.0
      %3212 = vmatprep.subr.mxu0 0.0
      %3213 = vmatpush2.msra.mxu0 0.0
      %3214 = vmatprep.subr.mxu0 0.0
      %3215 = vmatpush2.msra.mxu0 0.0
      %3216 = vmatprep.subr.mxu0 0.0
      %3217 = vmatpush2.msra.mxu0 0.0
      %3218 = vmatprep.subr.mxu0 0.0
      %3219 = vmatpush2.msra.mxu0 0.0
      %3220 = vmatprep.subr.mxu0 0.0
      %3221 = vmatpush2.msra.mxu0 0.0
      %3222 = vmatprep.subr.mxu0 0.0
      %3223 = vmatpush2.msra.mxu0 0.0
      %3224 = vmatprep.subr.mxu0 0.0
      %3225 = vmatpush2.msra.mxu0 0.0
      %3226 = vmatprep.mubr.f32.mxu0 0.0
      %3227 = vmatmul.mubr.f32.gmra.mxu0 %v3160
      %v3228 = vpop.f32.mrf.mxu0
      %v3229 = vadd.f32 0.0, %v3228
      %v3230 = vpop.f32.mrf.mxu0
      %3231 = vdwg.mxu0
      %v3232 = vadd.f32 %v3149, %v3229
      %v3233 = vld [vmem:[%s2393] sm:$0xff]
      %3234 = vrot.lane.b32.xlu0 %v2995, 80
      %v3235 = vpop.permute.xlu0 %3234
      %3236 = vrot.lane.b32.xlu0 %v2996, 80
      %v3237 = vpop.permute.xlu0 %3236
      %v3238 = vsel %vm2399, %v3235, %v3237
      %v3241 = vsel %vm2163, %v3233, 0
      %3243 = vmatprep.subr.mxu0 0.0
      %3244 = vmatpush1.msra.mxu0 0.0
      %3245 = vmatprep.subr.mxu0 0.0
      %3246 = vmatpush1.msra.mxu0 0.0
      %3247 = vmatprep.subr.mxu0 0.0
      %3248 = vmatpush1.msra.mxu0 0.0
      %3249 = vmatprep.subr.mxu0 0.0
      %3250 = vmatpush1.msra.mxu0 0.0
      %3251 = vmatprep.subr.mxu0 0.0
      %3252 = vmatpush1.msra.mxu0 0.0
      %3253 = vmatprep.subr.mxu0 0.0
      %3254 = vmatpush1.msra.mxu0 0.0
      %3255 = vmatprep.subr.mxu0 0.0
      %3256 = vmatpush1.msra.mxu0 0.0
      %3257 = vmatprep.subr.mxu0 0.0
      %3258 = vmatpush1.msra.mxu0 0.0
      %3259 = vmatprep.subr.mxu0 0.0
      %3260 = vmatpush1.msra.mxu0 0.0
      %3261 = vmatprep.subr.mxu0 0.0
      %3262 = vmatpush1.msra.mxu0 0.0
      %3263 = vmatprep.subr.mxu0 0.0
      %3264 = vmatpush1.msra.mxu0 0.0
      %3265 = vmatprep.subr.mxu0 0.0
      %3266 = vmatpush1.msra.mxu0 0.0
      %3267 = vmatprep.subr.mxu0 0.0
      %3268 = vmatpush1.msra.mxu0 0.0
      %3269 = vmatprep.subr.mxu0 0.0
      %3270 = vmatpush1.msra.mxu0 0.0
      %3271 = vmatprep.subr.mxu0 0.0
      %3272 = vmatpush1.msra.mxu0 0.0
      %3273 = vmatprep.subr.mxu0 0.0
      %3274 = vmatpush1.msra.mxu0 %v3238
      %3275 = vmatprep.subr.mxu0 0.0
      %3276 = vmatpush2.msra.mxu0 0.0
      %3277 = vmatprep.subr.mxu0 0.0
      %3278 = vmatpush2.msra.mxu0 0.0
      %3279 = vmatprep.subr.mxu0 0.0
      %3280 = vmatpush2.msra.mxu0 0.0
      %3281 = vmatprep.subr.mxu0 0.0
      %3282 = vmatpush2.msra.mxu0 0.0
      %3283 = vmatprep.subr.mxu0 0.0
      %3284 = vmatpush2.msra.mxu0 0.0
      %3285 = vmatprep.subr.mxu0 0.0
      %3286 = vmatpush2.msra.mxu0 0.0
      %3287 = vmatprep.subr.mxu0 0.0
      %3288 = vmatpush2.msra.mxu0 0.0
      %3289 = vmatprep.subr.mxu0 0.0
      %3290 = vmatpush2.msra.mxu0 0.0
      %3291 = vmatprep.subr.mxu0 0.0
      %3292 = vmatpush2.msra.mxu0 0.0
      %3293 = vmatprep.subr.mxu0 0.0
      %3294 = vmatpush2.msra.mxu0 0.0
      %3295 = vmatprep.subr.mxu0 0.0
      %3296 = vmatpush2.msra.mxu0 0.0
      %3297 = vmatprep.subr.mxu0 0.0
      %3298 = vmatpush2.msra.mxu0 0.0
      %3299 = vmatprep.subr.mxu0 0.0
      %3300 = vmatpush2.msra.mxu0 0.0
      %3301 = vmatprep.subr.mxu0 0.0
      %3302 = vmatpush2.msra.mxu0 0.0
      %3303 = vmatprep.subr.mxu0 0.0
      %3304 = vmatpush2.msra.mxu0 0.0
      %3305 = vmatprep.subr.mxu0 0.0
      %3306 = vmatpush2.msra.mxu0 0.0
      %3307 = vmatprep.mubr.f32.mxu0 0.0
      %3308 = vmatmul.mubr.f32.gmra.mxu0 %v3241
      %v3309 = vpop.f32.mrf.mxu0
      %v3310 = vadd.f32 0.0, %v3309
      %v3311 = vpop.f32.mrf.mxu0
      %3312 = vdwg.mxu0
      %v3313 = vadd.f32 %v3232, %v3310
      %v3314 = vld [vmem:[%s2476] sm:$0xff]
      %3315 = vrot.lane.b32.xlu0 %v2995, 64
      %v3316 = vpop.permute.xlu0 %3315
      %3317 = vrot.lane.b32.xlu0 %v2996, 64
      %v3318 = vpop.permute.xlu0 %3317
      %v3319 = vsel %vm1155, %v3316, %v3318
      %v3322 = vsel %vm2163, %v3314, 0
      %3324 = vmatprep.subr.mxu0 0.0
      %3325 = vmatpush1.msra.mxu0 0.0
      %3326 = vmatprep.subr.mxu0 0.0
      %3327 = vmatpush1.msra.mxu0 0.0
      %3328 = vmatprep.subr.mxu0 0.0
      %3329 = vmatpush1.msra.mxu0 0.0
      %3330 = vmatprep.subr.mxu0 0.0
      %3331 = vmatpush1.msra.mxu0 0.0
      %3332 = vmatprep.subr.mxu0 0.0
      %3333 = vmatpush1.msra.mxu0 0.0
      %3334 = vmatprep.subr.mxu0 0.0
      %3335 = vmatpush1.msra.mxu0 0.0
      %3336 = vmatprep.subr.mxu0 0.0
      %3337 = vmatpush1.msra.mxu0 0.0
      %3338 = vmatprep.subr.mxu0 0.0
      %3339 = vmatpush1.msra.mxu0 0.0
      %3340 = vmatprep.subr.mxu0 0.0
      %3341 = vmatpush1.msra.mxu0 0.0
      %3342 = vmatprep.subr.mxu0 0.0
      %3343 = vmatpush1.msra.mxu0 0.0
      %3344 = vmatprep.subr.mxu0 0.0
      %3345 = vmatpush1.msra.mxu0 0.0
      %3346 = vmatprep.subr.mxu0 0.0
      %3347 = vmatpush1.msra.mxu0 0.0
      %3348 = vmatprep.subr.mxu0 0.0
      %3349 = vmatpush1.msra.mxu0 0.0
      %3350 = vmatprep.subr.mxu0 0.0
      %3351 = vmatpush1.msra.mxu0 0.0
      %3352 = vmatprep.subr.mxu0 0.0
      %3353 = vmatpush1.msra.mxu0 0.0
      %3354 = vmatprep.subr.mxu0 0.0
      %3355 = vmatpush1.msra.mxu0 %v3319
      %3356 = vmatprep.subr.mxu0 0.0
      %3357 = vmatpush2.msra.mxu0 0.0
      %3358 = vmatprep.subr.mxu0 0.0
      %3359 = vmatpush2.msra.mxu0 0.0
      %3360 = vmatprep.subr.mxu0 0.0
      %3361 = vmatpush2.msra.mxu0 0.0
      %3362 = vmatprep.subr.mxu0 0.0
      %3363 = vmatpush2.msra.mxu0 0.0
      %3364 = vmatprep.subr.mxu0 0.0
      %3365 = vmatpush2.msra.mxu0 0.0
      %3366 = vmatprep.subr.mxu0 0.0
      %3367 = vmatpush2.msra.mxu0 0.0
      %3368 = vmatprep.subr.mxu0 0.0
      %3369 = vmatpush2.msra.mxu0 0.0
      %3370 = vmatprep.subr.mxu0 0.0
      %3371 = vmatpush2.msra.mxu0 0.0
      %3372 = vmatprep.subr.mxu0 0.0
      %3373 = vmatpush2.msra.mxu0 0.0
      %3374 = vmatprep.subr.mxu0 0.0
      %3375 = vmatpush2.msra.mxu0 0.0
      %3376 = vmatprep.subr.mxu0 0.0
      %3377 = vmatpush2.msra.mxu0 0.0
      %3378 = vmatprep.subr.mxu0 0.0
      %3379 = vmatpush2.msra.mxu0 0.0
      %3380 = vmatprep.subr.mxu0 0.0
      %3381 = vmatpush2.msra.mxu0 0.0
      %3382 = vmatprep.subr.mxu0 0.0
      %3383 = vmatpush2.msra.mxu0 0.0
      %3384 = vmatprep.subr.mxu0 0.0
      %3385 = vmatpush2.msra.mxu0 0.0
      %3386 = vmatprep.subr.mxu0 0.0
      %3387 = vmatpush2.msra.mxu0 0.0
      %3388 = vmatprep.mubr.f32.mxu0 0.0
      %3389 = vmatmul.mubr.f32.gmra.mxu0 %v3322
      %v3390 = vpop.f32.mrf.mxu0
      %v3391 = vadd.f32 0.0, %v3390
      %v3392 = vpop.f32.mrf.mxu0
      %3393 = vdwg.mxu0
      %v3394 = vadd.f32 %v3313, %v3391
      %v3395 = vld [vmem:[%s2558] sm:$0xff]
      %3396 = vrot.lane.b32.xlu0 %v2995, 48
      %v3397 = vpop.permute.xlu0 %3396
      %3398 = vrot.lane.b32.xlu0 %v2996, 48
      %v3399 = vpop.permute.xlu0 %3398
      %v3400 = vsel %vm2564, %v3397, %v3399
      %v3403 = vsel %vm2163, %v3395, 0
      %3405 = vmatprep.subr.mxu0 0.0
      %3406 = vmatpush1.msra.mxu0 0.0
      %3407 = vmatprep.subr.mxu0 0.0
      %3408 = vmatpush1.msra.mxu0 0.0
      %3409 = vmatprep.subr.mxu0 0.0
      %3410 = vmatpush1.msra.mxu0 0.0
      %3411 = vmatprep.subr.mxu0 0.0
      %3412 = vmatpush1.msra.mxu0 0.0
      %3413 = vmatprep.subr.mxu0 0.0
      %3414 = vmatpush1.msra.mxu0 0.0
      %3415 = vmatprep.subr.mxu0 0.0
      %3416 = vmatpush1.msra.mxu0 0.0
      %3417 = vmatprep.subr.mxu0 0.0
      %3418 = vmatpush1.msra.mxu0 0.0
      %3419 = vmatprep.subr.mxu0 0.0
      %3420 = vmatpush1.msra.mxu0 0.0
      %3421 = vmatprep.subr.mxu0 0.0
      %3422 = vmatpush1.msra.mxu0 0.0
      %3423 = vmatprep.subr.mxu0 0.0
      %3424 = vmatpush1.msra.mxu0 0.0
      %3425 = vmatprep.subr.mxu0 0.0
      %3426 = vmatpush1.msra.mxu0 0.0
      %3427 = vmatprep.subr.mxu0 0.0
      %3428 = vmatpush1.msra.mxu0 0.0
      %3429 = vmatprep.subr.mxu0 0.0
      %3430 = vmatpush1.msra.mxu0 0.0
      %3431 = vmatprep.subr.mxu0 0.0
      %3432 = vmatpush1.msra.mxu0 0.0
      %3433 = vmatprep.subr.mxu0 0.0
      %3434 = vmatpush1.msra.mxu0 0.0
      %3435 = vmatprep.subr.mxu0 0.0
      %3436 = vmatpush1.msra.mxu0 %v3400
      %3437 = vmatprep.subr.mxu0 0.0
      %3438 = vmatpush2.msra.mxu0 0.0
      %3439 = vmatprep.subr.mxu0 0.0
      %3440 = vmatpush2.msra.mxu0 0.0
      %3441 = vmatprep.subr.mxu0 0.0
      %3442 = vmatpush2.msra.mxu0 0.0
      %3443 = vmatprep.subr.mxu0 0.0
      %3444 = vmatpush2.msra.mxu0 0.0
      %3445 = vmatprep.subr.mxu0 0.0
      %3446 = vmatpush2.msra.mxu0 0.0
      %3447 = vmatprep.subr.mxu0 0.0
      %3448 = vmatpush2.msra.mxu0 0.0
      %3449 = vmatprep.subr.mxu0 0.0
      %3450 = vmatpush2.msra.mxu0 0.0
      %3451 = vmatprep.subr.mxu0 0.0
      %3452 = vmatpush2.msra.mxu0 0.0
      %3453 = vmatprep.subr.mxu0 0.0
      %3454 = vmatpush2.msra.mxu0 0.0
      %3455 = vmatprep.subr.mxu0 0.0
      %3456 = vmatpush2.msra.mxu0 0.0
      %3457 = vmatprep.subr.mxu0 0.0
      %3458 = vmatpush2.msra.mxu0 0.0
      %3459 = vmatprep.subr.mxu0 0.0
      %3460 = vmatpush2.msra.mxu0 0.0
      %3461 = vmatprep.subr.mxu0 0.0
      %3462 = vmatpush2.msra.mxu0 0.0
      %3463 = vmatprep.subr.mxu0 0.0
      %3464 = vmatpush2.msra.mxu0 0.0
      %3465 = vmatprep.subr.mxu0 0.0
      %3466 = vmatpush2.msra.mxu0 0.0
      %3467 = vmatprep.subr.mxu0 0.0
      %3468 = vmatpush2.msra.mxu0 0.0
      %3469 = vmatprep.mubr.f32.mxu0 0.0
      %3470 = vmatmul.mubr.f32.gmra.mxu0 %v3403
      %v3471 = vpop.f32.mrf.mxu0
      %v3472 = vadd.f32 0.0, %v3471
      %v3473 = vpop.f32.mrf.mxu0
      %3474 = vdwg.mxu0
      %v3475 = vadd.f32 %v3394, %v3472
      %v3476 = vld [vmem:[%s2641] sm:$0xff]
      %3477 = vrot.lane.b32.xlu0 %v2995, 32
      %v3478 = vpop.permute.xlu0 %3477
      %3479 = vrot.lane.b32.xlu0 %v2996, 32
      %v3480 = vpop.permute.xlu0 %3479
      %v3481 = vsel %vm2647, %v3478, %v3480
      %v3484 = vsel %vm2163, %v3476, 0
      %3486 = vmatprep.subr.mxu0 0.0
      %3487 = vmatpush1.msra.mxu0 0.0
      %3488 = vmatprep.subr.mxu0 0.0
      %3489 = vmatpush1.msra.mxu0 0.0
      %3490 = vmatprep.subr.mxu0 0.0
      %3491 = vmatpush1.msra.mxu0 0.0
      %3492 = vmatprep.subr.mxu0 0.0
      %3493 = vmatpush1.msra.mxu0 0.0
      %3494 = vmatprep.subr.mxu0 0.0
      %3495 = vmatpush1.msra.mxu0 0.0
      %3496 = vmatprep.subr.mxu0 0.0
      %3497 = vmatpush1.msra.mxu0 0.0
      %3498 = vmatprep.subr.mxu0 0.0
      %3499 = vmatpush1.msra.mxu0 0.0
      %3500 = vmatprep.subr.mxu0 0.0
      %3501 = vmatpush1.msra.mxu0 0.0
      %3502 = vmatprep.subr.mxu0 0.0
      %3503 = vmatpush1.msra.mxu0 0.0
      %3504 = vmatprep.subr.mxu0 0.0
      %3505 = vmatpush1.msra.mxu0 0.0
      %3506 = vmatprep.subr.mxu0 0.0
      %3507 = vmatpush1.msra.mxu0 0.0
      %3508 = vmatprep.subr.mxu0 0.0
      %3509 = vmatpush1.msra.mxu0 0.0
      %3510 = vmatprep.subr.mxu0 0.0
      %3511 = vmatpush1.msra.mxu0 0.0
      %3512 = vmatprep.subr.mxu0 0.0
      %3513 = vmatpush1.msra.mxu0 0.0
      %3514 = vmatprep.subr.mxu0 0.0
      %3515 = vmatpush1.msra.mxu0 0.0
      %3516 = vmatprep.subr.mxu0 0.0
      %3517 = vmatpush1.msra.mxu0 %v3481
      %3518 = vmatprep.subr.mxu0 0.0
      %3519 = vmatpush2.msra.mxu0 0.0
      %3520 = vmatprep.subr.mxu0 0.0
      %3521 = vmatpush2.msra.mxu0 0.0
      %3522 = vmatprep.subr.mxu0 0.0
      %3523 = vmatpush2.msra.mxu0 0.0
      %3524 = vmatprep.subr.mxu0 0.0
      %3525 = vmatpush2.msra.mxu0 0.0
      %3526 = vmatprep.subr.mxu0 0.0
      %3527 = vmatpush2.msra.mxu0 0.0
      %3528 = vmatprep.subr.mxu0 0.0
      %3529 = vmatpush2.msra.mxu0 0.0
      %3530 = vmatprep.subr.mxu0 0.0
      %3531 = vmatpush2.msra.mxu0 0.0
      %3532 = vmatprep.subr.mxu0 0.0
      %3533 = vmatpush2.msra.mxu0 0.0
      %3534 = vmatprep.subr.mxu0 0.0
      %3535 = vmatpush2.msra.mxu0 0.0
      %3536 = vmatprep.subr.mxu0 0.0
      %3537 = vmatpush2.msra.mxu0 0.0
      %3538 = vmatprep.subr.mxu0 0.0
      %3539 = vmatpush2.msra.mxu0 0.0
      %3540 = vmatprep.subr.mxu0 0.0
      %3541 = vmatpush2.msra.mxu0 0.0
      %3542 = vmatprep.subr.mxu0 0.0
      %3543 = vmatpush2.msra.mxu0 0.0
      %3544 = vmatprep.subr.mxu0 0.0
      %3545 = vmatpush2.msra.mxu0 0.0
      %3546 = vmatprep.subr.mxu0 0.0
      %3547 = vmatpush2.msra.mxu0 0.0
      %3548 = vmatprep.subr.mxu0 0.0
      %3549 = vmatpush2.msra.mxu0 0.0
      %3550 = vmatprep.mubr.f32.mxu0 0.0
      %3551 = vmatmul.mubr.f32.gmra.mxu0 %v3484
      %v3552 = vpop.f32.mrf.mxu0
      %v3553 = vadd.f32 0.0, %v3552
      %v3554 = vpop.f32.mrf.mxu0
      %3555 = vdwg.mxu0
      %v3556 = vadd.f32 %v3475, %v3553
      %v3557 = vld [vmem:[%s2724] sm:$0xff]
      %3558 = vrot.lane.b32.xlu0 %v2995, 16
      %v3559 = vpop.permute.xlu0 %3558
      %3560 = vrot.lane.b32.xlu0 %v2996, 16
      %v3561 = vpop.permute.xlu0 %3560
      %v3562 = vsel %vm2730, %v3559, %v3561
      %v3565 = vsel %vm2163, %v3557, 0
      %3567 = vmatprep.subr.mxu0 0.0
      %3568 = vmatpush1.msra.mxu0 0.0
      %3569 = vmatprep.subr.mxu0 0.0
      %3570 = vmatpush1.msra.mxu0 0.0
      %3571 = vmatprep.subr.mxu0 0.0
      %3572 = vmatpush1.msra.mxu0 0.0
      %3573 = vmatprep.subr.mxu0 0.0
      %3574 = vmatpush1.msra.mxu0 0.0
      %3575 = vmatprep.subr.mxu0 0.0
      %3576 = vmatpush1.msra.mxu0 0.0
      %3577 = vmatprep.subr.mxu0 0.0
      %3578 = vmatpush1.msra.mxu0 0.0
      %3579 = vmatprep.subr.mxu0 0.0
      %3580 = vmatpush1.msra.mxu0 0.0
      %3581 = vmatprep.subr.mxu0 0.0
      %3582 = vmatpush1.msra.mxu0 0.0
      %3583 = vmatprep.subr.mxu0 0.0
      %3584 = vmatpush1.msra.mxu0 0.0
      %3585 = vmatprep.subr.mxu0 0.0
      %3586 = vmatpush1.msra.mxu0 0.0
      %3587 = vmatprep.subr.mxu0 0.0
      %3588 = vmatpush1.msra.mxu0 0.0
      %3589 = vmatprep.subr.mxu0 0.0
      %3590 = vmatpush1.msra.mxu0 0.0
      %3591 = vmatprep.subr.mxu0 0.0
      %3592 = vmatpush1.msra.mxu0 0.0
      %3593 = vmatprep.subr.mxu0 0.0
      %3594 = vmatpush1.msra.mxu0 0.0
      %3595 = vmatprep.subr.mxu0 0.0
      %3596 = vmatpush1.msra.mxu0 0.0
      %3597 = vmatprep.subr.mxu0 0.0
      %3598 = vmatpush1.msra.mxu0 %v3562
      %3599 = vmatprep.subr.mxu0 0.0
      %3600 = vmatpush2.msra.mxu0 0.0
      %3601 = vmatprep.subr.mxu0 0.0
      %3602 = vmatpush2.msra.mxu0 0.0
      %3603 = vmatprep.subr.mxu0 0.0
      %3604 = vmatpush2.msra.mxu0 0.0
      %3605 = vmatprep.subr.mxu0 0.0
      %3606 = vmatpush2.msra.mxu0 0.0
      %3607 = vmatprep.subr.mxu0 0.0
      %3608 = vmatpush2.msra.mxu0 0.0
      %3609 = vmatprep.subr.mxu0 0.0
      %3610 = vmatpush2.msra.mxu0 0.0
      %3611 = vmatprep.subr.mxu0 0.0
      %3612 = vmatpush2.msra.mxu0 0.0
      %3613 = vmatprep.subr.mxu0 0.0
      %3614 = vmatpush2.msra.mxu0 0.0
      %3615 = vmatprep.subr.mxu0 0.0
      %3616 = vmatpush2.msra.mxu0 0.0
      %3617 = vmatprep.subr.mxu0 0.0
      %3618 = vmatpush2.msra.mxu0 0.0
      %3619 = vmatprep.subr.mxu0 0.0
      %3620 = vmatpush2.msra.mxu0 0.0
      %3621 = vmatprep.subr.mxu0 0.0
      %3622 = vmatpush2.msra.mxu0 0.0
      %3623 = vmatprep.subr.mxu0 0.0
      %3624 = vmatpush2.msra.mxu0 0.0
      %3625 = vmatprep.subr.mxu0 0.0
      %3626 = vmatpush2.msra.mxu0 0.0
      %3627 = vmatprep.subr.mxu0 0.0
      %3628 = vmatpush2.msra.mxu0 0.0
      %3629 = vmatprep.subr.mxu0 0.0
      %3630 = vmatpush2.msra.mxu0 0.0
      %3631 = vmatprep.mubr.f32.mxu0 0.0
      %3632 = vmatmul.mubr.f32.gmra.mxu0 %v3565
      %v3633 = vpop.f32.mrf.mxu0
      %v3634 = vadd.f32 0.0, %v3633
      %v3635 = vpop.f32.mrf.mxu0
      %3636 = vdwg.mxu0
      %v3637 = vadd.f32 %v3556, %v3634
      %v3638 = vld [vmem:[%s2807] sm:$0xff]
      %v3640 = vsel %vm2163, %v3638, 0
      %3642 = vmatprep.subr.mxu0 0.0
      %3643 = vmatpush1.msra.mxu0 0.0
      %3644 = vmatprep.subr.mxu0 0.0
      %3645 = vmatpush1.msra.mxu0 0.0
      %3646 = vmatprep.subr.mxu0 0.0
      %3647 = vmatpush1.msra.mxu0 0.0
      %3648 = vmatprep.subr.mxu0 0.0
      %3649 = vmatpush1.msra.mxu0 0.0
      %3650 = vmatprep.subr.mxu0 0.0
      %3651 = vmatpush1.msra.mxu0 0.0
      %3652 = vmatprep.subr.mxu0 0.0
      %3653 = vmatpush1.msra.mxu0 0.0
      %3654 = vmatprep.subr.mxu0 0.0
      %3655 = vmatpush1.msra.mxu0 0.0
      %3656 = vmatprep.subr.mxu0 0.0
      %3657 = vmatpush1.msra.mxu0 0.0
      %3658 = vmatprep.subr.mxu0 0.0
      %3659 = vmatpush1.msra.mxu0 0.0
      %3660 = vmatprep.subr.mxu0 0.0
      %3661 = vmatpush1.msra.mxu0 0.0
      %3662 = vmatprep.subr.mxu0 0.0
      %3663 = vmatpush1.msra.mxu0 0.0
      %3664 = vmatprep.subr.mxu0 0.0
      %3665 = vmatpush1.msra.mxu0 0.0
      %3666 = vmatprep.subr.mxu0 0.0
      %3667 = vmatpush1.msra.mxu0 0.0
      %3668 = vmatprep.subr.mxu0 0.0
      %3669 = vmatpush1.msra.mxu0 0.0
      %3670 = vmatprep.subr.mxu0 0.0
      %3671 = vmatpush1.msra.mxu0 0.0
      %3672 = vmatprep.subr.mxu0 0.0
      %3673 = vmatpush1.msra.mxu0 %v2996
      %3674 = vmatprep.subr.mxu0 0.0
      %3675 = vmatpush2.msra.mxu0 0.0
      %3676 = vmatprep.subr.mxu0 0.0
      %3677 = vmatpush2.msra.mxu0 0.0
      %3678 = vmatprep.subr.mxu0 0.0
      %3679 = vmatpush2.msra.mxu0 0.0
      %3680 = vmatprep.subr.mxu0 0.0
      %3681 = vmatpush2.msra.mxu0 0.0
      %3682 = vmatprep.subr.mxu0 0.0
      %3683 = vmatpush2.msra.mxu0 0.0
      %3684 = vmatprep.subr.mxu0 0.0
      %3685 = vmatpush2.msra.mxu0 0.0
      %3686 = vmatprep.subr.mxu0 0.0
      %3687 = vmatpush2.msra.mxu0 0.0
      %3688 = vmatprep.subr.mxu0 0.0
      %3689 = vmatpush2.msra.mxu0 0.0
      %3690 = vmatprep.subr.mxu0 0.0
      %3691 = vmatpush2.msra.mxu0 0.0
      %3692 = vmatprep.subr.mxu0 0.0
      %3693 = vmatpush2.msra.mxu0 0.0
      %3694 = vmatprep.subr.mxu0 0.0
      %3695 = vmatpush2.msra.mxu0 0.0
      %3696 = vmatprep.subr.mxu0 0.0
      %3697 = vmatpush2.msra.mxu0 0.0
      %3698 = vmatprep.subr.mxu0 0.0
      %3699 = vmatpush2.msra.mxu0 0.0
      %3700 = vmatprep.subr.mxu0 0.0
      %3701 = vmatpush2.msra.mxu0 0.0
      %3702 = vmatprep.subr.mxu0 0.0
      %3703 = vmatpush2.msra.mxu0 0.0
      %3704 = vmatprep.subr.mxu0 0.0
      %3705 = vmatpush2.msra.mxu0 0.0
      %3706 = vmatprep.mubr.f32.mxu0 0.0
      %3707 = vmatmul.mubr.f32.gmra.mxu0 %v3640
      %v3708 = vpop.f32.mrf.mxu0
      %v3709 = vadd.f32 0.0, %v3708
      %v3710 = vpop.f32.mrf.mxu0
      %3711 = vdwg.mxu0
      %v3712 = vadd.f32 %v3637, %v3709
      %v3713 = vld [vmem:[%s6] sm:$0xff]
      %3715 = vset.pattern.permute.xlu0 0
      %3716 = vperm.xlu0 %3715, %v3713
      %v3717 = vpop.permute.xlu0 %3716
      %v3719 = vmul.f32 %v3712, %v3717
      %v3720 = vld [vmem:[%s7] sm:$0xff]
      %3722 = vset.pattern.permute.xlu0 0
      %3723 = vperm.xlu0 %3722, %v3720
      %v3724 = vpop.permute.xlu0 %3723
      %v3726 = vadd.f32 %v3719, %v3724
      %v3727 = vmax.f32 %v3726, 0.0
      %v3728 = vld [vmem:[%s624 + $0x4] sm:$0xf]
      %v3729 = vld [vmem:[%s8] sm:$0xff]
      %v3731 = vsel %vm901, %v3729, 0
      %v3734 = vsel %vm905, %v3728, 0
      %3736 = vmatprep.subr.mxu0 0.0
      %3737 = vmatpush1.msra.mxu0 0.0
      %3738 = vmatprep.subr.mxu0 0.0
      %3739 = vmatpush1.msra.mxu0 0.0
      %3740 = vmatprep.subr.mxu0 0.0
      %3741 = vmatpush1.msra.mxu0 0.0
      %3742 = vmatprep.subr.mxu0 0.0
      %3743 = vmatpush1.msra.mxu0 0.0
      %3744 = vmatprep.subr.mxu0 0.0
      %3745 = vmatpush1.msra.mxu0 0.0
      %3746 = vmatprep.subr.mxu0 0.0
      %3747 = vmatpush1.msra.mxu0 0.0
      %3748 = vmatprep.subr.mxu0 0.0
      %3749 = vmatpush1.msra.mxu0 0.0
      %3750 = vmatprep.subr.mxu0 0.0
      %3751 = vmatpush1.msra.mxu0 0.0
      %3752 = vmatprep.subr.mxu0 0.0
      %3753 = vmatpush1.msra.mxu0 0.0
      %3754 = vmatprep.subr.mxu0 0.0
      %3755 = vmatpush1.msra.mxu0 0.0
      %3756 = vmatprep.subr.mxu0 0.0
      %3757 = vmatpush1.msra.mxu0 0.0
      %3758 = vmatprep.subr.mxu0 0.0
      %3759 = vmatpush1.msra.mxu0 0.0
      %3760 = vmatprep.subr.mxu0 0.0
      %3761 = vmatpush1.msra.mxu0 0.0
      %3762 = vmatprep.subr.mxu0 0.0
      %3763 = vmatpush1.msra.mxu0 0.0
      %3764 = vmatprep.subr.mxu0 0.0
      %3765 = vmatpush1.msra.mxu0 0.0
      %3766 = vmatprep.subr.mxu0 0.0
      %3767 = vmatpush1.msra.mxu0 %v3734
      %3768 = vmatprep.subr.mxu0 0.0
      %3769 = vmatpush2.msra.mxu0 0.0
      %3770 = vmatprep.subr.mxu0 0.0
      %3771 = vmatpush2.msra.mxu0 0.0
      %3772 = vmatprep.subr.mxu0 0.0
      %3773 = vmatpush2.msra.mxu0 0.0
      %3774 = vmatprep.subr.mxu0 0.0
      %3775 = vmatpush2.msra.mxu0 0.0
      %3776 = vmatprep.subr.mxu0 0.0
      %3777 = vmatpush2.msra.mxu0 0.0
      %3778 = vmatprep.subr.mxu0 0.0
      %3779 = vmatpush2.msra.mxu0 0.0
      %3780 = vmatprep.subr.mxu0 0.0
      %3781 = vmatpush2.msra.mxu0 0.0
      %3782 = vmatprep.subr.mxu0 0.0
      %3783 = vmatpush2.msra.mxu0 0.0
      %3784 = vmatprep.subr.mxu0 0.0
      %3785 = vmatpush2.msra.mxu0 0.0
      %3786 = vmatprep.subr.mxu0 0.0
      %3787 = vmatpush2.msra.mxu0 0.0
      %3788 = vmatprep.subr.mxu0 0.0
      %3789 = vmatpush2.msra.mxu0 0.0
      %3790 = vmatprep.subr.mxu0 0.0
      %3791 = vmatpush2.msra.mxu0 0.0
      %3792 = vmatprep.subr.mxu0 0.0
      %3793 = vmatpush2.msra.mxu0 0.0
      %3794 = vmatprep.subr.mxu0 0.0
      %3795 = vmatpush2.msra.mxu0 0.0
      %3796 = vmatprep.subr.mxu0 0.0
      %3797 = vmatpush2.msra.mxu0 0.0
      %3798 = vmatprep.subr.mxu0 0.0
      %3799 = vmatpush2.msra.mxu0 0.0
      %3800 = vmatprep.mubr.f32.mxu0 0.0
      %3801 = vmatmul.mubr.f32.gmra.mxu0 %v3731
      %v3802 = vpop.f32.mrf.mxu0
      %v3803 = vadd.f32 0.0, %v3802
      %v3804 = vpop.f32.mrf.mxu0
      %3805 = vdwg.mxu0
      %v3806 = vld [vmem:[%s9] sm:$0xff]
      %3808 = vset.pattern.permute.xlu0 0
      %3809 = vperm.xlu0 %3808, %v3806
      %v3810 = vpop.permute.xlu0 %3809
      %v3812 = vmul.f32 %v3803, %v3810
      %v3813 = vld [vmem:[%s10] sm:$0xff]
      %3815 = vset.pattern.permute.xlu0 0
      %3816 = vperm.xlu0 %3815, %v3813
      %v3817 = vpop.permute.xlu0 %3816
      %v3819 = vadd.f32 %v3812, %v3817
      %v3820 = vmax.f32 %v3819, 0.0
      %v3821 = vadd.f32 %v3727, %v3820
      %3822 = vst [vmem:[%s629 + $0x8] sm:$0xff] %v3821
      %v3823 = vld [vmem:[#allocation3] sm:$0xff]
      %v3824 = vld [vmem:[%s14] sm:$0xff]
      %v3825 = vld [vmem:[#allocation3 + $0x8] sm:$0xff]
      %s3826 = scalar_lea.vmem %s14, 8
      %v3827 = vld [vmem:[%s3826] sm:$0xff]
      %3830 = vrot.lane.b32.xlu0 %v3823, 112
      %v3831 = vpop.permute.xlu0 %3830
      %3832 = vrot.lane.b32.xlu0 %v3825, 112
      %v3833 = vpop.permute.xlu0 %3832
      %v3834 = vsel %vm2160, %v3831, %v3833
      %v3837 = vsel %vm2163, %v3827, 0
      %3839 = vmatprep.subr.mxu0 0.0
      %3840 = vmatpush1.msra.mxu0 0.0
      %3841 = vmatprep.subr.mxu0 0.0
      %3842 = vmatpush1.msra.mxu0 0.0
      %3843 = vmatprep.subr.mxu0 0.0
      %3844 = vmatpush1.msra.mxu0 0.0
      %3845 = vmatprep.subr.mxu0 0.0
      %3846 = vmatpush1.msra.mxu0 0.0
      %3847 = vmatprep.subr.mxu0 0.0
      %3848 = vmatpush1.msra.mxu0 0.0
      %3849 = vmatprep.subr.mxu0 0.0
      %3850 = vmatpush1.msra.mxu0 0.0
      %3851 = vmatprep.subr.mxu0 0.0
      %3852 = vmatpush1.msra.mxu0 0.0
      %3853 = vmatprep.subr.mxu0 0.0
      %3854 = vmatpush1.msra.mxu0 0.0
      %3855 = vmatprep.subr.mxu0 0.0
      %3856 = vmatpush1.msra.mxu0 0.0
      %3857 = vmatprep.subr.mxu0 0.0
      %3858 = vmatpush1.msra.mxu0 0.0
      %3859 = vmatprep.subr.mxu0 0.0
      %3860 = vmatpush1.msra.mxu0 0.0
      %3861 = vmatprep.subr.mxu0 0.0
      %3862 = vmatpush1.msra.mxu0 0.0
      %3863 = vmatprep.subr.mxu0 0.0
      %3864 = vmatpush1.msra.mxu0 0.0
      %3865 = vmatprep.subr.mxu0 0.0
      %3866 = vmatpush1.msra.mxu0 0.0
      %3867 = vmatprep.subr.mxu0 0.0
      %3868 = vmatpush1.msra.mxu0 0.0
      %3869 = vmatprep.subr.mxu0 0.0
      %3870 = vmatpush1.msra.mxu0 %v3834
      %3871 = vmatprep.subr.mxu0 0.0
      %3872 = vmatpush2.msra.mxu0 0.0
      %3873 = vmatprep.subr.mxu0 0.0
      %3874 = vmatpush2.msra.mxu0 0.0
      %3875 = vmatprep.subr.mxu0 0.0
      %3876 = vmatpush2.msra.mxu0 0.0
      %3877 = vmatprep.subr.mxu0 0.0
      %3878 = vmatpush2.msra.mxu0 0.0
      %3879 = vmatprep.subr.mxu0 0.0
      %3880 = vmatpush2.msra.mxu0 0.0
      %3881 = vmatprep.subr.mxu0 0.0
      %3882 = vmatpush2.msra.mxu0 0.0
      %3883 = vmatprep.subr.mxu0 0.0
      %3884 = vmatpush2.msra.mxu0 0.0
      %3885 = vmatprep.subr.mxu0 0.0
      %3886 = vmatpush2.msra.mxu0 0.0
      %3887 = vmatprep.subr.mxu0 0.0
      %3888 = vmatpush2.msra.mxu0 0.0
      %3889 = vmatprep.subr.mxu0 0.0
      %3890 = vmatpush2.msra.mxu0 0.0
      %3891 = vmatprep.subr.mxu0 0.0
      %3892 = vmatpush2.msra.mxu0 0.0
      %3893 = vmatprep.subr.mxu0 0.0
      %3894 = vmatpush2.msra.mxu0 0.0
      %3895 = vmatprep.subr.mxu0 0.0
      %3896 = vmatpush2.msra.mxu0 0.0
      %3897 = vmatprep.subr.mxu0 0.0
      %3898 = vmatpush2.msra.mxu0 0.0
      %3899 = vmatprep.subr.mxu0 0.0
      %3900 = vmatpush2.msra.mxu0 0.0
      %3901 = vmatprep.subr.mxu0 0.0
      %3902 = vmatpush2.msra.mxu0 0.0
      %3903 = vmatprep.mubr.f32.mxu0 0.0
      %3904 = vmatmul.mubr.f32.gmra.mxu0 %v3837
      %v3905 = vpop.f32.mrf.mxu0
      %v3906 = vadd.f32 0.0, %v3905
      %v3907 = vpop.f32.mrf.mxu0
      %3908 = vdwg.mxu0
      %v3910 = vsel %vm2163, %v3824, 0
      %3912 = vmatprep.subr.mxu0 0.0
      %3913 = vmatpush1.msra.mxu0 0.0
      %3914 = vmatprep.subr.mxu0 0.0
      %3915 = vmatpush1.msra.mxu0 0.0
      %3916 = vmatprep.subr.mxu0 0.0
      %3917 = vmatpush1.msra.mxu0 0.0
      %3918 = vmatprep.subr.mxu0 0.0
      %3919 = vmatpush1.msra.mxu0 0.0
      %3920 = vmatprep.subr.mxu0 0.0
      %3921 = vmatpush1.msra.mxu0 0.0
      %3922 = vmatprep.subr.mxu0 0.0
      %3923 = vmatpush1.msra.mxu0 0.0
      %3924 = vmatprep.subr.mxu0 0.0
      %3925 = vmatpush1.msra.mxu0 0.0
      %3926 = vmatprep.subr.mxu0 0.0
      %3927 = vmatpush1.msra.mxu0 0.0
      %3928 = vmatprep.subr.mxu0 0.0
      %3929 = vmatpush1.msra.mxu0 0.0
      %3930 = vmatprep.subr.mxu0 0.0
      %3931 = vmatpush1.msra.mxu0 0.0
      %3932 = vmatprep.subr.mxu0 0.0
      %3933 = vmatpush1.msra.mxu0 0.0
      %3934 = vmatprep.subr.mxu0 0.0
      %3935 = vmatpush1.msra.mxu0 0.0
      %3936 = vmatprep.subr.mxu0 0.0
      %3937 = vmatpush1.msra.mxu0 0.0
      %3938 = vmatprep.subr.mxu0 0.0
      %3939 = vmatpush1.msra.mxu0 0.0
      %3940 = vmatprep.subr.mxu0 0.0
      %3941 = vmatpush1.msra.mxu0 0.0
      %3942 = vmatprep.subr.mxu0 0.0
      %3943 = vmatpush1.msra.mxu0 %v3823
      %3944 = vmatprep.subr.mxu0 0.0
      %3945 = vmatpush2.msra.mxu0 0.0
      %3946 = vmatprep.subr.mxu0 0.0
      %3947 = vmatpush2.msra.mxu0 0.0
      %3948 = vmatprep.subr.mxu0 0.0
      %3949 = vmatpush2.msra.mxu0 0.0
      %3950 = vmatprep.subr.mxu0 0.0
      %3951 = vmatpush2.msra.mxu0 0.0
      %3952 = vmatprep.subr.mxu0 0.0
      %3953 = vmatpush2.msra.mxu0 0.0
      %3954 = vmatprep.subr.mxu0 0.0
      %3955 = vmatpush2.msra.mxu0 0.0
      %3956 = vmatprep.subr.mxu0 0.0
      %3957 = vmatpush2.msra.mxu0 0.0
      %3958 = vmatprep.subr.mxu0 0.0
      %3959 = vmatpush2.msra.mxu0 0.0
      %3960 = vmatprep.subr.mxu0 0.0
      %3961 = vmatpush2.msra.mxu0 0.0
      %3962 = vmatprep.subr.mxu0 0.0
      %3963 = vmatpush2.msra.mxu0 0.0
      %3964 = vmatprep.subr.mxu0 0.0
      %3965 = vmatpush2.msra.mxu0 0.0
      %3966 = vmatprep.subr.mxu0 0.0
      %3967 = vmatpush2.msra.mxu0 0.0
      %3968 = vmatprep.subr.mxu0 0.0
      %3969 = vmatpush2.msra.mxu0 0.0
      %3970 = vmatprep.subr.mxu0 0.0
      %3971 = vmatpush2.msra.mxu0 0.0
      %3972 = vmatprep.subr.mxu0 0.0
      %3973 = vmatpush2.msra.mxu0 0.0
      %3974 = vmatprep.subr.mxu0 0.0
      %3975 = vmatpush2.msra.mxu0 0.0
      %3976 = vmatprep.mubr.f32.mxu0 0.0
      %3977 = vmatmul.mubr.f32.gmra.mxu0 %v3910
      %v3978 = vpop.f32.mrf.mxu0
      %v3979 = vadd.f32 %v3906, %v3978
      %v3980 = vpop.f32.mrf.mxu0
      %3981 = vdwg.mxu0
      %s3982 = scalar_lea.vmem %s14, 16
      %v3983 = vld [vmem:[%s3982] sm:$0xff]
      %3984 = vrot.lane.b32.xlu0 %v3823, 96
      %v3985 = vpop.permute.xlu0 %3984
      %3986 = vrot.lane.b32.xlu0 %v3825, 96
      %v3987 = vpop.permute.xlu0 %3986
      %v3988 = vsel %vm2316, %v3985, %v3987
      %v3991 = vsel %vm2163, %v3983, 0
      %3993 = vmatprep.subr.mxu0 0.0
      %3994 = vmatpush1.msra.mxu0 0.0
      %3995 = vmatprep.subr.mxu0 0.0
      %3996 = vmatpush1.msra.mxu0 0.0
      %3997 = vmatprep.subr.mxu0 0.0
      %3998 = vmatpush1.msra.mxu0 0.0
      %3999 = vmatprep.subr.mxu0 0.0
      %4000 = vmatpush1.msra.mxu0 0.0
      %4001 = vmatprep.subr.mxu0 0.0
      %4002 = vmatpush1.msra.mxu0 0.0
      %4003 = vmatprep.subr.mxu0 0.0
      %4004 = vmatpush1.msra.mxu0 0.0
      %4005 = vmatprep.subr.mxu0 0.0
      %4006 = vmatpush1.msra.mxu0 0.0
      %4007 = vmatprep.subr.mxu0 0.0
      %4008 = vmatpush1.msra.mxu0 0.0
      %4009 = vmatprep.subr.mxu0 0.0
      %4010 = vmatpush1.msra.mxu0 0.0
      %4011 = vmatprep.subr.mxu0 0.0
      %4012 = vmatpush1.msra.mxu0 0.0
      %4013 = vmatprep.subr.mxu0 0.0
      %4014 = vmatpush1.msra.mxu0 0.0
      %4015 = vmatprep.subr.mxu0 0.0
      %4016 = vmatpush1.msra.mxu0 0.0
      %4017 = vmatprep.subr.mxu0 0.0
      %4018 = vmatpush1.msra.mxu0 0.0
      %4019 = vmatprep.subr.mxu0 0.0
      %4020 = vmatpush1.msra.mxu0 0.0
      %4021 = vmatprep.subr.mxu0 0.0
      %4022 = vmatpush1.msra.mxu0 0.0
      %4023 = vmatprep.subr.mxu0 0.0
      %4024 = vmatpush1.msra.mxu0 %v3988
      %4025 = vmatprep.subr.mxu0 0.0
      %4026 = vmatpush2.msra.mxu0 0.0
      %4027 = vmatprep.subr.mxu0 0.0
      %4028 = vmatpush2.msra.mxu0 0.0
      %4029 = vmatprep.subr.mxu0 0.0
      %4030 = vmatpush2.msra.mxu0 0.0
      %4031 = vmatprep.subr.mxu0 0.0
      %4032 = vmatpush2.msra.mxu0 0.0
      %4033 = vmatprep.subr.mxu0 0.0
      %4034 = vmatpush2.msra.mxu0 0.0
      %4035 = vmatprep.subr.mxu0 0.0
      %4036 = vmatpush2.msra.mxu0 0.0
      %4037 = vmatprep.subr.mxu0 0.0
      %4038 = vmatpush2.msra.mxu0 0.0
      %4039 = vmatprep.subr.mxu0 0.0
      %4040 = vmatpush2.msra.mxu0 0.0
      %4041 = vmatprep.subr.mxu0 0.0
      %4042 = vmatpush2.msra.mxu0 0.0
      %4043 = vmatprep.subr.mxu0 0.0
      %4044 = vmatpush2.msra.mxu0 0.0
      %4045 = vmatprep.subr.mxu0 0.0
      %4046 = vmatpush2.msra.mxu0 0.0
      %4047 = vmatprep.subr.mxu0 0.0
      %4048 = vmatpush2.msra.mxu0 0.0
      %4049 = vmatprep.subr.mxu0 0.0
      %4050 = vmatpush2.msra.mxu0 0.0
      %4051 = vmatprep.subr.mxu0 0.0
      %4052 = vmatpush2.msra.mxu0 0.0
      %4053 = vmatprep.subr.mxu0 0.0
      %4054 = vmatpush2.msra.mxu0 0.0
      %4055 = vmatprep.subr.mxu0 0.0
      %4056 = vmatpush2.msra.mxu0 0.0
      %4057 = vmatprep.mubr.f32.mxu0 0.0
      %4058 = vmatmul.mubr.f32.gmra.mxu0 %v3991
      %v4059 = vpop.f32.mrf.mxu0
      %v4060 = vadd.f32 0.0, %v4059
      %v4061 = vpop.f32.mrf.mxu0
      %4062 = vdwg.mxu0
      %v4063 = vadd.f32 %v3979, %v4060
      %s4064 = scalar_lea.vmem %s14, 24
      %v4065 = vld [vmem:[%s4064] sm:$0xff]
      %4066 = vrot.lane.b32.xlu0 %v3823, 80
      %v4067 = vpop.permute.xlu0 %4066
      %4068 = vrot.lane.b32.xlu0 %v3825, 80
      %v4069 = vpop.permute.xlu0 %4068
      %v4070 = vsel %vm2399, %v4067, %v4069
      %v4073 = vsel %vm2163, %v4065, 0
      %4075 = vmatprep.subr.mxu0 0.0
      %4076 = vmatpush1.msra.mxu0 0.0
      %4077 = vmatprep.subr.mxu0 0.0
      %4078 = vmatpush1.msra.mxu0 0.0
      %4079 = vmatprep.subr.mxu0 0.0
      %4080 = vmatpush1.msra.mxu0 0.0
      %4081 = vmatprep.subr.mxu0 0.0
      %4082 = vmatpush1.msra.mxu0 0.0
      %4083 = vmatprep.subr.mxu0 0.0
      %4084 = vmatpush1.msra.mxu0 0.0
      %4085 = vmatprep.subr.mxu0 0.0
      %4086 = vmatpush1.msra.mxu0 0.0
      %4087 = vmatprep.subr.mxu0 0.0
      %4088 = vmatpush1.msra.mxu0 0.0
      %4089 = vmatprep.subr.mxu0 0.0
      %4090 = vmatpush1.msra.mxu0 0.0
      %4091 = vmatprep.subr.mxu0 0.0
      %4092 = vmatpush1.msra.mxu0 0.0
      %4093 = vmatprep.subr.mxu0 0.0
      %4094 = vmatpush1.msra.mxu0 0.0
      %4095 = vmatprep.subr.mxu0 0.0
      %4096 = vmatpush1.msra.mxu0 0.0
      %4097 = vmatprep.subr.mxu0 0.0
      %4098 = vmatpush1.msra.mxu0 0.0
      %4099 = vmatprep.subr.mxu0 0.0
      %4100 = vmatpush1.msra.mxu0 0.0
      %4101 = vmatprep.subr.mxu0 0.0
      %4102 = vmatpush1.msra.mxu0 0.0
      %4103 = vmatprep.subr.mxu0 0.0
      %4104 = vmatpush1.msra.mxu0 0.0
      %4105 = vmatprep.subr.mxu0 0.0
      %4106 = vmatpush1.msra.mxu0 %v4070
      %4107 = vmatprep.subr.mxu0 0.0
      %4108 = vmatpush2.msra.mxu0 0.0
      %4109 = vmatprep.subr.mxu0 0.0
      %4110 = vmatpush2.msra.mxu0 0.0
      %4111 = vmatprep.subr.mxu0 0.0
      %4112 = vmatpush2.msra.mxu0 0.0
      %4113 = vmatprep.subr.mxu0 0.0
      %4114 = vmatpush2.msra.mxu0 0.0
      %4115 = vmatprep.subr.mxu0 0.0
      %4116 = vmatpush2.msra.mxu0 0.0
      %4117 = vmatprep.subr.mxu0 0.0
      %4118 = vmatpush2.msra.mxu0 0.0
      %4119 = vmatprep.subr.mxu0 0.0
      %4120 = vmatpush2.msra.mxu0 0.0
      %4121 = vmatprep.subr.mxu0 0.0
      %4122 = vmatpush2.msra.mxu0 0.0
      %4123 = vmatprep.subr.mxu0 0.0
      %4124 = vmatpush2.msra.mxu0 0.0
      %4125 = vmatprep.subr.mxu0 0.0
      %4126 = vmatpush2.msra.mxu0 0.0
      %4127 = vmatprep.subr.mxu0 0.0
      %4128 = vmatpush2.msra.mxu0 0.0
      %4129 = vmatprep.subr.mxu0 0.0
      %4130 = vmatpush2.msra.mxu0 0.0
      %4131 = vmatprep.subr.mxu0 0.0
      %4132 = vmatpush2.msra.mxu0 0.0
      %4133 = vmatprep.subr.mxu0 0.0
      %4134 = vmatpush2.msra.mxu0 0.0
      %4135 = vmatprep.subr.mxu0 0.0
      %4136 = vmatpush2.msra.mxu0 0.0
      %4137 = vmatprep.subr.mxu0 0.0
      %4138 = vmatpush2.msra.mxu0 0.0
      %4139 = vmatprep.mubr.f32.mxu0 0.0
      %4140 = vmatmul.mubr.f32.gmra.mxu0 %v4073
      %v4141 = vpop.f32.mrf.mxu0
      %v4142 = vadd.f32 0.0, %v4141
      %v4143 = vpop.f32.mrf.mxu0
      %4144 = vdwg.mxu0
      %v4145 = vadd.f32 %v4063, %v4142
      %s4146 = scalar_lea.vmem %s14, 32
      %v4147 = vld [vmem:[%s4146] sm:$0xff]
      %4148 = vrot.lane.b32.xlu0 %v3823, 64
      %v4149 = vpop.permute.xlu0 %4148
      %4150 = vrot.lane.b32.xlu0 %v3825, 64
      %v4151 = vpop.permute.xlu0 %4150
      %v4152 = vsel %vm1155, %v4149, %v4151
      %v4155 = vsel %vm2163, %v4147, 0
      %4157 = vmatprep.subr.mxu0 0.0
      %4158 = vmatpush1.msra.mxu0 0.0
      %4159 = vmatprep.subr.mxu0 0.0
      %4160 = vmatpush1.msra.mxu0 0.0
      %4161 = vmatprep.subr.mxu0 0.0
      %4162 = vmatpush1.msra.mxu0 0.0
      %4163 = vmatprep.subr.mxu0 0.0
      %4164 = vmatpush1.msra.mxu0 0.0
      %4165 = vmatprep.subr.mxu0 0.0
      %4166 = vmatpush1.msra.mxu0 0.0
      %4167 = vmatprep.subr.mxu0 0.0
      %4168 = vmatpush1.msra.mxu0 0.0
      %4169 = vmatprep.subr.mxu0 0.0
      %4170 = vmatpush1.msra.mxu0 0.0
      %4171 = vmatprep.subr.mxu0 0.0
      %4172 = vmatpush1.msra.mxu0 0.0
      %4173 = vmatprep.subr.mxu0 0.0
      %4174 = vmatpush1.msra.mxu0 0.0
      %4175 = vmatprep.subr.mxu0 0.0
      %4176 = vmatpush1.msra.mxu0 0.0
      %4177 = vmatprep.subr.mxu0 0.0
      %4178 = vmatpush1.msra.mxu0 0.0
      %4179 = vmatprep.subr.mxu0 0.0
      %4180 = vmatpush1.msra.mxu0 0.0
      %4181 = vmatprep.subr.mxu0 0.0
      %4182 = vmatpush1.msra.mxu0 0.0
      %4183 = vmatprep.subr.mxu0 0.0
      %4184 = vmatpush1.msra.mxu0 0.0
      %4185 = vmatprep.subr.mxu0 0.0
      %4186 = vmatpush1.msra.mxu0 0.0
      %4187 = vmatprep.subr.mxu0 0.0
      %4188 = vmatpush1.msra.mxu0 %v4152
      %4189 = vmatprep.subr.mxu0 0.0
      %4190 = vmatpush2.msra.mxu0 0.0
      %4191 = vmatprep.subr.mxu0 0.0
      %4192 = vmatpush2.msra.mxu0 0.0
      %4193 = vmatprep.subr.mxu0 0.0
      %4194 = vmatpush2.msra.mxu0 0.0
      %4195 = vmatprep.subr.mxu0 0.0
      %4196 = vmatpush2.msra.mxu0 0.0
      %4197 = vmatprep.subr.mxu0 0.0
      %4198 = vmatpush2.msra.mxu0 0.0
      %4199 = vmatprep.subr.mxu0 0.0
      %4200 = vmatpush2.msra.mxu0 0.0
      %4201 = vmatprep.subr.mxu0 0.0
      %4202 = vmatpush2.msra.mxu0 0.0
      %4203 = vmatprep.subr.mxu0 0.0
      %4204 = vmatpush2.msra.mxu0 0.0
      %4205 = vmatprep.subr.mxu0 0.0
      %4206 = vmatpush2.msra.mxu0 0.0
      %4207 = vmatprep.subr.mxu0 0.0
      %4208 = vmatpush2.msra.mxu0 0.0
      %4209 = vmatprep.subr.mxu0 0.0
      %4210 = vmatpush2.msra.mxu0 0.0
      %4211 = vmatprep.subr.mxu0 0.0
      %4212 = vmatpush2.msra.mxu0 0.0
      %4213 = vmatprep.subr.mxu0 0.0
      %4214 = vmatpush2.msra.mxu0 0.0
      %4215 = vmatprep.subr.mxu0 0.0
      %4216 = vmatpush2.msra.mxu0 0.0
      %4217 = vmatprep.subr.mxu0 0.0
      %4218 = vmatpush2.msra.mxu0 0.0
      %4219 = vmatprep.subr.mxu0 0.0
      %4220 = vmatpush2.msra.mxu0 0.0
      %4221 = vmatprep.mubr.f32.mxu0 0.0
      %4222 = vmatmul.mubr.f32.gmra.mxu0 %v4155
      %v4223 = vpop.f32.mrf.mxu0
      %v4224 = vadd.f32 0.0, %v4223
      %v4225 = vpop.f32.mrf.mxu0
      %4226 = vdwg.mxu0
      %v4227 = vadd.f32 %v4145, %v4224
      %s4228 = scalar_lea.vmem %s14, 40
      %v4229 = vld [vmem:[%s4228] sm:$0xff]
      %4230 = vrot.lane.b32.xlu0 %v3823, 48
      %v4231 = vpop.permute.xlu0 %4230
      %4232 = vrot.lane.b32.xlu0 %v3825, 48
      %v4233 = vpop.permute.xlu0 %4232
      %v4234 = vsel %vm2564, %v4231, %v4233
      %v4237 = vsel %vm2163, %v4229, 0
      %4239 = vmatprep.subr.mxu0 0.0
      %4240 = vmatpush1.msra.mxu0 0.0
      %4241 = vmatprep.subr.mxu0 0.0
      %4242 = vmatpush1.msra.mxu0 0.0
      %4243 = vmatprep.subr.mxu0 0.0
      %4244 = vmatpush1.msra.mxu0 0.0
      %4245 = vmatprep.subr.mxu0 0.0
      %4246 = vmatpush1.msra.mxu0 0.0
      %4247 = vmatprep.subr.mxu0 0.0
      %4248 = vmatpush1.msra.mxu0 0.0
      %4249 = vmatprep.subr.mxu0 0.0
      %4250 = vmatpush1.msra.mxu0 0.0
      %4251 = vmatprep.subr.mxu0 0.0
      %4252 = vmatpush1.msra.mxu0 0.0
      %4253 = vmatprep.subr.mxu0 0.0
      %4254 = vmatpush1.msra.mxu0 0.0
      %4255 = vmatprep.subr.mxu0 0.0
      %4256 = vmatpush1.msra.mxu0 0.0
      %4257 = vmatprep.subr.mxu0 0.0
      %4258 = vmatpush1.msra.mxu0 0.0
      %4259 = vmatprep.subr.mxu0 0.0
      %4260 = vmatpush1.msra.mxu0 0.0
      %4261 = vmatprep.subr.mxu0 0.0
      %4262 = vmatpush1.msra.mxu0 0.0
      %4263 = vmatprep.subr.mxu0 0.0
      %4264 = vmatpush1.msra.mxu0 0.0
      %4265 = vmatprep.subr.mxu0 0.0
      %4266 = vmatpush1.msra.mxu0 0.0
      %4267 = vmatprep.subr.mxu0 0.0
      %4268 = vmatpush1.msra.mxu0 0.0
      %4269 = vmatprep.subr.mxu0 0.0
      %4270 = vmatpush1.msra.mxu0 %v4234
      %4271 = vmatprep.subr.mxu0 0.0
      %4272 = vmatpush2.msra.mxu0 0.0
      %4273 = vmatprep.subr.mxu0 0.0
      %4274 = vmatpush2.msra.mxu0 0.0
      %4275 = vmatprep.subr.mxu0 0.0
      %4276 = vmatpush2.msra.mxu0 0.0
      %4277 = vmatprep.subr.mxu0 0.0
      %4278 = vmatpush2.msra.mxu0 0.0
      %4279 = vmatprep.subr.mxu0 0.0
      %4280 = vmatpush2.msra.mxu0 0.0
      %4281 = vmatprep.subr.mxu0 0.0
      %4282 = vmatpush2.msra.mxu0 0.0
      %4283 = vmatprep.subr.mxu0 0.0
      %4284 = vmatpush2.msra.mxu0 0.0
      %4285 = vmatprep.subr.mxu0 0.0
      %4286 = vmatpush2.msra.mxu0 0.0
      %4287 = vmatprep.subr.mxu0 0.0
      %4288 = vmatpush2.msra.mxu0 0.0
      %4289 = vmatprep.subr.mxu0 0.0
      %4290 = vmatpush2.msra.mxu0 0.0
      %4291 = vmatprep.subr.mxu0 0.0
      %4292 = vmatpush2.msra.mxu0 0.0
      %4293 = vmatprep.subr.mxu0 0.0
      %4294 = vmatpush2.msra.mxu0 0.0
      %4295 = vmatprep.subr.mxu0 0.0
      %4296 = vmatpush2.msra.mxu0 0.0
      %4297 = vmatprep.subr.mxu0 0.0
      %4298 = vmatpush2.msra.mxu0 0.0
      %4299 = vmatprep.subr.mxu0 0.0
      %4300 = vmatpush2.msra.mxu0 0.0
      %4301 = vmatprep.subr.mxu0 0.0
      %4302 = vmatpush2.msra.mxu0 0.0
      %4303 = vmatprep.mubr.f32.mxu0 0.0
      %4304 = vmatmul.mubr.f32.gmra.mxu0 %v4237
      %v4305 = vpop.f32.mrf.mxu0
      %v4306 = vadd.f32 0.0, %v4305
      %v4307 = vpop.f32.mrf.mxu0
      %4308 = vdwg.mxu0
      %v4309 = vadd.f32 %v4227, %v4306
      %s4310 = scalar_lea.vmem %s14, 48
      %v4311 = vld [vmem:[%s4310] sm:$0xff]
      %4312 = vrot.lane.b32.xlu0 %v3823, 32
      %v4313 = vpop.permute.xlu0 %4312
      %4314 = vrot.lane.b32.xlu0 %v3825, 32
      %v4315 = vpop.permute.xlu0 %4314
      %v4316 = vsel %vm2647, %v4313, %v4315
      %v4319 = vsel %vm2163, %v4311, 0
      %4321 = vmatprep.subr.mxu0 0.0
      %4322 = vmatpush1.msra.mxu0 0.0
      %4323 = vmatprep.subr.mxu0 0.0
      %4324 = vmatpush1.msra.mxu0 0.0
      %4325 = vmatprep.subr.mxu0 0.0
      %4326 = vmatpush1.msra.mxu0 0.0
      %4327 = vmatprep.subr.mxu0 0.0
      %4328 = vmatpush1.msra.mxu0 0.0
      %4329 = vmatprep.subr.mxu0 0.0
      %4330 = vmatpush1.msra.mxu0 0.0
      %4331 = vmatprep.subr.mxu0 0.0
      %4332 = vmatpush1.msra.mxu0 0.0
      %4333 = vmatprep.subr.mxu0 0.0
      %4334 = vmatpush1.msra.mxu0 0.0
      %4335 = vmatprep.subr.mxu0 0.0
      %4336 = vmatpush1.msra.mxu0 0.0
      %4337 = vmatprep.subr.mxu0 0.0
      %4338 = vmatpush1.msra.mxu0 0.0
      %4339 = vmatprep.subr.mxu0 0.0
      %4340 = vmatpush1.msra.mxu0 0.0
      %4341 = vmatprep.subr.mxu0 0.0
      %4342 = vmatpush1.msra.mxu0 0.0
      %4343 = vmatprep.subr.mxu0 0.0
      %4344 = vmatpush1.msra.mxu0 0.0
      %4345 = vmatprep.subr.mxu0 0.0
      %4346 = vmatpush1.msra.mxu0 0.0
      %4347 = vmatprep.subr.mxu0 0.0
      %4348 = vmatpush1.msra.mxu0 0.0
      %4349 = vmatprep.subr.mxu0 0.0
      %4350 = vmatpush1.msra.mxu0 0.0
      %4351 = vmatprep.subr.mxu0 0.0
      %4352 = vmatpush1.msra.mxu0 %v4316
      %4353 = vmatprep.subr.mxu0 0.0
      %4354 = vmatpush2.msra.mxu0 0.0
      %4355 = vmatprep.subr.mxu0 0.0
      %4356 = vmatpush2.msra.mxu0 0.0
      %4357 = vmatprep.subr.mxu0 0.0
      %4358 = vmatpush2.msra.mxu0 0.0
      %4359 = vmatprep.subr.mxu0 0.0
      %4360 = vmatpush2.msra.mxu0 0.0
      %4361 = vmatprep.subr.mxu0 0.0
      %4362 = vmatpush2.msra.mxu0 0.0
      %4363 = vmatprep.subr.mxu0 0.0
      %4364 = vmatpush2.msra.mxu0 0.0
      %4365 = vmatprep.subr.mxu0 0.0
      %4366 = vmatpush2.msra.mxu0 0.0
      %4367 = vmatprep.subr.mxu0 0.0
      %4368 = vmatpush2.msra.mxu0 0.0
      %4369 = vmatprep.subr.mxu0 0.0
      %4370 = vmatpush2.msra.mxu0 0.0
      %4371 = vmatprep.subr.mxu0 0.0
      %4372 = vmatpush2.msra.mxu0 0.0
      %4373 = vmatprep.subr.mxu0 0.0
      %4374 = vmatpush2.msra.mxu0 0.0
      %4375 = vmatprep.subr.mxu0 0.0
      %4376 = vmatpush2.msra.mxu0 0.0
      %4377 = vmatprep.subr.mxu0 0.0
      %4378 = vmatpush2.msra.mxu0 0.0
      %4379 = vmatprep.subr.mxu0 0.0
      %4380 = vmatpush2.msra.mxu0 0.0
      %4381 = vmatprep.subr.mxu0 0.0
      %4382 = vmatpush2.msra.mxu0 0.0
      %4383 = vmatprep.subr.mxu0 0.0
      %4384 = vmatpush2.msra.mxu0 0.0
      %4385 = vmatprep.mubr.f32.mxu0 0.0
      %4386 = vmatmul.mubr.f32.gmra.mxu0 %v4319
      %v4387 = vpop.f32.mrf.mxu0
      %v4388 = vadd.f32 0.0, %v4387
      %v4389 = vpop.f32.mrf.mxu0
      %4390 = vdwg.mxu0
      %v4391 = vadd.f32 %v4309, %v4388
      %s4392 = scalar_lea.vmem %s14, 56
      %v4393 = vld [vmem:[%s4392] sm:$0xff]
      %4394 = vrot.lane.b32.xlu0 %v3823, 16
      %v4395 = vpop.permute.xlu0 %4394
      %4396 = vrot.lane.b32.xlu0 %v3825, 16
      %v4397 = vpop.permute.xlu0 %4396
      %v4398 = vsel %vm2730, %v4395, %v4397
      %v4401 = vsel %vm2163, %v4393, 0
      %4403 = vmatprep.subr.mxu0 0.0
      %4404 = vmatpush1.msra.mxu0 0.0
      %4405 = vmatprep.subr.mxu0 0.0
      %4406 = vmatpush1.msra.mxu0 0.0
      %4407 = vmatprep.subr.mxu0 0.0
      %4408 = vmatpush1.msra.mxu0 0.0
      %4409 = vmatprep.subr.mxu0 0.0
      %4410 = vmatpush1.msra.mxu0 0.0
      %4411 = vmatprep.subr.mxu0 0.0
      %4412 = vmatpush1.msra.mxu0 0.0
      %4413 = vmatprep.subr.mxu0 0.0
      %4414 = vmatpush1.msra.mxu0 0.0
      %4415 = vmatprep.subr.mxu0 0.0
      %4416 = vmatpush1.msra.mxu0 0.0
      %4417 = vmatprep.subr.mxu0 0.0
      %4418 = vmatpush1.msra.mxu0 0.0
      %4419 = vmatprep.subr.mxu0 0.0
      %4420 = vmatpush1.msra.mxu0 0.0
      %4421 = vmatprep.subr.mxu0 0.0
      %4422 = vmatpush1.msra.mxu0 0.0
      %4423 = vmatprep.subr.mxu0 0.0
      %4424 = vmatpush1.msra.mxu0 0.0
      %4425 = vmatprep.subr.mxu0 0.0
      %4426 = vmatpush1.msra.mxu0 0.0
      %4427 = vmatprep.subr.mxu0 0.0
      %4428 = vmatpush1.msra.mxu0 0.0
      %4429 = vmatprep.subr.mxu0 0.0
      %4430 = vmatpush1.msra.mxu0 0.0
      %4431 = vmatprep.subr.mxu0 0.0
      %4432 = vmatpush1.msra.mxu0 0.0
      %4433 = vmatprep.subr.mxu0 0.0
      %4434 = vmatpush1.msra.mxu0 %v4398
      %4435 = vmatprep.subr.mxu0 0.0
      %4436 = vmatpush2.msra.mxu0 0.0
      %4437 = vmatprep.subr.mxu0 0.0
      %4438 = vmatpush2.msra.mxu0 0.0
      %4439 = vmatprep.subr.mxu0 0.0
      %4440 = vmatpush2.msra.mxu0 0.0
      %4441 = vmatprep.subr.mxu0 0.0
      %4442 = vmatpush2.msra.mxu0 0.0
      %4443 = vmatprep.subr.mxu0 0.0
      %4444 = vmatpush2.msra.mxu0 0.0
      %4445 = vmatprep.subr.mxu0 0.0
      %4446 = vmatpush2.msra.mxu0 0.0
      %4447 = vmatprep.subr.mxu0 0.0
      %4448 = vmatpush2.msra.mxu0 0.0
      %4449 = vmatprep.subr.mxu0 0.0
      %4450 = vmatpush2.msra.mxu0 0.0
      %4451 = vmatprep.subr.mxu0 0.0
      %4452 = vmatpush2.msra.mxu0 0.0
      %4453 = vmatprep.subr.mxu0 0.0
      %4454 = vmatpush2.msra.mxu0 0.0
      %4455 = vmatprep.subr.mxu0 0.0
      %4456 = vmatpush2.msra.mxu0 0.0
      %4457 = vmatprep.subr.mxu0 0.0
      %4458 = vmatpush2.msra.mxu0 0.0
      %4459 = vmatprep.subr.mxu0 0.0
      %4460 = vmatpush2.msra.mxu0 0.0
      %4461 = vmatprep.subr.mxu0 0.0
      %4462 = vmatpush2.msra.mxu0 0.0
      %4463 = vmatprep.subr.mxu0 0.0
      %4464 = vmatpush2.msra.mxu0 0.0
      %4465 = vmatprep.subr.mxu0 0.0
      %4466 = vmatpush2.msra.mxu0 0.0
      %4467 = vmatprep.mubr.f32.mxu0 0.0
      %4468 = vmatmul.mubr.f32.gmra.mxu0 %v4401
      %v4469 = vpop.f32.mrf.mxu0
      %v4470 = vadd.f32 0.0, %v4469
      %v4471 = vpop.f32.mrf.mxu0
      %4472 = vdwg.mxu0
      %v4473 = vadd.f32 %v4391, %v4470
      %s4474 = scalar_lea.vmem %s14, 64
      %v4475 = vld [vmem:[%s4474] sm:$0xff]
      %v4477 = vsel %vm2163, %v4475, 0
      %4479 = vmatprep.subr.mxu0 0.0
      %4480 = vmatpush1.msra.mxu0 0.0
      %4481 = vmatprep.subr.mxu0 0.0
      %4482 = vmatpush1.msra.mxu0 0.0
      %4483 = vmatprep.subr.mxu0 0.0
      %4484 = vmatpush1.msra.mxu0 0.0
      %4485 = vmatprep.subr.mxu0 0.0
      %4486 = vmatpush1.msra.mxu0 0.0
      %4487 = vmatprep.subr.mxu0 0.0
      %4488 = vmatpush1.msra.mxu0 0.0
      %4489 = vmatprep.subr.mxu0 0.0
      %4490 = vmatpush1.msra.mxu0 0.0
      %4491 = vmatprep.subr.mxu0 0.0
      %4492 = vmatpush1.msra.mxu0 0.0
      %4493 = vmatprep.subr.mxu0 0.0
      %4494 = vmatpush1.msra.mxu0 0.0
      %4495 = vmatprep.subr.mxu0 0.0
      %4496 = vmatpush1.msra.mxu0 0.0
      %4497 = vmatprep.subr.mxu0 0.0
      %4498 = vmatpush1.msra.mxu0 0.0
      %4499 = vmatprep.subr.mxu0 0.0
      %4500 = vmatpush1.msra.mxu0 0.0
      %4501 = vmatprep.subr.mxu0 0.0
      %4502 = vmatpush1.msra.mxu0 0.0
      %4503 = vmatprep.subr.mxu0 0.0
      %4504 = vmatpush1.msra.mxu0 0.0
      %4505 = vmatprep.subr.mxu0 0.0
      %4506 = vmatpush1.msra.mxu0 0.0
      %4507 = vmatprep.subr.mxu0 0.0
      %4508 = vmatpush1.msra.mxu0 0.0
      %4509 = vmatprep.subr.mxu0 0.0
      %4510 = vmatpush1.msra.mxu0 %v3825
      %4511 = vmatprep.subr.mxu0 0.0
      %4512 = vmatpush2.msra.mxu0 0.0
      %4513 = vmatprep.subr.mxu0 0.0
      %4514 = vmatpush2.msra.mxu0 0.0
      %4515 = vmatprep.subr.mxu0 0.0
      %4516 = vmatpush2.msra.mxu0 0.0
      %4517 = vmatprep.subr.mxu0 0.0
      %4518 = vmatpush2.msra.mxu0 0.0
      %4519 = vmatprep.subr.mxu0 0.0
      %4520 = vmatpush2.msra.mxu0 0.0
      %4521 = vmatprep.subr.mxu0 0.0
      %4522 = vmatpush2.msra.mxu0 0.0
      %4523 = vmatprep.subr.mxu0 0.0
      %4524 = vmatpush2.msra.mxu0 0.0
      %4525 = vmatprep.subr.mxu0 0.0
      %4526 = vmatpush2.msra.mxu0 0.0
      %4527 = vmatprep.subr.mxu0 0.0
      %4528 = vmatpush2.msra.mxu0 0.0
      %4529 = vmatprep.subr.mxu0 0.0
      %4530 = vmatpush2.msra.mxu0 0.0
      %4531 = vmatprep.subr.mxu0 0.0
      %4532 = vmatpush2.msra.mxu0 0.0
      %4533 = vmatprep.subr.mxu0 0.0
      %4534 = vmatpush2.msra.mxu0 0.0
      %4535 = vmatprep.subr.mxu0 0.0
      %4536 = vmatpush2.msra.mxu0 0.0
      %4537 = vmatprep.subr.mxu0 0.0
      %4538 = vmatpush2.msra.mxu0 0.0
      %4539 = vmatprep.subr.mxu0 0.0
      %4540 = vmatpush2.msra.mxu0 0.0
      %4541 = vmatprep.subr.mxu0 0.0
      %4542 = vmatpush2.msra.mxu0 0.0
      %4543 = vmatprep.mubr.f32.mxu0 0.0
      %4544 = vmatmul.mubr.f32.gmra.mxu0 %v4477
      %v4545 = vpop.f32.mrf.mxu0
      %v4546 = vadd.f32 0.0, %v4545
      %v4547 = vpop.f32.mrf.mxu0
      %4548 = vdwg.mxu0
      %v4549 = vadd.f32 %v4473, %v4546
      %v4550 = vld [vmem:[#allocation3 + $0x8] sm:$0xff]
      %v4551 = vld [vmem:[#allocation3 + $0x10] sm:$0xff]
      %s4552 = scalar_lea.vmem %s14, 72
      %v4553 = vld [vmem:[%s4552] sm:$0xff]
      %4556 = vrot.lane.b32.xlu0 %v4550, 112
      %v4557 = vpop.permute.xlu0 %4556
      %4558 = vrot.lane.b32.xlu0 %v4551, 112
      %v4559 = vpop.permute.xlu0 %4558
      %v4560 = vsel %vm2160, %v4557, %v4559
      %v4563 = vsel %vm2163, %v4553, 0
      %4565 = vmatprep.subr.mxu0 0.0
      %4566 = vmatpush1.msra.mxu0 0.0
      %4567 = vmatprep.subr.mxu0 0.0
      %4568 = vmatpush1.msra.mxu0 0.0
      %4569 = vmatprep.subr.mxu0 0.0
      %4570 = vmatpush1.msra.mxu0 0.0
      %4571 = vmatprep.subr.mxu0 0.0
      %4572 = vmatpush1.msra.mxu0 0.0
      %4573 = vmatprep.subr.mxu0 0.0
      %4574 = vmatpush1.msra.mxu0 0.0
      %4575 = vmatprep.subr.mxu0 0.0
      %4576 = vmatpush1.msra.mxu0 0.0
      %4577 = vmatprep.subr.mxu0 0.0
      %4578 = vmatpush1.msra.mxu0 0.0
      %4579 = vmatprep.subr.mxu0 0.0
      %4580 = vmatpush1.msra.mxu0 0.0
      %4581 = vmatprep.subr.mxu0 0.0
      %4582 = vmatpush1.msra.mxu0 0.0
      %4583 = vmatprep.subr.mxu0 0.0
      %4584 = vmatpush1.msra.mxu0 0.0
      %4585 = vmatprep.subr.mxu0 0.0
      %4586 = vmatpush1.msra.mxu0 0.0
      %4587 = vmatprep.subr.mxu0 0.0
      %4588 = vmatpush1.msra.mxu0 0.0
      %4589 = vmatprep.subr.mxu0 0.0
      %4590 = vmatpush1.msra.mxu0 0.0
      %4591 = vmatprep.subr.mxu0 0.0
      %4592 = vmatpush1.msra.mxu0 0.0
      %4593 = vmatprep.subr.mxu0 0.0
      %4594 = vmatpush1.msra.mxu0 0.0
      %4595 = vmatprep.subr.mxu0 0.0
      %4596 = vmatpush1.msra.mxu0 %v4560
      %4597 = vmatprep.subr.mxu0 0.0
      %4598 = vmatpush2.msra.mxu0 0.0
      %4599 = vmatprep.subr.mxu0 0.0
      %4600 = vmatpush2.msra.mxu0 0.0
      %4601 = vmatprep.subr.mxu0 0.0
      %4602 = vmatpush2.msra.mxu0 0.0
      %4603 = vmatprep.subr.mxu0 0.0
      %4604 = vmatpush2.msra.mxu0 0.0
      %4605 = vmatprep.subr.mxu0 0.0
      %4606 = vmatpush2.msra.mxu0 0.0
      %4607 = vmatprep.subr.mxu0 0.0
      %4608 = vmatpush2.msra.mxu0 0.0
      %4609 = vmatprep.subr.mxu0 0.0
      %4610 = vmatpush2.msra.mxu0 0.0
      %4611 = vmatprep.subr.mxu0 0.0
      %4612 = vmatpush2.msra.mxu0 0.0
      %4613 = vmatprep.subr.mxu0 0.0
      %4614 = vmatpush2.msra.mxu0 0.0
      %4615 = vmatprep.subr.mxu0 0.0
      %4616 = vmatpush2.msra.mxu0 0.0
      %4617 = vmatprep.subr.mxu0 0.0
      %4618 = vmatpush2.msra.mxu0 0.0
      %4619 = vmatprep.subr.mxu0 0.0
      %4620 = vmatpush2.msra.mxu0 0.0
      %4621 = vmatprep.subr.mxu0 0.0
      %4622 = vmatpush2.msra.mxu0 0.0
      %4623 = vmatprep.subr.mxu0 0.0
      %4624 = vmatpush2.msra.mxu0 0.0
      %4625 = vmatprep.subr.mxu0 0.0
      %4626 = vmatpush2.msra.mxu0 0.0
      %4627 = vmatprep.subr.mxu0 0.0
      %4628 = vmatpush2.msra.mxu0 0.0
      %4629 = vmatprep.mubr.f32.mxu0 0.0
      %4630 = vmatmul.mubr.f32.gmra.mxu0 %v4563
      %v4631 = vpop.f32.mrf.mxu0
      %v4632 = vadd.f32 0.0, %v4631
      %v4633 = vpop.f32.mrf.mxu0
      %4634 = vdwg.mxu0
      %v4635 = vadd.f32 %v4549, %v4632
      %s4636 = scalar_lea.vmem %s14, 80
      %v4637 = vld [vmem:[%s4636] sm:$0xff]
      %4638 = vrot.lane.b32.xlu0 %v4550, 96
      %v4639 = vpop.permute.xlu0 %4638
      %4640 = vrot.lane.b32.xlu0 %v4551, 96
      %v4641 = vpop.permute.xlu0 %4640
      %v4642 = vsel %vm2316, %v4639, %v4641
      %v4645 = vsel %vm2163, %v4637, 0
      %4647 = vmatprep.subr.mxu0 0.0
      %4648 = vmatpush1.msra.mxu0 0.0
      %4649 = vmatprep.subr.mxu0 0.0
      %4650 = vmatpush1.msra.mxu0 0.0
      %4651 = vmatprep.subr.mxu0 0.0
      %4652 = vmatpush1.msra.mxu0 0.0
      %4653 = vmatprep.subr.mxu0 0.0
      %4654 = vmatpush1.msra.mxu0 0.0
      %4655 = vmatprep.subr.mxu0 0.0
      %4656 = vmatpush1.msra.mxu0 0.0
      %4657 = vmatprep.subr.mxu0 0.0
      %4658 = vmatpush1.msra.mxu0 0.0
      %4659 = vmatprep.subr.mxu0 0.0
      %4660 = vmatpush1.msra.mxu0 0.0
      %4661 = vmatprep.subr.mxu0 0.0
      %4662 = vmatpush1.msra.mxu0 0.0
      %4663 = vmatprep.subr.mxu0 0.0
      %4664 = vmatpush1.msra.mxu0 0.0
      %4665 = vmatprep.subr.mxu0 0.0
      %4666 = vmatpush1.msra.mxu0 0.0
      %4667 = vmatprep.subr.mxu0 0.0
      %4668 = vmatpush1.msra.mxu0 0.0
      %4669 = vmatprep.subr.mxu0 0.0
      %4670 = vmatpush1.msra.mxu0 0.0
      %4671 = vmatprep.subr.mxu0 0.0
      %4672 = vmatpush1.msra.mxu0 0.0
      %4673 = vmatprep.subr.mxu0 0.0
      %4674 = vmatpush1.msra.mxu0 0.0
      %4675 = vmatprep.subr.mxu0 0.0
      %4676 = vmatpush1.msra.mxu0 0.0
      %4677 = vmatprep.subr.mxu0 0.0
      %4678 = vmatpush1.msra.mxu0 %v4642
      %4679 = vmatprep.subr.mxu0 0.0
      %4680 = vmatpush2.msra.mxu0 0.0
      %4681 = vmatprep.subr.mxu0 0.0
      %4682 = vmatpush2.msra.mxu0 0.0
      %4683 = vmatprep.subr.mxu0 0.0
      %4684 = vmatpush2.msra.mxu0 0.0
      %4685 = vmatprep.subr.mxu0 0.0
      %4686 = vmatpush2.msra.mxu0 0.0
      %4687 = vmatprep.subr.mxu0 0.0
      %4688 = vmatpush2.msra.mxu0 0.0
      %4689 = vmatprep.subr.mxu0 0.0
      %4690 = vmatpush2.msra.mxu0 0.0
      %4691 = vmatprep.subr.mxu0 0.0
      %4692 = vmatpush2.msra.mxu0 0.0
      %4693 = vmatprep.subr.mxu0 0.0
      %4694 = vmatpush2.msra.mxu0 0.0
      %4695 = vmatprep.subr.mxu0 0.0
      %4696 = vmatpush2.msra.mxu0 0.0
      %4697 = vmatprep.subr.mxu0 0.0
      %4698 = vmatpush2.msra.mxu0 0.0
      %4699 = vmatprep.subr.mxu0 0.0
      %4700 = vmatpush2.msra.mxu0 0.0
      %4701 = vmatprep.subr.mxu0 0.0
      %4702 = vmatpush2.msra.mxu0 0.0
      %4703 = vmatprep.subr.mxu0 0.0
      %4704 = vmatpush2.msra.mxu0 0.0
      %4705 = vmatprep.subr.mxu0 0.0
      %4706 = vmatpush2.msra.mxu0 0.0
      %4707 = vmatprep.subr.mxu0 0.0
      %4708 = vmatpush2.msra.mxu0 0.0
      %4709 = vmatprep.subr.mxu0 0.0
      %4710 = vmatpush2.msra.mxu0 0.0
      %4711 = vmatprep.mubr.f32.mxu0 0.0
      %4712 = vmatmul.mubr.f32.gmra.mxu0 %v4645
      %v4713 = vpop.f32.mrf.mxu0
      %v4714 = vadd.f32 0.0, %v4713
      %v4715 = vpop.f32.mrf.mxu0
      %4716 = vdwg.mxu0
      %v4717 = vadd.f32 %v4635, %v4714
      %s4718 = scalar_lea.vmem %s14, 88
      %v4719 = vld [vmem:[%s4718] sm:$0xff]
      %4720 = vrot.lane.b32.xlu0 %v4550, 80
      %v4721 = vpop.permute.xlu0 %4720
      %4722 = vrot.lane.b32.xlu0 %v4551, 80
      %v4723 = vpop.permute.xlu0 %4722
      %v4724 = vsel %vm2399, %v4721, %v4723
      %v4727 = vsel %vm2163, %v4719, 0
      %4729 = vmatprep.subr.mxu0 0.0
      %4730 = vmatpush1.msra.mxu0 0.0
      %4731 = vmatprep.subr.mxu0 0.0
      %4732 = vmatpush1.msra.mxu0 0.0
      %4733 = vmatprep.subr.mxu0 0.0
      %4734 = vmatpush1.msra.mxu0 0.0
      %4735 = vmatprep.subr.mxu0 0.0
      %4736 = vmatpush1.msra.mxu0 0.0
      %4737 = vmatprep.subr.mxu0 0.0
      %4738 = vmatpush1.msra.mxu0 0.0
      %4739 = vmatprep.subr.mxu0 0.0
      %4740 = vmatpush1.msra.mxu0 0.0
      %4741 = vmatprep.subr.mxu0 0.0
      %4742 = vmatpush1.msra.mxu0 0.0
      %4743 = vmatprep.subr.mxu0 0.0
      %4744 = vmatpush1.msra.mxu0 0.0
      %4745 = vmatprep.subr.mxu0 0.0
      %4746 = vmatpush1.msra.mxu0 0.0
      %4747 = vmatprep.subr.mxu0 0.0
      %4748 = vmatpush1.msra.mxu0 0.0
      %4749 = vmatprep.subr.mxu0 0.0
      %4750 = vmatpush1.msra.mxu0 0.0
      %4751 = vmatprep.subr.mxu0 0.0
      %4752 = vmatpush1.msra.mxu0 0.0
      %4753 = vmatprep.subr.mxu0 0.0
      %4754 = vmatpush1.msra.mxu0 0.0
      %4755 = vmatprep.subr.mxu0 0.0
      %4756 = vmatpush1.msra.mxu0 0.0
      %4757 = vmatprep.subr.mxu0 0.0
      %4758 = vmatpush1.msra.mxu0 0.0
      %4759 = vmatprep.subr.mxu0 0.0
      %4760 = vmatpush1.msra.mxu0 %v4724
      %4761 = vmatprep.subr.mxu0 0.0
      %4762 = vmatpush2.msra.mxu0 0.0
      %4763 = vmatprep.subr.mxu0 0.0
      %4764 = vmatpush2.msra.mxu0 0.0
      %4765 = vmatprep.subr.mxu0 0.0
      %4766 = vmatpush2.msra.mxu0 0.0
      %4767 = vmatprep.subr.mxu0 0.0
      %4768 = vmatpush2.msra.mxu0 0.0
      %4769 = vmatprep.subr.mxu0 0.0
      %4770 = vmatpush2.msra.mxu0 0.0
      %4771 = vmatprep.subr.mxu0 0.0
      %4772 = vmatpush2.msra.mxu0 0.0
      %4773 = vmatprep.subr.mxu0 0.0
      %4774 = vmatpush2.msra.mxu0 0.0
      %4775 = vmatprep.subr.mxu0 0.0
      %4776 = vmatpush2.msra.mxu0 0.0
      %4777 = vmatprep.subr.mxu0 0.0
      %4778 = vmatpush2.msra.mxu0 0.0
      %4779 = vmatprep.subr.mxu0 0.0
      %4780 = vmatpush2.msra.mxu0 0.0
      %4781 = vmatprep.subr.mxu0 0.0
      %4782 = vmatpush2.msra.mxu0 0.0
      %4783 = vmatprep.subr.mxu0 0.0
      %4784 = vmatpush2.msra.mxu0 0.0
      %4785 = vmatprep.subr.mxu0 0.0
      %4786 = vmatpush2.msra.mxu0 0.0
      %4787 = vmatprep.subr.mxu0 0.0
      %4788 = vmatpush2.msra.mxu0 0.0
      %4789 = vmatprep.subr.mxu0 0.0
      %4790 = vmatpush2.msra.mxu0 0.0
      %4791 = vmatprep.subr.mxu0 0.0
      %4792 = vmatpush2.msra.mxu0 0.0
      %4793 = vmatprep.mubr.f32.mxu0 0.0
      %4794 = vmatmul.mubr.f32.gmra.mxu0 %v4727
      %v4795 = vpop.f32.mrf.mxu0
      %v4796 = vadd.f32 0.0, %v4795
      %v4797 = vpop.f32.mrf.mxu0
      %4798 = vdwg.mxu0
      %v4799 = vadd.f32 %v4717, %v4796
      %s4800 = scalar_lea.vmem %s14, 96
      %v4801 = vld [vmem:[%s4800] sm:$0xff]
      %4802 = vrot.lane.b32.xlu0 %v4550, 64
      %v4803 = vpop.permute.xlu0 %4802
      %4804 = vrot.lane.b32.xlu0 %v4551, 64
      %v4805 = vpop.permute.xlu0 %4804
      %v4806 = vsel %vm1155, %v4803, %v4805
      %v4809 = vsel %vm2163, %v4801, 0
      %4811 = vmatprep.subr.mxu0 0.0
      %4812 = vmatpush1.msra.mxu0 0.0
      %4813 = vmatprep.subr.mxu0 0.0
      %4814 = vmatpush1.msra.mxu0 0.0
      %4815 = vmatprep.subr.mxu0 0.0
      %4816 = vmatpush1.msra.mxu0 0.0
      %4817 = vmatprep.subr.mxu0 0.0
      %4818 = vmatpush1.msra.mxu0 0.0
      %4819 = vmatprep.subr.mxu0 0.0
      %4820 = vmatpush1.msra.mxu0 0.0
      %4821 = vmatprep.subr.mxu0 0.0
      %4822 = vmatpush1.msra.mxu0 0.0
      %4823 = vmatprep.subr.mxu0 0.0
      %4824 = vmatpush1.msra.mxu0 0.0
      %4825 = vmatprep.subr.mxu0 0.0
      %4826 = vmatpush1.msra.mxu0 0.0
      %4827 = vmatprep.subr.mxu0 0.0
      %4828 = vmatpush1.msra.mxu0 0.0
      %4829 = vmatprep.subr.mxu0 0.0
      %4830 = vmatpush1.msra.mxu0 0.0
      %4831 = vmatprep.subr.mxu0 0.0
      %4832 = vmatpush1.msra.mxu0 0.0
      %4833 = vmatprep.subr.mxu0 0.0
      %4834 = vmatpush1.msra.mxu0 0.0
      %4835 = vmatprep.subr.mxu0 0.0
      %4836 = vmatpush1.msra.mxu0 0.0
      %4837 = vmatprep.subr.mxu0 0.0
      %4838 = vmatpush1.msra.mxu0 0.0
      %4839 = vmatprep.subr.mxu0 0.0
      %4840 = vmatpush1.msra.mxu0 0.0
      %4841 = vmatprep.subr.mxu0 0.0
      %4842 = vmatpush1.msra.mxu0 %v4806
      %4843 = vmatprep.subr.mxu0 0.0
      %4844 = vmatpush2.msra.mxu0 0.0
      %4845 = vmatprep.subr.mxu0 0.0
      %4846 = vmatpush2.msra.mxu0 0.0
      %4847 = vmatprep.subr.mxu0 0.0
      %4848 = vmatpush2.msra.mxu0 0.0
      %4849 = vmatprep.subr.mxu0 0.0
      %4850 = vmatpush2.msra.mxu0 0.0
      %4851 = vmatprep.subr.mxu0 0.0
      %4852 = vmatpush2.msra.mxu0 0.0
      %4853 = vmatprep.subr.mxu0 0.0
      %4854 = vmatpush2.msra.mxu0 0.0
      %4855 = vmatprep.subr.mxu0 0.0
      %4856 = vmatpush2.msra.mxu0 0.0
      %4857 = vmatprep.subr.mxu0 0.0
      %4858 = vmatpush2.msra.mxu0 0.0
      %4859 = vmatprep.subr.mxu0 0.0
      %4860 = vmatpush2.msra.mxu0 0.0
      %4861 = vmatprep.subr.mxu0 0.0
      %4862 = vmatpush2.msra.mxu0 0.0
      %4863 = vmatprep.subr.mxu0 0.0
      %4864 = vmatpush2.msra.mxu0 0.0
      %4865 = vmatprep.subr.mxu0 0.0
      %4866 = vmatpush2.msra.mxu0 0.0
      %4867 = vmatprep.subr.mxu0 0.0
      %4868 = vmatpush2.msra.mxu0 0.0
      %4869 = vmatprep.subr.mxu0 0.0
      %4870 = vmatpush2.msra.mxu0 0.0
      %4871 = vmatprep.subr.mxu0 0.0
      %4872 = vmatpush2.msra.mxu0 0.0
      %4873 = vmatprep.subr.mxu0 0.0
      %4874 = vmatpush2.msra.mxu0 0.0
      %4875 = vmatprep.mubr.f32.mxu0 0.0
      %4876 = vmatmul.mubr.f32.gmra.mxu0 %v4809
      %v4877 = vpop.f32.mrf.mxu0
      %v4878 = vadd.f32 0.0, %v4877
      %v4879 = vpop.f32.mrf.mxu0
      %4880 = vdwg.mxu0
      %v4881 = vadd.f32 %v4799, %v4878
      %s4882 = scalar_lea.vmem %s14, 104
      %v4883 = vld [vmem:[%s4882] sm:$0xff]
      %4884 = vrot.lane.b32.xlu0 %v4550, 48
      %v4885 = vpop.permute.xlu0 %4884
      %4886 = vrot.lane.b32.xlu0 %v4551, 48
      %v4887 = vpop.permute.xlu0 %4886
      %v4888 = vsel %vm2564, %v4885, %v4887
      %v4891 = vsel %vm2163, %v4883, 0
      %4893 = vmatprep.subr.mxu0 0.0
      %4894 = vmatpush1.msra.mxu0 0.0
      %4895 = vmatprep.subr.mxu0 0.0
      %4896 = vmatpush1.msra.mxu0 0.0
      %4897 = vmatprep.subr.mxu0 0.0
      %4898 = vmatpush1.msra.mxu0 0.0
      %4899 = vmatprep.subr.mxu0 0.0
      %4900 = vmatpush1.msra.mxu0 0.0
      %4901 = vmatprep.subr.mxu0 0.0
      %4902 = vmatpush1.msra.mxu0 0.0
      %4903 = vmatprep.subr.mxu0 0.0
      %4904 = vmatpush1.msra.mxu0 0.0
      %4905 = vmatprep.subr.mxu0 0.0
      %4906 = vmatpush1.msra.mxu0 0.0
      %4907 = vmatprep.subr.mxu0 0.0
      %4908 = vmatpush1.msra.mxu0 0.0
      %4909 = vmatprep.subr.mxu0 0.0
      %4910 = vmatpush1.msra.mxu0 0.0
      %4911 = vmatprep.subr.mxu0 0.0
      %4912 = vmatpush1.msra.mxu0 0.0
      %4913 = vmatprep.subr.mxu0 0.0
      %4914 = vmatpush1.msra.mxu0 0.0
      %4915 = vmatprep.subr.mxu0 0.0
      %4916 = vmatpush1.msra.mxu0 0.0
      %4917 = vmatprep.subr.mxu0 0.0
      %4918 = vmatpush1.msra.mxu0 0.0
      %4919 = vmatprep.subr.mxu0 0.0
      %4920 = vmatpush1.msra.mxu0 0.0
      %4921 = vmatprep.subr.mxu0 0.0
      %4922 = vmatpush1.msra.mxu0 0.0
      %4923 = vmatprep.subr.mxu0 0.0
      %4924 = vmatpush1.msra.mxu0 %v4888
      %4925 = vmatprep.subr.mxu0 0.0
      %4926 = vmatpush2.msra.mxu0 0.0
      %4927 = vmatprep.subr.mxu0 0.0
      %4928 = vmatpush2.msra.mxu0 0.0
      %4929 = vmatprep.subr.mxu0 0.0
      %4930 = vmatpush2.msra.mxu0 0.0
      %4931 = vmatprep.subr.mxu0 0.0
      %4932 = vmatpush2.msra.mxu0 0.0
      %4933 = vmatprep.subr.mxu0 0.0
      %4934 = vmatpush2.msra.mxu0 0.0
      %4935 = vmatprep.subr.mxu0 0.0
      %4936 = vmatpush2.msra.mxu0 0.0
      %4937 = vmatprep.subr.mxu0 0.0
      %4938 = vmatpush2.msra.mxu0 0.0
      %4939 = vmatprep.subr.mxu0 0.0
      %4940 = vmatpush2.msra.mxu0 0.0
      %4941 = vmatprep.subr.mxu0 0.0
      %4942 = vmatpush2.msra.mxu0 0.0
      %4943 = vmatprep.subr.mxu0 0.0
      %4944 = vmatpush2.msra.mxu0 0.0
      %4945 = vmatprep.subr.mxu0 0.0
      %4946 = vmatpush2.msra.mxu0 0.0
      %4947 = vmatprep.subr.mxu0 0.0
      %4948 = vmatpush2.msra.mxu0 0.0
      %4949 = vmatprep.subr.mxu0 0.0
      %4950 = vmatpush2.msra.mxu0 0.0
      %4951 = vmatprep.subr.mxu0 0.0
      %4952 = vmatpush2.msra.mxu0 0.0
      %4953 = vmatprep.subr.mxu0 0.0
      %4954 = vmatpush2.msra.mxu0 0.0
      %4955 = vmatprep.subr.mxu0 0.0
      %4956 = vmatpush2.msra.mxu0 0.0
      %4957 = vmatprep.mubr.f32.mxu0 0.0
      %4958 = vmatmul.mubr.f32.gmra.mxu0 %v4891
      %v4959 = vpop.f32.mrf.mxu0
      %v4960 = vadd.f32 0.0, %v4959
      %v4961 = vpop.f32.mrf.mxu0
      %4962 = vdwg.mxu0
      %v4963 = vadd.f32 %v4881, %v4960
      %s4964 = scalar_lea.vmem %s14, 112
      %v4965 = vld [vmem:[%s4964] sm:$0xff]
      %4966 = vrot.lane.b32.xlu0 %v4550, 32
      %v4967 = vpop.permute.xlu0 %4966
      %4968 = vrot.lane.b32.xlu0 %v4551, 32
      %v4969 = vpop.permute.xlu0 %4968
      %v4970 = vsel %vm2647, %v4967, %v4969
      %v4973 = vsel %vm2163, %v4965, 0
      %4975 = vmatprep.subr.mxu0 0.0
      %4976 = vmatpush1.msra.mxu0 0.0
      %4977 = vmatprep.subr.mxu0 0.0
      %4978 = vmatpush1.msra.mxu0 0.0
      %4979 = vmatprep.subr.mxu0 0.0
      %4980 = vmatpush1.msra.mxu0 0.0
      %4981 = vmatprep.subr.mxu0 0.0
      %4982 = vmatpush1.msra.mxu0 0.0
      %4983 = vmatprep.subr.mxu0 0.0
      %4984 = vmatpush1.msra.mxu0 0.0
      %4985 = vmatprep.subr.mxu0 0.0
      %4986 = vmatpush1.msra.mxu0 0.0
      %4987 = vmatprep.subr.mxu0 0.0
      %4988 = vmatpush1.msra.mxu0 0.0
      %4989 = vmatprep.subr.mxu0 0.0
      %4990 = vmatpush1.msra.mxu0 0.0
      %4991 = vmatprep.subr.mxu0 0.0
      %4992 = vmatpush1.msra.mxu0 0.0
      %4993 = vmatprep.subr.mxu0 0.0
      %4994 = vmatpush1.msra.mxu0 0.0
      %4995 = vmatprep.subr.mxu0 0.0
      %4996 = vmatpush1.msra.mxu0 0.0
      %4997 = vmatprep.subr.mxu0 0.0
      %4998 = vmatpush1.msra.mxu0 0.0
      %4999 = vmatprep.subr.mxu0 0.0
      %5000 = vmatpush1.msra.mxu0 0.0
      %5001 = vmatprep.subr.mxu0 0.0
      %5002 = vmatpush1.msra.mxu0 0.0
      %5003 = vmatprep.subr.mxu0 0.0
      %5004 = vmatpush1.msra.mxu0 0.0
      %5005 = vmatprep.subr.mxu0 0.0
      %5006 = vmatpush1.msra.mxu0 %v4970
      %5007 = vmatprep.subr.mxu0 0.0
      %5008 = vmatpush2.msra.mxu0 0.0
      %5009 = vmatprep.subr.mxu0 0.0
      %5010 = vmatpush2.msra.mxu0 0.0
      %5011 = vmatprep.subr.mxu0 0.0
      %5012 = vmatpush2.msra.mxu0 0.0
      %5013 = vmatprep.subr.mxu0 0.0
      %5014 = vmatpush2.msra.mxu0 0.0
      %5015 = vmatprep.subr.mxu0 0.0
      %5016 = vmatpush2.msra.mxu0 0.0
      %5017 = vmatprep.subr.mxu0 0.0
      %5018 = vmatpush2.msra.mxu0 0.0
      %5019 = vmatprep.subr.mxu0 0.0
      %5020 = vmatpush2.msra.mxu0 0.0
      %5021 = vmatprep.subr.mxu0 0.0
      %5022 = vmatpush2.msra.mxu0 0.0
      %5023 = vmatprep.subr.mxu0 0.0
      %5024 = vmatpush2.msra.mxu0 0.0
      %5025 = vmatprep.subr.mxu0 0.0
      %5026 = vmatpush2.msra.mxu0 0.0
      %5027 = vmatprep.subr.mxu0 0.0
      %5028 = vmatpush2.msra.mxu0 0.0
      %5029 = vmatprep.subr.mxu0 0.0
      %5030 = vmatpush2.msra.mxu0 0.0
      %5031 = vmatprep.subr.mxu0 0.0
      %5032 = vmatpush2.msra.mxu0 0.0
      %5033 = vmatprep.subr.mxu0 0.0
      %5034 = vmatpush2.msra.mxu0 0.0
      %5035 = vmatprep.subr.mxu0 0.0
      %5036 = vmatpush2.msra.mxu0 0.0
      %5037 = vmatprep.subr.mxu0 0.0
      %5038 = vmatpush2.msra.mxu0 0.0
      %5039 = vmatprep.mubr.f32.mxu0 0.0
      %5040 = vmatmul.mubr.f32.gmra.mxu0 %v4973
      %v5041 = vpop.f32.mrf.mxu0
      %v5042 = vadd.f32 0.0, %v5041
      %v5043 = vpop.f32.mrf.mxu0
      %5044 = vdwg.mxu0
      %v5045 = vadd.f32 %v4963, %v5042
      %s5046 = scalar_lea.vmem %s14, 120
      %v5047 = vld [vmem:[%s5046] sm:$0xff]
      %5048 = vrot.lane.b32.xlu0 %v4550, 16
      %v5049 = vpop.permute.xlu0 %5048
      %5050 = vrot.lane.b32.xlu0 %v4551, 16
      %v5051 = vpop.permute.xlu0 %5050
      %v5052 = vsel %vm2730, %v5049, %v5051
      %v5055 = vsel %vm2163, %v5047, 0
      %5057 = vmatprep.subr.mxu0 0.0
      %5058 = vmatpush1.msra.mxu0 0.0
      %5059 = vmatprep.subr.mxu0 0.0
      %5060 = vmatpush1.msra.mxu0 0.0
      %5061 = vmatprep.subr.mxu0 0.0
      %5062 = vmatpush1.msra.mxu0 0.0
      %5063 = vmatprep.subr.mxu0 0.0
      %5064 = vmatpush1.msra.mxu0 0.0
      %5065 = vmatprep.subr.mxu0 0.0
      %5066 = vmatpush1.msra.mxu0 0.0
      %5067 = vmatprep.subr.mxu0 0.0
      %5068 = vmatpush1.msra.mxu0 0.0
      %5069 = vmatprep.subr.mxu0 0.0
      %5070 = vmatpush1.msra.mxu0 0.0
      %5071 = vmatprep.subr.mxu0 0.0
      %5072 = vmatpush1.msra.mxu0 0.0
      %5073 = vmatprep.subr.mxu0 0.0
      %5074 = vmatpush1.msra.mxu0 0.0
      %5075 = vmatprep.subr.mxu0 0.0
      %5076 = vmatpush1.msra.mxu0 0.0
      %5077 = vmatprep.subr.mxu0 0.0
      %5078 = vmatpush1.msra.mxu0 0.0
      %5079 = vmatprep.subr.mxu0 0.0
      %5080 = vmatpush1.msra.mxu0 0.0
      %5081 = vmatprep.subr.mxu0 0.0
      %5082 = vmatpush1.msra.mxu0 0.0
      %5083 = vmatprep.subr.mxu0 0.0
      %5084 = vmatpush1.msra.mxu0 0.0
      %5085 = vmatprep.subr.mxu0 0.0
      %5086 = vmatpush1.msra.mxu0 0.0
      %5087 = vmatprep.subr.mxu0 0.0
      %5088 = vmatpush1.msra.mxu0 %v5052
      %5089 = vmatprep.subr.mxu0 0.0
      %5090 = vmatpush2.msra.mxu0 0.0
      %5091 = vmatprep.subr.mxu0 0.0
      %5092 = vmatpush2.msra.mxu0 0.0
      %5093 = vmatprep.subr.mxu0 0.0
      %5094 = vmatpush2.msra.mxu0 0.0
      %5095 = vmatprep.subr.mxu0 0.0
      %5096 = vmatpush2.msra.mxu0 0.0
      %5097 = vmatprep.subr.mxu0 0.0
      %5098 = vmatpush2.msra.mxu0 0.0
      %5099 = vmatprep.subr.mxu0 0.0
      %5100 = vmatpush2.msra.mxu0 0.0
      %5101 = vmatprep.subr.mxu0 0.0
      %5102 = vmatpush2.msra.mxu0 0.0
      %5103 = vmatprep.subr.mxu0 0.0
      %5104 = vmatpush2.msra.mxu0 0.0
      %5105 = vmatprep.subr.mxu0 0.0
      %5106 = vmatpush2.msra.mxu0 0.0
      %5107 = vmatprep.subr.mxu0 0.0
      %5108 = vmatpush2.msra.mxu0 0.0
      %5109 = vmatprep.subr.mxu0 0.0
      %5110 = vmatpush2.msra.mxu0 0.0
      %5111 = vmatprep.subr.mxu0 0.0
      %5112 = vmatpush2.msra.mxu0 0.0
      %5113 = vmatprep.subr.mxu0 0.0
      %5114 = vmatpush2.msra.mxu0 0.0
      %5115 = vmatprep.subr.mxu0 0.0
      %5116 = vmatpush2.msra.mxu0 0.0
      %5117 = vmatprep.subr.mxu0 0.0
      %5118 = vmatpush2.msra.mxu0 0.0
      %5119 = vmatprep.subr.mxu0 0.0
      %5120 = vmatpush2.msra.mxu0 0.0
      %5121 = vmatprep.mubr.f32.mxu0 0.0
      %5122 = vmatmul.mubr.f32.gmra.mxu0 %v5055
      %v5123 = vpop.f32.mrf.mxu0
      %v5124 = vadd.f32 0.0, %v5123
      %v5125 = vpop.f32.mrf.mxu0
      %5126 = vdwg.mxu0
      %v5127 = vadd.f32 %v5045, %v5124
      %s5128 = scalar_lea.vmem %s14, 128
      %v5129 = vld [vmem:[%s5128] sm:$0xff]
      %v5131 = vsel %vm2163, %v5129, 0
      %5133 = vmatprep.subr.mxu0 0.0
      %5134 = vmatpush1.msra.mxu0 0.0
      %5135 = vmatprep.subr.mxu0 0.0
      %5136 = vmatpush1.msra.mxu0 0.0
      %5137 = vmatprep.subr.mxu0 0.0
      %5138 = vmatpush1.msra.mxu0 0.0
      %5139 = vmatprep.subr.mxu0 0.0
      %5140 = vmatpush1.msra.mxu0 0.0
      %5141 = vmatprep.subr.mxu0 0.0
      %5142 = vmatpush1.msra.mxu0 0.0
      %5143 = vmatprep.subr.mxu0 0.0
      %5144 = vmatpush1.msra.mxu0 0.0
      %5145 = vmatprep.subr.mxu0 0.0
      %5146 = vmatpush1.msra.mxu0 0.0
      %5147 = vmatprep.subr.mxu0 0.0
      %5148 = vmatpush1.msra.mxu0 0.0
      %5149 = vmatprep.subr.mxu0 0.0
      %5150 = vmatpush1.msra.mxu0 0.0
      %5151 = vmatprep.subr.mxu0 0.0
      %5152 = vmatpush1.msra.mxu0 0.0
      %5153 = vmatprep.subr.mxu0 0.0
      %5154 = vmatpush1.msra.mxu0 0.0
      %5155 = vmatprep.subr.mxu0 0.0
      %5156 = vmatpush1.msra.mxu0 0.0
      %5157 = vmatprep.subr.mxu0 0.0
      %5158 = vmatpush1.msra.mxu0 0.0
      %5159 = vmatprep.subr.mxu0 0.0
      %5160 = vmatpush1.msra.mxu0 0.0
      %5161 = vmatprep.subr.mxu0 0.0
      %5162 = vmatpush1.msra.mxu0 0.0
      %5163 = vmatprep.subr.mxu0 0.0
      %5164 = vmatpush1.msra.mxu0 %v4551
      %5165 = vmatprep.subr.mxu0 0.0
      %5166 = vmatpush2.msra.mxu0 0.0
      %5167 = vmatprep.subr.mxu0 0.0
      %5168 = vmatpush2.msra.mxu0 0.0
      %5169 = vmatprep.subr.mxu0 0.0
      %5170 = vmatpush2.msra.mxu0 0.0
      %5171 = vmatprep.subr.mxu0 0.0
      %5172 = vmatpush2.msra.mxu0 0.0
      %5173 = vmatprep.subr.mxu0 0.0
      %5174 = vmatpush2.msra.mxu0 0.0
      %5175 = vmatprep.subr.mxu0 0.0
      %5176 = vmatpush2.msra.mxu0 0.0
      %5177 = vmatprep.subr.mxu0 0.0
      %5178 = vmatpush2.msra.mxu0 0.0
      %5179 = vmatprep.subr.mxu0 0.0
      %5180 = vmatpush2.msra.mxu0 0.0
      %5181 = vmatprep.subr.mxu0 0.0
      %5182 = vmatpush2.msra.mxu0 0.0
      %5183 = vmatprep.subr.mxu0 0.0
      %5184 = vmatpush2.msra.mxu0 0.0
      %5185 = vmatprep.subr.mxu0 0.0
      %5186 = vmatpush2.msra.mxu0 0.0
      %5187 = vmatprep.subr.mxu0 0.0
      %5188 = vmatpush2.msra.mxu0 0.0
      %5189 = vmatprep.subr.mxu0 0.0
      %5190 = vmatpush2.msra.mxu0 0.0
      %5191 = vmatprep.subr.mxu0 0.0
      %5192 = vmatpush2.msra.mxu0 0.0
      %5193 = vmatprep.subr.mxu0 0.0
      %5194 = vmatpush2.msra.mxu0 0.0
      %5195 = vmatprep.subr.mxu0 0.0
      %5196 = vmatpush2.msra.mxu0 0.0
      %5197 = vmatprep.mubr.f32.mxu0 0.0
      %5198 = vmatmul.mubr.f32.gmra.mxu0 %v5131
      %v5199 = vpop.f32.mrf.mxu0
      %v5200 = vadd.f32 0.0, %v5199
      %v5201 = vpop.f32.mrf.mxu0
      %5202 = vdwg.mxu0
      %v5203 = vadd.f32 %v5127, %v5200
      %v5204 = vld [vmem:[%s15] sm:$0xff]
      %5206 = vset.pattern.permute.xlu0 0
      %5207 = vperm.xlu0 %5206, %v5204
      %v5208 = vpop.permute.xlu0 %5207
      %v5210 = vmul.f32 %v5203, %v5208
      %v5211 = vld [vmem:[%s16] sm:$0xff]
      %5213 = vset.pattern.permute.xlu0 0
      %5214 = vperm.xlu0 %5213, %v5211
      %v5215 = vpop.permute.xlu0 %5214
      %v5217 = vadd.f32 %v5210, %v5215
      %v5218 = vmax.f32 %v5217, 0.0
      %v5219 = vld [vmem:[%s624] sm:$0xf]
      %v5220 = vld [vmem:[%s17] sm:$0xff]
      %v5222 = vsel %vm901, %v5220, 0
      %v5225 = vsel %vm905, %v5219, 0
      %5227 = vmatprep.subr.mxu0 0.0
      %5228 = vmatpush1.msra.mxu0 0.0
      %5229 = vmatprep.subr.mxu0 0.0
      %5230 = vmatpush1.msra.mxu0 0.0
      %5231 = vmatprep.subr.mxu0 0.0
      %5232 = vmatpush1.msra.mxu0 0.0
      %5233 = vmatprep.subr.mxu0 0.0
      %5234 = vmatpush1.msra.mxu0 0.0
      %5235 = vmatprep.subr.mxu0 0.0
      %5236 = vmatpush1.msra.mxu0 0.0
      %5237 = vmatprep.subr.mxu0 0.0
      %5238 = vmatpush1.msra.mxu0 0.0
      %5239 = vmatprep.subr.mxu0 0.0
      %5240 = vmatpush1.msra.mxu0 0.0
      %5241 = vmatprep.subr.mxu0 0.0
      %5242 = vmatpush1.msra.mxu0 0.0
      %5243 = vmatprep.subr.mxu0 0.0
      %5244 = vmatpush1.msra.mxu0 0.0
      %5245 = vmatprep.subr.mxu0 0.0
      %5246 = vmatpush1.msra.mxu0 0.0
      %5247 = vmatprep.subr.mxu0 0.0
      %5248 = vmatpush1.msra.mxu0 0.0
      %5249 = vmatprep.subr.mxu0 0.0
      %5250 = vmatpush1.msra.mxu0 0.0
      %5251 = vmatprep.subr.mxu0 0.0
      %5252 = vmatpush1.msra.mxu0 0.0
      %5253 = vmatprep.subr.mxu0 0.0
      %5254 = vmatpush1.msra.mxu0 0.0
      %5255 = vmatprep.subr.mxu0 0.0
      %5256 = vmatpush1.msra.mxu0 0.0
      %5257 = vmatprep.subr.mxu0 0.0
      %5258 = vmatpush1.msra.mxu0 %v5225
      %5259 = vmatprep.subr.mxu0 0.0
      %5260 = vmatpush2.msra.mxu0 0.0
      %5261 = vmatprep.subr.mxu0 0.0
      %5262 = vmatpush2.msra.mxu0 0.0
      %5263 = vmatprep.subr.mxu0 0.0
      %5264 = vmatpush2.msra.mxu0 0.0
      %5265 = vmatprep.subr.mxu0 0.0
      %5266 = vmatpush2.msra.mxu0 0.0
      %5267 = vmatprep.subr.mxu0 0.0
      %5268 = vmatpush2.msra.mxu0 0.0
      %5269 = vmatprep.subr.mxu0 0.0
      %5270 = vmatpush2.msra.mxu0 0.0
      %5271 = vmatprep.subr.mxu0 0.0
      %5272 = vmatpush2.msra.mxu0 0.0
      %5273 = vmatprep.subr.mxu0 0.0
      %5274 = vmatpush2.msra.mxu0 0.0
      %5275 = vmatprep.subr.mxu0 0.0
      %5276 = vmatpush2.msra.mxu0 0.0
      %5277 = vmatprep.subr.mxu0 0.0
      %5278 = vmatpush2.msra.mxu0 0.0
      %5279 = vmatprep.subr.mxu0 0.0
      %5280 = vmatpush2.msra.mxu0 0.0
      %5281 = vmatprep.subr.mxu0 0.0
      %5282 = vmatpush2.msra.mxu0 0.0
      %5283 = vmatprep.subr.mxu0 0.0
      %5284 = vmatpush2.msra.mxu0 0.0
      %5285 = vmatprep.subr.mxu0 0.0
      %5286 = vmatpush2.msra.mxu0 0.0
      %5287 = vmatprep.subr.mxu0 0.0
      %5288 = vmatpush2.msra.mxu0 0.0
      %5289 = vmatprep.subr.mxu0 0.0
      %5290 = vmatpush2.msra.mxu0 0.0
      %5291 = vmatprep.mubr.f32.mxu0 0.0
      %5292 = vmatmul.mubr.f32.gmra.mxu0 %v5222
      %v5293 = vpop.f32.mrf.mxu0
      %v5294 = vadd.f32 0.0, %v5293
      %v5295 = vpop.f32.mrf.mxu0
      %5296 = vdwg.mxu0
      %v5297 = vld [vmem:[%s18] sm:$0xff]
      %5299 = vset.pattern.permute.xlu0 0
      %5300 = vperm.xlu0 %5299, %v5297
      %v5301 = vpop.permute.xlu0 %5300
      %v5303 = vmul.f32 %v5294, %v5301
      %v5304 = vld [vmem:[%s19] sm:$0xff]
      %5306 = vset.pattern.permute.xlu0 0
      %5307 = vperm.xlu0 %5306, %v5304
      %v5308 = vpop.permute.xlu0 %5307
      %v5310 = vadd.f32 %v5303, %v5308
      %v5311 = vmax.f32 %v5310, 0.0
      %v5312 = vadd.f32 %v5218, %v5311
      %5313 = vst [vmem:[%s629 + $0x10] sm:$0xff] %v5312
      %v5314 = vld [vmem:[#allocation3 + $0x8] sm:$0xff]
      %v5315 = vld [vmem:[%s14] sm:$0xff]
      %v5316 = vld [vmem:[#allocation3 + $0x10] sm:$0xff]
      %v5317 = vld [vmem:[%s3826] sm:$0xff]
      %5320 = vrot.lane.b32.xlu0 %v5314, 112
      %v5321 = vpop.permute.xlu0 %5320
      %5322 = vrot.lane.b32.xlu0 %v5316, 112
      %v5323 = vpop.permute.xlu0 %5322
      %v5324 = vsel %vm2160, %v5321, %v5323
      %v5327 = vsel %vm2163, %v5317, 0
      %5329 = vmatprep.subr.mxu0 0.0
      %5330 = vmatpush1.msra.mxu0 0.0
      %5331 = vmatprep.subr.mxu0 0.0
      %5332 = vmatpush1.msra.mxu0 0.0
      %5333 = vmatprep.subr.mxu0 0.0
      %5334 = vmatpush1.msra.mxu0 0.0
      %5335 = vmatprep.subr.mxu0 0.0
      %5336 = vmatpush1.msra.mxu0 0.0
      %5337 = vmatprep.subr.mxu0 0.0
      %5338 = vmatpush1.msra.mxu0 0.0
      %5339 = vmatprep.subr.mxu0 0.0
      %5340 = vmatpush1.msra.mxu0 0.0
      %5341 = vmatprep.subr.mxu0 0.0
      %5342 = vmatpush1.msra.mxu0 0.0
      %5343 = vmatprep.subr.mxu0 0.0
      %5344 = vmatpush1.msra.mxu0 0.0
      %5345 = vmatprep.subr.mxu0 0.0
      %5346 = vmatpush1.msra.mxu0 0.0
      %5347 = vmatprep.subr.mxu0 0.0
      %5348 = vmatpush1.msra.mxu0 0.0
      %5349 = vmatprep.subr.mxu0 0.0
      %5350 = vmatpush1.msra.mxu0 0.0
      %5351 = vmatprep.subr.mxu0 0.0
      %5352 = vmatpush1.msra.mxu0 0.0
      %5353 = vmatprep.subr.mxu0 0.0
      %5354 = vmatpush1.msra.mxu0 0.0
      %5355 = vmatprep.subr.mxu0 0.0
      %5356 = vmatpush1.msra.mxu0 0.0
      %5357 = vmatprep.subr.mxu0 0.0
      %5358 = vmatpush1.msra.mxu0 0.0
      %5359 = vmatprep.subr.mxu0 0.0
      %5360 = vmatpush1.msra.mxu0 %v5324
      %5361 = vmatprep.subr.mxu0 0.0
      %5362 = vmatpush2.msra.mxu0 0.0
      %5363 = vmatprep.subr.mxu0 0.0
      %5364 = vmatpush2.msra.mxu0 0.0
      %5365 = vmatprep.subr.mxu0 0.0
      %5366 = vmatpush2.msra.mxu0 0.0
      %5367 = vmatprep.subr.mxu0 0.0
      %5368 = vmatpush2.msra.mxu0 0.0
      %5369 = vmatprep.subr.mxu0 0.0
      %5370 = vmatpush2.msra.mxu0 0.0
      %5371 = vmatprep.subr.mxu0 0.0
      %5372 = vmatpush2.msra.mxu0 0.0
      %5373 = vmatprep.subr.mxu0 0.0
      %5374 = vmatpush2.msra.mxu0 0.0
      %5375 = vmatprep.subr.mxu0 0.0
      %5376 = vmatpush2.msra.mxu0 0.0
      %5377 = vmatprep.subr.mxu0 0.0
      %5378 = vmatpush2.msra.mxu0 0.0
      %5379 = vmatprep.subr.mxu0 0.0
      %5380 = vmatpush2.msra.mxu0 0.0
      %5381 = vmatprep.subr.mxu0 0.0
      %5382 = vmatpush2.msra.mxu0 0.0
      %5383 = vmatprep.subr.mxu0 0.0
      %5384 = vmatpush2.msra.mxu0 0.0
      %5385 = vmatprep.subr.mxu0 0.0
      %5386 = vmatpush2.msra.mxu0 0.0
      %5387 = vmatprep.subr.mxu0 0.0
      %5388 = vmatpush2.msra.mxu0 0.0
      %5389 = vmatprep.subr.mxu0 0.0
      %5390 = vmatpush2.msra.mxu0 0.0
      %5391 = vmatprep.subr.mxu0 0.0
      %5392 = vmatpush2.msra.mxu0 0.0
      %5393 = vmatprep.mubr.f32.mxu0 0.0
      %5394 = vmatmul.mubr.f32.gmra.mxu0 %v5327
      %v5395 = vpop.f32.mrf.mxu0
      %v5396 = vadd.f32 0.0, %v5395
      %v5397 = vpop.f32.mrf.mxu0
      %5398 = vdwg.mxu0
      %v5400 = vsel %vm2163, %v5315, 0
      %5402 = vmatprep.subr.mxu0 0.0
      %5403 = vmatpush1.msra.mxu0 0.0
      %5404 = vmatprep.subr.mxu0 0.0
      %5405 = vmatpush1.msra.mxu0 0.0
      %5406 = vmatprep.subr.mxu0 0.0
      %5407 = vmatpush1.msra.mxu0 0.0
      %5408 = vmatprep.subr.mxu0 0.0
      %5409 = vmatpush1.msra.mxu0 0.0
      %5410 = vmatprep.subr.mxu0 0.0
      %5411 = vmatpush1.msra.mxu0 0.0
      %5412 = vmatprep.subr.mxu0 0.0
      %5413 = vmatpush1.msra.mxu0 0.0
      %5414 = vmatprep.subr.mxu0 0.0
      %5415 = vmatpush1.msra.mxu0 0.0
      %5416 = vmatprep.subr.mxu0 0.0
      %5417 = vmatpush1.msra.mxu0 0.0
      %5418 = vmatprep.subr.mxu0 0.0
      %5419 = vmatpush1.msra.mxu0 0.0
      %5420 = vmatprep.subr.mxu0 0.0
      %5421 = vmatpush1.msra.mxu0 0.0
      %5422 = vmatprep.subr.mxu0 0.0
      %5423 = vmatpush1.msra.mxu0 0.0
      %5424 = vmatprep.subr.mxu0 0.0
      %5425 = vmatpush1.msra.mxu0 0.0
      %5426 = vmatprep.subr.mxu0 0.0
      %5427 = vmatpush1.msra.mxu0 0.0
      %5428 = vmatprep.subr.mxu0 0.0
      %5429 = vmatpush1.msra.mxu0 0.0
      %5430 = vmatprep.subr.mxu0 0.0
      %5431 = vmatpush1.msra.mxu0 0.0
      %5432 = vmatprep.subr.mxu0 0.0
      %5433 = vmatpush1.msra.mxu0 %v5314
      %5434 = vmatprep.subr.mxu0 0.0
      %5435 = vmatpush2.msra.mxu0 0.0
      %5436 = vmatprep.subr.mxu0 0.0
      %5437 = vmatpush2.msra.mxu0 0.0
      %5438 = vmatprep.subr.mxu0 0.0
      %5439 = vmatpush2.msra.mxu0 0.0
      %5440 = vmatprep.subr.mxu0 0.0
      %5441 = vmatpush2.msra.mxu0 0.0
      %5442 = vmatprep.subr.mxu0 0.0
      %5443 = vmatpush2.msra.mxu0 0.0
      %5444 = vmatprep.subr.mxu0 0.0
      %5445 = vmatpush2.msra.mxu0 0.0
      %5446 = vmatprep.subr.mxu0 0.0
      %5447 = vmatpush2.msra.mxu0 0.0
      %5448 = vmatprep.subr.mxu0 0.0
      %5449 = vmatpush2.msra.mxu0 0.0
      %5450 = vmatprep.subr.mxu0 0.0
      %5451 = vmatpush2.msra.mxu0 0.0
      %5452 = vmatprep.subr.mxu0 0.0
      %5453 = vmatpush2.msra.mxu0 0.0
      %5454 = vmatprep.subr.mxu0 0.0
      %5455 = vmatpush2.msra.mxu0 0.0
      %5456 = vmatprep.subr.mxu0 0.0
      %5457 = vmatpush2.msra.mxu0 0.0
      %5458 = vmatprep.subr.mxu0 0.0
      %5459 = vmatpush2.msra.mxu0 0.0
      %5460 = vmatprep.subr.mxu0 0.0
      %5461 = vmatpush2.msra.mxu0 0.0
      %5462 = vmatprep.subr.mxu0 0.0
      %5463 = vmatpush2.msra.mxu0 0.0
      %5464 = vmatprep.subr.mxu0 0.0
      %5465 = vmatpush2.msra.mxu0 0.0
      %5466 = vmatprep.mubr.f32.mxu0 0.0
      %5467 = vmatmul.mubr.f32.gmra.mxu0 %v5400
      %v5468 = vpop.f32.mrf.mxu0
      %v5469 = vadd.f32 %v5396, %v5468
      %v5470 = vpop.f32.mrf.mxu0
      %5471 = vdwg.mxu0
      %v5472 = vld [vmem:[%s3982] sm:$0xff]
      %5473 = vrot.lane.b32.xlu0 %v5314, 96
      %v5474 = vpop.permute.xlu0 %5473
      %5475 = vrot.lane.b32.xlu0 %v5316, 96
      %v5476 = vpop.permute.xlu0 %5475
      %v5477 = vsel %vm2316, %v5474, %v5476
      %v5480 = vsel %vm2163, %v5472, 0
      %5482 = vmatprep.subr.mxu0 0.0
      %5483 = vmatpush1.msra.mxu0 0.0
      %5484 = vmatprep.subr.mxu0 0.0
      %5485 = vmatpush1.msra.mxu0 0.0
      %5486 = vmatprep.subr.mxu0 0.0
      %5487 = vmatpush1.msra.mxu0 0.0
      %5488 = vmatprep.subr.mxu0 0.0
      %5489 = vmatpush1.msra.mxu0 0.0
      %5490 = vmatprep.subr.mxu0 0.0
      %5491 = vmatpush1.msra.mxu0 0.0
      %5492 = vmatprep.subr.mxu0 0.0
      %5493 = vmatpush1.msra.mxu0 0.0
      %5494 = vmatprep.subr.mxu0 0.0
      %5495 = vmatpush1.msra.mxu0 0.0
      %5496 = vmatprep.subr.mxu0 0.0
      %5497 = vmatpush1.msra.mxu0 0.0
      %5498 = vmatprep.subr.mxu0 0.0
      %5499 = vmatpush1.msra.mxu0 0.0
      %5500 = vmatprep.subr.mxu0 0.0
      %5501 = vmatpush1.msra.mxu0 0.0
      %5502 = vmatprep.subr.mxu0 0.0
      %5503 = vmatpush1.msra.mxu0 0.0
      %5504 = vmatprep.subr.mxu0 0.0
      %5505 = vmatpush1.msra.mxu0 0.0
      %5506 = vmatprep.subr.mxu0 0.0
      %5507 = vmatpush1.msra.mxu0 0.0
      %5508 = vmatprep.subr.mxu0 0.0
      %5509 = vmatpush1.msra.mxu0 0.0
      %5510 = vmatprep.subr.mxu0 0.0
      %5511 = vmatpush1.msra.mxu0 0.0
      %5512 = vmatprep.subr.mxu0 0.0
      %5513 = vmatpush1.msra.mxu0 %v5477
      %5514 = vmatprep.subr.mxu0 0.0
      %5515 = vmatpush2.msra.mxu0 0.0
      %5516 = vmatprep.subr.mxu0 0.0
      %5517 = vmatpush2.msra.mxu0 0.0
      %5518 = vmatprep.subr.mxu0 0.0
      %5519 = vmatpush2.msra.mxu0 0.0
      %5520 = vmatprep.subr.mxu0 0.0
      %5521 = vmatpush2.msra.mxu0 0.0
      %5522 = vmatprep.subr.mxu0 0.0
      %5523 = vmatpush2.msra.mxu0 0.0
      %5524 = vmatprep.subr.mxu0 0.0
      %5525 = vmatpush2.msra.mxu0 0.0
      %5526 = vmatprep.subr.mxu0 0.0
      %5527 = vmatpush2.msra.mxu0 0.0
      %5528 = vmatprep.subr.mxu0 0.0
      %5529 = vmatpush2.msra.mxu0 0.0
      %5530 = vmatprep.subr.mxu0 0.0
      %5531 = vmatpush2.msra.mxu0 0.0
      %5532 = vmatprep.subr.mxu0 0.0
      %5533 = vmatpush2.msra.mxu0 0.0
      %5534 = vmatprep.subr.mxu0 0.0
      %5535 = vmatpush2.msra.mxu0 0.0
      %5536 = vmatprep.subr.mxu0 0.0
      %5537 = vmatpush2.msra.mxu0 0.0
      %5538 = vmatprep.subr.mxu0 0.0
      %5539 = vmatpush2.msra.mxu0 0.0
      %5540 = vmatprep.subr.mxu0 0.0
      %5541 = vmatpush2.msra.mxu0 0.0
      %5542 = vmatprep.subr.mxu0 0.0
      %5543 = vmatpush2.msra.mxu0 0.0
      %5544 = vmatprep.subr.mxu0 0.0
      %5545 = vmatpush2.msra.mxu0 0.0
      %5546 = vmatprep.mubr.f32.mxu0 0.0
      %5547 = vmatmul.mubr.f32.gmra.mxu0 %v5480
      %v5548 = vpop.f32.mrf.mxu0
      %v5549 = vadd.f32 0.0, %v5548
      %v5550 = vpop.f32.mrf.mxu0
      %5551 = vdwg.mxu0
      %v5552 = vadd.f32 %v5469, %v5549
      %v5553 = vld [vmem:[%s4064] sm:$0xff]
      %5554 = vrot.lane.b32.xlu0 %v5314, 80
      %v5555 = vpop.permute.xlu0 %5554
      %5556 = vrot.lane.b32.xlu0 %v5316, 80
      %v5557 = vpop.permute.xlu0 %5556
      %v5558 = vsel %vm2399, %v5555, %v5557
      %v5561 = vsel %vm2163, %v5553, 0
      %5563 = vmatprep.subr.mxu0 0.0
      %5564 = vmatpush1.msra.mxu0 0.0
      %5565 = vmatprep.subr.mxu0 0.0
      %5566 = vmatpush1.msra.mxu0 0.0
      %5567 = vmatprep.subr.mxu0 0.0
      %5568 = vmatpush1.msra.mxu0 0.0
      %5569 = vmatprep.subr.mxu0 0.0
      %5570 = vmatpush1.msra.mxu0 0.0
      %5571 = vmatprep.subr.mxu0 0.0
      %5572 = vmatpush1.msra.mxu0 0.0
      %5573 = vmatprep.subr.mxu0 0.0
      %5574 = vmatpush1.msra.mxu0 0.0
      %5575 = vmatprep.subr.mxu0 0.0
      %5576 = vmatpush1.msra.mxu0 0.0
      %5577 = vmatprep.subr.mxu0 0.0
      %5578 = vmatpush1.msra.mxu0 0.0
      %5579 = vmatprep.subr.mxu0 0.0
      %5580 = vmatpush1.msra.mxu0 0.0
      %5581 = vmatprep.subr.mxu0 0.0
      %5582 = vmatpush1.msra.mxu0 0.0
      %5583 = vmatprep.subr.mxu0 0.0
      %5584 = vmatpush1.msra.mxu0 0.0
      %5585 = vmatprep.subr.mxu0 0.0
      %5586 = vmatpush1.msra.mxu0 0.0
      %5587 = vmatprep.subr.mxu0 0.0
      %5588 = vmatpush1.msra.mxu0 0.0
      %5589 = vmatprep.subr.mxu0 0.0
      %5590 = vmatpush1.msra.mxu0 0.0
      %5591 = vmatprep.subr.mxu0 0.0
      %5592 = vmatpush1.msra.mxu0 0.0
      %5593 = vmatprep.subr.mxu0 0.0
      %5594 = vmatpush1.msra.mxu0 %v5558
      %5595 = vmatprep.subr.mxu0 0.0
      %5596 = vmatpush2.msra.mxu0 0.0
      %5597 = vmatprep.subr.mxu0 0.0
      %5598 = vmatpush2.msra.mxu0 0.0
      %5599 = vmatprep.subr.mxu0 0.0
      %5600 = vmatpush2.msra.mxu0 0.0
      %5601 = vmatprep.subr.mxu0 0.0
      %5602 = vmatpush2.msra.mxu0 0.0
      %5603 = vmatprep.subr.mxu0 0.0
      %5604 = vmatpush2.msra.mxu0 0.0
      %5605 = vmatprep.subr.mxu0 0.0
      %5606 = vmatpush2.msra.mxu0 0.0
      %5607 = vmatprep.subr.mxu0 0.0
      %5608 = vmatpush2.msra.mxu0 0.0
      %5609 = vmatprep.subr.mxu0 0.0
      %5610 = vmatpush2.msra.mxu0 0.0
      %5611 = vmatprep.subr.mxu0 0.0
      %5612 = vmatpush2.msra.mxu0 0.0
      %5613 = vmatprep.subr.mxu0 0.0
      %5614 = vmatpush2.msra.mxu0 0.0
      %5615 = vmatprep.subr.mxu0 0.0
      %5616 = vmatpush2.msra.mxu0 0.0
      %5617 = vmatprep.subr.mxu0 0.0
      %5618 = vmatpush2.msra.mxu0 0.0
      %5619 = vmatprep.subr.mxu0 0.0
      %5620 = vmatpush2.msra.mxu0 0.0
      %5621 = vmatprep.subr.mxu0 0.0
      %5622 = vmatpush2.msra.mxu0 0.0
      %5623 = vmatprep.subr.mxu0 0.0
      %5624 = vmatpush2.msra.mxu0 0.0
      %5625 = vmatprep.subr.mxu0 0.0
      %5626 = vmatpush2.msra.mxu0 0.0
      %5627 = vmatprep.mubr.f32.mxu0 0.0
      %5628 = vmatmul.mubr.f32.gmra.mxu0 %v5561
      %v5629 = vpop.f32.mrf.mxu0
      %v5630 = vadd.f32 0.0, %v5629
      %v5631 = vpop.f32.mrf.mxu0
      %5632 = vdwg.mxu0
      %v5633 = vadd.f32 %v5552, %v5630
      %v5634 = vld [vmem:[%s4146] sm:$0xff]
      %5635 = vrot.lane.b32.xlu0 %v5314, 64
      %v5636 = vpop.permute.xlu0 %5635
      %5637 = vrot.lane.b32.xlu0 %v5316, 64
      %v5638 = vpop.permute.xlu0 %5637
      %v5639 = vsel %vm1155, %v5636, %v5638
      %v5642 = vsel %vm2163, %v5634, 0
      %5644 = vmatprep.subr.mxu0 0.0
      %5645 = vmatpush1.msra.mxu0 0.0
      %5646 = vmatprep.subr.mxu0 0.0
      %5647 = vmatpush1.msra.mxu0 0.0
      %5648 = vmatprep.subr.mxu0 0.0
      %5649 = vmatpush1.msra.mxu0 0.0
      %5650 = vmatprep.subr.mxu0 0.0
      %5651 = vmatpush1.msra.mxu0 0.0
      %5652 = vmatprep.subr.mxu0 0.0
      %5653 = vmatpush1.msra.mxu0 0.0
      %5654 = vmatprep.subr.mxu0 0.0
      %5655 = vmatpush1.msra.mxu0 0.0
      %5656 = vmatprep.subr.mxu0 0.0
      %5657 = vmatpush1.msra.mxu0 0.0
      %5658 = vmatprep.subr.mxu0 0.0
      %5659 = vmatpush1.msra.mxu0 0.0
      %5660 = vmatprep.subr.mxu0 0.0
      %5661 = vmatpush1.msra.mxu0 0.0
      %5662 = vmatprep.subr.mxu0 0.0
      %5663 = vmatpush1.msra.mxu0 0.0
      %5664 = vmatprep.subr.mxu0 0.0
      %5665 = vmatpush1.msra.mxu0 0.0
      %5666 = vmatprep.subr.mxu0 0.0
      %5667 = vmatpush1.msra.mxu0 0.0
      %5668 = vmatprep.subr.mxu0 0.0
      %5669 = vmatpush1.msra.mxu0 0.0
      %5670 = vmatprep.subr.mxu0 0.0
      %5671 = vmatpush1.msra.mxu0 0.0
      %5672 = vmatprep.subr.mxu0 0.0
      %5673 = vmatpush1.msra.mxu0 0.0
      %5674 = vmatprep.subr.mxu0 0.0
      %5675 = vmatpush1.msra.mxu0 %v5639
      %5676 = vmatprep.subr.mxu0 0.0
      %5677 = vmatpush2.msra.mxu0 0.0
      %5678 = vmatprep.subr.mxu0 0.0
      %5679 = vmatpush2.msra.mxu0 0.0
      %5680 = vmatprep.subr.mxu0 0.0
      %5681 = vmatpush2.msra.mxu0 0.0
      %5682 = vmatprep.subr.mxu0 0.0
      %5683 = vmatpush2.msra.mxu0 0.0
      %5684 = vmatprep.subr.mxu0 0.0
      %5685 = vmatpush2.msra.mxu0 0.0
      %5686 = vmatprep.subr.mxu0 0.0
      %5687 = vmatpush2.msra.mxu0 0.0
      %5688 = vmatprep.subr.mxu0 0.0
      %5689 = vmatpush2.msra.mxu0 0.0
      %5690 = vmatprep.subr.mxu0 0.0
      %5691 = vmatpush2.msra.mxu0 0.0
      %5692 = vmatprep.subr.mxu0 0.0
      %5693 = vmatpush2.msra.mxu0 0.0
      %5694 = vmatprep.subr.mxu0 0.0
      %5695 = vmatpush2.msra.mxu0 0.0
      %5696 = vmatprep.subr.mxu0 0.0
      %5697 = vmatpush2.msra.mxu0 0.0
      %5698 = vmatprep.subr.mxu0 0.0
      %5699 = vmatpush2.msra.mxu0 0.0
      %5700 = vmatprep.subr.mxu0 0.0
      %5701 = vmatpush2.msra.mxu0 0.0
      %5702 = vmatprep.subr.mxu0 0.0
      %5703 = vmatpush2.msra.mxu0 0.0
      %5704 = vmatprep.subr.mxu0 0.0
      %5705 = vmatpush2.msra.mxu0 0.0
      %5706 = vmatprep.subr.mxu0 0.0
      %5707 = vmatpush2.msra.mxu0 0.0
      %5708 = vmatprep.mubr.f32.mxu0 0.0
      %5709 = vmatmul.mubr.f32.gmra.mxu0 %v5642
      %v5710 = vpop.f32.mrf.mxu0
      %v5711 = vadd.f32 0.0, %v5710
      %v5712 = vpop.f32.mrf.mxu0
      %5713 = vdwg.mxu0
      %v5714 = vadd.f32 %v5633, %v5711
      %v5715 = vld [vmem:[%s4228] sm:$0xff]
      %5716 = vrot.lane.b32.xlu0 %v5314, 48
      %v5717 = vpop.permute.xlu0 %5716
      %5718 = vrot.lane.b32.xlu0 %v5316, 48
      %v5719 = vpop.permute.xlu0 %5718
      %v5720 = vsel %vm2564, %v5717, %v5719
      %v5723 = vsel %vm2163, %v5715, 0
      %5725 = vmatprep.subr.mxu0 0.0
      %5726 = vmatpush1.msra.mxu0 0.0
      %5727 = vmatprep.subr.mxu0 0.0
      %5728 = vmatpush1.msra.mxu0 0.0
      %5729 = vmatprep.subr.mxu0 0.0
      %5730 = vmatpush1.msra.mxu0 0.0
      %5731 = vmatprep.subr.mxu0 0.0
      %5732 = vmatpush1.msra.mxu0 0.0
      %5733 = vmatprep.subr.mxu0 0.0
      %5734 = vmatpush1.msra.mxu0 0.0
      %5735 = vmatprep.subr.mxu0 0.0
      %5736 = vmatpush1.msra.mxu0 0.0
      %5737 = vmatprep.subr.mxu0 0.0
      %5738 = vmatpush1.msra.mxu0 0.0
      %5739 = vmatprep.subr.mxu0 0.0
      %5740 = vmatpush1.msra.mxu0 0.0
      %5741 = vmatprep.subr.mxu0 0.0
      %5742 = vmatpush1.msra.mxu0 0.0
      %5743 = vmatprep.subr.mxu0 0.0
      %5744 = vmatpush1.msra.mxu0 0.0
      %5745 = vmatprep.subr.mxu0 0.0
      %5746 = vmatpush1.msra.mxu0 0.0
      %5747 = vmatprep.subr.mxu0 0.0
      %5748 = vmatpush1.msra.mxu0 0.0
      %5749 = vmatprep.subr.mxu0 0.0
      %5750 = vmatpush1.msra.mxu0 0.0
      %5751 = vmatprep.subr.mxu0 0.0
      %5752 = vmatpush1.msra.mxu0 0.0
      %5753 = vmatprep.subr.mxu0 0.0
      %5754 = vmatpush1.msra.mxu0 0.0
      %5755 = vmatprep.subr.mxu0 0.0
      %5756 = vmatpush1.msra.mxu0 %v5720
      %5757 = vmatprep.subr.mxu0 0.0
      %5758 = vmatpush2.msra.mxu0 0.0
      %5759 = vmatprep.subr.mxu0 0.0
      %5760 = vmatpush2.msra.mxu0 0.0
      %5761 = vmatprep.subr.mxu0 0.0
      %5762 = vmatpush2.msra.mxu0 0.0
      %5763 = vmatprep.subr.mxu0 0.0
      %5764 = vmatpush2.msra.mxu0 0.0
      %5765 = vmatprep.subr.mxu0 0.0
      %5766 = vmatpush2.msra.mxu0 0.0
      %5767 = vmatprep.subr.mxu0 0.0
      %5768 = vmatpush2.msra.mxu0 0.0
      %5769 = vmatprep.subr.mxu0 0.0
      %5770 = vmatpush2.msra.mxu0 0.0
      %5771 = vmatprep.subr.mxu0 0.0
      %5772 = vmatpush2.msra.mxu0 0.0
      %5773 = vmatprep.subr.mxu0 0.0
      %5774 = vmatpush2.msra.mxu0 0.0
      %5775 = vmatprep.subr.mxu0 0.0
      %5776 = vmatpush2.msra.mxu0 0.0
      %5777 = vmatprep.subr.mxu0 0.0
      %5778 = vmatpush2.msra.mxu0 0.0
      %5779 = vmatprep.subr.mxu0 0.0
      %5780 = vmatpush2.msra.mxu0 0.0
      %5781 = vmatprep.subr.mxu0 0.0
      %5782 = vmatpush2.msra.mxu0 0.0
      %5783 = vmatprep.subr.mxu0 0.0
      %5784 = vmatpush2.msra.mxu0 0.0
      %5785 = vmatprep.subr.mxu0 0.0
      %5786 = vmatpush2.msra.mxu0 0.0
      %5787 = vmatprep.subr.mxu0 0.0
      %5788 = vmatpush2.msra.mxu0 0.0
      %5789 = vmatprep.mubr.f32.mxu0 0.0
      %5790 = vmatmul.mubr.f32.gmra.mxu0 %v5723
      %v5791 = vpop.f32.mrf.mxu0
      %v5792 = vadd.f32 0.0, %v5791
      %v5793 = vpop.f32.mrf.mxu0
      %5794 = vdwg.mxu0
      %v5795 = vadd.f32 %v5714, %v5792
      %v5796 = vld [vmem:[%s4310] sm:$0xff]
      %5797 = vrot.lane.b32.xlu0 %v5314, 32
      %v5798 = vpop.permute.xlu0 %5797
      %5799 = vrot.lane.b32.xlu0 %v5316, 32
      %v5800 = vpop.permute.xlu0 %5799
      %v5801 = vsel %vm2647, %v5798, %v5800
      %v5804 = vsel %vm2163, %v5796, 0
      %5806 = vmatprep.subr.mxu0 0.0
      %5807 = vmatpush1.msra.mxu0 0.0
      %5808 = vmatprep.subr.mxu0 0.0
      %5809 = vmatpush1.msra.mxu0 0.0
      %5810 = vmatprep.subr.mxu0 0.0
      %5811 = vmatpush1.msra.mxu0 0.0
      %5812 = vmatprep.subr.mxu0 0.0
      %5813 = vmatpush1.msra.mxu0 0.0
      %5814 = vmatprep.subr.mxu0 0.0
      %5815 = vmatpush1.msra.mxu0 0.0
      %5816 = vmatprep.subr.mxu0 0.0
      %5817 = vmatpush1.msra.mxu0 0.0
      %5818 = vmatprep.subr.mxu0 0.0
      %5819 = vmatpush1.msra.mxu0 0.0
      %5820 = vmatprep.subr.mxu0 0.0
      %5821 = vmatpush1.msra.mxu0 0.0
      %5822 = vmatprep.subr.mxu0 0.0
      %5823 = vmatpush1.msra.mxu0 0.0
      %5824 = vmatprep.subr.mxu0 0.0
      %5825 = vmatpush1.msra.mxu0 0.0
      %5826 = vmatprep.subr.mxu0 0.0
      %5827 = vmatpush1.msra.mxu0 0.0
      %5828 = vmatprep.subr.mxu0 0.0
      %5829 = vmatpush1.msra.mxu0 0.0
      %5830 = vmatprep.subr.mxu0 0.0
      %5831 = vmatpush1.msra.mxu0 0.0
      %5832 = vmatprep.subr.mxu0 0.0
      %5833 = vmatpush1.msra.mxu0 0.0
      %5834 = vmatprep.subr.mxu0 0.0
      %5835 = vmatpush1.msra.mxu0 0.0
      %5836 = vmatprep.subr.mxu0 0.0
      %5837 = vmatpush1.msra.mxu0 %v5801
      %5838 = vmatprep.subr.mxu0 0.0
      %5839 = vmatpush2.msra.mxu0 0.0
      %5840 = vmatprep.subr.mxu0 0.0
      %5841 = vmatpush2.msra.mxu0 0.0
      %5842 = vmatprep.subr.mxu0 0.0
      %5843 = vmatpush2.msra.mxu0 0.0
      %5844 = vmatprep.subr.mxu0 0.0
      %5845 = vmatpush2.msra.mxu0 0.0
      %5846 = vmatprep.subr.mxu0 0.0
      %5847 = vmatpush2.msra.mxu0 0.0
      %5848 = vmatprep.subr.mxu0 0.0
      %5849 = vmatpush2.msra.mxu0 0.0
      %5850 = vmatprep.subr.mxu0 0.0
      %5851 = vmatpush2.msra.mxu0 0.0
      %5852 = vmatprep.subr.mxu0 0.0
      %5853 = vmatpush2.msra.mxu0 0.0
      %5854 = vmatprep.subr.mxu0 0.0
      %5855 = vmatpush2.msra.mxu0 0.0
      %5856 = vmatprep.subr.mxu0 0.0
      %5857 = vmatpush2.msra.mxu0 0.0
      %5858 = vmatprep.subr.mxu0 0.0
      %5859 = vmatpush2.msra.mxu0 0.0
      %5860 = vmatprep.subr.mxu0 0.0
      %5861 = vmatpush2.msra.mxu0 0.0
      %5862 = vmatprep.subr.mxu0 0.0
      %5863 = vmatpush2.msra.mxu0 0.0
      %5864 = vmatprep.subr.mxu0 0.0
      %5865 = vmatpush2.msra.mxu0 0.0
      %5866 = vmatprep.subr.mxu0 0.0
      %5867 = vmatpush2.msra.mxu0 0.0
      %5868 = vmatprep.subr.mxu0 0.0
      %5869 = vmatpush2.msra.mxu0 0.0
      %5870 = vmatprep.mubr.f32.mxu0 0.0
      %5871 = vmatmul.mubr.f32.gmra.mxu0 %v5804
      %v5872 = vpop.f32.mrf.mxu0
      %v5873 = vadd.f32 0.0, %v5872
      %v5874 = vpop.f32.mrf.mxu0
      %5875 = vdwg.mxu0
      %v5876 = vadd.f32 %v5795, %v5873
      %v5877 = vld [vmem:[%s4392] sm:$0xff]
      %5878 = vrot.lane.b32.xlu0 %v5314, 16
      %v5879 = vpop.permute.xlu0 %5878
      %5880 = vrot.lane.b32.xlu0 %v5316, 16
      %v5881 = vpop.permute.xlu0 %5880
      %v5882 = vsel %vm2730, %v5879, %v5881
      %v5885 = vsel %vm2163, %v5877, 0
      %5887 = vmatprep.subr.mxu0 0.0
      %5888 = vmatpush1.msra.mxu0 0.0
      %5889 = vmatprep.subr.mxu0 0.0
      %5890 = vmatpush1.msra.mxu0 0.0
      %5891 = vmatprep.subr.mxu0 0.0
      %5892 = vmatpush1.msra.mxu0 0.0
      %5893 = vmatprep.subr.mxu0 0.0
      %5894 = vmatpush1.msra.mxu0 0.0
      %5895 = vmatprep.subr.mxu0 0.0
      %5896 = vmatpush1.msra.mxu0 0.0
      %5897 = vmatprep.subr.mxu0 0.0
      %5898 = vmatpush1.msra.mxu0 0.0
      %5899 = vmatprep.subr.mxu0 0.0
      %5900 = vmatpush1.msra.mxu0 0.0
      %5901 = vmatprep.subr.mxu0 0.0
      %5902 = vmatpush1.msra.mxu0 0.0
      %5903 = vmatprep.subr.mxu0 0.0
      %5904 = vmatpush1.msra.mxu0 0.0
      %5905 = vmatprep.subr.mxu0 0.0
      %5906 = vmatpush1.msra.mxu0 0.0
      %5907 = vmatprep.subr.mxu0 0.0
      %5908 = vmatpush1.msra.mxu0 0.0
      %5909 = vmatprep.subr.mxu0 0.0
      %5910 = vmatpush1.msra.mxu0 0.0
      %5911 = vmatprep.subr.mxu0 0.0
      %5912 = vmatpush1.msra.mxu0 0.0
      %5913 = vmatprep.subr.mxu0 0.0
      %5914 = vmatpush1.msra.mxu0 0.0
      %5915 = vmatprep.subr.mxu0 0.0
      %5916 = vmatpush1.msra.mxu0 0.0
      %5917 = vmatprep.subr.mxu0 0.0
      %5918 = vmatpush1.msra.mxu0 %v5882
      %5919 = vmatprep.subr.mxu0 0.0
      %5920 = vmatpush2.msra.mxu0 0.0
      %5921 = vmatprep.subr.mxu0 0.0
      %5922 = vmatpush2.msra.mxu0 0.0
      %5923 = vmatprep.subr.mxu0 0.0
      %5924 = vmatpush2.msra.mxu0 0.0
      %5925 = vmatprep.subr.mxu0 0.0
      %5926 = vmatpush2.msra.mxu0 0.0
      %5927 = vmatprep.subr.mxu0 0.0
      %5928 = vmatpush2.msra.mxu0 0.0
      %5929 = vmatprep.subr.mxu0 0.0
      %5930 = vmatpush2.msra.mxu0 0.0
      %5931 = vmatprep.subr.mxu0 0.0
      %5932 = vmatpush2.msra.mxu0 0.0
      %5933 = vmatprep.subr.mxu0 0.0
      %5934 = vmatpush2.msra.mxu0 0.0
      %5935 = vmatprep.subr.mxu0 0.0
      %5936 = vmatpush2.msra.mxu0 0.0
      %5937 = vmatprep.subr.mxu0 0.0
      %5938 = vmatpush2.msra.mxu0 0.0
      %5939 = vmatprep.subr.mxu0 0.0
      %5940 = vmatpush2.msra.mxu0 0.0
      %5941 = vmatprep.subr.mxu0 0.0
      %5942 = vmatpush2.msra.mxu0 0.0
      %5943 = vmatprep.subr.mxu0 0.0
      %5944 = vmatpush2.msra.mxu0 0.0
      %5945 = vmatprep.subr.mxu0 0.0
      %5946 = vmatpush2.msra.mxu0 0.0
      %5947 = vmatprep.subr.mxu0 0.0
      %5948 = vmatpush2.msra.mxu0 0.0
      %5949 = vmatprep.subr.mxu0 0.0
      %5950 = vmatpush2.msra.mxu0 0.0
      %5951 = vmatprep.mubr.f32.mxu0 0.0
      %5952 = vmatmul.mubr.f32.gmra.mxu0 %v5885
      %v5953 = vpop.f32.mrf.mxu0
      %v5954 = vadd.f32 0.0, %v5953
      %v5955 = vpop.f32.mrf.mxu0
      %5956 = vdwg.mxu0
      %v5957 = vadd.f32 %v5876, %v5954
      %v5958 = vld [vmem:[%s4474] sm:$0xff]
      %v5960 = vsel %vm2163, %v5958, 0
      %5962 = vmatprep.subr.mxu0 0.0
      %5963 = vmatpush1.msra.mxu0 0.0
      %5964 = vmatprep.subr.mxu0 0.0
      %5965 = vmatpush1.msra.mxu0 0.0
      %5966 = vmatprep.subr.mxu0 0.0
      %5967 = vmatpush1.msra.mxu0 0.0
      %5968 = vmatprep.subr.mxu0 0.0
      %5969 = vmatpush1.msra.mxu0 0.0
      %5970 = vmatprep.subr.mxu0 0.0
      %5971 = vmatpush1.msra.mxu0 0.0
      %5972 = vmatprep.subr.mxu0 0.0
      %5973 = vmatpush1.msra.mxu0 0.0
      %5974 = vmatprep.subr.mxu0 0.0
      %5975 = vmatpush1.msra.mxu0 0.0
      %5976 = vmatprep.subr.mxu0 0.0
      %5977 = vmatpush1.msra.mxu0 0.0
      %5978 = vmatprep.subr.mxu0 0.0
      %5979 = vmatpush1.msra.mxu0 0.0
      %5980 = vmatprep.subr.mxu0 0.0
      %5981 = vmatpush1.msra.mxu0 0.0
      %5982 = vmatprep.subr.mxu0 0.0
      %5983 = vmatpush1.msra.mxu0 0.0
      %5984 = vmatprep.subr.mxu0 0.0
      %5985 = vmatpush1.msra.mxu0 0.0
      %5986 = vmatprep.subr.mxu0 0.0
      %5987 = vmatpush1.msra.mxu0 0.0
      %5988 = vmatprep.subr.mxu0 0.0
      %5989 = vmatpush1.msra.mxu0 0.0
      %5990 = vmatprep.subr.mxu0 0.0
      %5991 = vmatpush1.msra.mxu0 0.0
      %5992 = vmatprep.subr.mxu0 0.0
      %5993 = vmatpush1.msra.mxu0 %v5316
      %5994 = vmatprep.subr.mxu0 0.0
      %5995 = vmatpush2.msra.mxu0 0.0
      %5996 = vmatprep.subr.mxu0 0.0
      %5997 = vmatpush2.msra.mxu0 0.0
      %5998 = vmatprep.subr.mxu0 0.0
      %5999 = vmatpush2.msra.mxu0 0.0
      %6000 = vmatprep.subr.mxu0 0.0
      %6001 = vmatpush2.msra.mxu0 0.0
      %6002 = vmatprep.subr.mxu0 0.0
      %6003 = vmatpush2.msra.mxu0 0.0
      %6004 = vmatprep.subr.mxu0 0.0
      %6005 = vmatpush2.msra.mxu0 0.0
      %6006 = vmatprep.subr.mxu0 0.0
      %6007 = vmatpush2.msra.mxu0 0.0
      %6008 = vmatprep.subr.mxu0 0.0
      %6009 = vmatpush2.msra.mxu0 0.0
      %6010 = vmatprep.subr.mxu0 0.0
      %6011 = vmatpush2.msra.mxu0 0.0
      %6012 = vmatprep.subr.mxu0 0.0
      %6013 = vmatpush2.msra.mxu0 0.0
      %6014 = vmatprep.subr.mxu0 0.0
      %6015 = vmatpush2.msra.mxu0 0.0
      %6016 = vmatprep.subr.mxu0 0.0
      %6017 = vmatpush2.msra.mxu0 0.0
      %6018 = vmatprep.subr.mxu0 0.0
      %6019 = vmatpush2.msra.mxu0 0.0
      %6020 = vmatprep.subr.mxu0 0.0
      %6021 = vmatpush2.msra.mxu0 0.0
      %6022 = vmatprep.subr.mxu0 0.0
      %6023 = vmatpush2.msra.mxu0 0.0
      %6024 = vmatprep.subr.mxu0 0.0
      %6025 = vmatpush2.msra.mxu0 0.0
      %6026 = vmatprep.mubr.f32.mxu0 0.0
      %6027 = vmatmul.mubr.f32.gmra.mxu0 %v5960
      %v6028 = vpop.f32.mrf.mxu0
      %v6029 = vadd.f32 0.0, %v6028
      %v6030 = vpop.f32.mrf.mxu0
      %6031 = vdwg.mxu0
      %v6032 = vadd.f32 %v5957, %v6029
      %v6033 = vld [vmem:[#allocation3 + $0x10] sm:$0xff]
      %v6034 = vld [vmem:[#allocation3 + $0x18] sm:$0xff]
      %v6035 = vld [vmem:[%s4552] sm:$0xff]
      %6038 = vrot.lane.b32.xlu0 %v6033, 112
      %v6039 = vpop.permute.xlu0 %6038
      %6040 = vrot.lane.b32.xlu0 %v6034, 112
      %v6041 = vpop.permute.xlu0 %6040
      %v6042 = vsel %vm2160, %v6039, %v6041
      %v6045 = vsel %vm2163, %v6035, 0
      %6047 = vmatprep.subr.mxu0 0.0
      %6048 = vmatpush1.msra.mxu0 0.0
      %6049 = vmatprep.subr.mxu0 0.0
      %6050 = vmatpush1.msra.mxu0 0.0
      %6051 = vmatprep.subr.mxu0 0.0
      %6052 = vmatpush1.msra.mxu0 0.0
      %6053 = vmatprep.subr.mxu0 0.0
      %6054 = vmatpush1.msra.mxu0 0.0
      %6055 = vmatprep.subr.mxu0 0.0
      %6056 = vmatpush1.msra.mxu0 0.0
      %6057 = vmatprep.subr.mxu0 0.0
      %6058 = vmatpush1.msra.mxu0 0.0
      %6059 = vmatprep.subr.mxu0 0.0
      %6060 = vmatpush1.msra.mxu0 0.0
      %6061 = vmatprep.subr.mxu0 0.0
      %6062 = vmatpush1.msra.mxu0 0.0
      %6063 = vmatprep.subr.mxu0 0.0
      %6064 = vmatpush1.msra.mxu0 0.0
      %6065 = vmatprep.subr.mxu0 0.0
      %6066 = vmatpush1.msra.mxu0 0.0
      %6067 = vmatprep.subr.mxu0 0.0
      %6068 = vmatpush1.msra.mxu0 0.0
      %6069 = vmatprep.subr.mxu0 0.0
      %6070 = vmatpush1.msra.mxu0 0.0
      %6071 = vmatprep.subr.mxu0 0.0
      %6072 = vmatpush1.msra.mxu0 0.0
      %6073 = vmatprep.subr.mxu0 0.0
      %6074 = vmatpush1.msra.mxu0 0.0
      %6075 = vmatprep.subr.mxu0 0.0
      %6076 = vmatpush1.msra.mxu0 0.0
      %6077 = vmatprep.subr.mxu0 0.0
      %6078 = vmatpush1.msra.mxu0 %v6042
      %6079 = vmatprep.subr.mxu0 0.0
      %6080 = vmatpush2.msra.mxu0 0.0
      %6081 = vmatprep.subr.mxu0 0.0
      %6082 = vmatpush2.msra.mxu0 0.0
      %6083 = vmatprep.subr.mxu0 0.0
      %6084 = vmatpush2.msra.mxu0 0.0
      %6085 = vmatprep.subr.mxu0 0.0
      %6086 = vmatpush2.msra.mxu0 0.0
      %6087 = vmatprep.subr.mxu0 0.0
      %6088 = vmatpush2.msra.mxu0 0.0
      %6089 = vmatprep.subr.mxu0 0.0
      %6090 = vmatpush2.msra.mxu0 0.0
      %6091 = vmatprep.subr.mxu0 0.0
      %6092 = vmatpush2.msra.mxu0 0.0
      %6093 = vmatprep.subr.mxu0 0.0
      %6094 = vmatpush2.msra.mxu0 0.0
      %6095 = vmatprep.subr.mxu0 0.0
      %6096 = vmatpush2.msra.mxu0 0.0
      %6097 = vmatprep.subr.mxu0 0.0
      %6098 = vmatpush2.msra.mxu0 0.0
      %6099 = vmatprep.subr.mxu0 0.0
      %6100 = vmatpush2.msra.mxu0 0.0
      %6101 = vmatprep.subr.mxu0 0.0
      %6102 = vmatpush2.msra.mxu0 0.0
      %6103 = vmatprep.subr.mxu0 0.0
      %6104 = vmatpush2.msra.mxu0 0.0
      %6105 = vmatprep.subr.mxu0 0.0
      %6106 = vmatpush2.msra.mxu0 0.0
      %6107 = vmatprep.subr.mxu0 0.0
      %6108 = vmatpush2.msra.mxu0 0.0
      %6109 = vmatprep.subr.mxu0 0.0
      %6110 = vmatpush2.msra.mxu0 0.0
      %6111 = vmatprep.mubr.f32.mxu0 0.0
      %6112 = vmatmul.mubr.f32.gmra.mxu0 %v6045
      %v6113 = vpop.f32.mrf.mxu0
      %v6114 = vadd.f32 0.0, %v6113
      %v6115 = vpop.f32.mrf.mxu0
      %6116 = vdwg.mxu0
      %v6117 = vadd.f32 %v6032, %v6114
      %v6118 = vld [vmem:[%s4636] sm:$0xff]
      %6119 = vrot.lane.b32.xlu0 %v6033, 96
      %v6120 = vpop.permute.xlu0 %6119
      %6121 = vrot.lane.b32.xlu0 %v6034, 96
      %v6122 = vpop.permute.xlu0 %6121
      %v6123 = vsel %vm2316, %v6120, %v6122
      %v6126 = vsel %vm2163, %v6118, 0
      %6128 = vmatprep.subr.mxu0 0.0
      %6129 = vmatpush1.msra.mxu0 0.0
      %6130 = vmatprep.subr.mxu0 0.0
      %6131 = vmatpush1.msra.mxu0 0.0
      %6132 = vmatprep.subr.mxu0 0.0
      %6133 = vmatpush1.msra.mxu0 0.0
      %6134 = vmatprep.subr.mxu0 0.0
      %6135 = vmatpush1.msra.mxu0 0.0
      %6136 = vmatprep.subr.mxu0 0.0
      %6137 = vmatpush1.msra.mxu0 0.0
      %6138 = vmatprep.subr.mxu0 0.0
      %6139 = vmatpush1.msra.mxu0 0.0
      %6140 = vmatprep.subr.mxu0 0.0
      %6141 = vmatpush1.msra.mxu0 0.0
      %6142 = vmatprep.subr.mxu0 0.0
      %6143 = vmatpush1.msra.mxu0 0.0
      %6144 = vmatprep.subr.mxu0 0.0
      %6145 = vmatpush1.msra.mxu0 0.0
      %6146 = vmatprep.subr.mxu0 0.0
      %6147 = vmatpush1.msra.mxu0 0.0
      %6148 = vmatprep.subr.mxu0 0.0
      %6149 = vmatpush1.msra.mxu0 0.0
      %6150 = vmatprep.subr.mxu0 0.0
      %6151 = vmatpush1.msra.mxu0 0.0
      %6152 = vmatprep.subr.mxu0 0.0
      %6153 = vmatpush1.msra.mxu0 0.0
      %6154 = vmatprep.subr.mxu0 0.0
      %6155 = vmatpush1.msra.mxu0 0.0
      %6156 = vmatprep.subr.mxu0 0.0
      %6157 = vmatpush1.msra.mxu0 0.0
      %6158 = vmatprep.subr.mxu0 0.0
      %6159 = vmatpush1.msra.mxu0 %v6123
      %6160 = vmatprep.subr.mxu0 0.0
      %6161 = vmatpush2.msra.mxu0 0.0
      %6162 = vmatprep.subr.mxu0 0.0
      %6163 = vmatpush2.msra.mxu0 0.0
      %6164 = vmatprep.subr.mxu0 0.0
      %6165 = vmatpush2.msra.mxu0 0.0
      %6166 = vmatprep.subr.mxu0 0.0
      %6167 = vmatpush2.msra.mxu0 0.0
      %6168 = vmatprep.subr.mxu0 0.0
      %6169 = vmatpush2.msra.mxu0 0.0
      %6170 = vmatprep.subr.mxu0 0.0
      %6171 = vmatpush2.msra.mxu0 0.0
      %6172 = vmatprep.subr.mxu0 0.0
      %6173 = vmatpush2.msra.mxu0 0.0
      %6174 = vmatprep.subr.mxu0 0.0
      %6175 = vmatpush2.msra.mxu0 0.0
      %6176 = vmatprep.subr.mxu0 0.0
      %6177 = vmatpush2.msra.mxu0 0.0
      %6178 = vmatprep.subr.mxu0 0.0
      %6179 = vmatpush2.msra.mxu0 0.0
      %6180 = vmatprep.subr.mxu0 0.0
      %6181 = vmatpush2.msra.mxu0 0.0
      %6182 = vmatprep.subr.mxu0 0.0
      %6183 = vmatpush2.msra.mxu0 0.0
      %6184 = vmatprep.subr.mxu0 0.0
      %6185 = vmatpush2.msra.mxu0 0.0
      %6186 = vmatprep.subr.mxu0 0.0
      %6187 = vmatpush2.msra.mxu0 0.0
      %6188 = vmatprep.subr.mxu0 0.0
      %6189 = vmatpush2.msra.mxu0 0.0
      %6190 = vmatprep.subr.mxu0 0.0
      %6191 = vmatpush2.msra.mxu0 0.0
      %6192 = vmatprep.mubr.f32.mxu0 0.0
      %6193 = vmatmul.mubr.f32.gmra.mxu0 %v6126
      %v6194 = vpop.f32.mrf.mxu0
      %v6195 = vadd.f32 0.0, %v6194
      %v6196 = vpop.f32.mrf.mxu0
      %6197 = vdwg.mxu0
      %v6198 = vadd.f32 %v6117, %v6195
      %v6199 = vld [vmem:[%s4718] sm:$0xff]
      %6200 = vrot.lane.b32.xlu0 %v6033, 80
      %v6201 = vpop.permute.xlu0 %6200
      %6202 = vrot.lane.b32.xlu0 %v6034, 80
      %v6203 = vpop.permute.xlu0 %6202
      %v6204 = vsel %vm2399, %v6201, %v6203
      %v6207 = vsel %vm2163, %v6199, 0
      %6209 = vmatprep.subr.mxu0 0.0
      %6210 = vmatpush1.msra.mxu0 0.0
      %6211 = vmatprep.subr.mxu0 0.0
      %6212 = vmatpush1.msra.mxu0 0.0
      %6213 = vmatprep.subr.mxu0 0.0
      %6214 = vmatpush1.msra.mxu0 0.0
      %6215 = vmatprep.subr.mxu0 0.0
      %6216 = vmatpush1.msra.mxu0 0.0
      %6217 = vmatprep.subr.mxu0 0.0
      %6218 = vmatpush1.msra.mxu0 0.0
      %6219 = vmatprep.subr.mxu0 0.0
      %6220 = vmatpush1.msra.mxu0 0.0
      %6221 = vmatprep.subr.mxu0 0.0
      %6222 = vmatpush1.msra.mxu0 0.0
      %6223 = vmatprep.subr.mxu0 0.0
      %6224 = vmatpush1.msra.mxu0 0.0
      %6225 = vmatprep.subr.mxu0 0.0
      %6226 = vmatpush1.msra.mxu0 0.0
      %6227 = vmatprep.subr.mxu0 0.0
      %6228 = vmatpush1.msra.mxu0 0.0
      %6229 = vmatprep.subr.mxu0 0.0
      %6230 = vmatpush1.msra.mxu0 0.0
      %6231 = vmatprep.subr.mxu0 0.0
      %6232 = vmatpush1.msra.mxu0 0.0
      %6233 = vmatprep.subr.mxu0 0.0
      %6234 = vmatpush1.msra.mxu0 0.0
      %6235 = vmatprep.subr.mxu0 0.0
      %6236 = vmatpush1.msra.mxu0 0.0
      %6237 = vmatprep.subr.mxu0 0.0
      %6238 = vmatpush1.msra.mxu0 0.0
      %6239 = vmatprep.subr.mxu0 0.0
      %6240 = vmatpush1.msra.mxu0 %v6204
      %6241 = vmatprep.subr.mxu0 0.0
      %6242 = vmatpush2.msra.mxu0 0.0
      %6243 = vmatprep.subr.mxu0 0.0
      %6244 = vmatpush2.msra.mxu0 0.0
      %6245 = vmatprep.subr.mxu0 0.0
      %6246 = vmatpush2.msra.mxu0 0.0
      %6247 = vmatprep.subr.mxu0 0.0
      %6248 = vmatpush2.msra.mxu0 0.0
      %6249 = vmatprep.subr.mxu0 0.0
      %6250 = vmatpush2.msra.mxu0 0.0
      %6251 = vmatprep.subr.mxu0 0.0
      %6252 = vmatpush2.msra.mxu0 0.0
      %6253 = vmatprep.subr.mxu0 0.0
      %6254 = vmatpush2.msra.mxu0 0.0
      %6255 = vmatprep.subr.mxu0 0.0
      %6256 = vmatpush2.msra.mxu0 0.0
      %6257 = vmatprep.subr.mxu0 0.0
      %6258 = vmatpush2.msra.mxu0 0.0
      %6259 = vmatprep.subr.mxu0 0.0
      %6260 = vmatpush2.msra.mxu0 0.0
      %6261 = vmatprep.subr.mxu0 0.0
      %6262 = vmatpush2.msra.mxu0 0.0
      %6263 = vmatprep.subr.mxu0 0.0
      %6264 = vmatpush2.msra.mxu0 0.0
      %6265 = vmatprep.subr.mxu0 0.0
      %6266 = vmatpush2.msra.mxu0 0.0
      %6267 = vmatprep.subr.mxu0 0.0
      %6268 = vmatpush2.msra.mxu0 0.0
      %6269 = vmatprep.subr.mxu0 0.0
      %6270 = vmatpush2.msra.mxu0 0.0
      %6271 = vmatprep.subr.mxu0 0.0
      %6272 = vmatpush2.msra.mxu0 0.0
      %6273 = vmatprep.mubr.f32.mxu0 0.0
      %6274 = vmatmul.mubr.f32.gmra.mxu0 %v6207
      %v6275 = vpop.f32.mrf.mxu0
      %v6276 = vadd.f32 0.0, %v6275
      %v6277 = vpop.f32.mrf.mxu0
      %6278 = vdwg.mxu0
      %v6279 = vadd.f32 %v6198, %v6276
      %v6280 = vld [vmem:[%s4800] sm:$0xff]
      %6281 = vrot.lane.b32.xlu0 %v6033, 64
      %v6282 = vpop.permute.xlu0 %6281
      %6283 = vrot.lane.b32.xlu0 %v6034, 64
      %v6284 = vpop.permute.xlu0 %6283
      %v6285 = vsel %vm1155, %v6282, %v6284
      %v6288 = vsel %vm2163, %v6280, 0
      %6290 = vmatprep.subr.mxu0 0.0
      %6291 = vmatpush1.msra.mxu0 0.0
      %6292 = vmatprep.subr.mxu0 0.0
      %6293 = vmatpush1.msra.mxu0 0.0
      %6294 = vmatprep.subr.mxu0 0.0
      %6295 = vmatpush1.msra.mxu0 0.0
      %6296 = vmatprep.subr.mxu0 0.0
      %6297 = vmatpush1.msra.mxu0 0.0
      %6298 = vmatprep.subr.mxu0 0.0
      %6299 = vmatpush1.msra.mxu0 0.0
      %6300 = vmatprep.subr.mxu0 0.0
      %6301 = vmatpush1.msra.mxu0 0.0
      %6302 = vmatprep.subr.mxu0 0.0
      %6303 = vmatpush1.msra.mxu0 0.0
      %6304 = vmatprep.subr.mxu0 0.0
      %6305 = vmatpush1.msra.mxu0 0.0
      %6306 = vmatprep.subr.mxu0 0.0
      %6307 = vmatpush1.msra.mxu0 0.0
      %6308 = vmatprep.subr.mxu0 0.0
      %6309 = vmatpush1.msra.mxu0 0.0
      %6310 = vmatprep.subr.mxu0 0.0
      %6311 = vmatpush1.msra.mxu0 0.0
      %6312 = vmatprep.subr.mxu0 0.0
      %6313 = vmatpush1.msra.mxu0 0.0
      %6314 = vmatprep.subr.mxu0 0.0
      %6315 = vmatpush1.msra.mxu0 0.0
      %6316 = vmatprep.subr.mxu0 0.0
      %6317 = vmatpush1.msra.mxu0 0.0
      %6318 = vmatprep.subr.mxu0 0.0
      %6319 = vmatpush1.msra.mxu0 0.0
      %6320 = vmatprep.subr.mxu0 0.0
      %6321 = vmatpush1.msra.mxu0 %v6285
      %6322 = vmatprep.subr.mxu0 0.0
      %6323 = vmatpush2.msra.mxu0 0.0
      %6324 = vmatprep.subr.mxu0 0.0
      %6325 = vmatpush2.msra.mxu0 0.0
      %6326 = vmatprep.subr.mxu0 0.0
      %6327 = vmatpush2.msra.mxu0 0.0
      %6328 = vmatprep.subr.mxu0 0.0
      %6329 = vmatpush2.msra.mxu0 0.0
      %6330 = vmatprep.subr.mxu0 0.0
      %6331 = vmatpush2.msra.mxu0 0.0
      %6332 = vmatprep.subr.mxu0 0.0
      %6333 = vmatpush2.msra.mxu0 0.0
      %6334 = vmatprep.subr.mxu0 0.0
      %6335 = vmatpush2.msra.mxu0 0.0
      %6336 = vmatprep.subr.mxu0 0.0
      %6337 = vmatpush2.msra.mxu0 0.0
      %6338 = vmatprep.subr.mxu0 0.0
      %6339 = vmatpush2.msra.mxu0 0.0
      %6340 = vmatprep.subr.mxu0 0.0
      %6341 = vmatpush2.msra.mxu0 0.0
      %6342 = vmatprep.subr.mxu0 0.0
      %6343 = vmatpush2.msra.mxu0 0.0
      %6344 = vmatprep.subr.mxu0 0.0
      %6345 = vmatpush2.msra.mxu0 0.0
      %6346 = vmatprep.subr.mxu0 0.0
      %6347 = vmatpush2.msra.mxu0 0.0
      %6348 = vmatprep.subr.mxu0 0.0
      %6349 = vmatpush2.msra.mxu0 0.0
      %6350 = vmatprep.subr.mxu0 0.0
      %6351 = vmatpush2.msra.mxu0 0.0
      %6352 = vmatprep.subr.mxu0 0.0
      %6353 = vmatpush2.msra.mxu0 0.0
      %6354 = vmatprep.mubr.f32.mxu0 0.0
      %6355 = vmatmul.mubr.f32.gmra.mxu0 %v6288
      %v6356 = vpop.f32.mrf.mxu0
      %v6357 = vadd.f32 0.0, %v6356
      %v6358 = vpop.f32.mrf.mxu0
      %6359 = vdwg.mxu0
      %v6360 = vadd.f32 %v6279, %v6357
      %v6361 = vld [vmem:[%s4882] sm:$0xff]
      %6362 = vrot.lane.b32.xlu0 %v6033, 48
      %v6363 = vpop.permute.xlu0 %6362
      %6364 = vrot.lane.b32.xlu0 %v6034, 48
      %v6365 = vpop.permute.xlu0 %6364
      %v6366 = vsel %vm2564, %v6363, %v6365
      %v6369 = vsel %vm2163, %v6361, 0
      %6371 = vmatprep.subr.mxu0 0.0
      %6372 = vmatpush1.msra.mxu0 0.0
      %6373 = vmatprep.subr.mxu0 0.0
      %6374 = vmatpush1.msra.mxu0 0.0
      %6375 = vmatprep.subr.mxu0 0.0
      %6376 = vmatpush1.msra.mxu0 0.0
      %6377 = vmatprep.subr.mxu0 0.0
      %6378 = vmatpush1.msra.mxu0 0.0
      %6379 = vmatprep.subr.mxu0 0.0
      %6380 = vmatpush1.msra.mxu0 0.0
      %6381 = vmatprep.subr.mxu0 0.0
      %6382 = vmatpush1.msra.mxu0 0.0
      %6383 = vmatprep.subr.mxu0 0.0
      %6384 = vmatpush1.msra.mxu0 0.0
      %6385 = vmatprep.subr.mxu0 0.0
      %6386 = vmatpush1.msra.mxu0 0.0
      %6387 = vmatprep.subr.mxu0 0.0
      %6388 = vmatpush1.msra.mxu0 0.0
      %6389 = vmatprep.subr.mxu0 0.0
      %6390 = vmatpush1.msra.mxu0 0.0
      %6391 = vmatprep.subr.mxu0 0.0
      %6392 = vmatpush1.msra.mxu0 0.0
      %6393 = vmatprep.subr.mxu0 0.0
      %6394 = vmatpush1.msra.mxu0 0.0
      %6395 = vmatprep.subr.mxu0 0.0
      %6396 = vmatpush1.msra.mxu0 0.0
      %6397 = vmatprep.subr.mxu0 0.0
      %6398 = vmatpush1.msra.mxu0 0.0
      %6399 = vmatprep.subr.mxu0 0.0
      %6400 = vmatpush1.msra.mxu0 0.0
      %6401 = vmatprep.subr.mxu0 0.0
      %6402 = vmatpush1.msra.mxu0 %v6366
      %6403 = vmatprep.subr.mxu0 0.0
      %6404 = vmatpush2.msra.mxu0 0.0
      %6405 = vmatprep.subr.mxu0 0.0
      %6406 = vmatpush2.msra.mxu0 0.0
      %6407 = vmatprep.subr.mxu0 0.0
      %6408 = vmatpush2.msra.mxu0 0.0
      %6409 = vmatprep.subr.mxu0 0.0
      %6410 = vmatpush2.msra.mxu0 0.0
      %6411 = vmatprep.subr.mxu0 0.0
      %6412 = vmatpush2.msra.mxu0 0.0
      %6413 = vmatprep.subr.mxu0 0.0
      %6414 = vmatpush2.msra.mxu0 0.0
      %6415 = vmatprep.subr.mxu0 0.0
      %6416 = vmatpush2.msra.mxu0 0.0
      %6417 = vmatprep.subr.mxu0 0.0
      %6418 = vmatpush2.msra.mxu0 0.0
      %6419 = vmatprep.subr.mxu0 0.0
      %6420 = vmatpush2.msra.mxu0 0.0
      %6421 = vmatprep.subr.mxu0 0.0
      %6422 = vmatpush2.msra.mxu0 0.0
      %6423 = vmatprep.subr.mxu0 0.0
      %6424 = vmatpush2.msra.mxu0 0.0
      %6425 = vmatprep.subr.mxu0 0.0
      %6426 = vmatpush2.msra.mxu0 0.0
      %6427 = vmatprep.subr.mxu0 0.0
      %6428 = vmatpush2.msra.mxu0 0.0
      %6429 = vmatprep.subr.mxu0 0.0
      %6430 = vmatpush2.msra.mxu0 0.0
      %6431 = vmatprep.subr.mxu0 0.0
      %6432 = vmatpush2.msra.mxu0 0.0
      %6433 = vmatprep.subr.mxu0 0.0
      %6434 = vmatpush2.msra.mxu0 0.0
      %6435 = vmatprep.mubr.f32.mxu0 0.0
      %6436 = vmatmul.mubr.f32.gmra.mxu0 %v6369
      %v6437 = vpop.f32.mrf.mxu0
      %v6438 = vadd.f32 0.0, %v6437
      %v6439 = vpop.f32.mrf.mxu0
      %6440 = vdwg.mxu0
      %v6441 = vadd.f32 %v6360, %v6438
      %v6442 = vld [vmem:[%s4964] sm:$0xff]
      %6443 = vrot.lane.b32.xlu0 %v6033, 32
      %v6444 = vpop.permute.xlu0 %6443
      %6445 = vrot.lane.b32.xlu0 %v6034, 32
      %v6446 = vpop.permute.xlu0 %6445
      %v6447 = vsel %vm2647, %v6444, %v6446
      %v6450 = vsel %vm2163, %v6442, 0
      %6452 = vmatprep.subr.mxu0 0.0
      %6453 = vmatpush1.msra.mxu0 0.0
      %6454 = vmatprep.subr.mxu0 0.0
      %6455 = vmatpush1.msra.mxu0 0.0
      %6456 = vmatprep.subr.mxu0 0.0
      %6457 = vmatpush1.msra.mxu0 0.0
      %6458 = vmatprep.subr.mxu0 0.0
      %6459 = vmatpush1.msra.mxu0 0.0
      %6460 = vmatprep.subr.mxu0 0.0
      %6461 = vmatpush1.msra.mxu0 0.0
      %6462 = vmatprep.subr.mxu0 0.0
      %6463 = vmatpush1.msra.mxu0 0.0
      %6464 = vmatprep.subr.mxu0 0.0
      %6465 = vmatpush1.msra.mxu0 0.0
      %6466 = vmatprep.subr.mxu0 0.0
      %6467 = vmatpush1.msra.mxu0 0.0
      %6468 = vmatprep.subr.mxu0 0.0
      %6469 = vmatpush1.msra.mxu0 0.0
      %6470 = vmatprep.subr.mxu0 0.0
      %6471 = vmatpush1.msra.mxu0 0.0
      %6472 = vmatprep.subr.mxu0 0.0
      %6473 = vmatpush1.msra.mxu0 0.0
      %6474 = vmatprep.subr.mxu0 0.0
      %6475 = vmatpush1.msra.mxu0 0.0
      %6476 = vmatprep.subr.mxu0 0.0
      %6477 = vmatpush1.msra.mxu0 0.0
      %6478 = vmatprep.subr.mxu0 0.0
      %6479 = vmatpush1.msra.mxu0 0.0
      %6480 = vmatprep.subr.mxu0 0.0
      %6481 = vmatpush1.msra.mxu0 0.0
      %6482 = vmatprep.subr.mxu0 0.0
      %6483 = vmatpush1.msra.mxu0 %v6447
      %6484 = vmatprep.subr.mxu0 0.0
      %6485 = vmatpush2.msra.mxu0 0.0
      %6486 = vmatprep.subr.mxu0 0.0
      %6487 = vmatpush2.msra.mxu0 0.0
      %6488 = vmatprep.subr.mxu0 0.0
      %6489 = vmatpush2.msra.mxu0 0.0
      %6490 = vmatprep.subr.mxu0 0.0
      %6491 = vmatpush2.msra.mxu0 0.0
      %6492 = vmatprep.subr.mxu0 0.0
      %6493 = vmatpush2.msra.mxu0 0.0
      %6494 = vmatprep.subr.mxu0 0.0
      %6495 = vmatpush2.msra.mxu0 0.0
      %6496 = vmatprep.subr.mxu0 0.0
      %6497 = vmatpush2.msra.mxu0 0.0
      %6498 = vmatprep.subr.mxu0 0.0
      %6499 = vmatpush2.msra.mxu0 0.0
      %6500 = vmatprep.subr.mxu0 0.0
      %6501 = vmatpush2.msra.mxu0 0.0
      %6502 = vmatprep.subr.mxu0 0.0
      %6503 = vmatpush2.msra.mxu0 0.0
      %6504 = vmatprep.subr.mxu0 0.0
      %6505 = vmatpush2.msra.mxu0 0.0
      %6506 = vmatprep.subr.mxu0 0.0
      %6507 = vmatpush2.msra.mxu0 0.0
      %6508 = vmatprep.subr.mxu0 0.0
      %6509 = vmatpush2.msra.mxu0 0.0
      %6510 = vmatprep.subr.mxu0 0.0
      %6511 = vmatpush2.msra.mxu0 0.0
      %6512 = vmatprep.subr.mxu0 0.0
      %6513 = vmatpush2.msra.mxu0 0.0
      %6514 = vmatprep.subr.mxu0 0.0
      %6515 = vmatpush2.msra.mxu0 0.0
      %6516 = vmatprep.mubr.f32.mxu0 0.0
      %6517 = vmatmul.mubr.f32.gmra.mxu0 %v6450
      %v6518 = vpop.f32.mrf.mxu0
      %v6519 = vadd.f32 0.0, %v6518
      %v6520 = vpop.f32.mrf.mxu0
      %6521 = vdwg.mxu0
      %v6522 = vadd.f32 %v6441, %v6519
      %v6523 = vld [vmem:[%s5046] sm:$0xff]
      %6524 = vrot.lane.b32.xlu0 %v6033, 16
      %v6525 = vpop.permute.xlu0 %6524
      %6526 = vrot.lane.b32.xlu0 %v6034, 16
      %v6527 = vpop.permute.xlu0 %6526
      %v6528 = vsel %vm2730, %v6525, %v6527
      %v6531 = vsel %vm2163, %v6523, 0
      %6533 = vmatprep.subr.mxu0 0.0
      %6534 = vmatpush1.msra.mxu0 0.0
      %6535 = vmatprep.subr.mxu0 0.0
      %6536 = vmatpush1.msra.mxu0 0.0
      %6537 = vmatprep.subr.mxu0 0.0
      %6538 = vmatpush1.msra.mxu0 0.0
      %6539 = vmatprep.subr.mxu0 0.0
      %6540 = vmatpush1.msra.mxu0 0.0
      %6541 = vmatprep.subr.mxu0 0.0
      %6542 = vmatpush1.msra.mxu0 0.0
      %6543 = vmatprep.subr.mxu0 0.0
      %6544 = vmatpush1.msra.mxu0 0.0
      %6545 = vmatprep.subr.mxu0 0.0
      %6546 = vmatpush1.msra.mxu0 0.0
      %6547 = vmatprep.subr.mxu0 0.0
      %6548 = vmatpush1.msra.mxu0 0.0
      %6549 = vmatprep.subr.mxu0 0.0
      %6550 = vmatpush1.msra.mxu0 0.0
      %6551 = vmatprep.subr.mxu0 0.0
      %6552 = vmatpush1.msra.mxu0 0.0
      %6553 = vmatprep.subr.mxu0 0.0
      %6554 = vmatpush1.msra.mxu0 0.0
      %6555 = vmatprep.subr.mxu0 0.0
      %6556 = vmatpush1.msra.mxu0 0.0
      %6557 = vmatprep.subr.mxu0 0.0
      %6558 = vmatpush1.msra.mxu0 0.0
      %6559 = vmatprep.subr.mxu0 0.0
      %6560 = vmatpush1.msra.mxu0 0.0
      %6561 = vmatprep.subr.mxu0 0.0
      %6562 = vmatpush1.msra.mxu0 0.0
      %6563 = vmatprep.subr.mxu0 0.0
      %6564 = vmatpush1.msra.mxu0 %v6528
      %6565 = vmatprep.subr.mxu0 0.0
      %6566 = vmatpush2.msra.mxu0 0.0
      %6567 = vmatprep.subr.mxu0 0.0
      %6568 = vmatpush2.msra.mxu0 0.0
      %6569 = vmatprep.subr.mxu0 0.0
      %6570 = vmatpush2.msra.mxu0 0.0
      %6571 = vmatprep.subr.mxu0 0.0
      %6572 = vmatpush2.msra.mxu0 0.0
      %6573 = vmatprep.subr.mxu0 0.0
      %6574 = vmatpush2.msra.mxu0 0.0
      %6575 = vmatprep.subr.mxu0 0.0
      %6576 = vmatpush2.msra.mxu0 0.0
      %6577 = vmatprep.subr.mxu0 0.0
      %6578 = vmatpush2.msra.mxu0 0.0
      %6579 = vmatprep.subr.mxu0 0.0
      %6580 = vmatpush2.msra.mxu0 0.0
      %6581 = vmatprep.subr.mxu0 0.0
      %6582 = vmatpush2.msra.mxu0 0.0
      %6583 = vmatprep.subr.mxu0 0.0
      %6584 = vmatpush2.msra.mxu0 0.0
      %6585 = vmatprep.subr.mxu0 0.0
      %6586 = vmatpush2.msra.mxu0 0.0
      %6587 = vmatprep.subr.mxu0 0.0
      %6588 = vmatpush2.msra.mxu0 0.0
      %6589 = vmatprep.subr.mxu0 0.0
      %6590 = vmatpush2.msra.mxu0 0.0
      %6591 = vmatprep.subr.mxu0 0.0
      %6592 = vmatpush2.msra.mxu0 0.0
      %6593 = vmatprep.subr.mxu0 0.0
      %6594 = vmatpush2.msra.mxu0 0.0
      %6595 = vmatprep.subr.mxu0 0.0
      %6596 = vmatpush2.msra.mxu0 0.0
      %6597 = vmatprep.mubr.f32.mxu0 0.0
      %6598 = vmatmul.mubr.f32.gmra.mxu0 %v6531
      %v6599 = vpop.f32.mrf.mxu0
      %v6600 = vadd.f32 0.0, %v6599
      %v6601 = vpop.f32.mrf.mxu0
      %6602 = vdwg.mxu0
      %v6603 = vadd.f32 %v6522, %v6600
      %v6604 = vld [vmem:[%s5128] sm:$0xff]
      %v6606 = vsel %vm2163, %v6604, 0
      %6608 = vmatprep.subr.mxu0 0.0
      %6609 = vmatpush1.msra.mxu0 0.0
      %6610 = vmatprep.subr.mxu0 0.0
      %6611 = vmatpush1.msra.mxu0 0.0
      %6612 = vmatprep.subr.mxu0 0.0
      %6613 = vmatpush1.msra.mxu0 0.0
      %6614 = vmatprep.subr.mxu0 0.0
      %6615 = vmatpush1.msra.mxu0 0.0
      %6616 = vmatprep.subr.mxu0 0.0
      %6617 = vmatpush1.msra.mxu0 0.0
      %6618 = vmatprep.subr.mxu0 0.0
      %6619 = vmatpush1.msra.mxu0 0.0
      %6620 = vmatprep.subr.mxu0 0.0
      %6621 = vmatpush1.msra.mxu0 0.0
      %6622 = vmatprep.subr.mxu0 0.0
      %6623 = vmatpush1.msra.mxu0 0.0
      %6624 = vmatprep.subr.mxu0 0.0
      %6625 = vmatpush1.msra.mxu0 0.0
      %6626 = vmatprep.subr.mxu0 0.0
      %6627 = vmatpush1.msra.mxu0 0.0
      %6628 = vmatprep.subr.mxu0 0.0
      %6629 = vmatpush1.msra.mxu0 0.0
      %6630 = vmatprep.subr.mxu0 0.0
      %6631 = vmatpush1.msra.mxu0 0.0
      %6632 = vmatprep.subr.mxu0 0.0
      %6633 = vmatpush1.msra.mxu0 0.0
      %6634 = vmatprep.subr.mxu0 0.0
      %6635 = vmatpush1.msra.mxu0 0.0
      %6636 = vmatprep.subr.mxu0 0.0
      %6637 = vmatpush1.msra.mxu0 0.0
      %6638 = vmatprep.subr.mxu0 0.0
      %6639 = vmatpush1.msra.mxu0 %v6034
      %6640 = vmatprep.subr.mxu0 0.0
      %6641 = vmatpush2.msra.mxu0 0.0
      %6642 = vmatprep.subr.mxu0 0.0
      %6643 = vmatpush2.msra.mxu0 0.0
      %6644 = vmatprep.subr.mxu0 0.0
      %6645 = vmatpush2.msra.mxu0 0.0
      %6646 = vmatprep.subr.mxu0 0.0
      %6647 = vmatpush2.msra.mxu0 0.0
      %6648 = vmatprep.subr.mxu0 0.0
      %6649 = vmatpush2.msra.mxu0 0.0
      %6650 = vmatprep.subr.mxu0 0.0
      %6651 = vmatpush2.msra.mxu0 0.0
      %6652 = vmatprep.subr.mxu0 0.0
      %6653 = vmatpush2.msra.mxu0 0.0
      %6654 = vmatprep.subr.mxu0 0.0
      %6655 = vmatpush2.msra.mxu0 0.0
      %6656 = vmatprep.subr.mxu0 0.0
      %6657 = vmatpush2.msra.mxu0 0.0
      %6658 = vmatprep.subr.mxu0 0.0
      %6659 = vmatpush2.msra.mxu0 0.0
      %6660 = vmatprep.subr.mxu0 0.0
      %6661 = vmatpush2.msra.mxu0 0.0
      %6662 = vmatprep.subr.mxu0 0.0
      %6663 = vmatpush2.msra.mxu0 0.0
      %6664 = vmatprep.subr.mxu0 0.0
      %6665 = vmatpush2.msra.mxu0 0.0
      %6666 = vmatprep.subr.mxu0 0.0
      %6667 = vmatpush2.msra.mxu0 0.0
      %6668 = vmatprep.subr.mxu0 0.0
      %6669 = vmatpush2.msra.mxu0 0.0
      %6670 = vmatprep.subr.mxu0 0.0
      %6671 = vmatpush2.msra.mxu0 0.0
      %6672 = vmatprep.mubr.f32.mxu0 0.0
      %6673 = vmatmul.mubr.f32.gmra.mxu0 %v6606
      %v6674 = vpop.f32.mrf.mxu0
      %v6675 = vadd.f32 0.0, %v6674
      %v6676 = vpop.f32.mrf.mxu0
      %6677 = vdwg.mxu0
      %v6678 = vadd.f32 %v6603, %v6675
      %v6679 = vld [vmem:[%s15] sm:$0xff]
      %6681 = vset.pattern.permute.xlu0 0
      %6682 = vperm.xlu0 %6681, %v6679
      %v6683 = vpop.permute.xlu0 %6682
      %v6685 = vmul.f32 %v6678, %v6683
      %v6686 = vld [vmem:[%s16] sm:$0xff]
      %6688 = vset.pattern.permute.xlu0 0
      %6689 = vperm.xlu0 %6688, %v6686
      %v6690 = vpop.permute.xlu0 %6689
      %v6692 = vadd.f32 %v6685, %v6690
      %v6693 = vmax.f32 %v6692, 0.0
      %v6694 = vld [vmem:[%s624 + $0x4] sm:$0xf]
      %v6695 = vld [vmem:[%s17] sm:$0xff]
      %v6697 = vsel %vm901, %v6695, 0
      %v6700 = vsel %vm905, %v6694, 0
      %6702 = vmatprep.subr.mxu0 0.0
      %6703 = vmatpush1.msra.mxu0 0.0
      %6704 = vmatprep.subr.mxu0 0.0
      %6705 = vmatpush1.msra.mxu0 0.0
      %6706 = vmatprep.subr.mxu0 0.0
      %6707 = vmatpush1.msra.mxu0 0.0
      %6708 = vmatprep.subr.mxu0 0.0
      %6709 = vmatpush1.msra.mxu0 0.0
      %6710 = vmatprep.subr.mxu0 0.0
      %6711 = vmatpush1.msra.mxu0 0.0
      %6712 = vmatprep.subr.mxu0 0.0
      %6713 = vmatpush1.msra.mxu0 0.0
      %6714 = vmatprep.subr.mxu0 0.0
      %6715 = vmatpush1.msra.mxu0 0.0
      %6716 = vmatprep.subr.mxu0 0.0
      %6717 = vmatpush1.msra.mxu0 0.0
      %6718 = vmatprep.subr.mxu0 0.0
      %6719 = vmatpush1.msra.mxu0 0.0
      %6720 = vmatprep.subr.mxu0 0.0
      %6721 = vmatpush1.msra.mxu0 0.0
      %6722 = vmatprep.subr.mxu0 0.0
      %6723 = vmatpush1.msra.mxu0 0.0
      %6724 = vmatprep.subr.mxu0 0.0
      %6725 = vmatpush1.msra.mxu0 0.0
      %6726 = vmatprep.subr.mxu0 0.0
      %6727 = vmatpush1.msra.mxu0 0.0
      %6728 = vmatprep.subr.mxu0 0.0
      %6729 = vmatpush1.msra.mxu0 0.0
      %6730 = vmatprep.subr.mxu0 0.0
      %6731 = vmatpush1.msra.mxu0 0.0
      %6732 = vmatprep.subr.mxu0 0.0
      %6733 = vmatpush1.msra.mxu0 %v6700
      %6734 = vmatprep.subr.mxu0 0.0
      %6735 = vmatpush2.msra.mxu0 0.0
      %6736 = vmatprep.subr.mxu0 0.0
      %6737 = vmatpush2.msra.mxu0 0.0
      %6738 = vmatprep.subr.mxu0 0.0
      %6739 = vmatpush2.msra.mxu0 0.0
      %6740 = vmatprep.subr.mxu0 0.0
      %6741 = vmatpush2.msra.mxu0 0.0
      %6742 = vmatprep.subr.mxu0 0.0
      %6743 = vmatpush2.msra.mxu0 0.0
      %6744 = vmatprep.subr.mxu0 0.0
      %6745 = vmatpush2.msra.mxu0 0.0
      %6746 = vmatprep.subr.mxu0 0.0
      %6747 = vmatpush2.msra.mxu0 0.0
      %6748 = vmatprep.subr.mxu0 0.0
      %6749 = vmatpush2.msra.mxu0 0.0
      %6750 = vmatprep.subr.mxu0 0.0
      %6751 = vmatpush2.msra.mxu0 0.0
      %6752 = vmatprep.subr.mxu0 0.0
      %6753 = vmatpush2.msra.mxu0 0.0
      %6754 = vmatprep.subr.mxu0 0.0
      %6755 = vmatpush2.msra.mxu0 0.0
      %6756 = vmatprep.subr.mxu0 0.0
      %6757 = vmatpush2.msra.mxu0 0.0
      %6758 = vmatprep.subr.mxu0 0.0
      %6759 = vmatpush2.msra.mxu0 0.0
      %6760 = vmatprep.subr.mxu0 0.0
      %6761 = vmatpush2.msra.mxu0 0.0
      %6762 = vmatprep.subr.mxu0 0.0
      %6763 = vmatpush2.msra.mxu0 0.0
      %6764 = vmatprep.subr.mxu0 0.0
      %6765 = vmatpush2.msra.mxu0 0.0
      %6766 = vmatprep.mubr.f32.mxu0 0.0
      %6767 = vmatmul.mubr.f32.gmra.mxu0 %v6697
      %v6768 = vpop.f32.mrf.mxu0
      %v6769 = vadd.f32 0.0, %v6768
      %v6770 = vpop.f32.mrf.mxu0
      %6771 = vdwg.mxu0
      %v6772 = vld [vmem:[%s18] sm:$0xff]
      %6774 = vset.pattern.permute.xlu0 0
      %6775 = vperm.xlu0 %6774, %v6772
      %v6776 = vpop.permute.xlu0 %6775
      %v6778 = vmul.f32 %v6769, %v6776
      %v6779 = vld [vmem:[%s19] sm:$0xff]
      %6781 = vset.pattern.permute.xlu0 0
      %6782 = vperm.xlu0 %6781, %v6779
      %v6783 = vpop.permute.xlu0 %6782
      %v6785 = vadd.f32 %v6778, %v6783
      %v6786 = vmax.f32 %v6785, 0.0
      %v6787 = vadd.f32 %v6693, %v6786
      %6788 = vst [vmem:[%s629 + $0x18] sm:$0xff] %v6787
      %p6789 = scmp.lt.s32.totalorder %s31, 1
      %s6790 = scalar_select %p6789, %s31, 1
      %s6791 = smul.addr %s6790, 4
      %s6792 = smul.addr %s6791, 8
      %s6793 = scalar_lea.vmem %s20, %s6792
      // Predicated region
      $region101: #{_lambda_.1} parent=99 // pred_check
        %p6794 = pneg %p474
      $region102: #{_lambda_.1} parent=99 // pred_check_branch
        %6796 = sbr.rel (%p6794) target = $region104
      $region103: #{_lambda_.1} parent=99 // pred_region
        _
      $region104: #{_lambda_.1} parent=99 // pred_fallthru
        _
    $region100: #{_lambda_.1} parent=5 // pred_fallthru
      _
    %p6797 = scmp.le.s32.totalorder 2, %s26
    // Predicated region
    $region105: #{_lambda_.1} parent=5 // pred_check
      %p6798 = pneg %p6797
    $region106: #{_lambda_.1} parent=5 // pred_check_branch
      %6800 = sbr.rel (%p6798) target = $region108
    $region107: #{_lambda_.1} parent=5 // pred_region
      %s6801 = ssub.s32 %s26, 2
      // Predicated region
      $region109: #{_lambda_.1} parent=107 // pred_check
        %p6802 = pneg %p480
      $region110: #{_lambda_.1} parent=107 // pred_check_branch
        %6804 = sbr.rel (%p6802) target = $region112
      $region111: #{_lambda_.1} parent=107 // pred_region
        %p6805 = scmp.lt.s32.totalorder %s32, 1
        %s6806 = scalar_select %p6805, %s32, 1
        %s6807 = smul.addr %s6806, 4
        %s6808 = smul.addr %s6807, 8
        %s6809 = scalar_lea.vmem %s20, %s6808
      $region112: #{_lambda_.1} parent=107 // pred_fallthru
        _
    $region108: #{_lambda_.1} parent=5 // pred_fallthru
      _
  $region6: #{_lambda_.1} parent=0 // loop_footer
    %s30 = sadd.s32 1, %s26
  $region7: #{_lambda_.1} parent=0 // loop_footer_branch
    %25 = sbr.rel target = $region3
  $region8: #{_lambda_.1} parent=0 // loop_exit
    _

</llo_original>
